<compile_context>
chip_gen: v7x
topology: tpu7x:2x2x1
jax: 0.10.0
libtpu: 0.0.40
codegen_flags: <defaults>
</compile_context>

<pallas_src>
import math

import jax
import jax.numpy as jnp
from jax.experimental import pallas as pl
from jax.experimental.pallas import tpu as pltpu


# ---------------------------------------------------------------------------
# Fused kernel: the whole C3_IFResNet forward for one image per grid step.
# Activations are (C, H*W) float32, channels on sublanes, spatial on lanes.
# ---------------------------------------------------------------------------
def _build_kernel(treedef, n_leaves, H, W):
    HW = H * W

    def kernel(x_ref, *refs):
        p = jax.tree_util.tree_unflatten(treedef, refs[:n_leaves])
        o_ref = refs[n_leaves]

        # -- boundary masks for the 9 taps of a 3x3 'same' conv (built once) --
        lane = jax.lax.broadcasted_iota(jnp.int32, (1, HW), 1)
        if (W & (W - 1)) == 0:                 # power-of-two fast path (bit ops only)
            xpos = lane & (W - 1)
        else:
            xpos = lane % W                    # TODO(synk): relies on vector int rem lowering
        masks = []
        for dy in range(3):
            for dx in range(3):
                ex, ey = dx - 1, dy - 1
                conds = []
                if ex < 0:
                    conds.append(xpos >= -ex)
                elif ex > 0:
                    conds.append(xpos < W - ex)
                if ey < 0:
                    conds.append(lane >= (-ey) * W)
                elif ey > 0:
                    conds.append(lane < (H - ey) * W)
                m = None
                for c in conds:
                    m = c if m is None else m & c
                masks.append(m)                # None == all-valid (centre tap)

        def taps(act):
            """9 shifted (+ border-zeroed) copies of act (Cin, H*W), one per 3x3 tap."""
            out = []
            for dy in range(3):
                for dx in range(3):
                    off = (dy - 1) * W + (dx - 1)
                    r = act if off == 0 else pltpu.roll(act, (-off) % HW, 1)
                    m = masks[dy * 3 + dx]
                    out.append(r if m is None else jnp.where(m, r, 0.0))
            return out

        def silu(y):
            return y * jax.nn.sigmoid(y)

        def conv1x1(parts, w_ref, b_ref):
            # parts: list of (Cin_j, HW); w_ref: (P, Cout, Cin_j); b_ref: (Cout, 1)
            acc = None
            for j, a in enumerate(parts):
                d = jnp.dot(w_ref[j], a, preferred_element_type=jnp.float32)
                acc = d if acc is None else acc + d
            return silu(acc + b_ref[...])

        def conv3x3(parts_taps, w_ref, b_ref):
            # parts_taps: list of taps()-lists; w_ref: (P, 9, Cout, Cin_j)
            acc = None
            for j, tp in enumerate(parts_taps):
                for t in range(9):
                    d = jnp.dot(w_ref[j, t], tp[t],
                                preferred_element_type=jnp.float32)
                    acc = d if acc is None else acc + d
            return silu(acc + b_ref[...])

        def bottleneck(xin, bp):
            # Faithful to Bottleneck_IFResNet.forward (including its quirks).
            t = conv1x1([xin], bp["cv1"]["w"], bp["cv1"]["b"])        # x1=x2=x3=x4
            w2, b2 = bp["cv2"]["w"], bp["cv2"]["b"]
            k1 = conv3x3([taps(t)], w2, b2)                           # k1 = cv2(x1)
            k2 = conv3x3([taps(k1 + t)], w2, b2)                      # k2 = cv2(k1+x2)
            k3 = conv3x3([taps(k2 + t)], w2, b2)                      # k3 = cv2(k2+x3)
            y4 = conv3x3([taps(k3 + t)], w2, b2)                      # y4 = k4 = cv2(k3+x4)
            y3 = conv3x3([taps(k3 + y4)], w2, b2)                     # y3 = cv2(k3+y4)
            t_y3 = taps(y3)
            y12 = conv3x3([t_y3], w2, b2)                             # ref quirk: y1 == y2 == cv2(y3)
            t_y12 = taps(y12)
            # cv3(cat(y1, y2, y3, y4)): cv3 weight pre-split over the 4 concat parts
            a = conv3x3([t_y12, t_y12, t_y3, taps(y4)],
                        bp["cv3"]["w"], bp["cv3"]["b"])
            return conv1x1([xin], bp["cv4"]["w"], bp["cv4"]["b"]) + a

        x = x_ref[0]                                                  # (C1, H*W)
        a = conv1x1([x], p["cv1"]["w"], p["cv1"]["b"])
        for bp in p["m"]:
            a = bottleneck(a, bp)
        b = conv1x1([x], p["cv2"]["w"], p["cv2"]["b"])
        # cv3(cat(a, b)): cv3 weight pre-split over the 2 concat parts
        o_ref[0] = conv1x1([a, b], p["cv3"]["w"], p["cv3"]["b"])

    return kernel


def c3_ifresnet_pallas(x_nchw, packed_params):
    """x_nchw: (N, C1, H, W) float32 in PyTorch layout.  Returns (N, C2, H, W)."""
    N, C1, H, W = x_nchw.shape
    HW = H * W
    C2 = packed_params["cv3"]["b"].shape[0]
    leaves, treedef = jax.tree_util.tree_flatten(packed_params)

    kernel = _build_kernel(treedef, len(leaves), H, W)

    in_specs = [pl.BlockSpec((1, C1, HW), lambda n: (n, 0, 0))]
    for leaf in leaves:   # weights: full blocks, constant index map (fetched once)
        in_specs.append(
            pl.BlockSpec(leaf.shape, lambda n, _nd=leaf.ndim: (0,) * _nd))

    out = pl.pallas_call(
        kernel,
        out_shape=jax.ShapeDtypeStruct((N, C2, HW), jnp.float32),
        grid=(N,),
        in_specs=in_specs,
        out_specs=pl.BlockSpec((1, C2, HW), lambda n: (n, 0, 0)),
        compiler_params=pltpu.CompilerParams(
            dimension_semantics=("parallel",),      # batch axis -> both v7x TCs
            vmem_limit_bytes=32 * 1024 * 1024,
        ),
    )(x_nchw.reshape(N, C1, HW), *leaves)
    return out.reshape(N, C2, H, W)


# ---------------------------------------------------------------------------
# Deterministic synthetic parameters (Conv2d bias=False + eval-mode BN folded).
# ---------------------------------------------------------------------------
def _init_conv(key, cin, cout, k):
    kw, kg, kb, km, kv = jax.random.split(key, 5)
    fan_in = cin * k * k
    w = jax.random.normal(kw, (cout, cin, k, k), jnp.float32) / math.sqrt(fan_in)
    gamma = jax.random.uniform(kg, (cout,), jnp.float32, 0.5, 1.5)
    beta = 0.1 * jax.random.normal(kb, (cout,), jnp.float32)
    mean = 0.1 * jax.random.normal(km, (cout,), jnp.float32)
    var = jax.random.uniform(kv, (cout,), jnp.float32, 0.5, 1.5)
    scale = gamma / jnp.sqrt(var + 1e-5)
    return {"w": w * scale[:, None, None, None],    # BN scale folded into conv (OIHW)
            "b": beta - mean * scale}               # folded BN bias


def init_c3_ifresnet(key, c1, c2, n=1, e=0.5):
    c_ = int(c2 * e)
    keys = jax.random.split(key, 3 + n)
    params = {
        "cv1": _init_conv(keys[0], c1, c_, 1),
        "cv2": _init_conv(keys[1], c1, c_, 1),
        "cv3": _init_conv(keys[2], 2 * c_, c2, 1),
        "m": [],
    }
    for i in range(n):                              # Bottleneck_IFResNet(c_, c_, e=1.0)
        bk = jax.random.split(keys[3 + i], 4)
        cb = int(c_ * 1.0)
        params["m"].append({
            "cv1": _init_conv(bk[0], c_, cb, 1),
            "cv2": _init_conv(bk[1], cb, cb, 3),
            "cv3": _init_conv(bk[2], 4 * cb, c_, 3),    # groups g=1
            "cv4": _init_conv(bk[3], c_, c_, 1),
        })
    return params


def _pack_conv(p, parts=1):
    """Repack OIHW conv into kernel layout: 1x1 -> (parts, Cout, Cin/parts),
    3x3 -> (parts, 9, Cout, Cin/parts); bias -> (Cout, 1).  `parts` splits the
    input channels of convs that consume a channel-concat."""
    w, b = p["w"], p["b"]
    cout, cin, k, _ = w.shape
    cp = cin // parts
    ws = []
    for j in range(parts):
        wj = w[:, j * cp:(j + 1) * cp]
        if k == 1:
            ws.append(wj[:, :, 0, 0])                                   # (Cout, cp)
        else:
            ws.append(jnp.transpose(wj, (2, 3, 0, 1)).reshape(k * k, cout, cp))
    return {"w": jnp.stack(ws, axis=0), "b": b.reshape(cout, 1)}


def pack_params(params):
    packed = {
        "cv1": _pack_conv(params["cv1"]),
        "cv2": _pack_conv(params["cv2"]),
        "cv3": _pack_conv(params["cv3"], parts=2),   # consumes cat(m(cv1(x)), cv2(x))
        "m": [],
    }
    for bp in params["m"]:
        packed["m"].append({
            "cv1": _pack_conv(bp["cv1"]),
            "cv2": _pack_conv(bp["cv2"]),
            "cv3": _pack_conv(bp["cv3"], parts=4),   # consumes cat(y1, y2, y3, y4)
            "cv4": _pack_conv(bp["cv4"]),
        })
    return packed


# ---------------------------------------------------------------------------
# Pure-JAX (XLA conv) reference of the same module, for the correctness check.
# ---------------------------------------------------------------------------
def _ref_conv(x, p):
    y = jax.lax.conv_general_dilated(
        x, p["w"], window_strides=(1, 1), padding="SAME",
        dimension_numbers=("NCHW", "OIHW", "NCHW"),
        precision=jax.lax.Precision.HIGHEST)
    y = y + p["b"].reshape(1, -1, 1, 1)
    return y * jax.nn.sigmoid(y)


def _ref_bottleneck(x, bp):
    t = _ref_conv(x, bp["cv1"])
    k1 = _ref_conv(t, bp["cv2"])
    k2 = _ref_conv(k1 + t, bp["cv2"])
    k3 = _ref_conv(k2 + t, bp["cv2"])
    y4 = _ref_conv(k3 + t, bp["cv2"])
    y3 = _ref_conv(k3 + y4, bp["cv2"])
    y2 = _ref_conv(y3, bp["cv2"])
    y1 = _ref_conv(y3, bp["cv2"])
    a = jnp.concatenate([y1, y2, y3, y4], axis=1)
    return _ref_conv(x, bp["cv4"]) + _ref_conv(a, bp["cv3"])


def _ref_c3(x, params):
    a = _ref_conv(x, params["cv1"])
    for bp in params["m"]:
        a = _ref_bottleneck(a, bp)
    b = _ref_conv(x, params["cv2"])
    return _ref_conv(jnp.concatenate([a, b], axis=1), params["cv3"])


if __name__ == "__main__":
    c1, c2, n = 4, 8, 1
    key = jax.random.PRNGKey(0)
    pkey, xkey = jax.random.split(key)
    params = init_c3_ifresnet(pkey, c1, c2, n)
    packed = pack_params(params)

    x = jax.random.normal(xkey, (2, c1, 16, 16), jnp.float32)   # NCHW like PyTorch

    fwd = jax.jit(lambda inp: c3_ifresnet_pallas(inp, packed))
    y = fwd(x)
    jax.block_until_ready(y)
    assert y.shape == (2, c2, 16, 16) and y.dtype == jnp.float32

    # correctness check against the XLA-conv reference (loose tol covers matmul
    # precision differences; logic errors would be O(1)).
    y_ref = jax.jit(lambda inp: _ref_c3(inp, params))(x)
    jax.block_until_ready(y_ref)
    max_err = float(jnp.max(jnp.abs(y - y_ref)))
    assert max_err < 1e-1, f"kernel/reference mismatch: max abs err = {max_err}"
    print("KERNEL_OK")
</pallas_src>

<mosaic_0001>
module attributes {stable_mosaic.version = 11 : i64} {
  func.func @kernel(%arg0: i32, %arg1: memref<1x4x256xf32, #tpu.memory_space<vmem>>, %arg2: memref<4x1xf32, #tpu.memory_space<vmem>>, %arg3: memref<1x4x4xf32, #tpu.memory_space<vmem>>, %arg4: memref<4x1xf32, #tpu.memory_space<vmem>>, %arg5: memref<1x4x4xf32, #tpu.memory_space<vmem>>, %arg6: memref<8x1xf32, #tpu.memory_space<vmem>>, %arg7: memref<2x8x4xf32, #tpu.memory_space<vmem>>, %arg8: memref<4x1xf32, #tpu.memory_space<vmem>>, %arg9: memref<1x4x4xf32, #tpu.memory_space<vmem>>, %arg10: memref<4x1xf32, #tpu.memory_space<vmem>>, %arg11: memref<1x9x4x4xf32, #tpu.memory_space<vmem>>, %arg12: memref<4x1xf32, #tpu.memory_space<vmem>>, %arg13: memref<4x9x4x4xf32, #tpu.memory_space<vmem>>, %arg14: memref<4x1xf32, #tpu.memory_space<vmem>>, %arg15: memref<1x4x4xf32, #tpu.memory_space<vmem>>, %arg16: memref<1x8x256xf32, #tpu.memory_space<vmem>>) attributes {dimension_semantics = [#tpu.dimension_semantics<parallel>], iteration_bounds = array<i64: 2>, scalar_prefetch = 0 : i64, scratch_operands = 0 : i64, tpu.core_type = #tpu.core_type<tc>, window_params = [{transform_indices = @transform_0, window_bounds = array<i64: 1, 4, 256>}, {pipeline_mode = #tpu.pipeline_mode<synchronous>, transform_indices = @transform_1, window_bounds = array<i64: 4, 1>}, {pipeline_mode = #tpu.pipeline_mode<synchronous>, transform_indices = @transform_2, window_bounds = array<i64: 1, 4, 4>}, {pipeline_mode = #tpu.pipeline_mode<synchronous>, transform_indices = @transform_3, window_bounds = array<i64: 4, 1>}, {pipeline_mode = #tpu.pipeline_mode<synchronous>, transform_indices = @transform_4, window_bounds = array<i64: 1, 4, 4>}, {pipeline_mode = #tpu.pipeline_mode<synchronous>, transform_indices = @transform_5, window_bounds = array<i64: 8, 1>}, {pipeline_mode = #tpu.pipeline_mode<synchronous>, transform_indices = @transform_6, window_bounds = array<i64: 2, 8, 4>}, {pipeline_mode = #tpu.pipeline_mode<synchronous>, transform_indices = @transform_7, window_bounds = array<i64: 4, 1>}, {pipeline_mode = #tpu.pipeline_mode<synchronous>, transform_indices = @transform_8, window_bounds = array<i64: 1, 4, 4>}, {pipeline_mode = #tpu.pipeline_mode<synchronous>, transform_indices = @transform_9, window_bounds = array<i64: 4, 1>}, {pipeline_mode = #tpu.pipeline_mode<synchronous>, transform_indices = @transform_10, window_bounds = array<i64: 1, 9, 4, 4>}, {pipeline_mode = #tpu.pipeline_mode<synchronous>, transform_indices = @transform_11, window_bounds = array<i64: 4, 1>}, {pipeline_mode = #tpu.pipeline_mode<synchronous>, transform_indices = @transform_12, window_bounds = array<i64: 4, 9, 4, 4>}, {pipeline_mode = #tpu.pipeline_mode<synchronous>, transform_indices = @transform_13, window_bounds = array<i64: 4, 1>}, {pipeline_mode = #tpu.pipeline_mode<synchronous>, transform_indices = @transform_14, window_bounds = array<i64: 1, 4, 4>}, {transform_indices = @transform_15, window_bounds = array<i64: 1, 8, 256>}]} {
    %0 = tpu.iota {dimensions = array<i32: 1>} : vector<1x256xi32>
    %c15_i32 = arith.constant 15 : i32
    %1 = vector.broadcast %c15_i32 : i32 to vector<1x256xi32>
    %2 = arith.andi %0, %1 : vector<1x256xi32>
    %c1_i32 = arith.constant 1 : i32
    %3 = vector.broadcast %c1_i32 : i32 to vector<1x256xi32>
    %4 = arith.cmpi sge, %2, %3 : vector<1x256xi32>
    %c16_i32 = arith.constant 16 : i32
    %5 = vector.broadcast %c16_i32 : i32 to vector<1x256xi32>
    %6 = arith.cmpi sge, %0, %5 : vector<1x256xi32>
    %7 = arith.andi %4, %6 : vector<1x256xi1>
    %c16_i32_0 = arith.constant 16 : i32
    %8 = vector.broadcast %c16_i32_0 : i32 to vector<1x256xi32>
    %9 = arith.cmpi sge, %0, %8 : vector<1x256xi32>
    %c15_i32_1 = arith.constant 15 : i32
    %10 = vector.broadcast %c15_i32_1 : i32 to vector<1x256xi32>
    %11 = arith.cmpi slt, %2, %10 : vector<1x256xi32>
    %c16_i32_2 = arith.constant 16 : i32
    %12 = vector.broadcast %c16_i32_2 : i32 to vector<1x256xi32>
    %13 = arith.cmpi sge, %0, %12 : vector<1x256xi32>
    %14 = arith.andi %11, %13 : vector<1x256xi1>
    %c1_i32_3 = arith.constant 1 : i32
    %15 = vector.broadcast %c1_i32_3 : i32 to vector<1x256xi32>
    %16 = arith.cmpi sge, %2, %15 : vector<1x256xi32>
    %c15_i32_4 = arith.constant 15 : i32
    %17 = vector.broadcast %c15_i32_4 : i32 to vector<1x256xi32>
    %18 = arith.cmpi slt, %2, %17 : vector<1x256xi32>
    %c1_i32_5 = arith.constant 1 : i32
    %19 = vector.broadcast %c1_i32_5 : i32 to vector<1x256xi32>
    %20 = arith.cmpi sge, %2, %19 : vector<1x256xi32>
    %c240_i32 = arith.constant 240 : i32
    %21 = vector.broadcast %c240_i32 : i32 to vector<1x256xi32>
    %22 = arith.cmpi slt, %0, %21 : vector<1x256xi32>
    %23 = arith.andi %20, %22 : vector<1x256xi1>
    %c240_i32_6 = arith.constant 240 : i32
    %24 = vector.broadcast %c240_i32_6 : i32 to vector<1x256xi32>
    %25 = arith.cmpi slt, %0, %24 : vector<1x256xi32>
    %c15_i32_7 = arith.constant 15 : i32
    %26 = vector.broadcast %c15_i32_7 : i32 to vector<1x256xi32>
    %27 = arith.cmpi slt, %2, %26 : vector<1x256xi32>
    %c240_i32_8 = arith.constant 240 : i32
    %28 = vector.broadcast %c240_i32_8 : i32 to vector<1x256xi32>
    %29 = arith.cmpi slt, %0, %28 : vector<1x256xi32>
    %30 = arith.andi %27, %29 : vector<1x256xi1>
    %c0 = arith.constant 0 : index
    %c0_9 = arith.constant 0 : index
    %c0_10 = arith.constant 0 : index
    %31 = vector.load %arg1[%c0, %c0_9, %c0_10] : memref<1x4x256xf32, #tpu.memory_space<vmem>>, vector<1x4x256xf32>
    %32 = vector.shape_cast %31 : vector<1x4x256xf32> to vector<4x256xf32>
    %c0_11 = arith.constant 0 : index
    %c0_12 = arith.constant 0 : index
    %c0_13 = arith.constant 0 : index
    %33 = vector.load %arg3[%c0_11, %c0_12, %c0_13] : memref<1x4x4xf32, #tpu.memory_space<vmem>>, vector<1x4x4xf32>
    %34 = vector.shape_cast %33 : vector<1x4x4xf32> to vector<4x4xf32>
    %cst = arith.constant dense<0.000000e+00> : vector<4x256xf32>
    %35 = tpu.matmul %34, %32, %cst {dimension_numbers = #tpu.dot_dimension_numbers<[1], [0], [0], [1], [0, 0, 1, 1], [], []>} : vector<4x4xf32>, vector<4x256xf32>, vector<4x256xf32> -> vector<4x256xf32>
    %c0_14 = arith.constant 0 : index
    %c0_15 = arith.constant 0 : index
    %36 = vector.load %arg2[%c0_14, %c0_15] : memref<4x1xf32, #tpu.memory_space<vmem>>, vector<4x1xf32>
    %37 = vector.broadcast %36 : vector<4x1xf32> to vector<4x256xf32>
    %38 = arith.addf %35, %37 : vector<4x256xf32>
    %39 = arith.negf %38 : vector<4x256xf32>
    %40 = math.exp %39 : vector<4x256xf32>
    %cst_16 = arith.constant 1.000000e+00 : f32
    %41 = vector.broadcast %cst_16 : f32 to vector<4x256xf32>
    %42 = arith.addf %41, %40 : vector<4x256xf32>
    %43 = arith.divf %41, %42 : vector<4x256xf32>
    %44 = arith.mulf %38, %43 : vector<4x256xf32>
    %c0_17 = arith.constant 0 : index
    %c0_18 = arith.constant 0 : index
    %c0_19 = arith.constant 0 : index
    %45 = vector.load %arg9[%c0_17, %c0_18, %c0_19] : memref<1x4x4xf32, #tpu.memory_space<vmem>>, vector<1x4x4xf32>
    %46 = vector.shape_cast %45 : vector<1x4x4xf32> to vector<4x4xf32>
    %cst_20 = arith.constant dense<0.000000e+00> : vector<4x256xf32>
    %47 = tpu.matmul %46, %44, %cst_20 {dimension_numbers = #tpu.dot_dimension_numbers<[1], [0], [0], [1], [0, 0, 1, 1], [], []>} : vector<4x4xf32>, vector<4x256xf32>, vector<4x256xf32> -> vector<4x256xf32>
    %c0_21 = arith.constant 0 : index
    %c0_22 = arith.constant 0 : index
    %48 = vector.load %arg8[%c0_21, %c0_22] : memref<4x1xf32, #tpu.memory_space<vmem>>, vector<4x1xf32>
    %49 = vector.broadcast %48 : vector<4x1xf32> to vector<4x256xf32>
    %50 = arith.addf %47, %49 : vector<4x256xf32>
    %51 = arith.negf %50 : vector<4x256xf32>
    %52 = math.exp %51 : vector<4x256xf32>
    %cst_23 = arith.constant 1.000000e+00 : f32
    %53 = vector.broadcast %cst_23 : f32 to vector<4x256xf32>
    %54 = arith.addf %53, %52 : vector<4x256xf32>
    %55 = arith.divf %53, %54 : vector<4x256xf32>
    %56 = arith.mulf %50, %55 : vector<4x256xf32>
    %c17_i32 = arith.constant 17 : i32
    %57 = tpu.dynamic_rotate %56 by %c17_i32 dim 1 : vector<4x256xf32>, i32 -> vector<4x256xf32>
    %cst_24 = arith.constant 0.000000e+00 : f32
    %58 = vector.shape_cast %7 : vector<1x256xi1> to vector<1x256xi1>
    %59 = vector.broadcast %58 : vector<1x256xi1> to vector<4x256xi1>
    %60 = vector.broadcast %cst_24 : f32 to vector<4x256xf32>
    %61 = arith.select %59, %57, %60 : vector<4x256xi1>, vector<4x256xf32>
    %c16_i32_25 = arith.constant 16 : i32
    %62 = tpu.dynamic_rotate %56 by %c16_i32_25 dim 1 : vector<4x256xf32>, i32 -> vector<4x256xf32>
    %cst_26 = arith.constant 0.000000e+00 : f32
    %63 = vector.shape_cast %9 : vector<1x256xi1> to vector<1x256xi1>
    %64 = vector.broadcast %63 : vector<1x256xi1> to vector<4x256xi1>
    %65 = vector.broadcast %cst_26 : f32 to vector<4x256xf32>
    %66 = arith.select %64, %62, %65 : vector<4x256xi1>, vector<4x256xf32>
    %c15_i32_27 = arith.constant 15 : i32
    %67 = tpu.dynamic_rotate %56 by %c15_i32_27 dim 1 : vector<4x256xf32>, i32 -> vector<4x256xf32>
    %cst_28 = arith.constant 0.000000e+00 : f32
    %68 = vector.shape_cast %14 : vector<1x256xi1> to vector<1x256xi1>
    %69 = vector.broadcast %68 : vector<1x256xi1> to vector<4x256xi1>
    %70 = vector.broadcast %cst_28 : f32 to vector<4x256xf32>
    %71 = arith.select %69, %67, %70 : vector<4x256xi1>, vector<4x256xf32>
    %c1_i32_29 = arith.constant 1 : i32
    %72 = tpu.dynamic_rotate %56 by %c1_i32_29 dim 1 : vector<4x256xf32>, i32 -> vector<4x256xf32>
    %cst_30 = arith.constant 0.000000e+00 : f32
    %73 = vector.shape_cast %16 : vector<1x256xi1> to vector<1x256xi1>
    %74 = vector.broadcast %73 : vector<1x256xi1> to vector<4x256xi1>
    %75 = vector.broadcast %cst_30 : f32 to vector<4x256xf32>
    %76 = arith.select %74, %72, %75 : vector<4x256xi1>, vector<4x256xf32>
    %c255_i32 = arith.constant 255 : i32
    %77 = tpu.dynamic_rotate %56 by %c255_i32 dim 1 : vector<4x256xf32>, i32 -> vector<4x256xf32>
    %cst_31 = arith.constant 0.000000e+00 : f32
    %78 = vector.shape_cast %18 : vector<1x256xi1> to vector<1x256xi1>
    %79 = vector.broadcast %78 : vector<1x256xi1> to vector<4x256xi1>
    %80 = vector.broadcast %cst_31 : f32 to vector<4x256xf32>
    %81 = arith.select %79, %77, %80 : vector<4x256xi1>, vector<4x256xf32>
    %c241_i32 = arith.constant 241 : i32
    %82 = tpu.dynamic_rotate %56 by %c241_i32 dim 1 : vector<4x256xf32>, i32 -> vector<4x256xf32>
    %cst_32 = arith.constant 0.000000e+00 : f32
    %83 = vector.shape_cast %23 : vector<1x256xi1> to vector<1x256xi1>
    %84 = vector.broadcast %83 : vector<1x256xi1> to vector<4x256xi1>
    %85 = vector.broadcast %cst_32 : f32 to vector<4x256xf32>
    %86 = arith.select %84, %82, %85 : vector<4x256xi1>, vector<4x256xf32>
    %c240_i32_33 = arith.constant 240 : i32
    %87 = tpu.dynamic_rotate %56 by %c240_i32_33 dim 1 : vector<4x256xf32>, i32 -> vector<4x256xf32>
    %cst_34 = arith.constant 0.000000e+00 : f32
    %88 = vector.shape_cast %25 : vector<1x256xi1> to vector<1x256xi1>
    %89 = vector.broadcast %88 : vector<1x256xi1> to vector<4x256xi1>
    %90 = vector.broadcast %cst_34 : f32 to vector<4x256xf32>
    %91 = arith.select %89, %87, %90 : vector<4x256xi1>, vector<4x256xf32>
    %c239_i32 = arith.constant 239 : i32
    %92 = tpu.dynamic_rotate %56 by %c239_i32 dim 1 : vector<4x256xf32>, i32 -> vector<4x256xf32>
    %cst_35 = arith.constant 0.000000e+00 : f32
    %93 = vector.shape_cast %30 : vector<1x256xi1> to vector<1x256xi1>
    %94 = vector.broadcast %93 : vector<1x256xi1> to vector<4x256xi1>
    %95 = vector.broadcast %cst_35 : f32 to vector<4x256xf32>
    %96 = arith.select %94, %92, %95 : vector<4x256xi1>, vector<4x256xf32>
    %c0_36 = arith.constant 0 : index
    %c0_37 = arith.constant 0 : index
    %c0_38 = arith.constant 0 : index
    %c0_39 = arith.constant 0 : index
    %97 = vector.load %arg11[%c0_36, %c0_37, %c0_38, %c0_39] : memref<1x9x4x4xf32, #tpu.memory_space<vmem>>, vector<1x1x4x4xf32>
    %98 = vector.shape_cast %97 : vector<1x1x4x4xf32> to vector<4x4xf32>
    %cst_40 = arith.constant dense<0.000000e+00> : vector<4x256xf32>
    %99 = tpu.matmul %98, %61, %cst_40 {dimension_numbers = #tpu.dot_dimension_numbers<[1], [0], [0], [1], [0, 0, 1, 1], [], []>} : vector<4x4xf32>, vector<4x256xf32>, vector<4x256xf32> -> vector<4x256xf32>
    %c0_41 = arith.constant 0 : index
    %c1 = arith.constant 1 : index
    %c0_42 = arith.constant 0 : index
    %c0_43 = arith.constant 0 : index
    %100 = vector.load %arg11[%c0_41, %c1, %c0_42, %c0_43] : memref<1x9x4x4xf32, #tpu.memory_space<vmem>>, vector<1x1x4x4xf32>
    %101 = vector.shape_cast %100 : vector<1x1x4x4xf32> to vector<4x4xf32>
    %cst_44 = arith.constant dense<0.000000e+00> : vector<4x256xf32>
    %102 = tpu.matmul %101, %66, %cst_44 {dimension_numbers = #tpu.dot_dimension_numbers<[1], [0], [0], [1], [0, 0, 1, 1], [], []>} : vector<4x4xf32>, vector<4x256xf32>, vector<4x256xf32> -> vector<4x256xf32>
    %103 = arith.addf %99, %102 : vector<4x256xf32>
    %c0_45 = arith.constant 0 : index
    %c2 = arith.constant 2 : index
    %c0_46 = arith.constant 0 : index
    %c0_47 = arith.constant 0 : index
    %104 = vector.load %arg11[%c0_45, %c2, %c0_46, %c0_47] : memref<1x9x4x4xf32, #tpu.memory_space<vmem>>, vector<1x1x4x4xf32>
    %105 = vector.shape_cast %104 : vector<1x1x4x4xf32> to vector<4x4xf32>
    %cst_48 = arith.constant dense<0.000000e+00> : vector<4x256xf32>
    %106 = tpu.matmul %105, %71, %cst_48 {dimension_numbers = #tpu.dot_dimension_numbers<[1], [0], [0], [1], [0, 0, 1, 1], [], []>} : vector<4x4xf32>, vector<4x256xf32>, vector<4x256xf32> -> vector<4x256xf32>
    %107 = arith.addf %103, %106 : vector<4x256xf32>
    %c0_49 = arith.constant 0 : index
    %c3 = arith.constant 3 : index
    %c0_50 = arith.constant 0 : index
    %c0_51 = arith.constant 0 : index
    %108 = vector.load %arg11[%c0_49, %c3, %c0_50, %c0_51] : memref<1x9x4x4xf32, #tpu.memory_space<vmem>>, vector<1x1x4x4xf32>
    %109 = vector.shape_cast %108 : vector<1x1x4x4xf32> to vector<4x4xf32>
    %cst_52 = arith.constant dense<0.000000e+00> : vector<4x256xf32>
    %110 = tpu.matmul %109, %76, %cst_52 {dimension_numbers = #tpu.dot_dimension_numbers<[1], [0], [0], [1], [0, 0, 1, 1], [], []>} : vector<4x4xf32>, vector<4x256xf32>, vector<4x256xf32> -> vector<4x256xf32>
    %111 = arith.addf %107, %110 : vector<4x256xf32>
    %c0_53 = arith.constant 0 : index
    %c4 = arith.constant 4 : index
    %c0_54 = arith.constant 0 : index
    %c0_55 = arith.constant 0 : index
    %112 = vector.load %arg11[%c0_53, %c4, %c0_54, %c0_55] : memref<1x9x4x4xf32, #tpu.memory_space<vmem>>, vector<1x1x4x4xf32>
    %113 = vector.shape_cast %112 : vector<1x1x4x4xf32> to vector<4x4xf32>
    %cst_56 = arith.constant dense<0.000000e+00> : vector<4x256xf32>
    %114 = tpu.matmul %113, %56, %cst_56 {dimension_numbers = #tpu.dot_dimension_numbers<[1], [0], [0], [1], [0, 0, 1, 1], [], []>} : vector<4x4xf32>, vector<4x256xf32>, vector<4x256xf32> -> vector<4x256xf32>
    %115 = arith.addf %111, %114 : vector<4x256xf32>
    %c0_57 = arith.constant 0 : index
    %c5 = arith.constant 5 : index
    %c0_58 = arith.constant 0 : index
    %c0_59 = arith.constant 0 : index
    %116 = vector.load %arg11[%c0_57, %c5, %c0_58, %c0_59] : memref<1x9x4x4xf32, #tpu.memory_space<vmem>>, vector<1x1x4x4xf32>
    %117 = vector.shape_cast %116 : vector<1x1x4x4xf32> to vector<4x4xf32>
    %cst_60 = arith.constant dense<0.000000e+00> : vector<4x256xf32>
    %118 = tpu.matmul %117, %81, %cst_60 {dimension_numbers = #tpu.dot_dimension_numbers<[1], [0], [0], [1], [0, 0, 1, 1], [], []>} : vector<4x4xf32>, vector<4x256xf32>, vector<4x256xf32> -> vector<4x256xf32>
    %119 = arith.addf %115, %118 : vector<4x256xf32>
    %c0_61 = arith.constant 0 : index
    %c6 = arith.constant 6 : index
    %c0_62 = arith.constant 0 : index
    %c0_63 = arith.constant 0 : index
    %120 = vector.load %arg11[%c0_61, %c6, %c0_62, %c0_63] : memref<1x9x4x4xf32, #tpu.memory_space<vmem>>, vector<1x1x4x4xf32>
    %121 = vector.shape_cast %120 : vector<1x1x4x4xf32> to vector<4x4xf32>
    %cst_64 = arith.constant dense<0.000000e+00> : vector<4x256xf32>
    %122 = tpu.matmul %121, %86, %cst_64 {dimension_numbers = #tpu.dot_dimension_numbers<[1], [0], [0], [1], [0, 0, 1, 1], [], []>} : vector<4x4xf32>, vector<4x256xf32>, vector<4x256xf32> -> vector<4x256xf32>
    %123 = arith.addf %119, %122 : vector<4x256xf32>
    %c0_65 = arith.constant 0 : index
    %c7 = arith.constant 7 : index
    %c0_66 = arith.constant 0 : index
    %c0_67 = arith.constant 0 : index
    %124 = vector.load %arg11[%c0_65, %c7, %c0_66, %c0_67] : memref<1x9x4x4xf32, #tpu.memory_space<vmem>>, vector<1x1x4x4xf32>
    %125 = vector.shape_cast %124 : vector<1x1x4x4xf32> to vector<4x4xf32>
    %cst_68 = arith.constant dense<0.000000e+00> : vector<4x256xf32>
    %126 = tpu.matmul %125, %91, %cst_68 {dimension_numbers = #tpu.dot_dimension_numbers<[1], [0], [0], [1], [0, 0, 1, 1], [], []>} : vector<4x4xf32>, vector<4x256xf32>, vector<4x256xf32> -> vector<4x256xf32>
    %127 = arith.addf %123, %126 : vector<4x256xf32>
    %c0_69 = arith.constant 0 : index
    %c8 = arith.constant 8 : index
    %c0_70 = arith.constant 0 : index
    %c0_71 = arith.constant 0 : index
    %128 = vector.load %arg11[%c0_69, %c8, %c0_70, %c0_71] : memref<1x9x4x4xf32, #tpu.memory_space<vmem>>, vector<1x1x4x4xf32>
    %129 = vector.shape_cast %128 : vector<1x1x4x4xf32> to vector<4x4xf32>
    %cst_72 = arith.constant dense<0.000000e+00> : vector<4x256xf32>
    %130 = tpu.matmul %129, %96, %cst_72 {dimension_numbers = #tpu.dot_dimension_numbers<[1], [0], [0], [1], [0, 0, 1, 1], [], []>} : vector<4x4xf32>, vector<4x256xf32>, vector<4x256xf32> -> vector<4x256xf32>
    %131 = arith.addf %127, %130 : vector<4x256xf32>
    %c0_73 = arith.constant 0 : index
    %c0_74 = arith.constant 0 : index
    %132 = vector.load %arg10[%c0_73, %c0_74] : memref<4x1xf32, #tpu.memory_space<vmem>>, vector<4x1xf32>
    %133 = vector.broadcast %132 : vector<4x1xf32> to vector<4x256xf32>
    %134 = arith.addf %131, %133 : vector<4x256xf32>
    %135 = arith.negf %134 : vector<4x256xf32>
    %136 = math.exp %135 : vector<4x256xf32>
    %cst_75 = arith.constant 1.000000e+00 : f32
    %137 = vector.broadcast %cst_75 : f32 to vector<4x256xf32>
    %138 = arith.addf %137, %136 : vector<4x256xf32>
    %139 = arith.divf %137, %138 : vector<4x256xf32>
    %140 = arith.mulf %134, %139 : vector<4x256xf32>
    %141 = arith.addf %140, %56 : vector<4x256xf32>
    %c17_i32_76 = arith.constant 17 : i32
    %142 = tpu.dynamic_rotate %141 by %c17_i32_76 dim 1 : vector<4x256xf32>, i32 -> vector<4x256xf32>
    %cst_77 = arith.constant 0.000000e+00 : f32
    %143 = vector.shape_cast %7 : vector<1x256xi1> to vector<1x256xi1>
    %144 = vector.broadcast %143 : vector<1x256xi1> to vector<4x256xi1>
    %145 = vector.broadcast %cst_77 : f32 to vector<4x256xf32>
    %146 = arith.select %144, %142, %145 : vector<4x256xi1>, vector<4x256xf32>
    %c16_i32_78 = arith.constant 16 : i32
    %147 = tpu.dynamic_rotate %141 by %c16_i32_78 dim 1 : vector<4x256xf32>, i32 -> vector<4x256xf32>
    %cst_79 = arith.constant 0.000000e+00 : f32
    %148 = vector.shape_cast %9 : vector<1x256xi1> to vector<1x256xi1>
    %149 = vector.broadcast %148 : vector<1x256xi1> to vector<4x256xi1>
    %150 = vector.broadcast %cst_79 : f32 to vector<4x256xf32>
    %151 = arith.select %149, %147, %150 : vector<4x256xi1>, vector<4x256xf32>
    %c15_i32_80 = arith.constant 15 : i32
    %152 = tpu.dynamic_rotate %141 by %c15_i32_80 dim 1 : vector<4x256xf32>, i32 -> vector<4x256xf32>
    %cst_81 = arith.constant 0.000000e+00 : f32
    %153 = vector.shape_cast %14 : vector<1x256xi1> to vector<1x256xi1>
    %154 = vector.broadcast %153 : vector<1x256xi1> to vector<4x256xi1>
    %155 = vector.broadcast %cst_81 : f32 to vector<4x256xf32>
    %156 = arith.select %154, %152, %155 : vector<4x256xi1>, vector<4x256xf32>
    %c1_i32_82 = arith.constant 1 : i32
    %157 = tpu.dynamic_rotate %141 by %c1_i32_82 dim 1 : vector<4x256xf32>, i32 -> vector<4x256xf32>
    %cst_83 = arith.constant 0.000000e+00 : f32
    %158 = vector.shape_cast %16 : vector<1x256xi1> to vector<1x256xi1>
    %159 = vector.broadcast %158 : vector<1x256xi1> to vector<4x256xi1>
    %160 = vector.broadcast %cst_83 : f32 to vector<4x256xf32>
    %161 = arith.select %159, %157, %160 : vector<4x256xi1>, vector<4x256xf32>
    %c255_i32_84 = arith.constant 255 : i32
    %162 = tpu.dynamic_rotate %141 by %c255_i32_84 dim 1 : vector<4x256xf32>, i32 -> vector<4x256xf32>
    %cst_85 = arith.constant 0.000000e+00 : f32
    %163 = vector.shape_cast %18 : vector<1x256xi1> to vector<1x256xi1>
    %164 = vector.broadcast %163 : vector<1x256xi1> to vector<4x256xi1>
    %165 = vector.broadcast %cst_85 : f32 to vector<4x256xf32>
    %166 = arith.select %164, %162, %165 : vector<4x256xi1>, vector<4x256xf32>
    %c241_i32_86 = arith.constant 241 : i32
    %167 = tpu.dynamic_rotate %141 by %c241_i32_86 dim 1 : vector<4x256xf32>, i32 -> vector<4x256xf32>
    %cst_87 = arith.constant 0.000000e+00 : f32
    %168 = vector.shape_cast %23 : vector<1x256xi1> to vector<1x256xi1>
    %169 = vector.broadcast %168 : vector<1x256xi1> to vector<4x256xi1>
    %170 = vector.broadcast %cst_87 : f32 to vector<4x256xf32>
    %171 = arith.select %169, %167, %170 : vector<4x256xi1>, vector<4x256xf32>
    %c240_i32_88 = arith.constant 240 : i32
    %172 = tpu.dynamic_rotate %141 by %c240_i32_88 dim 1 : vector<4x256xf32>, i32 -> vector<4x256xf32>
    %cst_89 = arith.constant 0.000000e+00 : f32
    %173 = vector.shape_cast %25 : vector<1x256xi1> to vector<1x256xi1>
    %174 = vector.broadcast %173 : vector<1x256xi1> to vector<4x256xi1>
    %175 = vector.broadcast %cst_89 : f32 to vector<4x256xf32>
    %176 = arith.select %174, %172, %175 : vector<4x256xi1>, vector<4x256xf32>
    %c239_i32_90 = arith.constant 239 : i32
    %177 = tpu.dynamic_rotate %141 by %c239_i32_90 dim 1 : vector<4x256xf32>, i32 -> vector<4x256xf32>
    %cst_91 = arith.constant 0.000000e+00 : f32
    %178 = vector.shape_cast %30 : vector<1x256xi1> to vector<1x256xi1>
    %179 = vector.broadcast %178 : vector<1x256xi1> to vector<4x256xi1>
    %180 = vector.broadcast %cst_91 : f32 to vector<4x256xf32>
    %181 = arith.select %179, %177, %180 : vector<4x256xi1>, vector<4x256xf32>
    %c0_92 = arith.constant 0 : index
    %c0_93 = arith.constant 0 : index
    %c0_94 = arith.constant 0 : index
    %c0_95 = arith.constant 0 : index
    %182 = vector.load %arg11[%c0_92, %c0_93, %c0_94, %c0_95] : memref<1x9x4x4xf32, #tpu.memory_space<vmem>>, vector<1x1x4x4xf32>
    %183 = vector.shape_cast %182 : vector<1x1x4x4xf32> to vector<4x4xf32>
    %cst_96 = arith.constant dense<0.000000e+00> : vector<4x256xf32>
    %184 = tpu.matmul %183, %146, %cst_96 {dimension_numbers = #tpu.dot_dimension_numbers<[1], [0], [0], [1], [0, 0, 1, 1], [], []>} : vector<4x4xf32>, vector<4x256xf32>, vector<4x256xf32> -> vector<4x256xf32>
    %c0_97 = arith.constant 0 : index
    %c1_98 = arith.constant 1 : index
    %c0_99 = arith.constant 0 : index
    %c0_100 = arith.constant 0 : index
    %185 = vector.load %arg11[%c0_97, %c1_98, %c0_99, %c0_100] : memref<1x9x4x4xf32, #tpu.memory_space<vmem>>, vector<1x1x4x4xf32>
    %186 = vector.shape_cast %185 : vector<1x1x4x4xf32> to vector<4x4xf32>
    %cst_101 = arith.constant dense<0.000000e+00> : vector<4x256xf32>
    %187 = tpu.matmul %186, %151, %cst_101 {dimension_numbers = #tpu.dot_dimension_numbers<[1], [0], [0], [1], [0, 0, 1, 1], [], []>} : vector<4x4xf32>, vector<4x256xf32>, vector<4x256xf32> -> vector<4x256xf32>
    %188 = arith.addf %184, %187 : vector<4x256xf32>
    %c0_102 = arith.constant 0 : index
    %c2_103 = arith.constant 2 : index
    %c0_104 = arith.constant 0 : index
    %c0_105 = arith.constant 0 : index
    %189 = vector.load %arg11[%c0_102, %c2_103, %c0_104, %c0_105] : memref<1x9x4x4xf32, #tpu.memory_space<vmem>>, vector<1x1x4x4xf32>
    %190 = vector.shape_cast %189 : vector<1x1x4x4xf32> to vector<4x4xf32>
    %cst_106 = arith.constant dense<0.000000e+00> : vector<4x256xf32>
    %191 = tpu.matmul %190, %156, %cst_106 {dimension_numbers = #tpu.dot_dimension_numbers<[1], [0], [0], [1], [0, 0, 1, 1], [], []>} : vector<4x4xf32>, vector<4x256xf32>, vector<4x256xf32> -> vector<4x256xf32>
    %192 = arith.addf %188, %191 : vector<4x256xf32>
    %c0_107 = arith.constant 0 : index
    %c3_108 = arith.constant 3 : index
    %c0_109 = arith.constant 0 : index
    %c0_110 = arith.constant 0 : index
    %193 = vector.load %arg11[%c0_107, %c3_108, %c0_109, %c0_110] : memref<1x9x4x4xf32, #tpu.memory_space<vmem>>, vector<1x1x4x4xf32>
    %194 = vector.shape_cast %193 : vector<1x1x4x4xf32> to vector<4x4xf32>
    %cst_111 = arith.constant dense<0.000000e+00> : vector<4x256xf32>
    %195 = tpu.matmul %194, %161, %cst_111 {dimension_numbers = #tpu.dot_dimension_numbers<[1], [0], [0], [1], [0, 0, 1, 1], [], []>} : vector<4x4xf32>, vector<4x256xf32>, vector<4x256xf32> -> vector<4x256xf32>
    %196 = arith.addf %192, %195 : vector<4x256xf32>
    %c0_112 = arith.constant 0 : index
    %c4_113 = arith.constant 4 : index
    %c0_114 = arith.constant 0 : index
    %c0_115 = arith.constant 0 : index
    %197 = vector.load %arg11[%c0_112, %c4_113, %c0_114, %c0_115] : memref<1x9x4x4xf32, #tpu.memory_space<vmem>>, vector<1x1x4x4xf32>
    %198 = vector.shape_cast %197 : vector<1x1x4x4xf32> to vector<4x4xf32>
    %cst_116 = arith.constant dense<0.000000e+00> : vector<4x256xf32>
    %199 = tpu.matmul %198, %141, %cst_116 {dimension_numbers = #tpu.dot_dimension_numbers<[1], [0], [0], [1], [0, 0, 1, 1], [], []>} : vector<4x4xf32>, vector<4x256xf32>, vector<4x256xf32> -> vector<4x256xf32>
    %200 = arith.addf %196, %199 : vector<4x256xf32>
    %c0_117 = arith.constant 0 : index
    %c5_118 = arith.constant 5 : index
    %c0_119 = arith.constant 0 : index
    %c0_120 = arith.constant 0 : index
    %201 = vector.load %arg11[%c0_117, %c5_118, %c0_119, %c0_120] : memref<1x9x4x4xf32, #tpu.memory_space<vmem>>, vector<1x1x4x4xf32>
    %202 = vector.shape_cast %201 : vector<1x1x4x4xf32> to vector<4x4xf32>
    %cst_121 = arith.constant dense<0.000000e+00> : vector<4x256xf32>
    %203 = tpu.matmul %202, %166, %cst_121 {dimension_numbers = #tpu.dot_dimension_numbers<[1], [0], [0], [1], [0, 0, 1, 1], [], []>} : vector<4x4xf32>, vector<4x256xf32>, vector<4x256xf32> -> vector<4x256xf32>
    %204 = arith.addf %200, %203 : vector<4x256xf32>
    %c0_122 = arith.constant 0 : index
    %c6_123 = arith.constant 6 : index
    %c0_124 = arith.constant 0 : index
    %c0_125 = arith.constant 0 : index
    %205 = vector.load %arg11[%c0_122, %c6_123, %c0_124, %c0_125] : memref<1x9x4x4xf32, #tpu.memory_space<vmem>>, vector<1x1x4x4xf32>
    %206 = vector.shape_cast %205 : vector<1x1x4x4xf32> to vector<4x4xf32>
    %cst_126 = arith.constant dense<0.000000e+00> : vector<4x256xf32>
    %207 = tpu.matmul %206, %171, %cst_126 {dimension_numbers = #tpu.dot_dimension_numbers<[1], [0], [0], [1], [0, 0, 1, 1], [], []>} : vector<4x4xf32>, vector<4x256xf32>, vector<4x256xf32> -> vector<4x256xf32>
    %208 = arith.addf %204, %207 : vector<4x256xf32>
    %c0_127 = arith.constant 0 : index
    %c7_128 = arith.constant 7 : index
    %c0_129 = arith.constant 0 : index
    %c0_130 = arith.constant 0 : index
    %209 = vector.load %arg11[%c0_127, %c7_128, %c0_129, %c0_130] : memref<1x9x4x4xf32, #tpu.memory_space<vmem>>, vector<1x1x4x4xf32>
    %210 = vector.shape_cast %209 : vector<1x1x4x4xf32> to vector<4x4xf32>
    %cst_131 = arith.constant dense<0.000000e+00> : vector<4x256xf32>
    %211 = tpu.matmul %210, %176, %cst_131 {dimension_numbers = #tpu.dot_dimension_numbers<[1], [0], [0], [1], [0, 0, 1, 1], [], []>} : vector<4x4xf32>, vector<4x256xf32>, vector<4x256xf32> -> vector<4x256xf32>
    %212 = arith.addf %208, %211 : vector<4x256xf32>
    %c0_132 = arith.constant 0 : index
    %c8_133 = arith.constant 8 : index
    %c0_134 = arith.constant 0 : index
    %c0_135 = arith.constant 0 : index
    %213 = vector.load %arg11[%c0_132, %c8_133, %c0_134, %c0_135] : memref<1x9x4x4xf32, #tpu.memory_space<vmem>>, vector<1x1x4x4xf32>
    %214 = vector.shape_cast %213 : vector<1x1x4x4xf32> to vector<4x4xf32>
    %cst_136 = arith.constant dense<0.000000e+00> : vector<4x256xf32>
    %215 = tpu.matmul %214, %181, %cst_136 {dimension_numbers = #tpu.dot_dimension_numbers<[1], [0], [0], [1], [0, 0, 1, 1], [], []>} : vector<4x4xf32>, vector<4x256xf32>, vector<4x256xf32> -> vector<4x256xf32>
    %216 = arith.addf %212, %215 : vector<4x256xf32>
    %c0_137 = arith.constant 0 : index
    %c0_138 = arith.constant 0 : index
    %217 = vector.load %arg10[%c0_137, %c0_138] : memref<4x1xf32, #tpu.memory_space<vmem>>, vector<4x1xf32>
    %218 = vector.broadcast %217 : vector<4x1xf32> to vector<4x256xf32>
    %219 = arith.addf %216, %218 : vector<4x256xf32>
    %220 = arith.negf %219 : vector<4x256xf32>
    %221 = math.exp %220 : vector<4x256xf32>
    %cst_139 = arith.constant 1.000000e+00 : f32
    %222 = vector.broadcast %cst_139 : f32 to vector<4x256xf32>
    %223 = arith.addf %222, %221 : vector<4x256xf32>
    %224 = arith.divf %222, %223 : vector<4x256xf32>
    %225 = arith.mulf %219, %224 : vector<4x256xf32>
    %226 = arith.addf %225, %56 : vector<4x256xf32>
    %c17_i32_140 = arith.constant 17 : i32
    %227 = tpu.dynamic_rotate %226 by %c17_i32_140 dim 1 : vector<4x256xf32>, i32 -> vector<4x256xf32>
    %cst_141 = arith.constant 0.000000e+00 : f32
    %228 = vector.shape_cast %7 : vector<1x256xi1> to vector<1x256xi1>
    %229 = vector.broadcast %228 : vector<1x256xi1> to vector<4x256xi1>
    %230 = vector.broadcast %cst_141 : f32 to vector<4x256xf32>
    %231 = arith.select %229, %227, %230 : vector<4x256xi1>, vector<4x256xf32>
    %c16_i32_142 = arith.constant 16 : i32
    %232 = tpu.dynamic_rotate %226 by %c16_i32_142 dim 1 : vector<4x256xf32>, i32 -> vector<4x256xf32>
    %cst_143 = arith.constant 0.000000e+00 : f32
    %233 = vector.shape_cast %9 : vector<1x256xi1> to vector<1x256xi1>
    %234 = vector.broadcast %233 : vector<1x256xi1> to vector<4x256xi1>
    %235 = vector.broadcast %cst_143 : f32 to vector<4x256xf32>
    %236 = arith.select %234, %232, %235 : vector<4x256xi1>, vector<4x256xf32>
    %c15_i32_144 = arith.constant 15 : i32
    %237 = tpu.dynamic_rotate %226 by %c15_i32_144 dim 1 : vector<4x256xf32>, i32 -> vector<4x256xf32>
    %cst_145 = arith.constant 0.000000e+00 : f32
    %238 = vector.shape_cast %14 : vector<1x256xi1> to vector<1x256xi1>
    %239 = vector.broadcast %238 : vector<1x256xi1> to vector<4x256xi1>
    %240 = vector.broadcast %cst_145 : f32 to vector<4x256xf32>
    %241 = arith.select %239, %237, %240 : vector<4x256xi1>, vector<4x256xf32>
    %c1_i32_146 = arith.constant 1 : i32
    %242 = tpu.dynamic_rotate %226 by %c1_i32_146 dim 1 : vector<4x256xf32>, i32 -> vector<4x256xf32>
    %cst_147 = arith.constant 0.000000e+00 : f32
    %243 = vector.shape_cast %16 : vector<1x256xi1> to vector<1x256xi1>
    %244 = vector.broadcast %243 : vector<1x256xi1> to vector<4x256xi1>
    %245 = vector.broadcast %cst_147 : f32 to vector<4x256xf32>
    %246 = arith.select %244, %242, %245 : vector<4x256xi1>, vector<4x256xf32>
    %c255_i32_148 = arith.constant 255 : i32
    %247 = tpu.dynamic_rotate %226 by %c255_i32_148 dim 1 : vector<4x256xf32>, i32 -> vector<4x256xf32>
    %cst_149 = arith.constant 0.000000e+00 : f32
    %248 = vector.shape_cast %18 : vector<1x256xi1> to vector<1x256xi1>
    %249 = vector.broadcast %248 : vector<1x256xi1> to vector<4x256xi1>
    %250 = vector.broadcast %cst_149 : f32 to vector<4x256xf32>
    %251 = arith.select %249, %247, %250 : vector<4x256xi1>, vector<4x256xf32>
    %c241_i32_150 = arith.constant 241 : i32
    %252 = tpu.dynamic_rotate %226 by %c241_i32_150 dim 1 : vector<4x256xf32>, i32 -> vector<4x256xf32>
    %cst_151 = arith.constant 0.000000e+00 : f32
    %253 = vector.shape_cast %23 : vector<1x256xi1> to vector<1x256xi1>
    %254 = vector.broadcast %253 : vector<1x256xi1> to vector<4x256xi1>
    %255 = vector.broadcast %cst_151 : f32 to vector<4x256xf32>
    %256 = arith.select %254, %252, %255 : vector<4x256xi1>, vector<4x256xf32>
    %c240_i32_152 = arith.constant 240 : i32
    %257 = tpu.dynamic_rotate %226 by %c240_i32_152 dim 1 : vector<4x256xf32>, i32 -> vector<4x256xf32>
    %cst_153 = arith.constant 0.000000e+00 : f32
    %258 = vector.shape_cast %25 : vector<1x256xi1> to vector<1x256xi1>
    %259 = vector.broadcast %258 : vector<1x256xi1> to vector<4x256xi1>
    %260 = vector.broadcast %cst_153 : f32 to vector<4x256xf32>
    %261 = arith.select %259, %257, %260 : vector<4x256xi1>, vector<4x256xf32>
    %c239_i32_154 = arith.constant 239 : i32
    %262 = tpu.dynamic_rotate %226 by %c239_i32_154 dim 1 : vector<4x256xf32>, i32 -> vector<4x256xf32>
    %cst_155 = arith.constant 0.000000e+00 : f32
    %263 = vector.shape_cast %30 : vector<1x256xi1> to vector<1x256xi1>
    %264 = vector.broadcast %263 : vector<1x256xi1> to vector<4x256xi1>
    %265 = vector.broadcast %cst_155 : f32 to vector<4x256xf32>
    %266 = arith.select %264, %262, %265 : vector<4x256xi1>, vector<4x256xf32>
    %c0_156 = arith.constant 0 : index
    %c0_157 = arith.constant 0 : index
    %c0_158 = arith.constant 0 : index
    %c0_159 = arith.constant 0 : index
    %267 = vector.load %arg11[%c0_156, %c0_157, %c0_158, %c0_159] : memref<1x9x4x4xf32, #tpu.memory_space<vmem>>, vector<1x1x4x4xf32>
    %268 = vector.shape_cast %267 : vector<1x1x4x4xf32> to vector<4x4xf32>
    %cst_160 = arith.constant dense<0.000000e+00> : vector<4x256xf32>
    %269 = tpu.matmul %268, %231, %cst_160 {dimension_numbers = #tpu.dot_dimension_numbers<[1], [0], [0], [1], [0, 0, 1, 1], [], []>} : vector<4x4xf32>, vector<4x256xf32>, vector<4x256xf32> -> vector<4x256xf32>
    %c0_161 = arith.constant 0 : index
    %c1_162 = arith.constant 1 : index
    %c0_163 = arith.constant 0 : index
    %c0_164 = arith.constant 0 : index
    %270 = vector.load %arg11[%c0_161, %c1_162, %c0_163, %c0_164] : memref<1x9x4x4xf32, #tpu.memory_space<vmem>>, vector<1x1x4x4xf32>
    %271 = vector.shape_cast %270 : vector<1x1x4x4xf32> to vector<4x4xf32>
    %cst_165 = arith.constant dense<0.000000e+00> : vector<4x256xf32>
    %272 = tpu.matmul %271, %236, %cst_165 {dimension_numbers = #tpu.dot_dimension_numbers<[1], [0], [0], [1], [0, 0, 1, 1], [], []>} : vector<4x4xf32>, vector<4x256xf32>, vector<4x256xf32> -> vector<4x256xf32>
    %273 = arith.addf %269, %272 : vector<4x256xf32>
    %c0_166 = arith.constant 0 : index
    %c2_167 = arith.constant 2 : index
    %c0_168 = arith.constant 0 : index
    %c0_169 = arith.constant 0 : index
    %274 = vector.load %arg11[%c0_166, %c2_167, %c0_168, %c0_169] : memref<1x9x4x4xf32, #tpu.memory_space<vmem>>, vector<1x1x4x4xf32>
    %275 = vector.shape_cast %274 : vector<1x1x4x4xf32> to vector<4x4xf32>
    %cst_170 = arith.constant dense<0.000000e+00> : vector<4x256xf32>
    %276 = tpu.matmul %275, %241, %cst_170 {dimension_numbers = #tpu.dot_dimension_numbers<[1], [0], [0], [1], [0, 0, 1, 1], [], []>} : vector<4x4xf32>, vector<4x256xf32>, vector<4x256xf32> -> vector<4x256xf32>
    %277 = arith.addf %273, %276 : vector<4x256xf32>
    %c0_171 = arith.constant 0 : index
    %c3_172 = arith.constant 3 : index
    %c0_173 = arith.constant 0 : index
    %c0_174 = arith.constant 0 : index
    %278 = vector.load %arg11[%c0_171, %c3_172, %c0_173, %c0_174] : memref<1x9x4x4xf32, #tpu.memory_space<vmem>>, vector<1x1x4x4xf32>
    %279 = vector.shape_cast %278 : vector<1x1x4x4xf32> to vector<4x4xf32>
    %cst_175 = arith.constant dense<0.000000e+00> : vector<4x256xf32>
    %280 = tpu.matmul %279, %246, %cst_175 {dimension_numbers = #tpu.dot_dimension_numbers<[1], [0], [0], [1], [0, 0, 1, 1], [], []>} : vector<4x4xf32>, vector<4x256xf32>, vector<4x256xf32> -> vector<4x256xf32>
    %281 = arith.addf %277, %280 : vector<4x256xf32>
    %c0_176 = arith.constant 0 : index
    %c4_177 = arith.constant 4 : index
    %c0_178 = arith.constant 0 : index
    %c0_179 = arith.constant 0 : index
    %282 = vector.load %arg11[%c0_176, %c4_177, %c0_178, %c0_179] : memref<1x9x4x4xf32, #tpu.memory_space<vmem>>, vector<1x1x4x4xf32>
    %283 = vector.shape_cast %282 : vector<1x1x4x4xf32> to vector<4x4xf32>
    %cst_180 = arith.constant dense<0.000000e+00> : vector<4x256xf32>
    %284 = tpu.matmul %283, %226, %cst_180 {dimension_numbers = #tpu.dot_dimension_numbers<[1], [0], [0], [1], [0, 0, 1, 1], [], []>} : vector<4x4xf32>, vector<4x256xf32>, vector<4x256xf32> -> vector<4x256xf32>
    %285 = arith.addf %281, %284 : vector<4x256xf32>
    %c0_181 = arith.constant 0 : index
    %c5_182 = arith.constant 5 : index
    %c0_183 = arith.constant 0 : index
    %c0_184 = arith.constant 0 : index
    %286 = vector.load %arg11[%c0_181, %c5_182, %c0_183, %c0_184] : memref<1x9x4x4xf32, #tpu.memory_space<vmem>>, vector<1x1x4x4xf32>
    %287 = vector.shape_cast %286 : vector<1x1x4x4xf32> to vector<4x4xf32>
    %cst_185 = arith.constant dense<0.000000e+00> : vector<4x256xf32>
    %288 = tpu.matmul %287, %251, %cst_185 {dimension_numbers = #tpu.dot_dimension_numbers<[1], [0], [0], [1], [0, 0, 1, 1], [], []>} : vector<4x4xf32>, vector<4x256xf32>, vector<4x256xf32> -> vector<4x256xf32>
    %289 = arith.addf %285, %288 : vector<4x256xf32>
    %c0_186 = arith.constant 0 : index
    %c6_187 = arith.constant 6 : index
    %c0_188 = arith.constant 0 : index
    %c0_189 = arith.constant 0 : index
    %290 = vector.load %arg11[%c0_186, %c6_187, %c0_188, %c0_189] : memref<1x9x4x4xf32, #tpu.memory_space<vmem>>, vector<1x1x4x4xf32>
    %291 = vector.shape_cast %290 : vector<1x1x4x4xf32> to vector<4x4xf32>
    %cst_190 = arith.constant dense<0.000000e+00> : vector<4x256xf32>
    %292 = tpu.matmul %291, %256, %cst_190 {dimension_numbers = #tpu.dot_dimension_numbers<[1], [0], [0], [1], [0, 0, 1, 1], [], []>} : vector<4x4xf32>, vector<4x256xf32>, vector<4x256xf32> -> vector<4x256xf32>
    %293 = arith.addf %289, %292 : vector<4x256xf32>
    %c0_191 = arith.constant 0 : index
    %c7_192 = arith.constant 7 : index
    %c0_193 = arith.constant 0 : index
    %c0_194 = arith.constant 0 : index
    %294 = vector.load %arg11[%c0_191, %c7_192, %c0_193, %c0_194] : memref<1x9x4x4xf32, #tpu.memory_space<vmem>>, vector<1x1x4x4xf32>
    %295 = vector.shape_cast %294 : vector<1x1x4x4xf32> to vector<4x4xf32>
    %cst_195 = arith.constant dense<0.000000e+00> : vector<4x256xf32>
    %296 = tpu.matmul %295, %261, %cst_195 {dimension_numbers = #tpu.dot_dimension_numbers<[1], [0], [0], [1], [0, 0, 1, 1], [], []>} : vector<4x4xf32>, vector<4x256xf32>, vector<4x256xf32> -> vector<4x256xf32>
    %297 = arith.addf %293, %296 : vector<4x256xf32>
    %c0_196 = arith.constant 0 : index
    %c8_197 = arith.constant 8 : index
    %c0_198 = arith.constant 0 : index
    %c0_199 = arith.constant 0 : index
    %298 = vector.load %arg11[%c0_196, %c8_197, %c0_198, %c0_199] : memref<1x9x4x4xf32, #tpu.memory_space<vmem>>, vector<1x1x4x4xf32>
    %299 = vector.shape_cast %298 : vector<1x1x4x4xf32> to vector<4x4xf32>
    %cst_200 = arith.constant dense<0.000000e+00> : vector<4x256xf32>
    %300 = tpu.matmul %299, %266, %cst_200 {dimension_numbers = #tpu.dot_dimension_numbers<[1], [0], [0], [1], [0, 0, 1, 1], [], []>} : vector<4x4xf32>, vector<4x256xf32>, vector<4x256xf32> -> vector<4x256xf32>
    %301 = arith.addf %297, %300 : vector<4x256xf32>
    %c0_201 = arith.constant 0 : index
    %c0_202 = arith.constant 0 : index
    %302 = vector.load %arg10[%c0_201, %c0_202] : memref<4x1xf32, #tpu.memory_space<vmem>>, vector<4x1xf32>
    %303 = vector.broadcast %302 : vector<4x1xf32> to vector<4x256xf32>
    %304 = arith.addf %301, %303 : vector<4x256xf32>
    %305 = arith.negf %304 : vector<4x256xf32>
    %306 = math.exp %305 : vector<4x256xf32>
    %cst_203 = arith.constant 1.000000e+00 : f32
    %307 = vector.broadcast %cst_203 : f32 to vector<4x256xf32>
    %308 = arith.addf %307, %306 : vector<4x256xf32>
    %309 = arith.divf %307, %308 : vector<4x256xf32>
    %310 = arith.mulf %304, %309 : vector<4x256xf32>
    %311 = arith.addf %310, %56 : vector<4x256xf32>
    %c17_i32_204 = arith.constant 17 : i32
    %312 = tpu.dynamic_rotate %311 by %c17_i32_204 dim 1 : vector<4x256xf32>, i32 -> vector<4x256xf32>
    %cst_205 = arith.constant 0.000000e+00 : f32
    %313 = vector.shape_cast %7 : vector<1x256xi1> to vector<1x256xi1>
    %314 = vector.broadcast %313 : vector<1x256xi1> to vector<4x256xi1>
    %315 = vector.broadcast %cst_205 : f32 to vector<4x256xf32>
    %316 = arith.select %314, %312, %315 : vector<4x256xi1>, vector<4x256xf32>
    %c16_i32_206 = arith.constant 16 : i32
    %317 = tpu.dynamic_rotate %311 by %c16_i32_206 dim 1 : vector<4x256xf32>, i32 -> vector<4x256xf32>
    %cst_207 = arith.constant 0.000000e+00 : f32
    %318 = vector.shape_cast %9 : vector<1x256xi1> to vector<1x256xi1>
    %319 = vector.broadcast %318 : vector<1x256xi1> to vector<4x256xi1>
    %320 = vector.broadcast %cst_207 : f32 to vector<4x256xf32>
    %321 = arith.select %319, %317, %320 : vector<4x256xi1>, vector<4x256xf32>
    %c15_i32_208 = arith.constant 15 : i32
    %322 = tpu.dynamic_rotate %311 by %c15_i32_208 dim 1 : vector<4x256xf32>, i32 -> vector<4x256xf32>
    %cst_209 = arith.constant 0.000000e+00 : f32
    %323 = vector.shape_cast %14 : vector<1x256xi1> to vector<1x256xi1>
    %324 = vector.broadcast %323 : vector<1x256xi1> to vector<4x256xi1>
    %325 = vector.broadcast %cst_209 : f32 to vector<4x256xf32>
    %326 = arith.select %324, %322, %325 : vector<4x256xi1>, vector<4x256xf32>
    %c1_i32_210 = arith.constant 1 : i32
    %327 = tpu.dynamic_rotate %311 by %c1_i32_210 dim 1 : vector<4x256xf32>, i32 -> vector<4x256xf32>
    %cst_211 = arith.constant 0.000000e+00 : f32
    %328 = vector.shape_cast %16 : vector<1x256xi1> to vector<1x256xi1>
    %329 = vector.broadcast %328 : vector<1x256xi1> to vector<4x256xi1>
    %330 = vector.broadcast %cst_211 : f32 to vector<4x256xf32>
    %331 = arith.select %329, %327, %330 : vector<4x256xi1>, vector<4x256xf32>
    %c255_i32_212 = arith.constant 255 : i32
    %332 = tpu.dynamic_rotate %311 by %c255_i32_212 dim 1 : vector<4x256xf32>, i32 -> vector<4x256xf32>
    %cst_213 = arith.constant 0.000000e+00 : f32
    %333 = vector.shape_cast %18 : vector<1x256xi1> to vector<1x256xi1>
    %334 = vector.broadcast %333 : vector<1x256xi1> to vector<4x256xi1>
    %335 = vector.broadcast %cst_213 : f32 to vector<4x256xf32>
    %336 = arith.select %334, %332, %335 : vector<4x256xi1>, vector<4x256xf32>
    %c241_i32_214 = arith.constant 241 : i32
    %337 = tpu.dynamic_rotate %311 by %c241_i32_214 dim 1 : vector<4x256xf32>, i32 -> vector<4x256xf32>
    %cst_215 = arith.constant 0.000000e+00 : f32
    %338 = vector.shape_cast %23 : vector<1x256xi1> to vector<1x256xi1>
    %339 = vector.broadcast %338 : vector<1x256xi1> to vector<4x256xi1>
    %340 = vector.broadcast %cst_215 : f32 to vector<4x256xf32>
    %341 = arith.select %339, %337, %340 : vector<4x256xi1>, vector<4x256xf32>
    %c240_i32_216 = arith.constant 240 : i32
    %342 = tpu.dynamic_rotate %311 by %c240_i32_216 dim 1 : vector<4x256xf32>, i32 -> vector<4x256xf32>
    %cst_217 = arith.constant 0.000000e+00 : f32
    %343 = vector.shape_cast %25 : vector<1x256xi1> to vector<1x256xi1>
    %344 = vector.broadcast %343 : vector<1x256xi1> to vector<4x256xi1>
    %345 = vector.broadcast %cst_217 : f32 to vector<4x256xf32>
    %346 = arith.select %344, %342, %345 : vector<4x256xi1>, vector<4x256xf32>
    %c239_i32_218 = arith.constant 239 : i32
    %347 = tpu.dynamic_rotate %311 by %c239_i32_218 dim 1 : vector<4x256xf32>, i32 -> vector<4x256xf32>
    %cst_219 = arith.constant 0.000000e+00 : f32
    %348 = vector.shape_cast %30 : vector<1x256xi1> to vector<1x256xi1>
    %349 = vector.broadcast %348 : vector<1x256xi1> to vector<4x256xi1>
    %350 = vector.broadcast %cst_219 : f32 to vector<4x256xf32>
    %351 = arith.select %349, %347, %350 : vector<4x256xi1>, vector<4x256xf32>
    %c0_220 = arith.constant 0 : index
    %c0_221 = arith.constant 0 : index
    %c0_222 = arith.constant 0 : index
    %c0_223 = arith.constant 0 : index
    %352 = vector.load %arg11[%c0_220, %c0_221, %c0_222, %c0_223] : memref<1x9x4x4xf32, #tpu.memory_space<vmem>>, vector<1x1x4x4xf32>
    %353 = vector.shape_cast %352 : vector<1x1x4x4xf32> to vector<4x4xf32>
    %cst_224 = arith.constant dense<0.000000e+00> : vector<4x256xf32>
    %354 = tpu.matmul %353, %316, %cst_224 {dimension_numbers = #tpu.dot_dimension_numbers<[1], [0], [0], [1], [0, 0, 1, 1], [], []>} : vector<4x4xf32>, vector<4x256xf32>, vector<4x256xf32> -> vector<4x256xf32>
    %c0_225 = arith.constant 0 : index
    %c1_226 = arith.constant 1 : index
    %c0_227 = arith.constant 0 : index
    %c0_228 = arith.constant 0 : index
    %355 = vector.load %arg11[%c0_225, %c1_226, %c0_227, %c0_228] : memref<1x9x4x4xf32, #tpu.memory_space<vmem>>, vector<1x1x4x4xf32>
    %356 = vector.shape_cast %355 : vector<1x1x4x4xf32> to vector<4x4xf32>
    %cst_229 = arith.constant dense<0.000000e+00> : vector<4x256xf32>
    %357 = tpu.matmul %356, %321, %cst_229 {dimension_numbers = #tpu.dot_dimension_numbers<[1], [0], [0], [1], [0, 0, 1, 1], [], []>} : vector<4x4xf32>, vector<4x256xf32>, vector<4x256xf32> -> vector<4x256xf32>
    %358 = arith.addf %354, %357 : vector<4x256xf32>
    %c0_230 = arith.constant 0 : index
    %c2_231 = arith.constant 2 : index
    %c0_232 = arith.constant 0 : index
    %c0_233 = arith.constant 0 : index
    %359 = vector.load %arg11[%c0_230, %c2_231, %c0_232, %c0_233] : memref<1x9x4x4xf32, #tpu.memory_space<vmem>>, vector<1x1x4x4xf32>
    %360 = vector.shape_cast %359 : vector<1x1x4x4xf32> to vector<4x4xf32>
    %cst_234 = arith.constant dense<0.000000e+00> : vector<4x256xf32>
    %361 = tpu.matmul %360, %326, %cst_234 {dimension_numbers = #tpu.dot_dimension_numbers<[1], [0], [0], [1], [0, 0, 1, 1], [], []>} : vector<4x4xf32>, vector<4x256xf32>, vector<4x256xf32> -> vector<4x256xf32>
    %362 = arith.addf %358, %361 : vector<4x256xf32>
    %c0_235 = arith.constant 0 : index
    %c3_236 = arith.constant 3 : index
    %c0_237 = arith.constant 0 : index
    %c0_238 = arith.constant 0 : index
    %363 = vector.load %arg11[%c0_235, %c3_236, %c0_237, %c0_238] : memref<1x9x4x4xf32, #tpu.memory_space<vmem>>, vector<1x1x4x4xf32>
    %364 = vector.shape_cast %363 : vector<1x1x4x4xf32> to vector<4x4xf32>
    %cst_239 = arith.constant dense<0.000000e+00> : vector<4x256xf32>
    %365 = tpu.matmul %364, %331, %cst_239 {dimension_numbers = #tpu.dot_dimension_numbers<[1], [0], [0], [1], [0, 0, 1, 1], [], []>} : vector<4x4xf32>, vector<4x256xf32>, vector<4x256xf32> -> vector<4x256xf32>
    %366 = arith.addf %362, %365 : vector<4x256xf32>
    %c0_240 = arith.constant 0 : index
    %c4_241 = arith.constant 4 : index
    %c0_242 = arith.constant 0 : index
    %c0_243 = arith.constant 0 : index
    %367 = vector.load %arg11[%c0_240, %c4_241, %c0_242, %c0_243] : memref<1x9x4x4xf32, #tpu.memory_space<vmem>>, vector<1x1x4x4xf32>
    %368 = vector.shape_cast %367 : vector<1x1x4x4xf32> to vector<4x4xf32>
    %cst_244 = arith.constant dense<0.000000e+00> : vector<4x256xf32>
    %369 = tpu.matmul %368, %311, %cst_244 {dimension_numbers = #tpu.dot_dimension_numbers<[1], [0], [0], [1], [0, 0, 1, 1], [], []>} : vector<4x4xf32>, vector<4x256xf32>, vector<4x256xf32> -> vector<4x256xf32>
    %370 = arith.addf %366, %369 : vector<4x256xf32>
    %c0_245 = arith.constant 0 : index
    %c5_246 = arith.constant 5 : index
    %c0_247 = arith.constant 0 : index
    %c0_248 = arith.constant 0 : index
    %371 = vector.load %arg11[%c0_245, %c5_246, %c0_247, %c0_248] : memref<1x9x4x4xf32, #tpu.memory_space<vmem>>, vector<1x1x4x4xf32>
    %372 = vector.shape_cast %371 : vector<1x1x4x4xf32> to vector<4x4xf32>
    %cst_249 = arith.constant dense<0.000000e+00> : vector<4x256xf32>
    %373 = tpu.matmul %372, %336, %cst_249 {dimension_numbers = #tpu.dot_dimension_numbers<[1], [0], [0], [1], [0, 0, 1, 1], [], []>} : vector<4x4xf32>, vector<4x256xf32>, vector<4x256xf32> -> vector<4x256xf32>
    %374 = arith.addf %370, %373 : vector<4x256xf32>
    %c0_250 = arith.constant 0 : index
    %c6_251 = arith.constant 6 : index
    %c0_252 = arith.constant 0 : index
    %c0_253 = arith.constant 0 : index
    %375 = vector.load %arg11[%c0_250, %c6_251, %c0_252, %c0_253] : memref<1x9x4x4xf32, #tpu.memory_space<vmem>>, vector<1x1x4x4xf32>
    %376 = vector.shape_cast %375 : vector<1x1x4x4xf32> to vector<4x4xf32>
    %cst_254 = arith.constant dense<0.000000e+00> : vector<4x256xf32>
    %377 = tpu.matmul %376, %341, %cst_254 {dimension_numbers = #tpu.dot_dimension_numbers<[1], [0], [0], [1], [0, 0, 1, 1], [], []>} : vector<4x4xf32>, vector<4x256xf32>, vector<4x256xf32> -> vector<4x256xf32>
    %378 = arith.addf %374, %377 : vector<4x256xf32>
    %c0_255 = arith.constant 0 : index
    %c7_256 = arith.constant 7 : index
    %c0_257 = arith.constant 0 : index
    %c0_258 = arith.constant 0 : index
    %379 = vector.load %arg11[%c0_255, %c7_256, %c0_257, %c0_258] : memref<1x9x4x4xf32, #tpu.memory_space<vmem>>, vector<1x1x4x4xf32>
    %380 = vector.shape_cast %379 : vector<1x1x4x4xf32> to vector<4x4xf32>
    %cst_259 = arith.constant dense<0.000000e+00> : vector<4x256xf32>
    %381 = tpu.matmul %380, %346, %cst_259 {dimension_numbers = #tpu.dot_dimension_numbers<[1], [0], [0], [1], [0, 0, 1, 1], [], []>} : vector<4x4xf32>, vector<4x256xf32>, vector<4x256xf32> -> vector<4x256xf32>
    %382 = arith.addf %378, %381 : vector<4x256xf32>
    %c0_260 = arith.constant 0 : index
    %c8_261 = arith.constant 8 : index
    %c0_262 = arith.constant 0 : index
    %c0_263 = arith.constant 0 : index
    %383 = vector.load %arg11[%c0_260, %c8_261, %c0_262, %c0_263] : memref<1x9x4x4xf32, #tpu.memory_space<vmem>>, vector<1x1x4x4xf32>
    %384 = vector.shape_cast %383 : vector<1x1x4x4xf32> to vector<4x4xf32>
    %cst_264 = arith.constant dense<0.000000e+00> : vector<4x256xf32>
    %385 = tpu.matmul %384, %351, %cst_264 {dimension_numbers = #tpu.dot_dimension_numbers<[1], [0], [0], [1], [0, 0, 1, 1], [], []>} : vector<4x4xf32>, vector<4x256xf32>, vector<4x256xf32> -> vector<4x256xf32>
    %386 = arith.addf %382, %385 : vector<4x256xf32>
    %c0_265 = arith.constant 0 : index
    %c0_266 = arith.constant 0 : index
    %387 = vector.load %arg10[%c0_265, %c0_266] : memref<4x1xf32, #tpu.memory_space<vmem>>, vector<4x1xf32>
    %388 = vector.broadcast %387 : vector<4x1xf32> to vector<4x256xf32>
    %389 = arith.addf %386, %388 : vector<4x256xf32>
    %390 = arith.negf %389 : vector<4x256xf32>
    %391 = math.exp %390 : vector<4x256xf32>
    %cst_267 = arith.constant 1.000000e+00 : f32
    %392 = vector.broadcast %cst_267 : f32 to vector<4x256xf32>
    %393 = arith.addf %392, %391 : vector<4x256xf32>
    %394 = arith.divf %392, %393 : vector<4x256xf32>
    %395 = arith.mulf %389, %394 : vector<4x256xf32>
    %396 = arith.addf %310, %395 : vector<4x256xf32>
    %c17_i32_268 = arith.constant 17 : i32
    %397 = tpu.dynamic_rotate %396 by %c17_i32_268 dim 1 : vector<4x256xf32>, i32 -> vector<4x256xf32>
    %cst_269 = arith.constant 0.000000e+00 : f32
    %398 = vector.shape_cast %7 : vector<1x256xi1> to vector<1x256xi1>
    %399 = vector.broadcast %398 : vector<1x256xi1> to vector<4x256xi1>
    %400 = vector.broadcast %cst_269 : f32 to vector<4x256xf32>
    %401 = arith.select %399, %397, %400 : vector<4x256xi1>, vector<4x256xf32>
    %c16_i32_270 = arith.constant 16 : i32
    %402 = tpu.dynamic_rotate %396 by %c16_i32_270 dim 1 : vector<4x256xf32>, i32 -> vector<4x256xf32>
    %cst_271 = arith.constant 0.000000e+00 : f32
    %403 = vector.shape_cast %9 : vector<1x256xi1> to vector<1x256xi1>
    %404 = vector.broadcast %403 : vector<1x256xi1> to vector<4x256xi1>
    %405 = vector.broadcast %cst_271 : f32 to vector<4x256xf32>
    %406 = arith.select %404, %402, %405 : vector<4x256xi1>, vector<4x256xf32>
    %c15_i32_272 = arith.constant 15 : i32
    %407 = tpu.dynamic_rotate %396 by %c15_i32_272 dim 1 : vector<4x256xf32>, i32 -> vector<4x256xf32>
    %cst_273 = arith.constant 0.000000e+00 : f32
    %408 = vector.shape_cast %14 : vector<1x256xi1> to vector<1x256xi1>
    %409 = vector.broadcast %408 : vector<1x256xi1> to vector<4x256xi1>
    %410 = vector.broadcast %cst_273 : f32 to vector<4x256xf32>
    %411 = arith.select %409, %407, %410 : vector<4x256xi1>, vector<4x256xf32>
    %c1_i32_274 = arith.constant 1 : i32
    %412 = tpu.dynamic_rotate %396 by %c1_i32_274 dim 1 : vector<4x256xf32>, i32 -> vector<4x256xf32>
    %cst_275 = arith.constant 0.000000e+00 : f32
    %413 = vector.shape_cast %16 : vector<1x256xi1> to vector<1x256xi1>
    %414 = vector.broadcast %413 : vector<1x256xi1> to vector<4x256xi1>
    %415 = vector.broadcast %cst_275 : f32 to vector<4x256xf32>
    %416 = arith.select %414, %412, %415 : vector<4x256xi1>, vector<4x256xf32>
    %c255_i32_276 = arith.constant 255 : i32
    %417 = tpu.dynamic_rotate %396 by %c255_i32_276 dim 1 : vector<4x256xf32>, i32 -> vector<4x256xf32>
    %cst_277 = arith.constant 0.000000e+00 : f32
    %418 = vector.shape_cast %18 : vector<1x256xi1> to vector<1x256xi1>
    %419 = vector.broadcast %418 : vector<1x256xi1> to vector<4x256xi1>
    %420 = vector.broadcast %cst_277 : f32 to vector<4x256xf32>
    %421 = arith.select %419, %417, %420 : vector<4x256xi1>, vector<4x256xf32>
    %c241_i32_278 = arith.constant 241 : i32
    %422 = tpu.dynamic_rotate %396 by %c241_i32_278 dim 1 : vector<4x256xf32>, i32 -> vector<4x256xf32>
    %cst_279 = arith.constant 0.000000e+00 : f32
    %423 = vector.shape_cast %23 : vector<1x256xi1> to vector<1x256xi1>
    %424 = vector.broadcast %423 : vector<1x256xi1> to vector<4x256xi1>
    %425 = vector.broadcast %cst_279 : f32 to vector<4x256xf32>
    %426 = arith.select %424, %422, %425 : vector<4x256xi1>, vector<4x256xf32>
    %c240_i32_280 = arith.constant 240 : i32
    %427 = tpu.dynamic_rotate %396 by %c240_i32_280 dim 1 : vector<4x256xf32>, i32 -> vector<4x256xf32>
    %cst_281 = arith.constant 0.000000e+00 : f32
    %428 = vector.shape_cast %25 : vector<1x256xi1> to vector<1x256xi1>
    %429 = vector.broadcast %428 : vector<1x256xi1> to vector<4x256xi1>
    %430 = vector.broadcast %cst_281 : f32 to vector<4x256xf32>
    %431 = arith.select %429, %427, %430 : vector<4x256xi1>, vector<4x256xf32>
    %c239_i32_282 = arith.constant 239 : i32
    %432 = tpu.dynamic_rotate %396 by %c239_i32_282 dim 1 : vector<4x256xf32>, i32 -> vector<4x256xf32>
    %cst_283 = arith.constant 0.000000e+00 : f32
    %433 = vector.shape_cast %30 : vector<1x256xi1> to vector<1x256xi1>
    %434 = vector.broadcast %433 : vector<1x256xi1> to vector<4x256xi1>
    %435 = vector.broadcast %cst_283 : f32 to vector<4x256xf32>
    %436 = arith.select %434, %432, %435 : vector<4x256xi1>, vector<4x256xf32>
    %c0_284 = arith.constant 0 : index
    %c0_285 = arith.constant 0 : index
    %c0_286 = arith.constant 0 : index
    %c0_287 = arith.constant 0 : index
    %437 = vector.load %arg11[%c0_284, %c0_285, %c0_286, %c0_287] : memref<1x9x4x4xf32, #tpu.memory_space<vmem>>, vector<1x1x4x4xf32>
    %438 = vector.shape_cast %437 : vector<1x1x4x4xf32> to vector<4x4xf32>
    %cst_288 = arith.constant dense<0.000000e+00> : vector<4x256xf32>
    %439 = tpu.matmul %438, %401, %cst_288 {dimension_numbers = #tpu.dot_dimension_numbers<[1], [0], [0], [1], [0, 0, 1, 1], [], []>} : vector<4x4xf32>, vector<4x256xf32>, vector<4x256xf32> -> vector<4x256xf32>
    %c0_289 = arith.constant 0 : index
    %c1_290 = arith.constant 1 : index
    %c0_291 = arith.constant 0 : index
    %c0_292 = arith.constant 0 : index
    %440 = vector.load %arg11[%c0_289, %c1_290, %c0_291, %c0_292] : memref<1x9x4x4xf32, #tpu.memory_space<vmem>>, vector<1x1x4x4xf32>
    %441 = vector.shape_cast %440 : vector<1x1x4x4xf32> to vector<4x4xf32>
    %cst_293 = arith.constant dense<0.000000e+00> : vector<4x256xf32>
    %442 = tpu.matmul %441, %406, %cst_293 {dimension_numbers = #tpu.dot_dimension_numbers<[1], [0], [0], [1], [0, 0, 1, 1], [], []>} : vector<4x4xf32>, vector<4x256xf32>, vector<4x256xf32> -> vector<4x256xf32>
    %443 = arith.addf %439, %442 : vector<4x256xf32>
    %c0_294 = arith.constant 0 : index
    %c2_295 = arith.constant 2 : index
    %c0_296 = arith.constant 0 : index
    %c0_297 = arith.constant 0 : index
    %444 = vector.load %arg11[%c0_294, %c2_295, %c0_296, %c0_297] : memref<1x9x4x4xf32, #tpu.memory_space<vmem>>, vector<1x1x4x4xf32>
    %445 = vector.shape_cast %444 : vector<1x1x4x4xf32> to vector<4x4xf32>
    %cst_298 = arith.constant dense<0.000000e+00> : vector<4x256xf32>
    %446 = tpu.matmul %445, %411, %cst_298 {dimension_numbers = #tpu.dot_dimension_numbers<[1], [0], [0], [1], [0, 0, 1, 1], [], []>} : vector<4x4xf32>, vector<4x256xf32>, vector<4x256xf32> -> vector<4x256xf32>
    %447 = arith.addf %443, %446 : vector<4x256xf32>
    %c0_299 = arith.constant 0 : index
    %c3_300 = arith.constant 3 : index
    %c0_301 = arith.constant 0 : index
    %c0_302 = arith.constant 0 : index
    %448 = vector.load %arg11[%c0_299, %c3_300, %c0_301, %c0_302] : memref<1x9x4x4xf32, #tpu.memory_space<vmem>>, vector<1x1x4x4xf32>
    %449 = vector.shape_cast %448 : vector<1x1x4x4xf32> to vector<4x4xf32>
    %cst_303 = arith.constant dense<0.000000e+00> : vector<4x256xf32>
    %450 = tpu.matmul %449, %416, %cst_303 {dimension_numbers = #tpu.dot_dimension_numbers<[1], [0], [0], [1], [0, 0, 1, 1], [], []>} : vector<4x4xf32>, vector<4x256xf32>, vector<4x256xf32> -> vector<4x256xf32>
    %451 = arith.addf %447, %450 : vector<4x256xf32>
    %c0_304 = arith.constant 0 : index
    %c4_305 = arith.constant 4 : index
    %c0_306 = arith.constant 0 : index
    %c0_307 = arith.constant 0 : index
    %452 = vector.load %arg11[%c0_304, %c4_305, %c0_306, %c0_307] : memref<1x9x4x4xf32, #tpu.memory_space<vmem>>, vector<1x1x4x4xf32>
    %453 = vector.shape_cast %452 : vector<1x1x4x4xf32> to vector<4x4xf32>
    %cst_308 = arith.constant dense<0.000000e+00> : vector<4x256xf32>
    %454 = tpu.matmul %453, %396, %cst_308 {dimension_numbers = #tpu.dot_dimension_numbers<[1], [0], [0], [1], [0, 0, 1, 1], [], []>} : vector<4x4xf32>, vector<4x256xf32>, vector<4x256xf32> -> vector<4x256xf32>
    %455 = arith.addf %451, %454 : vector<4x256xf32>
    %c0_309 = arith.constant 0 : index
    %c5_310 = arith.constant 5 : index
    %c0_311 = arith.constant 0 : index
    %c0_312 = arith.constant 0 : index
    %456 = vector.load %arg11[%c0_309, %c5_310, %c0_311, %c0_312] : memref<1x9x4x4xf32, #tpu.memory_space<vmem>>, vector<1x1x4x4xf32>
    %457 = vector.shape_cast %456 : vector<1x1x4x4xf32> to vector<4x4xf32>
    %cst_313 = arith.constant dense<0.000000e+00> : vector<4x256xf32>
    %458 = tpu.matmul %457, %421, %cst_313 {dimension_numbers = #tpu.dot_dimension_numbers<[1], [0], [0], [1], [0, 0, 1, 1], [], []>} : vector<4x4xf32>, vector<4x256xf32>, vector<4x256xf32> -> vector<4x256xf32>
    %459 = arith.addf %455, %458 : vector<4x256xf32>
    %c0_314 = arith.constant 0 : index
    %c6_315 = arith.constant 6 : index
    %c0_316 = arith.constant 0 : index
    %c0_317 = arith.constant 0 : index
    %460 = vector.load %arg11[%c0_314, %c6_315, %c0_316, %c0_317] : memref<1x9x4x4xf32, #tpu.memory_space<vmem>>, vector<1x1x4x4xf32>
    %461 = vector.shape_cast %460 : vector<1x1x4x4xf32> to vector<4x4xf32>
    %cst_318 = arith.constant dense<0.000000e+00> : vector<4x256xf32>
    %462 = tpu.matmul %461, %426, %cst_318 {dimension_numbers = #tpu.dot_dimension_numbers<[1], [0], [0], [1], [0, 0, 1, 1], [], []>} : vector<4x4xf32>, vector<4x256xf32>, vector<4x256xf32> -> vector<4x256xf32>
    %463 = arith.addf %459, %462 : vector<4x256xf32>
    %c0_319 = arith.constant 0 : index
    %c7_320 = arith.constant 7 : index
    %c0_321 = arith.constant 0 : index
    %c0_322 = arith.constant 0 : index
    %464 = vector.load %arg11[%c0_319, %c7_320, %c0_321, %c0_322] : memref<1x9x4x4xf32, #tpu.memory_space<vmem>>, vector<1x1x4x4xf32>
    %465 = vector.shape_cast %464 : vector<1x1x4x4xf32> to vector<4x4xf32>
    %cst_323 = arith.constant dense<0.000000e+00> : vector<4x256xf32>
    %466 = tpu.matmul %465, %431, %cst_323 {dimension_numbers = #tpu.dot_dimension_numbers<[1], [0], [0], [1], [0, 0, 1, 1], [], []>} : vector<4x4xf32>, vector<4x256xf32>, vector<4x256xf32> -> vector<4x256xf32>
    %467 = arith.addf %463, %466 : vector<4x256xf32>
    %c0_324 = arith.constant 0 : index
    %c8_325 = arith.constant 8 : index
    %c0_326 = arith.constant 0 : index
    %c0_327 = arith.constant 0 : index
    %468 = vector.load %arg11[%c0_324, %c8_325, %c0_326, %c0_327] : memref<1x9x4x4xf32, #tpu.memory_space<vmem>>, vector<1x1x4x4xf32>
    %469 = vector.shape_cast %468 : vector<1x1x4x4xf32> to vector<4x4xf32>
    %cst_328 = arith.constant dense<0.000000e+00> : vector<4x256xf32>
    %470 = tpu.matmul %469, %436, %cst_328 {dimension_numbers = #tpu.dot_dimension_numbers<[1], [0], [0], [1], [0, 0, 1, 1], [], []>} : vector<4x4xf32>, vector<4x256xf32>, vector<4x256xf32> -> vector<4x256xf32>
    %471 = arith.addf %467, %470 : vector<4x256xf32>
    %c0_329 = arith.constant 0 : index
    %c0_330 = arith.constant 0 : index
    %472 = vector.load %arg10[%c0_329, %c0_330] : memref<4x1xf32, #tpu.memory_space<vmem>>, vector<4x1xf32>
    %473 = vector.broadcast %472 : vector<4x1xf32> to vector<4x256xf32>
    %474 = arith.addf %471, %473 : vector<4x256xf32>
    %475 = arith.negf %474 : vector<4x256xf32>
    %476 = math.exp %475 : vector<4x256xf32>
    %cst_331 = arith.constant 1.000000e+00 : f32
    %477 = vector.broadcast %cst_331 : f32 to vector<4x256xf32>
    %478 = arith.addf %477, %476 : vector<4x256xf32>
    %479 = arith.divf %477, %478 : vector<4x256xf32>
    %480 = arith.mulf %474, %479 : vector<4x256xf32>
    %c17_i32_332 = arith.constant 17 : i32
    %481 = tpu.dynamic_rotate %480 by %c17_i32_332 dim 1 : vector<4x256xf32>, i32 -> vector<4x256xf32>
    %cst_333 = arith.constant 0.000000e+00 : f32
    %482 = vector.shape_cast %7 : vector<1x256xi1> to vector<1x256xi1>
    %483 = vector.broadcast %482 : vector<1x256xi1> to vector<4x256xi1>
    %484 = vector.broadcast %cst_333 : f32 to vector<4x256xf32>
    %485 = arith.select %483, %481, %484 : vector<4x256xi1>, vector<4x256xf32>
    %c16_i32_334 = arith.constant 16 : i32
    %486 = tpu.dynamic_rotate %480 by %c16_i32_334 dim 1 : vector<4x256xf32>, i32 -> vector<4x256xf32>
    %cst_335 = arith.constant 0.000000e+00 : f32
    %487 = vector.shape_cast %9 : vector<1x256xi1> to vector<1x256xi1>
    %488 = vector.broadcast %487 : vector<1x256xi1> to vector<4x256xi1>
    %489 = vector.broadcast %cst_335 : f32 to vector<4x256xf32>
    %490 = arith.select %488, %486, %489 : vector<4x256xi1>, vector<4x256xf32>
    %c15_i32_336 = arith.constant 15 : i32
    %491 = tpu.dynamic_rotate %480 by %c15_i32_336 dim 1 : vector<4x256xf32>, i32 -> vector<4x256xf32>
    %cst_337 = arith.constant 0.000000e+00 : f32
    %492 = vector.shape_cast %14 : vector<1x256xi1> to vector<1x256xi1>
    %493 = vector.broadcast %492 : vector<1x256xi1> to vector<4x256xi1>
    %494 = vector.broadcast %cst_337 : f32 to vector<4x256xf32>
    %495 = arith.select %493, %491, %494 : vector<4x256xi1>, vector<4x256xf32>
    %c1_i32_338 = arith.constant 1 : i32
    %496 = tpu.dynamic_rotate %480 by %c1_i32_338 dim 1 : vector<4x256xf32>, i32 -> vector<4x256xf32>
    %cst_339 = arith.constant 0.000000e+00 : f32
    %497 = vector.shape_cast %16 : vector<1x256xi1> to vector<1x256xi1>
    %498 = vector.broadcast %497 : vector<1x256xi1> to vector<4x256xi1>
    %499 = vector.broadcast %cst_339 : f32 to vector<4x256xf32>
    %500 = arith.select %498, %496, %499 : vector<4x256xi1>, vector<4x256xf32>
    %c255_i32_340 = arith.constant 255 : i32
    %501 = tpu.dynamic_rotate %480 by %c255_i32_340 dim 1 : vector<4x256xf32>, i32 -> vector<4x256xf32>
    %cst_341 = arith.constant 0.000000e+00 : f32
    %502 = vector.shape_cast %18 : vector<1x256xi1> to vector<1x256xi1>
    %503 = vector.broadcast %502 : vector<1x256xi1> to vector<4x256xi1>
    %504 = vector.broadcast %cst_341 : f32 to vector<4x256xf32>
    %505 = arith.select %503, %501, %504 : vector<4x256xi1>, vector<4x256xf32>
    %c241_i32_342 = arith.constant 241 : i32
    %506 = tpu.dynamic_rotate %480 by %c241_i32_342 dim 1 : vector<4x256xf32>, i32 -> vector<4x256xf32>
    %cst_343 = arith.constant 0.000000e+00 : f32
    %507 = vector.shape_cast %23 : vector<1x256xi1> to vector<1x256xi1>
    %508 = vector.broadcast %507 : vector<1x256xi1> to vector<4x256xi1>
    %509 = vector.broadcast %cst_343 : f32 to vector<4x256xf32>
    %510 = arith.select %508, %506, %509 : vector<4x256xi1>, vector<4x256xf32>
    %c240_i32_344 = arith.constant 240 : i32
    %511 = tpu.dynamic_rotate %480 by %c240_i32_344 dim 1 : vector<4x256xf32>, i32 -> vector<4x256xf32>
    %cst_345 = arith.constant 0.000000e+00 : f32
    %512 = vector.shape_cast %25 : vector<1x256xi1> to vector<1x256xi1>
    %513 = vector.broadcast %512 : vector<1x256xi1> to vector<4x256xi1>
    %514 = vector.broadcast %cst_345 : f32 to vector<4x256xf32>
    %515 = arith.select %513, %511, %514 : vector<4x256xi1>, vector<4x256xf32>
    %c239_i32_346 = arith.constant 239 : i32
    %516 = tpu.dynamic_rotate %480 by %c239_i32_346 dim 1 : vector<4x256xf32>, i32 -> vector<4x256xf32>
    %cst_347 = arith.constant 0.000000e+00 : f32
    %517 = vector.shape_cast %30 : vector<1x256xi1> to vector<1x256xi1>
    %518 = vector.broadcast %517 : vector<1x256xi1> to vector<4x256xi1>
    %519 = vector.broadcast %cst_347 : f32 to vector<4x256xf32>
    %520 = arith.select %518, %516, %519 : vector<4x256xi1>, vector<4x256xf32>
    %c0_348 = arith.constant 0 : index
    %c0_349 = arith.constant 0 : index
    %c0_350 = arith.constant 0 : index
    %c0_351 = arith.constant 0 : index
    %521 = vector.load %arg11[%c0_348, %c0_349, %c0_350, %c0_351] : memref<1x9x4x4xf32, #tpu.memory_space<vmem>>, vector<1x1x4x4xf32>
    %522 = vector.shape_cast %521 : vector<1x1x4x4xf32> to vector<4x4xf32>
    %cst_352 = arith.constant dense<0.000000e+00> : vector<4x256xf32>
    %523 = tpu.matmul %522, %485, %cst_352 {dimension_numbers = #tpu.dot_dimension_numbers<[1], [0], [0], [1], [0, 0, 1, 1], [], []>} : vector<4x4xf32>, vector<4x256xf32>, vector<4x256xf32> -> vector<4x256xf32>
    %c0_353 = arith.constant 0 : index
    %c1_354 = arith.constant 1 : index
    %c0_355 = arith.constant 0 : index
    %c0_356 = arith.constant 0 : index
    %524 = vector.load %arg11[%c0_353, %c1_354, %c0_355, %c0_356] : memref<1x9x4x4xf32, #tpu.memory_space<vmem>>, vector<1x1x4x4xf32>
    %525 = vector.shape_cast %524 : vector<1x1x4x4xf32> to vector<4x4xf32>
    %cst_357 = arith.constant dense<0.000000e+00> : vector<4x256xf32>
    %526 = tpu.matmul %525, %490, %cst_357 {dimension_numbers = #tpu.dot_dimension_numbers<[1], [0], [0], [1], [0, 0, 1, 1], [], []>} : vector<4x4xf32>, vector<4x256xf32>, vector<4x256xf32> -> vector<4x256xf32>
    %527 = arith.addf %523, %526 : vector<4x256xf32>
    %c0_358 = arith.constant 0 : index
    %c2_359 = arith.constant 2 : index
    %c0_360 = arith.constant 0 : index
    %c0_361 = arith.constant 0 : index
    %528 = vector.load %arg11[%c0_358, %c2_359, %c0_360, %c0_361] : memref<1x9x4x4xf32, #tpu.memory_space<vmem>>, vector<1x1x4x4xf32>
    %529 = vector.shape_cast %528 : vector<1x1x4x4xf32> to vector<4x4xf32>
    %cst_362 = arith.constant dense<0.000000e+00> : vector<4x256xf32>
    %530 = tpu.matmul %529, %495, %cst_362 {dimension_numbers = #tpu.dot_dimension_numbers<[1], [0], [0], [1], [0, 0, 1, 1], [], []>} : vector<4x4xf32>, vector<4x256xf32>, vector<4x256xf32> -> vector<4x256xf32>
    %531 = arith.addf %527, %530 : vector<4x256xf32>
    %c0_363 = arith.constant 0 : index
    %c3_364 = arith.constant 3 : index
    %c0_365 = arith.constant 0 : index
    %c0_366 = arith.constant 0 : index
    %532 = vector.load %arg11[%c0_363, %c3_364, %c0_365, %c0_366] : memref<1x9x4x4xf32, #tpu.memory_space<vmem>>, vector<1x1x4x4xf32>
    %533 = vector.shape_cast %532 : vector<1x1x4x4xf32> to vector<4x4xf32>
    %cst_367 = arith.constant dense<0.000000e+00> : vector<4x256xf32>
    %534 = tpu.matmul %533, %500, %cst_367 {dimension_numbers = #tpu.dot_dimension_numbers<[1], [0], [0], [1], [0, 0, 1, 1], [], []>} : vector<4x4xf32>, vector<4x256xf32>, vector<4x256xf32> -> vector<4x256xf32>
    %535 = arith.addf %531, %534 : vector<4x256xf32>
    %c0_368 = arith.constant 0 : index
    %c4_369 = arith.constant 4 : index
    %c0_370 = arith.constant 0 : index
    %c0_371 = arith.constant 0 : index
    %536 = vector.load %arg11[%c0_368, %c4_369, %c0_370, %c0_371] : memref<1x9x4x4xf32, #tpu.memory_space<vmem>>, vector<1x1x4x4xf32>
    %537 = vector.shape_cast %536 : vector<1x1x4x4xf32> to vector<4x4xf32>
    %cst_372 = arith.constant dense<0.000000e+00> : vector<4x256xf32>
    %538 = tpu.matmul %537, %480, %cst_372 {dimension_numbers = #tpu.dot_dimension_numbers<[1], [0], [0], [1], [0, 0, 1, 1], [], []>} : vector<4x4xf32>, vector<4x256xf32>, vector<4x256xf32> -> vector<4x256xf32>
    %539 = arith.addf %535, %538 : vector<4x256xf32>
    %c0_373 = arith.constant 0 : index
    %c5_374 = arith.constant 5 : index
    %c0_375 = arith.constant 0 : index
    %c0_376 = arith.constant 0 : index
    %540 = vector.load %arg11[%c0_373, %c5_374, %c0_375, %c0_376] : memref<1x9x4x4xf32, #tpu.memory_space<vmem>>, vector<1x1x4x4xf32>
    %541 = vector.shape_cast %540 : vector<1x1x4x4xf32> to vector<4x4xf32>
    %cst_377 = arith.constant dense<0.000000e+00> : vector<4x256xf32>
    %542 = tpu.matmul %541, %505, %cst_377 {dimension_numbers = #tpu.dot_dimension_numbers<[1], [0], [0], [1], [0, 0, 1, 1], [], []>} : vector<4x4xf32>, vector<4x256xf32>, vector<4x256xf32> -> vector<4x256xf32>
    %543 = arith.addf %539, %542 : vector<4x256xf32>
    %c0_378 = arith.constant 0 : index
    %c6_379 = arith.constant 6 : index
    %c0_380 = arith.constant 0 : index
    %c0_381 = arith.constant 0 : index
    %544 = vector.load %arg11[%c0_378, %c6_379, %c0_380, %c0_381] : memref<1x9x4x4xf32, #tpu.memory_space<vmem>>, vector<1x1x4x4xf32>
    %545 = vector.shape_cast %544 : vector<1x1x4x4xf32> to vector<4x4xf32>
    %cst_382 = arith.constant dense<0.000000e+00> : vector<4x256xf32>
    %546 = tpu.matmul %545, %510, %cst_382 {dimension_numbers = #tpu.dot_dimension_numbers<[1], [0], [0], [1], [0, 0, 1, 1], [], []>} : vector<4x4xf32>, vector<4x256xf32>, vector<4x256xf32> -> vector<4x256xf32>
    %547 = arith.addf %543, %546 : vector<4x256xf32>
    %c0_383 = arith.constant 0 : index
    %c7_384 = arith.constant 7 : index
    %c0_385 = arith.constant 0 : index
    %c0_386 = arith.constant 0 : index
    %548 = vector.load %arg11[%c0_383, %c7_384, %c0_385, %c0_386] : memref<1x9x4x4xf32, #tpu.memory_space<vmem>>, vector<1x1x4x4xf32>
    %549 = vector.shape_cast %548 : vector<1x1x4x4xf32> to vector<4x4xf32>
    %cst_387 = arith.constant dense<0.000000e+00> : vector<4x256xf32>
    %550 = tpu.matmul %549, %515, %cst_387 {dimension_numbers = #tpu.dot_dimension_numbers<[1], [0], [0], [1], [0, 0, 1, 1], [], []>} : vector<4x4xf32>, vector<4x256xf32>, vector<4x256xf32> -> vector<4x256xf32>
    %551 = arith.addf %547, %550 : vector<4x256xf32>
    %c0_388 = arith.constant 0 : index
    %c8_389 = arith.constant 8 : index
    %c0_390 = arith.constant 0 : index
    %c0_391 = arith.constant 0 : index
    %552 = vector.load %arg11[%c0_388, %c8_389, %c0_390, %c0_391] : memref<1x9x4x4xf32, #tpu.memory_space<vmem>>, vector<1x1x4x4xf32>
    %553 = vector.shape_cast %552 : vector<1x1x4x4xf32> to vector<4x4xf32>
    %cst_392 = arith.constant dense<0.000000e+00> : vector<4x256xf32>
    %554 = tpu.matmul %553, %520, %cst_392 {dimension_numbers = #tpu.dot_dimension_numbers<[1], [0], [0], [1], [0, 0, 1, 1], [], []>} : vector<4x4xf32>, vector<4x256xf32>, vector<4x256xf32> -> vector<4x256xf32>
    %555 = arith.addf %551, %554 : vector<4x256xf32>
    %c0_393 = arith.constant 0 : index
    %c0_394 = arith.constant 0 : index
    %556 = vector.load %arg10[%c0_393, %c0_394] : memref<4x1xf32, #tpu.memory_space<vmem>>, vector<4x1xf32>
    %557 = vector.broadcast %556 : vector<4x1xf32> to vector<4x256xf32>
    %558 = arith.addf %555, %557 : vector<4x256xf32>
    %559 = arith.negf %558 : vector<4x256xf32>
    %560 = math.exp %559 : vector<4x256xf32>
    %cst_395 = arith.constant 1.000000e+00 : f32
    %561 = vector.broadcast %cst_395 : f32 to vector<4x256xf32>
    %562 = arith.addf %561, %560 : vector<4x256xf32>
    %563 = arith.divf %561, %562 : vector<4x256xf32>
    %564 = arith.mulf %558, %563 : vector<4x256xf32>
    %c17_i32_396 = arith.constant 17 : i32
    %565 = tpu.dynamic_rotate %564 by %c17_i32_396 dim 1 : vector<4x256xf32>, i32 -> vector<4x256xf32>
    %cst_397 = arith.constant 0.000000e+00 : f32
    %566 = vector.shape_cast %7 : vector<1x256xi1> to vector<1x256xi1>
    %567 = vector.broadcast %566 : vector<1x256xi1> to vector<4x256xi1>
    %568 = vector.broadcast %cst_397 : f32 to vector<4x256xf32>
    %569 = arith.select %567, %565, %568 : vector<4x256xi1>, vector<4x256xf32>
    %c16_i32_398 = arith.constant 16 : i32
    %570 = tpu.dynamic_rotate %564 by %c16_i32_398 dim 1 : vector<4x256xf32>, i32 -> vector<4x256xf32>
    %cst_399 = arith.constant 0.000000e+00 : f32
    %571 = vector.shape_cast %9 : vector<1x256xi1> to vector<1x256xi1>
    %572 = vector.broadcast %571 : vector<1x256xi1> to vector<4x256xi1>
    %573 = vector.broadcast %cst_399 : f32 to vector<4x256xf32>
    %574 = arith.select %572, %570, %573 : vector<4x256xi1>, vector<4x256xf32>
    %c15_i32_400 = arith.constant 15 : i32
    %575 = tpu.dynamic_rotate %564 by %c15_i32_400 dim 1 : vector<4x256xf32>, i32 -> vector<4x256xf32>
    %cst_401 = arith.constant 0.000000e+00 : f32
    %576 = vector.shape_cast %14 : vector<1x256xi1> to vector<1x256xi1>
    %577 = vector.broadcast %576 : vector<1x256xi1> to vector<4x256xi1>
    %578 = vector.broadcast %cst_401 : f32 to vector<4x256xf32>
    %579 = arith.select %577, %575, %578 : vector<4x256xi1>, vector<4x256xf32>
    %c1_i32_402 = arith.constant 1 : i32
    %580 = tpu.dynamic_rotate %564 by %c1_i32_402 dim 1 : vector<4x256xf32>, i32 -> vector<4x256xf32>
    %cst_403 = arith.constant 0.000000e+00 : f32
    %581 = vector.shape_cast %16 : vector<1x256xi1> to vector<1x256xi1>
    %582 = vector.broadcast %581 : vector<1x256xi1> to vector<4x256xi1>
    %583 = vector.broadcast %cst_403 : f32 to vector<4x256xf32>
    %584 = arith.select %582, %580, %583 : vector<4x256xi1>, vector<4x256xf32>
    %c255_i32_404 = arith.constant 255 : i32
    %585 = tpu.dynamic_rotate %564 by %c255_i32_404 dim 1 : vector<4x256xf32>, i32 -> vector<4x256xf32>
    %cst_405 = arith.constant 0.000000e+00 : f32
    %586 = vector.shape_cast %18 : vector<1x256xi1> to vector<1x256xi1>
    %587 = vector.broadcast %586 : vector<1x256xi1> to vector<4x256xi1>
    %588 = vector.broadcast %cst_405 : f32 to vector<4x256xf32>
    %589 = arith.select %587, %585, %588 : vector<4x256xi1>, vector<4x256xf32>
    %c241_i32_406 = arith.constant 241 : i32
    %590 = tpu.dynamic_rotate %564 by %c241_i32_406 dim 1 : vector<4x256xf32>, i32 -> vector<4x256xf32>
    %cst_407 = arith.constant 0.000000e+00 : f32
    %591 = vector.shape_cast %23 : vector<1x256xi1> to vector<1x256xi1>
    %592 = vector.broadcast %591 : vector<1x256xi1> to vector<4x256xi1>
    %593 = vector.broadcast %cst_407 : f32 to vector<4x256xf32>
    %594 = arith.select %592, %590, %593 : vector<4x256xi1>, vector<4x256xf32>
    %c240_i32_408 = arith.constant 240 : i32
    %595 = tpu.dynamic_rotate %564 by %c240_i32_408 dim 1 : vector<4x256xf32>, i32 -> vector<4x256xf32>
    %cst_409 = arith.constant 0.000000e+00 : f32
    %596 = vector.shape_cast %25 : vector<1x256xi1> to vector<1x256xi1>
    %597 = vector.broadcast %596 : vector<1x256xi1> to vector<4x256xi1>
    %598 = vector.broadcast %cst_409 : f32 to vector<4x256xf32>
    %599 = arith.select %597, %595, %598 : vector<4x256xi1>, vector<4x256xf32>
    %c239_i32_410 = arith.constant 239 : i32
    %600 = tpu.dynamic_rotate %564 by %c239_i32_410 dim 1 : vector<4x256xf32>, i32 -> vector<4x256xf32>
    %cst_411 = arith.constant 0.000000e+00 : f32
    %601 = vector.shape_cast %30 : vector<1x256xi1> to vector<1x256xi1>
    %602 = vector.broadcast %601 : vector<1x256xi1> to vector<4x256xi1>
    %603 = vector.broadcast %cst_411 : f32 to vector<4x256xf32>
    %604 = arith.select %602, %600, %603 : vector<4x256xi1>, vector<4x256xf32>
    %c17_i32_412 = arith.constant 17 : i32
    %605 = tpu.dynamic_rotate %395 by %c17_i32_412 dim 1 : vector<4x256xf32>, i32 -> vector<4x256xf32>
    %cst_413 = arith.constant 0.000000e+00 : f32
    %606 = vector.shape_cast %7 : vector<1x256xi1> to vector<1x256xi1>
    %607 = vector.broadcast %606 : vector<1x256xi1> to vector<4x256xi1>
    %608 = vector.broadcast %cst_413 : f32 to vector<4x256xf32>
    %609 = arith.select %607, %605, %608 : vector<4x256xi1>, vector<4x256xf32>
    %c16_i32_414 = arith.constant 16 : i32
    %610 = tpu.dynamic_rotate %395 by %c16_i32_414 dim 1 : vector<4x256xf32>, i32 -> vector<4x256xf32>
    %cst_415 = arith.constant 0.000000e+00 : f32
    %611 = vector.shape_cast %9 : vector<1x256xi1> to vector<1x256xi1>
    %612 = vector.broadcast %611 : vector<1x256xi1> to vector<4x256xi1>
    %613 = vector.broadcast %cst_415 : f32 to vector<4x256xf32>
    %614 = arith.select %612, %610, %613 : vector<4x256xi1>, vector<4x256xf32>
    %c15_i32_416 = arith.constant 15 : i32
    %615 = tpu.dynamic_rotate %395 by %c15_i32_416 dim 1 : vector<4x256xf32>, i32 -> vector<4x256xf32>
    %cst_417 = arith.constant 0.000000e+00 : f32
    %616 = vector.shape_cast %14 : vector<1x256xi1> to vector<1x256xi1>
    %617 = vector.broadcast %616 : vector<1x256xi1> to vector<4x256xi1>
    %618 = vector.broadcast %cst_417 : f32 to vector<4x256xf32>
    %619 = arith.select %617, %615, %618 : vector<4x256xi1>, vector<4x256xf32>
    %c1_i32_418 = arith.constant 1 : i32
    %620 = tpu.dynamic_rotate %395 by %c1_i32_418 dim 1 : vector<4x256xf32>, i32 -> vector<4x256xf32>
    %cst_419 = arith.constant 0.000000e+00 : f32
    %621 = vector.shape_cast %16 : vector<1x256xi1> to vector<1x256xi1>
    %622 = vector.broadcast %621 : vector<1x256xi1> to vector<4x256xi1>
    %623 = vector.broadcast %cst_419 : f32 to vector<4x256xf32>
    %624 = arith.select %622, %620, %623 : vector<4x256xi1>, vector<4x256xf32>
    %c255_i32_420 = arith.constant 255 : i32
    %625 = tpu.dynamic_rotate %395 by %c255_i32_420 dim 1 : vector<4x256xf32>, i32 -> vector<4x256xf32>
    %cst_421 = arith.constant 0.000000e+00 : f32
    %626 = vector.shape_cast %18 : vector<1x256xi1> to vector<1x256xi1>
    %627 = vector.broadcast %626 : vector<1x256xi1> to vector<4x256xi1>
    %628 = vector.broadcast %cst_421 : f32 to vector<4x256xf32>
    %629 = arith.select %627, %625, %628 : vector<4x256xi1>, vector<4x256xf32>
    %c241_i32_422 = arith.constant 241 : i32
    %630 = tpu.dynamic_rotate %395 by %c241_i32_422 dim 1 : vector<4x256xf32>, i32 -> vector<4x256xf32>
    %cst_423 = arith.constant 0.000000e+00 : f32
    %631 = vector.shape_cast %23 : vector<1x256xi1> to vector<1x256xi1>
    %632 = vector.broadcast %631 : vector<1x256xi1> to vector<4x256xi1>
    %633 = vector.broadcast %cst_423 : f32 to vector<4x256xf32>
    %634 = arith.select %632, %630, %633 : vector<4x256xi1>, vector<4x256xf32>
    %c240_i32_424 = arith.constant 240 : i32
    %635 = tpu.dynamic_rotate %395 by %c240_i32_424 dim 1 : vector<4x256xf32>, i32 -> vector<4x256xf32>
    %cst_425 = arith.constant 0.000000e+00 : f32
    %636 = vector.shape_cast %25 : vector<1x256xi1> to vector<1x256xi1>
    %637 = vector.broadcast %636 : vector<1x256xi1> to vector<4x256xi1>
    %638 = vector.broadcast %cst_425 : f32 to vector<4x256xf32>
    %639 = arith.select %637, %635, %638 : vector<4x256xi1>, vector<4x256xf32>
    %c239_i32_426 = arith.constant 239 : i32
    %640 = tpu.dynamic_rotate %395 by %c239_i32_426 dim 1 : vector<4x256xf32>, i32 -> vector<4x256xf32>
    %cst_427 = arith.constant 0.000000e+00 : f32
    %641 = vector.shape_cast %30 : vector<1x256xi1> to vector<1x256xi1>
    %642 = vector.broadcast %641 : vector<1x256xi1> to vector<4x256xi1>
    %643 = vector.broadcast %cst_427 : f32 to vector<4x256xf32>
    %644 = arith.select %642, %640, %643 : vector<4x256xi1>, vector<4x256xf32>
    %c0_428 = arith.constant 0 : index
    %c0_429 = arith.constant 0 : index
    %c0_430 = arith.constant 0 : index
    %c0_431 = arith.constant 0 : index
    %645 = vector.load %arg13[%c0_428, %c0_429, %c0_430, %c0_431] : memref<4x9x4x4xf32, #tpu.memory_space<vmem>>, vector<1x1x4x4xf32>
    %646 = vector.shape_cast %645 : vector<1x1x4x4xf32> to vector<4x4xf32>
    %cst_432 = arith.constant dense<0.000000e+00> : vector<4x256xf32>
    %647 = tpu.matmul %646, %569, %cst_432 {dimension_numbers = #tpu.dot_dimension_numbers<[1], [0], [0], [1], [0, 0, 1, 1], [], []>} : vector<4x4xf32>, vector<4x256xf32>, vector<4x256xf32> -> vector<4x256xf32>
    %c0_433 = arith.constant 0 : index
    %c1_434 = arith.constant 1 : index
    %c0_435 = arith.constant 0 : index
    %c0_436 = arith.constant 0 : index
    %648 = vector.load %arg13[%c0_433, %c1_434, %c0_435, %c0_436] : memref<4x9x4x4xf32, #tpu.memory_space<vmem>>, vector<1x1x4x4xf32>
    %649 = vector.shape_cast %648 : vector<1x1x4x4xf32> to vector<4x4xf32>
    %cst_437 = arith.constant dense<0.000000e+00> : vector<4x256xf32>
    %650 = tpu.matmul %649, %574, %cst_437 {dimension_numbers = #tpu.dot_dimension_numbers<[1], [0], [0], [1], [0, 0, 1, 1], [], []>} : vector<4x4xf32>, vector<4x256xf32>, vector<4x256xf32> -> vector<4x256xf32>
    %651 = arith.addf %647, %650 : vector<4x256xf32>
    %c0_438 = arith.constant 0 : index
    %c2_439 = arith.constant 2 : index
    %c0_440 = arith.constant 0 : index
    %c0_441 = arith.constant 0 : index
    %652 = vector.load %arg13[%c0_438, %c2_439, %c0_440, %c0_441] : memref<4x9x4x4xf32, #tpu.memory_space<vmem>>, vector<1x1x4x4xf32>
    %653 = vector.shape_cast %652 : vector<1x1x4x4xf32> to vector<4x4xf32>
    %cst_442 = arith.constant dense<0.000000e+00> : vector<4x256xf32>
    %654 = tpu.matmul %653, %579, %cst_442 {dimension_numbers = #tpu.dot_dimension_numbers<[1], [0], [0], [1], [0, 0, 1, 1], [], []>} : vector<4x4xf32>, vector<4x256xf32>, vector<4x256xf32> -> vector<4x256xf32>
    %655 = arith.addf %651, %654 : vector<4x256xf32>
    %c0_443 = arith.constant 0 : index
    %c3_444 = arith.constant 3 : index
    %c0_445 = arith.constant 0 : index
    %c0_446 = arith.constant 0 : index
    %656 = vector.load %arg13[%c0_443, %c3_444, %c0_445, %c0_446] : memref<4x9x4x4xf32, #tpu.memory_space<vmem>>, vector<1x1x4x4xf32>
    %657 = vector.shape_cast %656 : vector<1x1x4x4xf32> to vector<4x4xf32>
    %cst_447 = arith.constant dense<0.000000e+00> : vector<4x256xf32>
    %658 = tpu.matmul %657, %584, %cst_447 {dimension_numbers = #tpu.dot_dimension_numbers<[1], [0], [0], [1], [0, 0, 1, 1], [], []>} : vector<4x4xf32>, vector<4x256xf32>, vector<4x256xf32> -> vector<4x256xf32>
    %659 = arith.addf %655, %658 : vector<4x256xf32>
    %c0_448 = arith.constant 0 : index
    %c4_449 = arith.constant 4 : index
    %c0_450 = arith.constant 0 : index
    %c0_451 = arith.constant 0 : index
    %660 = vector.load %arg13[%c0_448, %c4_449, %c0_450, %c0_451] : memref<4x9x4x4xf32, #tpu.memory_space<vmem>>, vector<1x1x4x4xf32>
    %661 = vector.shape_cast %660 : vector<1x1x4x4xf32> to vector<4x4xf32>
    %cst_452 = arith.constant dense<0.000000e+00> : vector<4x256xf32>
    %662 = tpu.matmul %661, %564, %cst_452 {dimension_numbers = #tpu.dot_dimension_numbers<[1], [0], [0], [1], [0, 0, 1, 1], [], []>} : vector<4x4xf32>, vector<4x256xf32>, vector<4x256xf32> -> vector<4x256xf32>
    %663 = arith.addf %659, %662 : vector<4x256xf32>
    %c0_453 = arith.constant 0 : index
    %c5_454 = arith.constant 5 : index
    %c0_455 = arith.constant 0 : index
    %c0_456 = arith.constant 0 : index
    %664 = vector.load %arg13[%c0_453, %c5_454, %c0_455, %c0_456] : memref<4x9x4x4xf32, #tpu.memory_space<vmem>>, vector<1x1x4x4xf32>
    %665 = vector.shape_cast %664 : vector<1x1x4x4xf32> to vector<4x4xf32>
    %cst_457 = arith.constant dense<0.000000e+00> : vector<4x256xf32>
    %666 = tpu.matmul %665, %589, %cst_457 {dimension_numbers = #tpu.dot_dimension_numbers<[1], [0], [0], [1], [0, 0, 1, 1], [], []>} : vector<4x4xf32>, vector<4x256xf32>, vector<4x256xf32> -> vector<4x256xf32>
    %667 = arith.addf %663, %666 : vector<4x256xf32>
    %c0_458 = arith.constant 0 : index
    %c6_459 = arith.constant 6 : index
    %c0_460 = arith.constant 0 : index
    %c0_461 = arith.constant 0 : index
    %668 = vector.load %arg13[%c0_458, %c6_459, %c0_460, %c0_461] : memref<4x9x4x4xf32, #tpu.memory_space<vmem>>, vector<1x1x4x4xf32>
    %669 = vector.shape_cast %668 : vector<1x1x4x4xf32> to vector<4x4xf32>
    %cst_462 = arith.constant dense<0.000000e+00> : vector<4x256xf32>
    %670 = tpu.matmul %669, %594, %cst_462 {dimension_numbers = #tpu.dot_dimension_numbers<[1], [0], [0], [1], [0, 0, 1, 1], [], []>} : vector<4x4xf32>, vector<4x256xf32>, vector<4x256xf32> -> vector<4x256xf32>
    %671 = arith.addf %667, %670 : vector<4x256xf32>
    %c0_463 = arith.constant 0 : index
    %c7_464 = arith.constant 7 : index
    %c0_465 = arith.constant 0 : index
    %c0_466 = arith.constant 0 : index
    %672 = vector.load %arg13[%c0_463, %c7_464, %c0_465, %c0_466] : memref<4x9x4x4xf32, #tpu.memory_space<vmem>>, vector<1x1x4x4xf32>
    %673 = vector.shape_cast %672 : vector<1x1x4x4xf32> to vector<4x4xf32>
    %cst_467 = arith.constant dense<0.000000e+00> : vector<4x256xf32>
    %674 = tpu.matmul %673, %599, %cst_467 {dimension_numbers = #tpu.dot_dimension_numbers<[1], [0], [0], [1], [0, 0, 1, 1], [], []>} : vector<4x4xf32>, vector<4x256xf32>, vector<4x256xf32> -> vector<4x256xf32>
    %675 = arith.addf %671, %674 : vector<4x256xf32>
    %c0_468 = arith.constant 0 : index
    %c8_469 = arith.constant 8 : index
    %c0_470 = arith.constant 0 : index
    %c0_471 = arith.constant 0 : index
    %676 = vector.load %arg13[%c0_468, %c8_469, %c0_470, %c0_471] : memref<4x9x4x4xf32, #tpu.memory_space<vmem>>, vector<1x1x4x4xf32>
    %677 = vector.shape_cast %676 : vector<1x1x4x4xf32> to vector<4x4xf32>
    %cst_472 = arith.constant dense<0.000000e+00> : vector<4x256xf32>
    %678 = tpu.matmul %677, %604, %cst_472 {dimension_numbers = #tpu.dot_dimension_numbers<[1], [0], [0], [1], [0, 0, 1, 1], [], []>} : vector<4x4xf32>, vector<4x256xf32>, vector<4x256xf32> -> vector<4x256xf32>
    %679 = arith.addf %675, %678 : vector<4x256xf32>
    %c1_473 = arith.constant 1 : index
    %c0_474 = arith.constant 0 : index
    %c0_475 = arith.constant 0 : index
    %c0_476 = arith.constant 0 : index
    %680 = vector.load %arg13[%c1_473, %c0_474, %c0_475, %c0_476] : memref<4x9x4x4xf32, #tpu.memory_space<vmem>>, vector<1x1x4x4xf32>
    %681 = vector.shape_cast %680 : vector<1x1x4x4xf32> to vector<4x4xf32>
    %cst_477 = arith.constant dense<0.000000e+00> : vector<4x256xf32>
    %682 = tpu.matmul %681, %569, %cst_477 {dimension_numbers = #tpu.dot_dimension_numbers<[1], [0], [0], [1], [0, 0, 1, 1], [], []>} : vector<4x4xf32>, vector<4x256xf32>, vector<4x256xf32> -> vector<4x256xf32>
    %683 = arith.addf %679, %682 : vector<4x256xf32>
    %c1_478 = arith.constant 1 : index
    %c1_479 = arith.constant 1 : index
    %c0_480 = arith.constant 0 : index
    %c0_481 = arith.constant 0 : index
    %684 = vector.load %arg13[%c1_478, %c1_479, %c0_480, %c0_481] : memref<4x9x4x4xf32, #tpu.memory_space<vmem>>, vector<1x1x4x4xf32>
    %685 = vector.shape_cast %684 : vector<1x1x4x4xf32> to vector<4x4xf32>
    %cst_482 = arith.constant dense<0.000000e+00> : vector<4x256xf32>
    %686 = tpu.matmul %685, %574, %cst_482 {dimension_numbers = #tpu.dot_dimension_numbers<[1], [0], [0], [1], [0, 0, 1, 1], [], []>} : vector<4x4xf32>, vector<4x256xf32>, vector<4x256xf32> -> vector<4x256xf32>
    %687 = arith.addf %683, %686 : vector<4x256xf32>
    %c1_483 = arith.constant 1 : index
    %c2_484 = arith.constant 2 : index
    %c0_485 = arith.constant 0 : index
    %c0_486 = arith.constant 0 : index
    %688 = vector.load %arg13[%c1_483, %c2_484, %c0_485, %c0_486] : memref<4x9x4x4xf32, #tpu.memory_space<vmem>>, vector<1x1x4x4xf32>
    %689 = vector.shape_cast %688 : vector<1x1x4x4xf32> to vector<4x4xf32>
    %cst_487 = arith.constant dense<0.000000e+00> : vector<4x256xf32>
    %690 = tpu.matmul %689, %579, %cst_487 {dimension_numbers = #tpu.dot_dimension_numbers<[1], [0], [0], [1], [0, 0, 1, 1], [], []>} : vector<4x4xf32>, vector<4x256xf32>, vector<4x256xf32> -> vector<4x256xf32>
    %691 = arith.addf %687, %690 : vector<4x256xf32>
    %c1_488 = arith.constant 1 : index
    %c3_489 = arith.constant 3 : index
    %c0_490 = arith.constant 0 : index
    %c0_491 = arith.constant 0 : index
    %692 = vector.load %arg13[%c1_488, %c3_489, %c0_490, %c0_491] : memref<4x9x4x4xf32, #tpu.memory_space<vmem>>, vector<1x1x4x4xf32>
    %693 = vector.shape_cast %692 : vector<1x1x4x4xf32> to vector<4x4xf32>
    %cst_492 = arith.constant dense<0.000000e+00> : vector<4x256xf32>
    %694 = tpu.matmul %693, %584, %cst_492 {dimension_numbers = #tpu.dot_dimension_numbers<[1], [0], [0], [1], [0, 0, 1, 1], [], []>} : vector<4x4xf32>, vector<4x256xf32>, vector<4x256xf32> -> vector<4x256xf32>
    %695 = arith.addf %691, %694 : vector<4x256xf32>
    %c1_493 = arith.constant 1 : index
    %c4_494 = arith.constant 4 : index
    %c0_495 = arith.constant 0 : index
    %c0_496 = arith.constant 0 : index
    %696 = vector.load %arg13[%c1_493, %c4_494, %c0_495, %c0_496] : memref<4x9x4x4xf32, #tpu.memory_space<vmem>>, vector<1x1x4x4xf32>
    %697 = vector.shape_cast %696 : vector<1x1x4x4xf32> to vector<4x4xf32>
    %cst_497 = arith.constant dense<0.000000e+00> : vector<4x256xf32>
    %698 = tpu.matmul %697, %564, %cst_497 {dimension_numbers = #tpu.dot_dimension_numbers<[1], [0], [0], [1], [0, 0, 1, 1], [], []>} : vector<4x4xf32>, vector<4x256xf32>, vector<4x256xf32> -> vector<4x256xf32>
    %699 = arith.addf %695, %698 : vector<4x256xf32>
    %c1_498 = arith.constant 1 : index
    %c5_499 = arith.constant 5 : index
    %c0_500 = arith.constant 0 : index
    %c0_501 = arith.constant 0 : index
    %700 = vector.load %arg13[%c1_498, %c5_499, %c0_500, %c0_501] : memref<4x9x4x4xf32, #tpu.memory_space<vmem>>, vector<1x1x4x4xf32>
    %701 = vector.shape_cast %700 : vector<1x1x4x4xf32> to vector<4x4xf32>
    %cst_502 = arith.constant dense<0.000000e+00> : vector<4x256xf32>
    %702 = tpu.matmul %701, %589, %cst_502 {dimension_numbers = #tpu.dot_dimension_numbers<[1], [0], [0], [1], [0, 0, 1, 1], [], []>} : vector<4x4xf32>, vector<4x256xf32>, vector<4x256xf32> -> vector<4x256xf32>
    %703 = arith.addf %699, %702 : vector<4x256xf32>
    %c1_503 = arith.constant 1 : index
    %c6_504 = arith.constant 6 : index
    %c0_505 = arith.constant 0 : index
    %c0_506 = arith.constant 0 : index
    %704 = vector.load %arg13[%c1_503, %c6_504, %c0_505, %c0_506] : memref<4x9x4x4xf32, #tpu.memory_space<vmem>>, vector<1x1x4x4xf32>
    %705 = vector.shape_cast %704 : vector<1x1x4x4xf32> to vector<4x4xf32>
    %cst_507 = arith.constant dense<0.000000e+00> : vector<4x256xf32>
    %706 = tpu.matmul %705, %594, %cst_507 {dimension_numbers = #tpu.dot_dimension_numbers<[1], [0], [0], [1], [0, 0, 1, 1], [], []>} : vector<4x4xf32>, vector<4x256xf32>, vector<4x256xf32> -> vector<4x256xf32>
    %707 = arith.addf %703, %706 : vector<4x256xf32>
    %c1_508 = arith.constant 1 : index
    %c7_509 = arith.constant 7 : index
    %c0_510 = arith.constant 0 : index
    %c0_511 = arith.constant 0 : index
    %708 = vector.load %arg13[%c1_508, %c7_509, %c0_510, %c0_511] : memref<4x9x4x4xf32, #tpu.memory_space<vmem>>, vector<1x1x4x4xf32>
    %709 = vector.shape_cast %708 : vector<1x1x4x4xf32> to vector<4x4xf32>
    %cst_512 = arith.constant dense<0.000000e+00> : vector<4x256xf32>
    %710 = tpu.matmul %709, %599, %cst_512 {dimension_numbers = #tpu.dot_dimension_numbers<[1], [0], [0], [1], [0, 0, 1, 1], [], []>} : vector<4x4xf32>, vector<4x256xf32>, vector<4x256xf32> -> vector<4x256xf32>
    %711 = arith.addf %707, %710 : vector<4x256xf32>
    %c1_513 = arith.constant 1 : index
    %c8_514 = arith.constant 8 : index
    %c0_515 = arith.constant 0 : index
    %c0_516 = arith.constant 0 : index
    %712 = vector.load %arg13[%c1_513, %c8_514, %c0_515, %c0_516] : memref<4x9x4x4xf32, #tpu.memory_space<vmem>>, vector<1x1x4x4xf32>
    %713 = vector.shape_cast %712 : vector<1x1x4x4xf32> to vector<4x4xf32>
    %cst_517 = arith.constant dense<0.000000e+00> : vector<4x256xf32>
    %714 = tpu.matmul %713, %604, %cst_517 {dimension_numbers = #tpu.dot_dimension_numbers<[1], [0], [0], [1], [0, 0, 1, 1], [], []>} : vector<4x4xf32>, vector<4x256xf32>, vector<4x256xf32> -> vector<4x256xf32>
    %715 = arith.addf %711, %714 : vector<4x256xf32>
    %c2_518 = arith.constant 2 : index
    %c0_519 = arith.constant 0 : index
    %c0_520 = arith.constant 0 : index
    %c0_521 = arith.constant 0 : index
    %716 = vector.load %arg13[%c2_518, %c0_519, %c0_520, %c0_521] : memref<4x9x4x4xf32, #tpu.memory_space<vmem>>, vector<1x1x4x4xf32>
    %717 = vector.shape_cast %716 : vector<1x1x4x4xf32> to vector<4x4xf32>
    %cst_522 = arith.constant dense<0.000000e+00> : vector<4x256xf32>
    %718 = tpu.matmul %717, %485, %cst_522 {dimension_numbers = #tpu.dot_dimension_numbers<[1], [0], [0], [1], [0, 0, 1, 1], [], []>} : vector<4x4xf32>, vector<4x256xf32>, vector<4x256xf32> -> vector<4x256xf32>
    %719 = arith.addf %715, %718 : vector<4x256xf32>
    %c2_523 = arith.constant 2 : index
    %c1_524 = arith.constant 1 : index
    %c0_525 = arith.constant 0 : index
    %c0_526 = arith.constant 0 : index
    %720 = vector.load %arg13[%c2_523, %c1_524, %c0_525, %c0_526] : memref<4x9x4x4xf32, #tpu.memory_space<vmem>>, vector<1x1x4x4xf32>
    %721 = vector.shape_cast %720 : vector<1x1x4x4xf32> to vector<4x4xf32>
    %cst_527 = arith.constant dense<0.000000e+00> : vector<4x256xf32>
    %722 = tpu.matmul %721, %490, %cst_527 {dimension_numbers = #tpu.dot_dimension_numbers<[1], [0], [0], [1], [0, 0, 1, 1], [], []>} : vector<4x4xf32>, vector<4x256xf32>, vector<4x256xf32> -> vector<4x256xf32>
    %723 = arith.addf %719, %722 : vector<4x256xf32>
    %c2_528 = arith.constant 2 : index
    %c2_529 = arith.constant 2 : index
    %c0_530 = arith.constant 0 : index
    %c0_531 = arith.constant 0 : index
    %724 = vector.load %arg13[%c2_528, %c2_529, %c0_530, %c0_531] : memref<4x9x4x4xf32, #tpu.memory_space<vmem>>, vector<1x1x4x4xf32>
    %725 = vector.shape_cast %724 : vector<1x1x4x4xf32> to vector<4x4xf32>
    %cst_532 = arith.constant dense<0.000000e+00> : vector<4x256xf32>
    %726 = tpu.matmul %725, %495, %cst_532 {dimension_numbers = #tpu.dot_dimension_numbers<[1], [0], [0], [1], [0, 0, 1, 1], [], []>} : vector<4x4xf32>, vector<4x256xf32>, vector<4x256xf32> -> vector<4x256xf32>
    %727 = arith.addf %723, %726 : vector<4x256xf32>
    %c2_533 = arith.constant 2 : index
    %c3_534 = arith.constant 3 : index
    %c0_535 = arith.constant 0 : index
    %c0_536 = arith.constant 0 : index
    %728 = vector.load %arg13[%c2_533, %c3_534, %c0_535, %c0_536] : memref<4x9x4x4xf32, #tpu.memory_space<vmem>>, vector<1x1x4x4xf32>
    %729 = vector.shape_cast %728 : vector<1x1x4x4xf32> to vector<4x4xf32>
    %cst_537 = arith.constant dense<0.000000e+00> : vector<4x256xf32>
    %730 = tpu.matmul %729, %500, %cst_537 {dimension_numbers = #tpu.dot_dimension_numbers<[1], [0], [0], [1], [0, 0, 1, 1], [], []>} : vector<4x4xf32>, vector<4x256xf32>, vector<4x256xf32> -> vector<4x256xf32>
    %731 = arith.addf %727, %730 : vector<4x256xf32>
    %c2_538 = arith.constant 2 : index
    %c4_539 = arith.constant 4 : index
    %c0_540 = arith.constant 0 : index
    %c0_541 = arith.constant 0 : index
    %732 = vector.load %arg13[%c2_538, %c4_539, %c0_540, %c0_541] : memref<4x9x4x4xf32, #tpu.memory_space<vmem>>, vector<1x1x4x4xf32>
    %733 = vector.shape_cast %732 : vector<1x1x4x4xf32> to vector<4x4xf32>
    %cst_542 = arith.constant dense<0.000000e+00> : vector<4x256xf32>
    %734 = tpu.matmul %733, %480, %cst_542 {dimension_numbers = #tpu.dot_dimension_numbers<[1], [0], [0], [1], [0, 0, 1, 1], [], []>} : vector<4x4xf32>, vector<4x256xf32>, vector<4x256xf32> -> vector<4x256xf32>
    %735 = arith.addf %731, %734 : vector<4x256xf32>
    %c2_543 = arith.constant 2 : index
    %c5_544 = arith.constant 5 : index
    %c0_545 = arith.constant 0 : index
    %c0_546 = arith.constant 0 : index
    %736 = vector.load %arg13[%c2_543, %c5_544, %c0_545, %c0_546] : memref<4x9x4x4xf32, #tpu.memory_space<vmem>>, vector<1x1x4x4xf32>
    %737 = vector.shape_cast %736 : vector<1x1x4x4xf32> to vector<4x4xf32>
    %cst_547 = arith.constant dense<0.000000e+00> : vector<4x256xf32>
    %738 = tpu.matmul %737, %505, %cst_547 {dimension_numbers = #tpu.dot_dimension_numbers<[1], [0], [0], [1], [0, 0, 1, 1], [], []>} : vector<4x4xf32>, vector<4x256xf32>, vector<4x256xf32> -> vector<4x256xf32>
    %739 = arith.addf %735, %738 : vector<4x256xf32>
    %c2_548 = arith.constant 2 : index
    %c6_549 = arith.constant 6 : index
    %c0_550 = arith.constant 0 : index
    %c0_551 = arith.constant 0 : index
    %740 = vector.load %arg13[%c2_548, %c6_549, %c0_550, %c0_551] : memref<4x9x4x4xf32, #tpu.memory_space<vmem>>, vector<1x1x4x4xf32>
    %741 = vector.shape_cast %740 : vector<1x1x4x4xf32> to vector<4x4xf32>
    %cst_552 = arith.constant dense<0.000000e+00> : vector<4x256xf32>
    %742 = tpu.matmul %741, %510, %cst_552 {dimension_numbers = #tpu.dot_dimension_numbers<[1], [0], [0], [1], [0, 0, 1, 1], [], []>} : vector<4x4xf32>, vector<4x256xf32>, vector<4x256xf32> -> vector<4x256xf32>
    %743 = arith.addf %739, %742 : vector<4x256xf32>
    %c2_553 = arith.constant 2 : index
    %c7_554 = arith.constant 7 : index
    %c0_555 = arith.constant 0 : index
    %c0_556 = arith.constant 0 : index
    %744 = vector.load %arg13[%c2_553, %c7_554, %c0_555, %c0_556] : memref<4x9x4x4xf32, #tpu.memory_space<vmem>>, vector<1x1x4x4xf32>
    %745 = vector.shape_cast %744 : vector<1x1x4x4xf32> to vector<4x4xf32>
    %cst_557 = arith.constant dense<0.000000e+00> : vector<4x256xf32>
    %746 = tpu.matmul %745, %515, %cst_557 {dimension_numbers = #tpu.dot_dimension_numbers<[1], [0], [0], [1], [0, 0, 1, 1], [], []>} : vector<4x4xf32>, vector<4x256xf32>, vector<4x256xf32> -> vector<4x256xf32>
    %747 = arith.addf %743, %746 : vector<4x256xf32>
    %c2_558 = arith.constant 2 : index
    %c8_559 = arith.constant 8 : index
    %c0_560 = arith.constant 0 : index
    %c0_561 = arith.constant 0 : index
    %748 = vector.load %arg13[%c2_558, %c8_559, %c0_560, %c0_561] : memref<4x9x4x4xf32, #tpu.memory_space<vmem>>, vector<1x1x4x4xf32>
    %749 = vector.shape_cast %748 : vector<1x1x4x4xf32> to vector<4x4xf32>
    %cst_562 = arith.constant dense<0.000000e+00> : vector<4x256xf32>
    %750 = tpu.matmul %749, %520, %cst_562 {dimension_numbers = #tpu.dot_dimension_numbers<[1], [0], [0], [1], [0, 0, 1, 1], [], []>} : vector<4x4xf32>, vector<4x256xf32>, vector<4x256xf32> -> vector<4x256xf32>
    %751 = arith.addf %747, %750 : vector<4x256xf32>
    %c3_563 = arith.constant 3 : index
    %c0_564 = arith.constant 0 : index
    %c0_565 = arith.constant 0 : index
    %c0_566 = arith.constant 0 : index
    %752 = vector.load %arg13[%c3_563, %c0_564, %c0_565, %c0_566] : memref<4x9x4x4xf32, #tpu.memory_space<vmem>>, vector<1x1x4x4xf32>
    %753 = vector.shape_cast %752 : vector<1x1x4x4xf32> to vector<4x4xf32>
    %cst_567 = arith.constant dense<0.000000e+00> : vector<4x256xf32>
    %754 = tpu.matmul %753, %609, %cst_567 {dimension_numbers = #tpu.dot_dimension_numbers<[1], [0], [0], [1], [0, 0, 1, 1], [], []>} : vector<4x4xf32>, vector<4x256xf32>, vector<4x256xf32> -> vector<4x256xf32>
    %755 = arith.addf %751, %754 : vector<4x256xf32>
    %c3_568 = arith.constant 3 : index
    %c1_569 = arith.constant 1 : index
    %c0_570 = arith.constant 0 : index
    %c0_571 = arith.constant 0 : index
    %756 = vector.load %arg13[%c3_568, %c1_569, %c0_570, %c0_571] : memref<4x9x4x4xf32, #tpu.memory_space<vmem>>, vector<1x1x4x4xf32>
    %757 = vector.shape_cast %756 : vector<1x1x4x4xf32> to vector<4x4xf32>
    %cst_572 = arith.constant dense<0.000000e+00> : vector<4x256xf32>
    %758 = tpu.matmul %757, %614, %cst_572 {dimension_numbers = #tpu.dot_dimension_numbers<[1], [0], [0], [1], [0, 0, 1, 1], [], []>} : vector<4x4xf32>, vector<4x256xf32>, vector<4x256xf32> -> vector<4x256xf32>
    %759 = arith.addf %755, %758 : vector<4x256xf32>
    %c3_573 = arith.constant 3 : index
    %c2_574 = arith.constant 2 : index
    %c0_575 = arith.constant 0 : index
    %c0_576 = arith.constant 0 : index
    %760 = vector.load %arg13[%c3_573, %c2_574, %c0_575, %c0_576] : memref<4x9x4x4xf32, #tpu.memory_space<vmem>>, vector<1x1x4x4xf32>
    %761 = vector.shape_cast %760 : vector<1x1x4x4xf32> to vector<4x4xf32>
    %cst_577 = arith.constant dense<0.000000e+00> : vector<4x256xf32>
    %762 = tpu.matmul %761, %619, %cst_577 {dimension_numbers = #tpu.dot_dimension_numbers<[1], [0], [0], [1], [0, 0, 1, 1], [], []>} : vector<4x4xf32>, vector<4x256xf32>, vector<4x256xf32> -> vector<4x256xf32>
    %763 = arith.addf %759, %762 : vector<4x256xf32>
    %c3_578 = arith.constant 3 : index
    %c3_579 = arith.constant 3 : index
    %c0_580 = arith.constant 0 : index
    %c0_581 = arith.constant 0 : index
    %764 = vector.load %arg13[%c3_578, %c3_579, %c0_580, %c0_581] : memref<4x9x4x4xf32, #tpu.memory_space<vmem>>, vector<1x1x4x4xf32>
    %765 = vector.shape_cast %764 : vector<1x1x4x4xf32> to vector<4x4xf32>
    %cst_582 = arith.constant dense<0.000000e+00> : vector<4x256xf32>
    %766 = tpu.matmul %765, %624, %cst_582 {dimension_numbers = #tpu.dot_dimension_numbers<[1], [0], [0], [1], [0, 0, 1, 1], [], []>} : vector<4x4xf32>, vector<4x256xf32>, vector<4x256xf32> -> vector<4x256xf32>
    %767 = arith.addf %763, %766 : vector<4x256xf32>
    %c3_583 = arith.constant 3 : index
    %c4_584 = arith.constant 4 : index
    %c0_585 = arith.constant 0 : index
    %c0_586 = arith.constant 0 : index
    %768 = vector.load %arg13[%c3_583, %c4_584, %c0_585, %c0_586] : memref<4x9x4x4xf32, #tpu.memory_space<vmem>>, vector<1x1x4x4xf32>
    %769 = vector.shape_cast %768 : vector<1x1x4x4xf32> to vector<4x4xf32>
    %cst_587 = arith.constant dense<0.000000e+00> : vector<4x256xf32>
    %770 = tpu.matmul %769, %395, %cst_587 {dimension_numbers = #tpu.dot_dimension_numbers<[1], [0], [0], [1], [0, 0, 1, 1], [], []>} : vector<4x4xf32>, vector<4x256xf32>, vector<4x256xf32> -> vector<4x256xf32>
    %771 = arith.addf %767, %770 : vector<4x256xf32>
    %c3_588 = arith.constant 3 : index
    %c5_589 = arith.constant 5 : index
    %c0_590 = arith.constant 0 : index
    %c0_591 = arith.constant 0 : index
    %772 = vector.load %arg13[%c3_588, %c5_589, %c0_590, %c0_591] : memref<4x9x4x4xf32, #tpu.memory_space<vmem>>, vector<1x1x4x4xf32>
    %773 = vector.shape_cast %772 : vector<1x1x4x4xf32> to vector<4x4xf32>
    %cst_592 = arith.constant dense<0.000000e+00> : vector<4x256xf32>
    %774 = tpu.matmul %773, %629, %cst_592 {dimension_numbers = #tpu.dot_dimension_numbers<[1], [0], [0], [1], [0, 0, 1, 1], [], []>} : vector<4x4xf32>, vector<4x256xf32>, vector<4x256xf32> -> vector<4x256xf32>
    %775 = arith.addf %771, %774 : vector<4x256xf32>
    %c3_593 = arith.constant 3 : index
    %c6_594 = arith.constant 6 : index
    %c0_595 = arith.constant 0 : index
    %c0_596 = arith.constant 0 : index
    %776 = vector.load %arg13[%c3_593, %c6_594, %c0_595, %c0_596] : memref<4x9x4x4xf32, #tpu.memory_space<vmem>>, vector<1x1x4x4xf32>
    %777 = vector.shape_cast %776 : vector<1x1x4x4xf32> to vector<4x4xf32>
    %cst_597 = arith.constant dense<0.000000e+00> : vector<4x256xf32>
    %778 = tpu.matmul %777, %634, %cst_597 {dimension_numbers = #tpu.dot_dimension_numbers<[1], [0], [0], [1], [0, 0, 1, 1], [], []>} : vector<4x4xf32>, vector<4x256xf32>, vector<4x256xf32> -> vector<4x256xf32>
    %779 = arith.addf %775, %778 : vector<4x256xf32>
    %c3_598 = arith.constant 3 : index
    %c7_599 = arith.constant 7 : index
    %c0_600 = arith.constant 0 : index
    %c0_601 = arith.constant 0 : index
    %780 = vector.load %arg13[%c3_598, %c7_599, %c0_600, %c0_601] : memref<4x9x4x4xf32, #tpu.memory_space<vmem>>, vector<1x1x4x4xf32>
    %781 = vector.shape_cast %780 : vector<1x1x4x4xf32> to vector<4x4xf32>
    %cst_602 = arith.constant dense<0.000000e+00> : vector<4x256xf32>
    %782 = tpu.matmul %781, %639, %cst_602 {dimension_numbers = #tpu.dot_dimension_numbers<[1], [0], [0], [1], [0, 0, 1, 1], [], []>} : vector<4x4xf32>, vector<4x256xf32>, vector<4x256xf32> -> vector<4x256xf32>
    %783 = arith.addf %779, %782 : vector<4x256xf32>
    %c3_603 = arith.constant 3 : index
    %c8_604 = arith.constant 8 : index
    %c0_605 = arith.constant 0 : index
    %c0_606 = arith.constant 0 : index
    %784 = vector.load %arg13[%c3_603, %c8_604, %c0_605, %c0_606] : memref<4x9x4x4xf32, #tpu.memory_space<vmem>>, vector<1x1x4x4xf32>
    %785 = vector.shape_cast %784 : vector<1x1x4x4xf32> to vector<4x4xf32>
    %cst_607 = arith.constant dense<0.000000e+00> : vector<4x256xf32>
    %786 = tpu.matmul %785, %644, %cst_607 {dimension_numbers = #tpu.dot_dimension_numbers<[1], [0], [0], [1], [0, 0, 1, 1], [], []>} : vector<4x4xf32>, vector<4x256xf32>, vector<4x256xf32> -> vector<4x256xf32>
    %787 = arith.addf %783, %786 : vector<4x256xf32>
    %c0_608 = arith.constant 0 : index
    %c0_609 = arith.constant 0 : index
    %788 = vector.load %arg12[%c0_608, %c0_609] : memref<4x1xf32, #tpu.memory_space<vmem>>, vector<4x1xf32>
    %789 = vector.broadcast %788 : vector<4x1xf32> to vector<4x256xf32>
    %790 = arith.addf %787, %789 : vector<4x256xf32>
    %791 = arith.negf %790 : vector<4x256xf32>
    %792 = math.exp %791 : vector<4x256xf32>
    %cst_610 = arith.constant 1.000000e+00 : f32
    %793 = vector.broadcast %cst_610 : f32 to vector<4x256xf32>
    %794 = arith.addf %793, %792 : vector<4x256xf32>
    %795 = arith.divf %793, %794 : vector<4x256xf32>
    %796 = arith.mulf %790, %795 : vector<4x256xf32>
    %c0_611 = arith.constant 0 : index
    %c0_612 = arith.constant 0 : index
    %c0_613 = arith.constant 0 : index
    %797 = vector.load %arg15[%c0_611, %c0_612, %c0_613] : memref<1x4x4xf32, #tpu.memory_space<vmem>>, vector<1x4x4xf32>
    %798 = vector.shape_cast %797 : vector<1x4x4xf32> to vector<4x4xf32>
    %cst_614 = arith.constant dense<0.000000e+00> : vector<4x256xf32>
    %799 = tpu.matmul %798, %44, %cst_614 {dimension_numbers = #tpu.dot_dimension_numbers<[1], [0], [0], [1], [0, 0, 1, 1], [], []>} : vector<4x4xf32>, vector<4x256xf32>, vector<4x256xf32> -> vector<4x256xf32>
    %c0_615 = arith.constant 0 : index
    %c0_616 = arith.constant 0 : index
    %800 = vector.load %arg14[%c0_615, %c0_616] : memref<4x1xf32, #tpu.memory_space<vmem>>, vector<4x1xf32>
    %801 = vector.broadcast %800 : vector<4x1xf32> to vector<4x256xf32>
    %802 = arith.addf %799, %801 : vector<4x256xf32>
    %803 = arith.negf %802 : vector<4x256xf32>
    %804 = math.exp %803 : vector<4x256xf32>
    %cst_617 = arith.constant 1.000000e+00 : f32
    %805 = vector.broadcast %cst_617 : f32 to vector<4x256xf32>
    %806 = arith.addf %805, %804 : vector<4x256xf32>
    %807 = arith.divf %805, %806 : vector<4x256xf32>
    %808 = arith.mulf %802, %807 : vector<4x256xf32>
    %809 = arith.addf %808, %796 : vector<4x256xf32>
    %c0_618 = arith.constant 0 : index
    %c0_619 = arith.constant 0 : index
    %c0_620 = arith.constant 0 : index
    %810 = vector.load %arg5[%c0_618, %c0_619, %c0_620] : memref<1x4x4xf32, #tpu.memory_space<vmem>>, vector<1x4x4xf32>
    %811 = vector.shape_cast %810 : vector<1x4x4xf32> to vector<4x4xf32>
    %cst_621 = arith.constant dense<0.000000e+00> : vector<4x256xf32>
    %812 = tpu.matmul %811, %32, %cst_621 {dimension_numbers = #tpu.dot_dimension_numbers<[1], [0], [0], [1], [0, 0, 1, 1], [], []>} : vector<4x4xf32>, vector<4x256xf32>, vector<4x256xf32> -> vector<4x256xf32>
    %c0_622 = arith.constant 0 : index
    %c0_623 = arith.constant 0 : index
    %813 = vector.load %arg4[%c0_622, %c0_623] : memref<4x1xf32, #tpu.memory_space<vmem>>, vector<4x1xf32>
    %814 = vector.broadcast %813 : vector<4x1xf32> to vector<4x256xf32>
    %815 = arith.addf %812, %814 : vector<4x256xf32>
    %816 = arith.negf %815 : vector<4x256xf32>
    %817 = math.exp %816 : vector<4x256xf32>
    %cst_624 = arith.constant 1.000000e+00 : f32
    %818 = vector.broadcast %cst_624 : f32 to vector<4x256xf32>
    %819 = arith.addf %818, %817 : vector<4x256xf32>
    %820 = arith.divf %818, %819 : vector<4x256xf32>
    %821 = arith.mulf %815, %820 : vector<4x256xf32>
    %c0_625 = arith.constant 0 : index
    %c0_626 = arith.constant 0 : index
    %c0_627 = arith.constant 0 : index
    %822 = vector.load %arg7[%c0_625, %c0_626, %c0_627] : memref<2x8x4xf32, #tpu.memory_space<vmem>>, vector<1x8x4xf32>
    %823 = vector.shape_cast %822 : vector<1x8x4xf32> to vector<8x4xf32>
    %cst_628 = arith.constant dense<0.000000e+00> : vector<8x256xf32>
    %824 = tpu.matmul %823, %809, %cst_628 {dimension_numbers = #tpu.dot_dimension_numbers<[1], [0], [0], [1], [0, 0, 1, 1], [], []>} : vector<8x4xf32>, vector<4x256xf32>, vector<8x256xf32> -> vector<8x256xf32>
    %c1_629 = arith.constant 1 : index
    %c0_630 = arith.constant 0 : index
    %c0_631 = arith.constant 0 : index
    %825 = vector.load %arg7[%c1_629, %c0_630, %c0_631] : memref<2x8x4xf32, #tpu.memory_space<vmem>>, vector<1x8x4xf32>
    %826 = vector.shape_cast %825 : vector<1x8x4xf32> to vector<8x4xf32>
    %cst_632 = arith.constant dense<0.000000e+00> : vector<8x256xf32>
    %827 = tpu.matmul %826, %821, %cst_632 {dimension_numbers = #tpu.dot_dimension_numbers<[1], [0], [0], [1], [0, 0, 1, 1], [], []>} : vector<8x4xf32>, vector<4x256xf32>, vector<8x256xf32> -> vector<8x256xf32>
    %828 = arith.addf %824, %827 : vector<8x256xf32>
    %c0_633 = arith.constant 0 : index
    %c0_634 = arith.constant 0 : index
    %829 = vector.load %arg6[%c0_633, %c0_634] : memref<8x1xf32, #tpu.memory_space<vmem>>, vector<8x1xf32>
    %830 = vector.broadcast %829 : vector<8x1xf32> to vector<8x256xf32>
    %831 = arith.addf %828, %830 : vector<8x256xf32>
    %832 = arith.negf %831 : vector<8x256xf32>
    %833 = math.exp %832 : vector<8x256xf32>
    %cst_635 = arith.constant 1.000000e+00 : f32
    %834 = vector.broadcast %cst_635 : f32 to vector<8x256xf32>
    %835 = arith.addf %834, %833 : vector<8x256xf32>
    %836 = arith.divf %834, %835 : vector<8x256xf32>
    %837 = arith.mulf %831, %836 : vector<8x256xf32>
    %c0_636 = arith.constant 0 : index
    %c0_637 = arith.constant 0 : index
    %c0_638 = arith.constant 0 : index
    %838 = vector.load %arg16[%c0_636, %c0_637, %c0_638] : memref<1x8x256xf32, #tpu.memory_space<vmem>>, vector<1x8x256xf32>
    %839 = vector.shape_cast %838 : vector<1x8x256xf32> to vector<8x256xf32>
    %840 = vector.shape_cast %837 : vector<8x256xf32> to vector<1x8x256xf32>
    tpu.vector_store %arg16[%c0_636, %c0_637, %c0_638], %840 {strides = array<i32>} : memref<1x8x256xf32, #tpu.memory_space<vmem>>, vector<1x8x256xf32>,
    return
  }
  func.func @transform_0(%arg0: i32) -> (i32, i32, i32) {
    %c0_i32 = arith.constant 0 : i32
    %c0_i32_0 = arith.constant 0 : i32
    %c0_i32_1 = arith.constant 0 : i32
    return %arg0, %c0_i32, %c0_i32_0 : i32, i32, i32
  }
  func.func @transform_1(%arg0: i32) -> (i32, i32) {
    %c0_i32 = arith.constant 0 : i32
    %c0_i32_0 = arith.constant 0 : i32
    %c0_i32_1 = arith.constant 0 : i32
    return %c0_i32, %c0_i32_0 : i32, i32
  }
  func.func @transform_2(%arg0: i32) -> (i32, i32, i32) {
    %c0_i32 = arith.constant 0 : i32
    %c0_i32_0 = arith.constant 0 : i32
    %c0_i32_1 = arith.constant 0 : i32
    %c0_i32_2 = arith.constant 0 : i32
    return %c0_i32, %c0_i32_0, %c0_i32_1 : i32, i32, i32
  }
  func.func @transform_3(%arg0: i32) -> (i32, i32) {
    %c0_i32 = arith.constant 0 : i32
    %c0_i32_0 = arith.constant 0 : i32
    %c0_i32_1 = arith.constant 0 : i32
    return %c0_i32, %c0_i32_0 : i32, i32
  }
  func.func @transform_4(%arg0: i32) -> (i32, i32, i32) {
    %c0_i32 = arith.constant 0 : i32
    %c0_i32_0 = arith.constant 0 : i32
    %c0_i32_1 = arith.constant 0 : i32
    %c0_i32_2 = arith.constant 0 : i32
    return %c0_i32, %c0_i32_0, %c0_i32_1 : i32, i32, i32
  }
  func.func @transform_5(%arg0: i32) -> (i32, i32) {
    %c0_i32 = arith.constant 0 : i32
    %c0_i32_0 = arith.constant 0 : i32
    %c0_i32_1 = arith.constant 0 : i32
    return %c0_i32, %c0_i32_0 : i32, i32
  }
  func.func @transform_6(%arg0: i32) -> (i32, i32, i32) {
    %c0_i32 = arith.constant 0 : i32
    %c0_i32_0 = arith.constant 0 : i32
    %c0_i32_1 = arith.constant 0 : i32
    %c0_i32_2 = arith.constant 0 : i32
    return %c0_i32, %c0_i32_0, %c0_i32_1 : i32, i32, i32
  }
  func.func @transform_7(%arg0: i32) -> (i32, i32) {
    %c0_i32 = arith.constant 0 : i32
    %c0_i32_0 = arith.constant 0 : i32
    %c0_i32_1 = arith.constant 0 : i32
    return %c0_i32, %c0_i32_0 : i32, i32
  }
  func.func @transform_8(%arg0: i32) -> (i32, i32, i32) {
    %c0_i32 = arith.constant 0 : i32
    %c0_i32_0 = arith.constant 0 : i32
    %c0_i32_1 = arith.constant 0 : i32
    %c0_i32_2 = arith.constant 0 : i32
    return %c0_i32, %c0_i32_0, %c0_i32_1 : i32, i32, i32
  }
  func.func @transform_9(%arg0: i32) -> (i32, i32) {
    %c0_i32 = arith.constant 0 : i32
    %c0_i32_0 = arith.constant 0 : i32
    %c0_i32_1 = arith.constant 0 : i32
    return %c0_i32, %c0_i32_0 : i32, i32
  }
  func.func @transform_10(%arg0: i32) -> (i32, i32, i32, i32) {
    %c0_i32 = arith.constant 0 : i32
    %c0_i32_0 = arith.constant 0 : i32
    %c0_i32_1 = arith.constant 0 : i32
    %c0_i32_2 = arith.constant 0 : i32
    %c0_i32_3 = arith.constant 0 : i32
    return %c0_i32, %c0_i32_0, %c0_i32_1, %c0_i32_2 : i32, i32, i32, i32
  }
  func.func @transform_11(%arg0: i32) -> (i32, i32) {
    %c0_i32 = arith.constant 0 : i32
    %c0_i32_0 = arith.constant 0 : i32
    %c0_i32_1 = arith.constant 0 : i32
    return %c0_i32, %c0_i32_0 : i32, i32
  }
  func.func @transform_12(%arg0: i32) -> (i32, i32, i32, i32) {
    %c0_i32 = arith.constant 0 : i32
    %c0_i32_0 = arith.constant 0 : i32
    %c0_i32_1 = arith.constant 0 : i32
    %c0_i32_2 = arith.constant 0 : i32
    %c0_i32_3 = arith.constant 0 : i32
    return %c0_i32, %c0_i32_0, %c0_i32_1, %c0_i32_2 : i32, i32, i32, i32
  }
  func.func @transform_13(%arg0: i32) -> (i32, i32) {
    %c0_i32 = arith.constant 0 : i32
    %c0_i32_0 = arith.constant 0 : i32
    %c0_i32_1 = arith.constant 0 : i32
    return %c0_i32, %c0_i32_0 : i32, i32
  }
  func.func @transform_14(%arg0: i32) -> (i32, i32, i32) {
    %c0_i32 = arith.constant 0 : i32
    %c0_i32_0 = arith.constant 0 : i32
    %c0_i32_1 = arith.constant 0 : i32
    %c0_i32_2 = arith.constant 0 : i32
    return %c0_i32, %c0_i32_0, %c0_i32_1 : i32, i32, i32
  }
  func.func @transform_15(%arg0: i32) -> (i32, i32, i32) {
    %c0_i32 = arith.constant 0 : i32
    %c0_i32_0 = arith.constant 0 : i32
    %c0_i32_1 = arith.constant 0 : i32
    return %arg0, %c0_i32, %c0_i32_0 : i32, i32, i32
  }
}

</mosaic_0001>

<llo_original>
// kernel: _lambda_.1
$region0: #{_lambda_.1}
  #allocation0 [shape = 'u32[]', space=smem, size = 0x4, offset = 0x4, fixed_abs, tag = 'smem constant byte address 0x4 - core index']
  #allocation1 [shape = 'u32[144,128]{1,0:T(1,128)}', space=vmem, size = 0x12000, scoped, tag = 'internal scratch']
  %s0 = inlined_call_operand.vmem [shape: f32[2,4,256], index: 0, kind: input, shape index: {}]
  %s1 = inlined_call_operand.hbm [shape: f32[4,1], index: 1, kind: input, shape index: {}]
  %s2 = inlined_call_operand.hbm [shape: f32[1,4,4], index: 2, kind: input, shape index: {}]
  %s3 = inlined_call_operand.hbm [shape: f32[4,1], index: 3, kind: input, shape index: {}]
  %s4 = inlined_call_operand.hbm [shape: f32[1,4,4], index: 4, kind: input, shape index: {}]
  %s5 = inlined_call_operand.vmem [shape: f32[8,1], index: 5, kind: input, shape index: {}]
  %s6 = inlined_call_operand.hbm [shape: f32[2,8,4], index: 6, kind: input, shape index: {}]
  %s7 = inlined_call_operand.hbm [shape: f32[4,1], index: 7, kind: input, shape index: {}]
  %s8 = inlined_call_operand.hbm [shape: f32[1,4,4], index: 8, kind: input, shape index: {}]
  %s9 = inlined_call_operand.hbm [shape: f32[4,1], index: 9, kind: input, shape index: {}]
  %s10 = inlined_call_operand.vmem [shape: f32[1,9,4,4], index: 10, kind: input, shape index: {}]
  %s11 = inlined_call_operand.hbm [shape: f32[4,1], index: 11, kind: input, shape index: {}]
  %s12 = inlined_call_operand.vmem [shape: f32[4,9,4,4], index: 12, kind: input, shape index: {}]
  %s13 = inlined_call_operand.hbm [shape: f32[4,1], index: 13, kind: input, shape index: {}]
  %s14 = inlined_call_operand.vmem [shape: f32[1,4,4], index: 14, kind: input, shape index: {}]
  %s15 = inlined_call_operand.vmem [shape: f32[2,8,256], index: 15, kind: output, shape index: {}]
  %s16 = sld [smem:[#allocation0]]
  $region133: #{_lambda_.1} parent=0
    _
  %s18 = ssub.s32 1, %s16
  %s19 = scalar_select 0, %s18, %s16
  $region1: #{_lambda_.1} parent=0
    #allocation2 [shape = 'u8[2048]{0}', space=vmem, size = 0x800, scoped, tag = 'input window, operand 1, single buffered']
    #allocation3 [shape = 's32[2]{0}', space=sflag, size = 0x8, scoped, tag = 'scoped memory for _lambda_.1']
    #allocation4 [shape = 'u8[2048]{0}', space=vmem, size = 0x800, scoped, tag = 'input window, operand 2, single buffered']
    #allocation5 [shape = 's32[1]{0}', space=sflag, size = 0x4, scoped, tag = 'scoped memory for _lambda_.1']
    #allocation6 [shape = 'u8[2048]{0}', space=vmem, size = 0x800, scoped, tag = 'input window, operand 3, single buffered']
    #allocation7 [shape = 'u8[2048]{0}', space=vmem, size = 0x800, scoped, tag = 'input window, operand 4, single buffered']
    #allocation8 [shape = 's32[1]{0}', space=sflag, size = 0x4, scoped, tag = 'scoped memory for _lambda_.1']
    #allocation9 [shape = 'u8[8192]{0}', space=vmem, size = 0x2000, scoped, tag = 'input window, operand 6, single buffered']
    #allocation10 [shape = 'u8[2048]{0}', space=vmem, size = 0x800, scoped, tag = 'input window, operand 7, single buffered']
    #allocation11 [shape = 's32[1]{0}', space=sflag, size = 0x4, scoped, tag = 'scoped memory for _lambda_.1']
    #allocation12 [shape = 'u8[2048]{0}', space=vmem, size = 0x800, scoped, tag = 'input window, operand 8, single buffered']
    #allocation13 [shape = 'u8[2048]{0}', space=vmem, size = 0x800, scoped, tag = 'input window, operand 9, single buffered']
    #allocation14 [shape = 's32[1]{0}', space=sflag, size = 0x4, scoped, tag = 'scoped memory for _lambda_.1']
    #allocation15 [shape = 'u8[2048]{0}', space=vmem, size = 0x800, scoped, tag = 'input window, operand 11, single buffered']
    #allocation16 [shape = 'u8[2048]{0}', space=vmem, size = 0x800, scoped, tag = 'input window, operand 13, single buffered']
    #allocation17 [shape = 's32[1]{0}', space=sflag, size = 0x4, scoped, tag = 'scoped memory for _lambda_.1']
    %20 = vsyncpa [#allocation3], 0
    %21 = vsyncpa [#allocation5], 0
    %22 = vsyncpa [#allocation8], 0
    %23 = vsyncpa [#allocation11], 0
    %24 = vsyncpa [#allocation14], 0
    %25 = vsyncpa [#allocation17], 0
    loop: start=0, step=1, limit=4
    $region2: #{_lambda_.1} parent=1 // loop_pre_header
      _
    $region3: #{_lambda_.1} parent=1 // loop_header
      %s27 = sphi 0, %s31
      %p28 = scmp.ge.s32.totalorder %s27, 4
      %s37 = sphi 0, %s39
      %s40 = sphi 0, %s37
      %s41 = sphi 0, %s40
      %s57 = sphi 0, %s41
      %s61 = sphi 0, %s61
      %s63 = sphi 0, %s61
      %s64 = sphi 0, %s63
      %s78 = sphi 0, %s64
      %s82 = sphi 0, %s82
      %s84 = sphi 0, %s82
      %s85 = sphi 0, %s84
      %s99 = sphi 0, %s85
      %s103 = sphi 0, %s103
      %s105 = sphi 0, %s103
      %s106 = sphi 0, %s105
      %s120 = sphi 0, %s106
      %s124 = sphi 0, %s124
      %s126 = sphi 0, %s124
      %s127 = sphi 0, %s126
      %s141 = sphi 0, %s127
      %s145 = sphi 0, %s145
      %s147 = sphi 0, %s145
      %s148 = sphi 0, %s147
      %s162 = sphi 0, %s148
      %s166 = sphi 0, %s166
      %s168 = sphi 0, %s166
      %s169 = sphi 0, %s168
      %s183 = sphi 0, %s169
      %s187 = sphi 0, %s187
      %s189 = sphi 0, %s187
      %s190 = sphi 0, %s189
      %s204 = sphi 0, %s190
      %s208 = sphi 0, %s208
      %s210 = sphi 0, %s208
      %s211 = sphi 0, %s210
      %s225 = sphi 0, %s211
      %s229 = sphi 0, %s229
      %s231 = sphi 0, %s229
      %s232 = sphi 0, %s231
      %s246 = sphi 0, %s232
      %s250 = sphi 0, %s250
      %s252 = sphi 0, %s250
      %s253 = sphi 0, %s252
      %s267 = sphi 0, %s253
      %s271 = sphi 0, %s271
      %s273 = sphi 0, %s271
      %s274 = sphi 0, %s273
      %s288 = sphi 0, %s274
      %s292 = sphi 0, %s292
      %s294 = sphi 0, %s292
      %s295 = sphi 0, %s294
      %s309 = sphi 0, %s295
      %s313 = sphi 0, %s313
      %s315 = sphi 0, %s313
      %s316 = sphi 0, %s315
      %s330 = sphi 0, %s316
      %s334 = sphi 0, %s334
      %s336 = sphi 0, %s334
      %s337 = sphi 0, %s336
      %s351 = sphi 0, %s337
      %s357 = sphi 0, %s359
      %s360 = sphi 0, %s357
      %s361 = sphi 0, %s360
      %s377 = sphi 0, %s361
    $region4: #{_lambda_.1} parent=1 // loop_header_branch
      %30 = sbr.rel (%p28) target = $region8
    $region5: #{_lambda_.1} parent=1 // loop_body
      %s32 = ssub.s32 %s27, 1
      %s33 = ssub.s32 %s27, 2
      %s34 = sadd.s32 %s27, 1
      %s35 = ssub.s32 %s27, %s34
      %p36 = scmp.eq.s32.totalorder %s35, 0
      %s38 = sadd.s32 %s37, 1
      %s39 = scalar_select %p36, %s37, %s38
      %p42 = pneg %p36
      %p43 = scmp.eq.s32.totalorder %s27, 1
      %p44 = por %p42, %p43
      %p45 = scmp.ne.s32.totalorder %s37, %s40
      %p46 = scmp.eq.s32.totalorder %s27, 0
      %p47 = por %p45, %p46
      %p48 = scmp.ne.s32.totalorder %s37, %s40
      %p49 = scmp.eq.s32.totalorder %s32, 1
      %p50 = por %p48, %p49
      %p51 = scmp.ne.s32.totalorder %s40, %s41
      %p52 = scmp.eq.s32.totalorder %s32, 0
      %p53 = por %p51, %p52
      %p54 = scmp.ne.s32.totalorder %s40, %s41
      %p55 = scmp.eq.s32.totalorder %s33, 1
      %p56 = por %p54, %p55
      %p58 = scmp.ne.s32.totalorder %s41, %s57
      %p59 = scmp.eq.s32.totalorder %s33, 0
      %p60 = por %p58, %p59
      %s62 = sadd.s32 %s61, 1
      %p65 = scmp.eq.s32.totalorder %s27, 1
      %p66 = scmp.ne.s32.totalorder %s61, %s63
      %p67 = scmp.eq.s32.totalorder %s27, 0
      %p68 = por %p66, %p67
      %p69 = scmp.ne.s32.totalorder %s61, %s63
      %p70 = scmp.eq.s32.totalorder %s32, 1
      %p71 = por %p69, %p70
      %p72 = scmp.ne.s32.totalorder %s63, %s64
      %p73 = scmp.eq.s32.totalorder %s32, 0
      %p74 = por %p72, %p73
      %p75 = scmp.ne.s32.totalorder %s63, %s64
      %p76 = scmp.eq.s32.totalorder %s33, 1
      %p77 = por %p75, %p76
      %p79 = scmp.ne.s32.totalorder %s64, %s78
      %p80 = scmp.eq.s32.totalorder %s33, 0
      %p81 = por %p79, %p80
      %s83 = sadd.s32 %s82, 1
      %p86 = scmp.eq.s32.totalorder %s27, 1
      %p87 = scmp.ne.s32.totalorder %s82, %s84
      %p88 = scmp.eq.s32.totalorder %s27, 0
      %p89 = por %p87, %p88
      %p90 = scmp.ne.s32.totalorder %s82, %s84
      %p91 = scmp.eq.s32.totalorder %s32, 1
      %p92 = por %p90, %p91
      %p93 = scmp.ne.s32.totalorder %s84, %s85
      %p94 = scmp.eq.s32.totalorder %s32, 0
      %p95 = por %p93, %p94
      %p96 = scmp.ne.s32.totalorder %s84, %s85
      %p97 = scmp.eq.s32.totalorder %s33, 1
      %p98 = por %p96, %p97
      %p100 = scmp.ne.s32.totalorder %s85, %s99
      %p101 = scmp.eq.s32.totalorder %s33, 0
      %p102 = por %p100, %p101
      %s104 = sadd.s32 %s103, 1
      %p107 = scmp.eq.s32.totalorder %s27, 1
      %p108 = scmp.ne.s32.totalorder %s103, %s105
      %p109 = scmp.eq.s32.totalorder %s27, 0
      %p110 = por %p108, %p109
      %p111 = scmp.ne.s32.totalorder %s103, %s105
      %p112 = scmp.eq.s32.totalorder %s32, 1
      %p113 = por %p111, %p112
      %p114 = scmp.ne.s32.totalorder %s105, %s106
      %p115 = scmp.eq.s32.totalorder %s32, 0
      %p116 = por %p114, %p115
      %p117 = scmp.ne.s32.totalorder %s105, %s106
      %p118 = scmp.eq.s32.totalorder %s33, 1
      %p119 = por %p117, %p118
      %p121 = scmp.ne.s32.totalorder %s106, %s120
      %p122 = scmp.eq.s32.totalorder %s33, 0
      %p123 = por %p121, %p122
      %s125 = sadd.s32 %s124, 1
      %p128 = scmp.eq.s32.totalorder %s27, 1
      %p129 = scmp.ne.s32.totalorder %s124, %s126
      %p130 = scmp.eq.s32.totalorder %s27, 0
      %p131 = por %p129, %p130
      %p132 = scmp.ne.s32.totalorder %s124, %s126
      %p133 = scmp.eq.s32.totalorder %s32, 1
      %p134 = por %p132, %p133
      %p135 = scmp.ne.s32.totalorder %s126, %s127
      %p136 = scmp.eq.s32.totalorder %s32, 0
      %p137 = por %p135, %p136
      %p138 = scmp.ne.s32.totalorder %s126, %s127
      %p139 = scmp.eq.s32.totalorder %s33, 1
      %p140 = por %p138, %p139
      %p142 = scmp.ne.s32.totalorder %s127, %s141
      %p143 = scmp.eq.s32.totalorder %s33, 0
      %p144 = por %p142, %p143
      %s146 = sadd.s32 %s145, 1
      %p149 = scmp.eq.s32.totalorder %s27, 1
      %p150 = scmp.ne.s32.totalorder %s145, %s147
      %p151 = scmp.eq.s32.totalorder %s27, 0
      %p152 = por %p150, %p151
      %p153 = scmp.ne.s32.totalorder %s145, %s147
      %p154 = scmp.eq.s32.totalorder %s32, 1
      %p155 = por %p153, %p154
      %p156 = scmp.ne.s32.totalorder %s147, %s148
      %p157 = scmp.eq.s32.totalorder %s32, 0
      %p158 = por %p156, %p157
      %p159 = scmp.ne.s32.totalorder %s147, %s148
      %p160 = scmp.eq.s32.totalorder %s33, 1
      %p161 = por %p159, %p160
      %p163 = scmp.ne.s32.totalorder %s148, %s162
      %p164 = scmp.eq.s32.totalorder %s33, 0
      %p165 = por %p163, %p164
      %s167 = sadd.s32 %s166, 1
      %p170 = scmp.eq.s32.totalorder %s27, 1
      %p171 = scmp.ne.s32.totalorder %s166, %s168
      %p172 = scmp.eq.s32.totalorder %s27, 0
      %p173 = por %p171, %p172
      %p174 = scmp.ne.s32.totalorder %s166, %s168
      %p175 = scmp.eq.s32.totalorder %s32, 1
      %p176 = por %p174, %p175
      %p177 = scmp.ne.s32.totalorder %s168, %s169
      %p178 = scmp.eq.s32.totalorder %s32, 0
      %p179 = por %p177, %p178
      %p180 = scmp.ne.s32.totalorder %s168, %s169
      %p181 = scmp.eq.s32.totalorder %s33, 1
      %p182 = por %p180, %p181
      %p184 = scmp.ne.s32.totalorder %s169, %s183
      %p185 = scmp.eq.s32.totalorder %s33, 0
      %p186 = por %p184, %p185
      %s188 = sadd.s32 %s187, 1
      %p191 = scmp.eq.s32.totalorder %s27, 1
      %p192 = scmp.ne.s32.totalorder %s187, %s189
      %p193 = scmp.eq.s32.totalorder %s27, 0
      %p194 = por %p192, %p193
      %p195 = scmp.ne.s32.totalorder %s187, %s189
      %p196 = scmp.eq.s32.totalorder %s32, 1
      %p197 = por %p195, %p196
      %p198 = scmp.ne.s32.totalorder %s189, %s190
      %p199 = scmp.eq.s32.totalorder %s32, 0
      %p200 = por %p198, %p199
      %p201 = scmp.ne.s32.totalorder %s189, %s190
      %p202 = scmp.eq.s32.totalorder %s33, 1
      %p203 = por %p201, %p202
      %p205 = scmp.ne.s32.totalorder %s190, %s204
      %p206 = scmp.eq.s32.totalorder %s33, 0
      %p207 = por %p205, %p206
      %s209 = sadd.s32 %s208, 1
      %p212 = scmp.eq.s32.totalorder %s27, 1
      %p213 = scmp.ne.s32.totalorder %s208, %s210
      %p214 = scmp.eq.s32.totalorder %s27, 0
      %p215 = por %p213, %p214
      %p216 = scmp.ne.s32.totalorder %s208, %s210
      %p217 = scmp.eq.s32.totalorder %s32, 1
      %p218 = por %p216, %p217
      %p219 = scmp.ne.s32.totalorder %s210, %s211
      %p220 = scmp.eq.s32.totalorder %s32, 0
      %p221 = por %p219, %p220
      %p222 = scmp.ne.s32.totalorder %s210, %s211
      %p223 = scmp.eq.s32.totalorder %s33, 1
      %p224 = por %p222, %p223
      %p226 = scmp.ne.s32.totalorder %s211, %s225
      %p227 = scmp.eq.s32.totalorder %s33, 0
      %p228 = por %p226, %p227
      %s230 = sadd.s32 %s229, 1
      %p233 = scmp.eq.s32.totalorder %s27, 1
      %p234 = scmp.ne.s32.totalorder %s229, %s231
      %p235 = scmp.eq.s32.totalorder %s27, 0
      %p236 = por %p234, %p235
      %p237 = scmp.ne.s32.totalorder %s229, %s231
      %p238 = scmp.eq.s32.totalorder %s32, 1
      %p239 = por %p237, %p238
      %p240 = scmp.ne.s32.totalorder %s231, %s232
      %p241 = scmp.eq.s32.totalorder %s32, 0
      %p242 = por %p240, %p241
      %p243 = scmp.ne.s32.totalorder %s231, %s232
      %p244 = scmp.eq.s32.totalorder %s33, 1
      %p245 = por %p243, %p244
      %p247 = scmp.ne.s32.totalorder %s232, %s246
      %p248 = scmp.eq.s32.totalorder %s33, 0
      %p249 = por %p247, %p248
      %s251 = sadd.s32 %s250, 1
      %p254 = scmp.eq.s32.totalorder %s27, 1
      %p255 = scmp.ne.s32.totalorder %s250, %s252
      %p256 = scmp.eq.s32.totalorder %s27, 0
      %p257 = por %p255, %p256
      %p258 = scmp.ne.s32.totalorder %s250, %s252
      %p259 = scmp.eq.s32.totalorder %s32, 1
      %p260 = por %p258, %p259
      %p261 = scmp.ne.s32.totalorder %s252, %s253
      %p262 = scmp.eq.s32.totalorder %s32, 0
      %p263 = por %p261, %p262
      %p264 = scmp.ne.s32.totalorder %s252, %s253
      %p265 = scmp.eq.s32.totalorder %s33, 1
      %p266 = por %p264, %p265
      %p268 = scmp.ne.s32.totalorder %s253, %s267
      %p269 = scmp.eq.s32.totalorder %s33, 0
      %p270 = por %p268, %p269
      %s272 = sadd.s32 %s271, 1
      %p275 = scmp.eq.s32.totalorder %s27, 1
      %p276 = scmp.ne.s32.totalorder %s271, %s273
      %p277 = scmp.eq.s32.totalorder %s27, 0
      %p278 = por %p276, %p277
      %p279 = scmp.ne.s32.totalorder %s271, %s273
      %p280 = scmp.eq.s32.totalorder %s32, 1
      %p281 = por %p279, %p280
      %p282 = scmp.ne.s32.totalorder %s273, %s274
      %p283 = scmp.eq.s32.totalorder %s32, 0
      %p284 = por %p282, %p283
      %p285 = scmp.ne.s32.totalorder %s273, %s274
      %p286 = scmp.eq.s32.totalorder %s33, 1
      %p287 = por %p285, %p286
      %p289 = scmp.ne.s32.totalorder %s274, %s288
      %p290 = scmp.eq.s32.totalorder %s33, 0
      %p291 = por %p289, %p290
      %s293 = sadd.s32 %s292, 1
      %p296 = scmp.eq.s32.totalorder %s27, 1
      %p297 = scmp.ne.s32.totalorder %s292, %s294
      %p298 = scmp.eq.s32.totalorder %s27, 0
      %p299 = por %p297, %p298
      %p300 = scmp.ne.s32.totalorder %s292, %s294
      %p301 = scmp.eq.s32.totalorder %s32, 1
      %p302 = por %p300, %p301
      %p303 = scmp.ne.s32.totalorder %s294, %s295
      %p304 = scmp.eq.s32.totalorder %s32, 0
      %p305 = por %p303, %p304
      %p306 = scmp.ne.s32.totalorder %s294, %s295
      %p307 = scmp.eq.s32.totalorder %s33, 1
      %p308 = por %p306, %p307
      %p310 = scmp.ne.s32.totalorder %s295, %s309
      %p311 = scmp.eq.s32.totalorder %s33, 0
      %p312 = por %p310, %p311
      %s314 = sadd.s32 %s313, 1
      %p317 = scmp.eq.s32.totalorder %s27, 1
      %p318 = scmp.ne.s32.totalorder %s313, %s315
      %p319 = scmp.eq.s32.totalorder %s27, 0
      %p320 = por %p318, %p319
      %p321 = scmp.ne.s32.totalorder %s313, %s315
      %p322 = scmp.eq.s32.totalorder %s32, 1
      %p323 = por %p321, %p322
      %p324 = scmp.ne.s32.totalorder %s315, %s316
      %p325 = scmp.eq.s32.totalorder %s32, 0
      %p326 = por %p324, %p325
      %p327 = scmp.ne.s32.totalorder %s315, %s316
      %p328 = scmp.eq.s32.totalorder %s33, 1
      %p329 = por %p327, %p328
      %p331 = scmp.ne.s32.totalorder %s316, %s330
      %p332 = scmp.eq.s32.totalorder %s33, 0
      %p333 = por %p331, %p332
      %s335 = sadd.s32 %s334, 1
      %p338 = scmp.eq.s32.totalorder %s27, 1
      %p339 = scmp.ne.s32.totalorder %s334, %s336
      %p340 = scmp.eq.s32.totalorder %s27, 0
      %p341 = por %p339, %p340
      %p342 = scmp.ne.s32.totalorder %s334, %s336
      %p343 = scmp.eq.s32.totalorder %s32, 1
      %p344 = por %p342, %p343
      %p345 = scmp.ne.s32.totalorder %s336, %s337
      %p346 = scmp.eq.s32.totalorder %s32, 0
      %p347 = por %p345, %p346
      %p348 = scmp.ne.s32.totalorder %s336, %s337
      %p349 = scmp.eq.s32.totalorder %s33, 1
      %p350 = por %p348, %p349
      %p352 = scmp.ne.s32.totalorder %s337, %s351
      %p353 = scmp.eq.s32.totalorder %s33, 0
      %p354 = por %p352, %p353
      %s355 = ssub.s32 %s27, %s34
      %p356 = scmp.eq.s32.totalorder %s355, 0
      %s358 = sadd.s32 %s357, 1
      %s359 = scalar_select %p356, %s357, %s358
      %p362 = pneg %p356
      %p363 = scmp.eq.s32.totalorder %s27, 1
      %p364 = por %p362, %p363
      %p365 = scmp.ne.s32.totalorder %s357, %s360
      %p366 = scmp.eq.s32.totalorder %s27, 0
      %p367 = por %p365, %p366
      %p368 = scmp.ne.s32.totalorder %s357, %s360
      %p369 = scmp.eq.s32.totalorder %s32, 1
      %p370 = por %p368, %p369
      %p371 = scmp.ne.s32.totalorder %s360, %s361
      %p372 = scmp.eq.s32.totalorder %s32, 0
      %p373 = por %p371, %p372
      %p374 = scmp.ne.s32.totalorder %s360, %s361
      %p375 = scmp.eq.s32.totalorder %s33, 1
      %p376 = por %p374, %p375
      %p378 = scmp.ne.s32.totalorder %s361, %s377
      %p379 = scmp.eq.s32.totalorder %s33, 0
      %p380 = por %p378, %p379
      %p381 = scmp.le.s32.totalorder 1, %s27
      %p382 = scmp.lt.s32.totalorder %s27, 3
      %p383 = pnand %p381, %p382
      %p384 = pneg %p383
      // Predicated region
      $region9: #{_lambda_.1} parent=5 // pred_check
        _
      $region10: #{_lambda_.1} parent=5 // pred_check_branch
        %386 = sbr.rel (%p383) target = $region12
      $region11: #{_lambda_.1} parent=5 // pred_region
        %s387 = ssub.s32 %s27, 1
        // Predicated region
        $region13: #{_lambda_.1} parent=11 // pred_check
          %p388 = pneg %p74
        $region14: #{_lambda_.1} parent=11 // pred_check_branch
          %390 = sbr.rel (%p388) target = $region16
        $region15: #{_lambda_.1} parent=11 // pred_region
          %s392 = ssub.s32 64, 64
          %393 = vsyncadd [#allocation3], %s392
          %s395 = sshll.u32 [#allocation2], 4
          %s396 = int_to_ptr.vmem [resolvable:$true] %s395
          %398 = dma.hbm_to_vmem [thread:$0]  %s1, 64, %s396, [#allocation3]
        $region16: #{_lambda_.1} parent=11 // pred_fallthru
          _
        // Predicated region
        $region17: #{_lambda_.1} parent=11 // pred_check
          %p399 = pneg %p95
        $region18: #{_lambda_.1} parent=11 // pred_check_branch
          %401 = sbr.rel (%p399) target = $region20
        $region19: #{_lambda_.1} parent=11 // pred_region
          %s403 = ssub.s32 64, 64
          %404 = vsyncadd [#allocation5], %s403
          %s406 = sshll.u32 [#allocation4], 4
          %s407 = int_to_ptr.vmem [resolvable:$true] %s406
          %409 = dma.hbm_to_vmem [thread:$0]  %s2, 64, %s407, [#allocation5]
        $region20: #{_lambda_.1} parent=11 // pred_fallthru
          _
        // Predicated region
        $region21: #{_lambda_.1} parent=11 // pred_check
          %p410 = pneg %p116
        $region22: #{_lambda_.1} parent=11 // pred_check_branch
          %412 = sbr.rel (%p410) target = $region24
        $region23: #{_lambda_.1} parent=11 // pred_region
          %s414 = ssub.s32 64, 64
          %415 = vsyncadd [#allocation5], %s414
          %s417 = sshll.u32 [#allocation6], 4
          %s418 = int_to_ptr.vmem [resolvable:$true] %s417
          %420 = dma.hbm_to_vmem [thread:$0]  %s3, 64, %s418, [#allocation5]
        $region24: #{_lambda_.1} parent=11 // pred_fallthru
          _
        // Predicated region
        $region25: #{_lambda_.1} parent=11 // pred_check
          %p421 = pneg %p137
        $region26: #{_lambda_.1} parent=11 // pred_check_branch
          %423 = sbr.rel (%p421) target = $region28
        $region27: #{_lambda_.1} parent=11 // pred_region
          %s425 = ssub.s32 64, 64
          %426 = vsyncadd [#allocation8], %s425
          %s428 = sshll.u32 [#allocation7], 4
          %s429 = int_to_ptr.vmem [resolvable:$true] %s428
          %431 = dma.hbm_to_vmem [thread:$0]  %s4, 64, %s429, [#allocation8]
        $region28: #{_lambda_.1} parent=11 // pred_fallthru
          _
        // Predicated region
        $region29: #{_lambda_.1} parent=11 // pred_check
          %p432 = pneg %p158
        $region30: #{_lambda_.1} parent=11 // pred_check_branch
          %434 = sbr.rel (%p432) target = $region32
        $region31: #{_lambda_.1} parent=11 // pred_region
          _
        $region32: #{_lambda_.1} parent=11 // pred_fallthru
          _
        // Predicated region
        $region33: #{_lambda_.1} parent=11 // pred_check
          %p435 = pneg %p179
        $region34: #{_lambda_.1} parent=11 // pred_check_branch
          %437 = sbr.rel (%p435) target = $region36
        $region35: #{_lambda_.1} parent=11 // pred_region
          %s439 = ssub.s32 256, 256
          %440 = vsyncadd [#allocation8], %s439
          %s441 = sshll.u32 [#allocation9], 4
          %s442 = int_to_ptr.vmem [resolvable:$true] %s441
          %447 = dma.hbm_to_vmem [thread:$0]  %s6, 256, %s442, [#allocation8], 128, 128, 8
        $region36: #{_lambda_.1} parent=11 // pred_fallthru
          _
        // Predicated region
        $region37: #{_lambda_.1} parent=11 // pred_check
          %p448 = pneg %p200
        $region38: #{_lambda_.1} parent=11 // pred_check_branch
          %450 = sbr.rel (%p448) target = $region40
        $region39: #{_lambda_.1} parent=11 // pred_region
          %s452 = ssub.s32 64, 64
          %453 = vsyncadd [#allocation11], %s452
          %s455 = sshll.u32 [#allocation10], 4
          %s456 = int_to_ptr.vmem [resolvable:$true] %s455
          %458 = dma.hbm_to_vmem [thread:$0]  %s7, 64, %s456, [#allocation11]
        $region40: #{_lambda_.1} parent=11 // pred_fallthru
          _
        // Predicated region
        $region41: #{_lambda_.1} parent=11 // pred_check
          %p459 = pneg %p221
        $region42: #{_lambda_.1} parent=11 // pred_check_branch
          %461 = sbr.rel (%p459) target = $region44
        $region43: #{_lambda_.1} parent=11 // pred_region
          %s463 = ssub.s32 64, 64
          %464 = vsyncadd [#allocation11], %s463
          %s466 = sshll.u32 [#allocation12], 4
          %s467 = int_to_ptr.vmem [resolvable:$true] %s466
          %469 = dma.hbm_to_vmem [thread:$0]  %s8, 64, %s467, [#allocation11]
        $region44: #{_lambda_.1} parent=11 // pred_fallthru
          _
        // Predicated region
        $region45: #{_lambda_.1} parent=11 // pred_check
          %p470 = pneg %p242
        $region46: #{_lambda_.1} parent=11 // pred_check_branch
          %472 = sbr.rel (%p470) target = $region48
        $region47: #{_lambda_.1} parent=11 // pred_region
          %s474 = ssub.s32 64, 64
          %475 = vsyncadd [#allocation14], %s474
          %s477 = sshll.u32 [#allocation13], 4
          %s478 = int_to_ptr.vmem [resolvable:$true] %s477
          %480 = dma.hbm_to_vmem [thread:$0]  %s9, 64, %s478, [#allocation14]
        $region48: #{_lambda_.1} parent=11 // pred_fallthru
          _
        // Predicated region
        $region49: #{_lambda_.1} parent=11 // pred_check
          %p481 = pneg %p263
        $region50: #{_lambda_.1} parent=11 // pred_check_branch
          %483 = sbr.rel (%p481) target = $region52
        $region51: #{_lambda_.1} parent=11 // pred_region
          _
        $region52: #{_lambda_.1} parent=11 // pred_fallthru
          _
        // Predicated region
        $region53: #{_lambda_.1} parent=11 // pred_check
          %p484 = pneg %p284
        $region54: #{_lambda_.1} parent=11 // pred_check_branch
          %486 = sbr.rel (%p484) target = $region56
        $region55: #{_lambda_.1} parent=11 // pred_region
          %s488 = ssub.s32 64, 64
          %489 = vsyncadd [#allocation14], %s488
          %s491 = sshll.u32 [#allocation15], 4
          %s492 = int_to_ptr.vmem [resolvable:$true] %s491
          %494 = dma.hbm_to_vmem [thread:$0]  %s11, 64, %s492, [#allocation14]
        $region56: #{_lambda_.1} parent=11 // pred_fallthru
          _
        // Predicated region
        $region57: #{_lambda_.1} parent=11 // pred_check
          %p495 = pneg %p305
        $region58: #{_lambda_.1} parent=11 // pred_check_branch
          %497 = sbr.rel (%p495) target = $region60
        $region59: #{_lambda_.1} parent=11 // pred_region
          _
        $region60: #{_lambda_.1} parent=11 // pred_fallthru
          _
        // Predicated region
        $region61: #{_lambda_.1} parent=11 // pred_check
          %p498 = pneg %p326
        $region62: #{_lambda_.1} parent=11 // pred_check_branch
          %500 = sbr.rel (%p498) target = $region64
        $region63: #{_lambda_.1} parent=11 // pred_region
          %s502 = ssub.s32 64, 64
          %503 = vsyncadd [#allocation17], %s502
          %s505 = sshll.u32 [#allocation16], 4
          %s506 = int_to_ptr.vmem [resolvable:$true] %s505
          %508 = dma.hbm_to_vmem [thread:$0]  %s13, 64, %s506, [#allocation17]
        $region64: #{_lambda_.1} parent=11 // pred_fallthru
          _
        // Predicated region
        $region65: #{_lambda_.1} parent=11 // pred_check
          %p509 = pneg %p347
        $region66: #{_lambda_.1} parent=11 // pred_check_branch
          %511 = sbr.rel (%p509) target = $region68
        $region67: #{_lambda_.1} parent=11 // pred_region
          _
        $region68: #{_lambda_.1} parent=11 // pred_fallthru
          _
      $region12: #{_lambda_.1} parent=5 // pred_fallthru
        _
      %p512 = scmp.lt.s32.totalorder %s27, 2
      // Predicated region
      $region69: #{_lambda_.1} parent=5 // pred_check
        %p513 = pneg %p512
      $region70: #{_lambda_.1} parent=5 // pred_check_branch
        %515 = sbr.rel (%p513) target = $region72
      $region71: #{_lambda_.1} parent=5 // pred_region
        // Predicated region
        $region73: #{_lambda_.1} parent=71 // pred_check
          %p516 = pneg %p47
        $region74: #{_lambda_.1} parent=71 // pred_check_branch
          %518 = sbr.rel (%p516) target = $region76
        $region75: #{_lambda_.1} parent=71 // pred_region
          %p519 = scmp.lt.s32.totalorder %s27, 1
          %s520 = scalar_select %p519, %s27, 1
          %s521 = smul.addr %s520, 2
          %s522 = smul.addr %s521, 4
          %s523 = scalar_lea.vmem %s0, %s522
        $region76: #{_lambda_.1} parent=71 // pred_fallthru
          _
      $region72: #{_lambda_.1} parent=5 // pred_fallthru
        _
      %p524 = scmp.le.s32.totalorder 1, %s27
      %p525 = scmp.lt.s32.totalorder %s27, 3
      %p526 = pnand %p524, %p525
      %p527 = pneg %p526
      // Predicated region
      $region77: #{_lambda_.1} parent=5 // pred_check
        _
      $region78: #{_lambda_.1} parent=5 // pred_check_branch
        %529 = sbr.rel (%p526) target = $region80
      $region79: #{_lambda_.1} parent=5 // pred_region
        %s530 = ssub.s32 %s27, 1
        // Predicated region
        $region81: #{_lambda_.1} parent=79 // pred_check
          %p531 = pneg %p74
        $region82: #{_lambda_.1} parent=79 // pred_check_branch
          %533 = sbr.rel (%p531) target = $region84
        $region83: #{_lambda_.1} parent=79 // pred_region
          %534 = dma.done [#allocation3], 64
        $region84: #{_lambda_.1} parent=79 // pred_fallthru
          _
        // Predicated region
        $region85: #{_lambda_.1} parent=79 // pred_check
          %p535 = pneg %p95
        $region86: #{_lambda_.1} parent=79 // pred_check_branch
          %537 = sbr.rel (%p535) target = $region88
        $region87: #{_lambda_.1} parent=79 // pred_region
          %538 = dma.done [#allocation5], 64
        $region88: #{_lambda_.1} parent=79 // pred_fallthru
          _
        // Predicated region
        $region89: #{_lambda_.1} parent=79 // pred_check
          %p539 = pneg %p116
        $region90: #{_lambda_.1} parent=79 // pred_check_branch
          %541 = sbr.rel (%p539) target = $region92
        $region91: #{_lambda_.1} parent=79 // pred_region
          %542 = dma.done [#allocation5], 64
        $region92: #{_lambda_.1} parent=79 // pred_fallthru
          _
        // Predicated region
        $region93: #{_lambda_.1} parent=79 // pred_check
          %p543 = pneg %p137
        $region94: #{_lambda_.1} parent=79 // pred_check_branch
          %545 = sbr.rel (%p543) target = $region96
        $region95: #{_lambda_.1} parent=79 // pred_region
          %546 = dma.done [#allocation8], 64
        $region96: #{_lambda_.1} parent=79 // pred_fallthru
          _
        // Predicated region
        $region97: #{_lambda_.1} parent=79 // pred_check
          %p547 = pneg %p179
        $region98: #{_lambda_.1} parent=79 // pred_check_branch
          %549 = sbr.rel (%p547) target = $region100
        $region99: #{_lambda_.1} parent=79 // pred_region
          %550 = dma.done [#allocation8], 256
        $region100: #{_lambda_.1} parent=79 // pred_fallthru
          _
        // Predicated region
        $region101: #{_lambda_.1} parent=79 // pred_check
          %p551 = pneg %p200
        $region102: #{_lambda_.1} parent=79 // pred_check_branch
          %553 = sbr.rel (%p551) target = $region104
        $region103: #{_lambda_.1} parent=79 // pred_region
          %554 = dma.done [#allocation11], 64
        $region104: #{_lambda_.1} parent=79 // pred_fallthru
          _
        // Predicated region
        $region105: #{_lambda_.1} parent=79 // pred_check
          %p555 = pneg %p221
        $region106: #{_lambda_.1} parent=79 // pred_check_branch
          %557 = sbr.rel (%p555) target = $region108
        $region107: #{_lambda_.1} parent=79 // pred_region
          %558 = dma.done [#allocation11], 64
        $region108: #{_lambda_.1} parent=79 // pred_fallthru
          _
        // Predicated region
        $region109: #{_lambda_.1} parent=79 // pred_check
          %p559 = pneg %p242
        $region110: #{_lambda_.1} parent=79 // pred_check_branch
          %561 = sbr.rel (%p559) target = $region112
        $region111: #{_lambda_.1} parent=79 // pred_region
          %562 = dma.done [#allocation14], 64
        $region112: #{_lambda_.1} parent=79 // pred_fallthru
          _
        // Predicated region
        $region113: #{_lambda_.1} parent=79 // pred_check
          %p563 = pneg %p284
        $region114: #{_lambda_.1} parent=79 // pred_check_branch
          %565 = sbr.rel (%p563) target = $region116
        $region115: #{_lambda_.1} parent=79 // pred_region
          %566 = dma.done [#allocation14], 64
        $region116: #{_lambda_.1} parent=79 // pred_fallthru
          _
        // Predicated region
        $region117: #{_lambda_.1} parent=79 // pred_check
          %p567 = pneg %p326
        $region118: #{_lambda_.1} parent=79 // pred_check_branch
          %569 = sbr.rel (%p567) target = $region120
        $region119: #{_lambda_.1} parent=79 // pred_region
          %570 = dma.done [#allocation17], 64
        $region120: #{_lambda_.1} parent=79 // pred_fallthru
          _
        %p571 = scmp.lt.s32.totalorder %s32, 1
        %s572 = scalar_select %p571, %s32, 1
        %s573 = smul.addr %s572, 2
        %s574 = smul.addr %s573, 4
        %s575 = scalar_lea.vmem %s0, %s574
        %p576 = pneg %p53
        %p577 = pneg %p50
        %p578 = pneg %p74
        %p579 = pneg %p71
        %p580 = pneg %p95
        %p581 = pneg %p92
        %p582 = pneg %p116
        %p583 = pneg %p113
        %p584 = pneg %p137
        %p585 = pneg %p134
        %p586 = pneg %p158
        %p587 = pneg %p155
        %p588 = pneg %p179
        %p589 = pneg %p176
        %p590 = pneg %p200
        %p591 = pneg %p197
        %p592 = pneg %p221
        %p593 = pneg %p218
        %p594 = pneg %p242
        %p595 = pneg %p239
        %p596 = pneg %p263
        %p597 = pneg %p260
        %p598 = pneg %p284
        %p599 = pneg %p281
        %p600 = pneg %p305
        %p601 = pneg %p302
        %p602 = pneg %p326
        %p603 = pneg %p323
        %p604 = pneg %p347
        %p605 = pneg %p344
        %p606 = pneg %p373
        %p607 = pneg %p370
        %p608 = scmp.lt.s32.totalorder %s32, 1
        %s609 = scalar_select %p608, %s32, 1
        %s610 = smul.addr %s609, 2
        %s611 = smul.addr %s610, 8
        %s612 = scalar_lea.vmem %s15, %s611
        %p613 = scmp.lt.s32.totalorder %s32, 1
        %s614 = scalar_select %p613, %s32, 1
        %s615 = smul.addr %s614, 2
        %s616 = smul.addr %s615, 4
        %s617 = scalar_lea.vmem %s0, %s616
        %p618 = scmp.lt.s32.totalorder %s32, 1
        %s619 = scalar_select %p618, %s32, 1
        %s620 = smul.addr %s619, 2
        %s621 = smul.addr %s620, 8
        %s622 = scalar_lea.vmem %s15, %s621
        %v623 = vlaneseq
        %v624 = vand.u32 %v623, 127
        %v625 = vadd.s32 %v624, 128
        %v626 = vand.u32 %v624, 15
        %v627 = vand.u32 %v625, 15
        %vm628 = vcmp.ge.s32.totalorder %v626, 1
        %vm629 = vcmp.ge.s32.totalorder %v627, 1
        %vm630 = vcmp.ge.s32.totalorder %v624, 16
        %vm631 = vcmp.ge.s32.totalorder %v625, 16
        %vm632 = vmand %vm628, %vm630
        %vm633 = vmand %vm629, %vm631
        %vm634 = vcmp.lt.s32.totalorder %v626, 15
        %vm635 = vcmp.lt.s32.totalorder %v627, 15
        %vm636 = vmand %vm634, %vm630
        %vm637 = vmand %vm635, %vm631
        %vm638 = vcmp.lt.s32.totalorder %v624, 240
        %vm639 = vcmp.lt.s32.totalorder %v625, 240
        %vm640 = vmand %vm628, %vm638
        %vm641 = vmand %vm629, %vm639
        %vm642 = vmand %vm634, %vm638
        %vm643 = vmand %vm635, %vm639
        %v644 = vld [vmem:[%s617] sm:$0xff]
        %v645 = vld [vmem:[#allocation4] sm:$0xf]
        %v646 = vld [vmem:[#allocation2] sm:$0xf]
        %648 = vset.pattern.permute.xlu0 0
        %649 = vperm.xlu0 %648, %v646
        %v650 = vpop.permute.xlu0 %649
        %v653 = vcombine.high %v644, %v644
        %vm654 = vcmask 31744
        %v656 = vsel %vm654, %v645, 0
        %vm658 = vcmask 1043456
        %v659 = vsel %vm658, %v644, 0
        %v661 = vsel %vm658, %v653, 0
        %663 = vmatprep.subr.mxu0 %v661
        %664 = vmatpush1.msra.mxu0 %v659
        %665 = vmatprep.subr.mxu0 0.0
        %666 = vmatpush1.msra.mxu0 0.0
        %667 = vmatprep.subr.mxu0 0.0
        %668 = vmatpush1.msra.mxu0 0.0
        %669 = vmatprep.subr.mxu0 0.0
        %670 = vmatpush1.msra.mxu0 0.0
        %671 = vmatprep.subr.mxu0 0.0
        %672 = vmatpush1.msra.mxu0 0.0
        %673 = vmatprep.subr.mxu0 0.0
        %674 = vmatpush1.msra.mxu0 0.0
        %675 = vmatprep.subr.mxu0 0.0
        %676 = vmatpush1.msra.mxu0 0.0
        %677 = vmatprep.subr.mxu0 0.0
        %678 = vmatpush1.msra.mxu0 0.0
        %679 = vmatprep.subr.mxu0 0.0
        %680 = vmatpush1.msra.mxu0 0.0
        %681 = vmatprep.subr.mxu0 0.0
        %682 = vmatpush1.msra.mxu0 0.0
        %683 = vmatprep.subr.mxu0 0.0
        %684 = vmatpush1.msra.mxu0 0.0
        %685 = vmatprep.subr.mxu0 0.0
        %686 = vmatpush1.msra.mxu0 0.0
        %687 = vmatprep.subr.mxu0 0.0
        %688 = vmatpush1.msra.mxu0 0.0
        %689 = vmatprep.subr.mxu0 0.0
        %690 = vmatpush1.msra.mxu0 0.0
        %691 = vmatprep.subr.mxu0 0.0
        %692 = vmatpush1.msra.mxu0 0.0
        %693 = vmatprep.subr.mxu0 0.0
        %694 = vmatpush1.msra.mxu0 0.0
        %695 = vmatprep.subr.mxu0 0.0
        %696 = vmatpush1.msra.mxu0 0.0
        %697 = vmatprep.subr.mxu0 0.0
        %698 = vmatpush1.msra.mxu0 0.0
        %699 = vmatprep.subr.mxu0 0.0
        %700 = vmatpush1.msra.mxu0 0.0
        %701 = vmatprep.subr.mxu0 0.0
        %702 = vmatpush1.msra.mxu0 0.0
        %703 = vmatprep.subr.mxu0 0.0
        %704 = vmatpush1.msra.mxu0 0.0
        %705 = vmatprep.subr.mxu0 0.0
        %706 = vmatpush1.msra.mxu0 0.0
        %707 = vmatprep.subr.mxu0 0.0
        %708 = vmatpush1.msra.mxu0 0.0
        %709 = vmatprep.subr.mxu0 0.0
        %710 = vmatpush1.msra.mxu0 0.0
        %711 = vmatprep.subr.mxu0 0.0
        %712 = vmatpush1.msra.mxu0 0.0
        %713 = vmatprep.subr.mxu0 0.0
        %714 = vmatpush1.msra.mxu0 0.0
        %715 = vmatprep.subr.mxu0 0.0
        %716 = vmatpush1.msra.mxu0 0.0
        %717 = vmatprep.subr.mxu0 0.0
        %718 = vmatpush1.msra.mxu0 0.0
        %719 = vmatprep.subr.mxu0 0.0
        %720 = vmatpush1.msra.mxu0 0.0
        %721 = vmatprep.subr.mxu0 0.0
        %722 = vmatpush1.msra.mxu0 0.0
        %723 = vmatprep.subr.mxu0 0.0
        %724 = vmatpush1.msra.mxu0 0.0
        %725 = vmatprep.subr.mxu0 0.0
        %726 = vmatpush1.msra.mxu0 0.0
        %727 = vmatprep.mubr.f32.mxu0 0.0
        %728 = vmatmul.mubr.f32.gmra.mrb[0].mxu0 %v656
        %v729 = vpop.f32.mrb[0].mxu0
        %v730 = vadd.f32 %v650, %v729
        %v731 = vpop.f32.mrb[0].mxu0
        %v732 = vadd.f32 %v650, %v731
        %733 = vdwg.mxu0
        %v734 = vxor.u32 %v730, 2147483648
        %v735 = vxor.u32 %v732, 2147483648
        %v736 = vmul.f32 %v734, 1.442695
        %v737 = vpow.pop %v736
        %v738 = vmul.f32 %v735, 1.442695
        %v739 = vpow.pop %v738
        %v740 = vadd.f32 %v737, 1.0
        %v741 = vadd.f32 %v739, 1.0
        %v742 = vrcp.pop %v740
        %v743 = vmul.f32 1.0, %v742
        %v744 = vrcp.pop %v741
        %v745 = vmul.f32 1.0, %v744
        %v746 = vmul.f32 %v730, %v743
        %v747 = vmul.f32 %v732, %v745
        %v748 = vld [vmem:[#allocation12] sm:$0xf]
        %v749 = vld [vmem:[#allocation10] sm:$0xf]
        %751 = vset.pattern.permute.xlu0 0
        %752 = vperm.xlu0 %751, %v749
        %v753 = vpop.permute.xlu0 %752
        %v756 = vsel %vm654, %v748, 0
        %v759 = vsel %vm658, %v746, 0
        %v762 = vsel %vm658, %v747, 0
        %764 = vmatprep.subr.mxu0 %v762
        %765 = vmatpush1.msra.mxu0 %v759
        %766 = vmatprep.subr.mxu0 0.0
        %767 = vmatpush1.msra.mxu0 0.0
        %768 = vmatprep.subr.mxu0 0.0
        %769 = vmatpush1.msra.mxu0 0.0
        %770 = vmatprep.subr.mxu0 0.0
        %771 = vmatpush1.msra.mxu0 0.0
        %772 = vmatprep.subr.mxu0 0.0
        %773 = vmatpush1.msra.mxu0 0.0
        %774 = vmatprep.subr.mxu0 0.0
        %775 = vmatpush1.msra.mxu0 0.0
        %776 = vmatprep.subr.mxu0 0.0
        %777 = vmatpush1.msra.mxu0 0.0
        %778 = vmatprep.subr.mxu0 0.0
        %779 = vmatpush1.msra.mxu0 0.0
        %780 = vmatprep.subr.mxu0 0.0
        %781 = vmatpush1.msra.mxu0 0.0
        %782 = vmatprep.subr.mxu0 0.0
        %783 = vmatpush1.msra.mxu0 0.0
        %784 = vmatprep.subr.mxu0 0.0
        %785 = vmatpush1.msra.mxu0 0.0
        %786 = vmatprep.subr.mxu0 0.0
        %787 = vmatpush1.msra.mxu0 0.0
        %788 = vmatprep.subr.mxu0 0.0
        %789 = vmatpush1.msra.mxu0 0.0
        %790 = vmatprep.subr.mxu0 0.0
        %791 = vmatpush1.msra.mxu0 0.0
        %792 = vmatprep.subr.mxu0 0.0
        %793 = vmatpush1.msra.mxu0 0.0
        %794 = vmatprep.subr.mxu0 0.0
        %795 = vmatpush1.msra.mxu0 0.0
        %796 = vmatprep.subr.mxu0 0.0
        %797 = vmatpush1.msra.mxu0 0.0
        %798 = vmatprep.subr.mxu0 0.0
        %799 = vmatpush1.msra.mxu0 0.0
        %800 = vmatprep.subr.mxu0 0.0
        %801 = vmatpush1.msra.mxu0 0.0
        %802 = vmatprep.subr.mxu0 0.0
        %803 = vmatpush1.msra.mxu0 0.0
        %804 = vmatprep.subr.mxu0 0.0
        %805 = vmatpush1.msra.mxu0 0.0
        %806 = vmatprep.subr.mxu0 0.0
        %807 = vmatpush1.msra.mxu0 0.0
        %808 = vmatprep.subr.mxu0 0.0
        %809 = vmatpush1.msra.mxu0 0.0
        %810 = vmatprep.subr.mxu0 0.0
        %811 = vmatpush1.msra.mxu0 0.0
        %812 = vmatprep.subr.mxu0 0.0
        %813 = vmatpush1.msra.mxu0 0.0
        %814 = vmatprep.subr.mxu0 0.0
        %815 = vmatpush1.msra.mxu0 0.0
        %816 = vmatprep.subr.mxu0 0.0
        %817 = vmatpush1.msra.mxu0 0.0
        %818 = vmatprep.subr.mxu0 0.0
        %819 = vmatpush1.msra.mxu0 0.0
        %820 = vmatprep.subr.mxu0 0.0
        %821 = vmatpush1.msra.mxu0 0.0
        %822 = vmatprep.subr.mxu0 0.0
        %823 = vmatpush1.msra.mxu0 0.0
        %824 = vmatprep.subr.mxu0 0.0
        %825 = vmatpush1.msra.mxu0 0.0
        %826 = vmatprep.subr.mxu0 0.0
        %827 = vmatpush1.msra.mxu0 0.0
        %828 = vmatprep.mubr.f32.mxu0 0.0
        %829 = vmatmul.mubr.f32.gmra.mrb[0].mxu0 %v756
        %v830 = vpop.f32.mrb[0].mxu0
        %v831 = vadd.f32 %v753, %v830
        %v832 = vpop.f32.mrb[0].mxu0
        %v833 = vadd.f32 %v753, %v832
        %834 = vdwg.mxu0
        %v835 = vxor.u32 %v831, 2147483648
        %v836 = vxor.u32 %v833, 2147483648
        %v837 = vmul.f32 %v835, 1.442695
        %v838 = vpow.pop %v837
        %v839 = vmul.f32 %v836, 1.442695
        %v840 = vpow.pop %v839
        %v841 = vadd.f32 %v838, 1.0
        %v842 = vadd.f32 %v840, 1.0
        %v843 = vrcp.pop %v841
        %v844 = vmul.f32 1.0, %v843
        %v845 = vrcp.pop %v842
        %v846 = vmul.f32 1.0, %v845
        %v847 = vmul.f32 %v831, %v844
        %v848 = vmul.f32 %v833, %v846
        %849 = vrot.lane.b32.xlu0 %v847, 17
        %v850 = vpop.permute.xlu0 %849
        %851 = vrot.lane.b32.xlu0 %v848, 17
        %v852 = vpop.permute.xlu0 %851
        %vm853 = vcmp.lt.s32.totalorder %v624, 17
        %v854 = vsel %vm853, %v850, %v852
        %v855 = vsel %vm853, %v852, %v850
        %v856 = vsel %vm632, 1, 0
        %v857 = vsel %vm633, 1, 0
        %vm858 = vcmp.eq.s32.totalorder %v856, 1
        %vm859 = vcmp.eq.s32.totalorder %v857, 1
        %v860 = vsel %vm858, %v855, 0.0
        %v861 = vsel %vm859, %v854, 0.0
        %862 = vrot.lane.b32.xlu0 %v847, 16
        %v863 = vpop.permute.xlu0 %862
        %864 = vrot.lane.b32.xlu0 %v848, 16
        %v865 = vpop.permute.xlu0 %864
        %vm866 = vcmp.lt.s32.totalorder %v624, 16
        %v867 = vsel %vm866, %v863, %v865
        %v868 = vsel %vm866, %v865, %v863
        %v869 = vsel %vm630, 1, 0
        %v870 = vsel %vm631, 1, 0
        %vm871 = vcmp.eq.s32.totalorder %v869, 1
        %vm872 = vcmp.eq.s32.totalorder %v870, 1
        %v873 = vsel %vm871, %v868, 0.0
        %v874 = vsel %vm872, %v867, 0.0
        %875 = vrot.lane.b32.xlu0 %v847, 15
        %v876 = vpop.permute.xlu0 %875
        %877 = vrot.lane.b32.xlu0 %v848, 15
        %v878 = vpop.permute.xlu0 %877
        %vm879 = vcmp.lt.s32.totalorder %v624, 15
        %v880 = vsel %vm879, %v876, %v878
        %v881 = vsel %vm879, %v878, %v876
        %v882 = vsel %vm636, 1, 0
        %v883 = vsel %vm637, 1, 0
        %vm884 = vcmp.eq.s32.totalorder %v882, 1
        %vm885 = vcmp.eq.s32.totalorder %v883, 1
        %v886 = vsel %vm884, %v881, 0.0
        %v887 = vsel %vm885, %v880, 0.0
        %888 = vrot.lane.b32.xlu0 %v847, 1
        %v889 = vpop.permute.xlu0 %888
        %890 = vrot.lane.b32.xlu0 %v848, 1
        %v891 = vpop.permute.xlu0 %890
        %vm892 = vcmp.lt.s32.totalorder %v624, 1
        %v893 = vsel %vm892, %v889, %v891
        %v894 = vsel %vm892, %v891, %v889
        %v895 = vsel %vm628, 1, 0
        %v896 = vsel %vm629, 1, 0
        %vm897 = vcmp.eq.s32.totalorder %v895, 1
        %vm898 = vcmp.eq.s32.totalorder %v896, 1
        %v899 = vsel %vm897, %v894, 0.0
        %v900 = vsel %vm898, %v893, 0.0
        %901 = vrot.lane.b32.xlu0 %v847, 127
        %v902 = vpop.permute.xlu0 %901
        %903 = vrot.lane.b32.xlu0 %v848, 127
        %v904 = vpop.permute.xlu0 %903
        %vm905 = vcmp.lt.s32.totalorder %v624, 127
        %v906 = vsel %vm905, %v902, %v904
        %v907 = vsel %vm905, %v904, %v902
        %v908 = vsel %vm634, 1, 0
        %v909 = vsel %vm635, 1, 0
        %vm910 = vcmp.eq.s32.totalorder %v908, 1
        %vm911 = vcmp.eq.s32.totalorder %v909, 1
        %v912 = vsel %vm910, %v906, 0.0
        %v913 = vsel %vm911, %v907, 0.0
        %914 = vrot.lane.b32.xlu0 %v847, 113
        %v915 = vpop.permute.xlu0 %914
        %916 = vrot.lane.b32.xlu0 %v848, 113
        %v917 = vpop.permute.xlu0 %916
        %vm918 = vcmp.lt.s32.totalorder %v624, 113
        %v919 = vsel %vm918, %v915, %v917
        %v920 = vsel %vm918, %v917, %v915
        %v921 = vsel %vm640, 1, 0
        %v922 = vsel %vm641, 1, 0
        %vm923 = vcmp.eq.s32.totalorder %v921, 1
        %vm924 = vcmp.eq.s32.totalorder %v922, 1
        %v925 = vsel %vm923, %v919, 0.0
        %v926 = vsel %vm924, %v920, 0.0
        %927 = vrot.lane.b32.xlu0 %v847, 112
        %v928 = vpop.permute.xlu0 %927
        %929 = vrot.lane.b32.xlu0 %v848, 112
        %v930 = vpop.permute.xlu0 %929
        %vm931 = vcmp.lt.s32.totalorder %v624, 112
        %v932 = vsel %vm931, %v928, %v930
        %v933 = vsel %vm931, %v930, %v928
        %v934 = vsel %vm638, 1, 0
        %v935 = vsel %vm639, 1, 0
        %vm936 = vcmp.eq.s32.totalorder %v934, 1
        %vm937 = vcmp.eq.s32.totalorder %v935, 1
        %v938 = vsel %vm936, %v932, 0.0
        %v939 = vsel %vm937, %v933, 0.0
        %940 = vrot.lane.b32.xlu0 %v847, 111
        %v941 = vpop.permute.xlu0 %940
        %942 = vrot.lane.b32.xlu0 %v848, 111
        %v943 = vpop.permute.xlu0 %942
        %vm944 = vcmp.lt.s32.totalorder %v624, 111
        %v945 = vsel %vm944, %v941, %v943
        %v946 = vsel %vm944, %v943, %v941
        %v947 = vsel %vm642, 1, 0
        %v948 = vsel %vm643, 1, 0
        %vm949 = vcmp.eq.s32.totalorder %v947, 1
        %vm950 = vcmp.eq.s32.totalorder %v948, 1
        %v951 = vsel %vm949, %v945, 0.0
        %v952 = vsel %vm950, %v946, 0.0
        %v953 = vld [vmem:[%s10] sm:$0xf]
        %s954 = scalar_lea.vmem %s10, 4
        %v955 = vld [vmem:[%s954] sm:$0xf]
        %v957 = vsel %vm654, %v955, 0
        %v960 = vsel %vm658, %v873, 0
        %v963 = vsel %vm658, %v874, 0
        %965 = vmatprep.subr.mxu0 %v963
        %966 = vmatpush1.msra.mxu0 %v960
        %967 = vmatprep.subr.mxu0 0.0
        %968 = vmatpush1.msra.mxu0 0.0
        %969 = vmatprep.subr.mxu0 0.0
        %970 = vmatpush1.msra.mxu0 0.0
        %971 = vmatprep.subr.mxu0 0.0
        %972 = vmatpush1.msra.mxu0 0.0
        %973 = vmatprep.subr.mxu0 0.0
        %974 = vmatpush1.msra.mxu0 0.0
        %975 = vmatprep.subr.mxu0 0.0
        %976 = vmatpush1.msra.mxu0 0.0
        %977 = vmatprep.subr.mxu0 0.0
        %978 = vmatpush1.msra.mxu0 0.0
        %979 = vmatprep.subr.mxu0 0.0
        %980 = vmatpush1.msra.mxu0 0.0
        %981 = vmatprep.subr.mxu0 0.0
        %982 = vmatpush1.msra.mxu0 0.0
        %983 = vmatprep.subr.mxu0 0.0
        %984 = vmatpush1.msra.mxu0 0.0
        %985 = vmatprep.subr.mxu0 0.0
        %986 = vmatpush1.msra.mxu0 0.0
        %987 = vmatprep.subr.mxu0 0.0
        %988 = vmatpush1.msra.mxu0 0.0
        %989 = vmatprep.subr.mxu0 0.0
        %990 = vmatpush1.msra.mxu0 0.0
        %991 = vmatprep.subr.mxu0 0.0
        %992 = vmatpush1.msra.mxu0 0.0
        %993 = vmatprep.subr.mxu0 0.0
        %994 = vmatpush1.msra.mxu0 0.0
        %995 = vmatprep.subr.mxu0 0.0
        %996 = vmatpush1.msra.mxu0 0.0
        %997 = vmatprep.subr.mxu0 0.0
        %998 = vmatpush1.msra.mxu0 0.0
        %999 = vmatprep.subr.mxu0 0.0
        %1000 = vmatpush1.msra.mxu0 0.0
        %1001 = vmatprep.subr.mxu0 0.0
        %1002 = vmatpush1.msra.mxu0 0.0
        %1003 = vmatprep.subr.mxu0 0.0
        %1004 = vmatpush1.msra.mxu0 0.0
        %1005 = vmatprep.subr.mxu0 0.0
        %1006 = vmatpush1.msra.mxu0 0.0
        %1007 = vmatprep.subr.mxu0 0.0
        %1008 = vmatpush1.msra.mxu0 0.0
        %1009 = vmatprep.subr.mxu0 0.0
        %1010 = vmatpush1.msra.mxu0 0.0
        %1011 = vmatprep.subr.mxu0 0.0
        %1012 = vmatpush1.msra.mxu0 0.0
        %1013 = vmatprep.subr.mxu0 0.0
        %1014 = vmatpush1.msra.mxu0 0.0
        %1015 = vmatprep.subr.mxu0 0.0
        %1016 = vmatpush1.msra.mxu0 0.0
        %1017 = vmatprep.subr.mxu0 0.0
        %1018 = vmatpush1.msra.mxu0 0.0
        %1019 = vmatprep.subr.mxu0 0.0
        %1020 = vmatpush1.msra.mxu0 0.0
        %1021 = vmatprep.subr.mxu0 0.0
        %1022 = vmatpush1.msra.mxu0 0.0
        %1023 = vmatprep.subr.mxu0 0.0
        %1024 = vmatpush1.msra.mxu0 0.0
        %1025 = vmatprep.subr.mxu0 0.0
        %1026 = vmatpush1.msra.mxu0 0.0
        %1027 = vmatprep.subr.mxu0 0.0
        %1028 = vmatpush1.msra.mxu0 0.0
        %1029 = vmatprep.mubr.f32.mxu0 0.0
        %1030 = vmatmul.mubr.f32.gmra.mrb[0].mxu0 %v957
        %v1031 = vpop.f32.mrb[0].mxu0
        %v1032 = vadd.f32 0.0, %v1031
        %v1033 = vpop.f32.mrb[0].mxu0
        %v1034 = vadd.f32 0.0, %v1033
        %1035 = vdwg.mxu0
        %v1037 = vsel %vm654, %v953, 0
        %v1040 = vsel %vm658, %v860, 0
        %v1043 = vsel %vm658, %v861, 0
        %1045 = vmatprep.subr.mxu0 %v1043
        %1046 = vmatpush1.msra.mxu0 %v1040
        %1047 = vmatprep.subr.mxu0 0.0
        %1048 = vmatpush1.msra.mxu0 0.0
        %1049 = vmatprep.subr.mxu0 0.0
        %1050 = vmatpush1.msra.mxu0 0.0
        %1051 = vmatprep.subr.mxu0 0.0
        %1052 = vmatpush1.msra.mxu0 0.0
        %1053 = vmatprep.subr.mxu0 0.0
        %1054 = vmatpush1.msra.mxu0 0.0
        %1055 = vmatprep.subr.mxu0 0.0
        %1056 = vmatpush1.msra.mxu0 0.0
        %1057 = vmatprep.subr.mxu0 0.0
        %1058 = vmatpush1.msra.mxu0 0.0
        %1059 = vmatprep.subr.mxu0 0.0
        %1060 = vmatpush1.msra.mxu0 0.0
        %1061 = vmatprep.subr.mxu0 0.0
        %1062 = vmatpush1.msra.mxu0 0.0
        %1063 = vmatprep.subr.mxu0 0.0
        %1064 = vmatpush1.msra.mxu0 0.0
        %1065 = vmatprep.subr.mxu0 0.0
        %1066 = vmatpush1.msra.mxu0 0.0
        %1067 = vmatprep.subr.mxu0 0.0
        %1068 = vmatpush1.msra.mxu0 0.0
        %1069 = vmatprep.subr.mxu0 0.0
        %1070 = vmatpush1.msra.mxu0 0.0
        %1071 = vmatprep.subr.mxu0 0.0
        %1072 = vmatpush1.msra.mxu0 0.0
        %1073 = vmatprep.subr.mxu0 0.0
        %1074 = vmatpush1.msra.mxu0 0.0
        %1075 = vmatprep.subr.mxu0 0.0
        %1076 = vmatpush1.msra.mxu0 0.0
        %1077 = vmatprep.subr.mxu0 0.0
        %1078 = vmatpush1.msra.mxu0 0.0
        %1079 = vmatprep.subr.mxu0 0.0
        %1080 = vmatpush1.msra.mxu0 0.0
        %1081 = vmatprep.subr.mxu0 0.0
        %1082 = vmatpush1.msra.mxu0 0.0
        %1083 = vmatprep.subr.mxu0 0.0
        %1084 = vmatpush1.msra.mxu0 0.0
        %1085 = vmatprep.subr.mxu0 0.0
        %1086 = vmatpush1.msra.mxu0 0.0
        %1087 = vmatprep.subr.mxu0 0.0
        %1088 = vmatpush1.msra.mxu0 0.0
        %1089 = vmatprep.subr.mxu0 0.0
        %1090 = vmatpush1.msra.mxu0 0.0
        %1091 = vmatprep.subr.mxu0 0.0
        %1092 = vmatpush1.msra.mxu0 0.0
        %1093 = vmatprep.subr.mxu0 0.0
        %1094 = vmatpush1.msra.mxu0 0.0
        %1095 = vmatprep.subr.mxu0 0.0
        %1096 = vmatpush1.msra.mxu0 0.0
        %1097 = vmatprep.subr.mxu0 0.0
        %1098 = vmatpush1.msra.mxu0 0.0
        %1099 = vmatprep.subr.mxu0 0.0
        %1100 = vmatpush1.msra.mxu0 0.0
        %1101 = vmatprep.subr.mxu0 0.0
        %1102 = vmatpush1.msra.mxu0 0.0
        %1103 = vmatprep.subr.mxu0 0.0
        %1104 = vmatpush1.msra.mxu0 0.0
        %1105 = vmatprep.subr.mxu0 0.0
        %1106 = vmatpush1.msra.mxu0 0.0
        %1107 = vmatprep.subr.mxu0 0.0
        %1108 = vmatpush1.msra.mxu0 0.0
        %1109 = vmatprep.mubr.f32.mxu0 0.0
        %1110 = vmatmul.mubr.f32.gmra.mrb[0].mxu0 %v1037
        %v1111 = vpop.f32.mrb[0].mxu0
        %v1112 = vadd.f32 %v1032, %v1111
        %v1113 = vpop.f32.mrb[0].mxu0
        %v1114 = vadd.f32 %v1034, %v1113
        %1115 = vdwg.mxu0
        %s1116 = scalar_lea.vmem %s10, 8
        %v1117 = vld [vmem:[%s1116] sm:$0xf]
        %v1119 = vsel %vm654, %v1117, 0
        %v1122 = vsel %vm658, %v886, 0
        %v1125 = vsel %vm658, %v887, 0
        %1127 = vmatprep.subr.mxu0 %v1125
        %1128 = vmatpush1.msra.mxu0 %v1122
        %1129 = vmatprep.subr.mxu0 0.0
        %1130 = vmatpush1.msra.mxu0 0.0
        %1131 = vmatprep.subr.mxu0 0.0
        %1132 = vmatpush1.msra.mxu0 0.0
        %1133 = vmatprep.subr.mxu0 0.0
        %1134 = vmatpush1.msra.mxu0 0.0
        %1135 = vmatprep.subr.mxu0 0.0
        %1136 = vmatpush1.msra.mxu0 0.0
        %1137 = vmatprep.subr.mxu0 0.0
        %1138 = vmatpush1.msra.mxu0 0.0
        %1139 = vmatprep.subr.mxu0 0.0
        %1140 = vmatpush1.msra.mxu0 0.0
        %1141 = vmatprep.subr.mxu0 0.0
        %1142 = vmatpush1.msra.mxu0 0.0
        %1143 = vmatprep.subr.mxu0 0.0
        %1144 = vmatpush1.msra.mxu0 0.0
        %1145 = vmatprep.subr.mxu0 0.0
        %1146 = vmatpush1.msra.mxu0 0.0
        %1147 = vmatprep.subr.mxu0 0.0
        %1148 = vmatpush1.msra.mxu0 0.0
        %1149 = vmatprep.subr.mxu0 0.0
        %1150 = vmatpush1.msra.mxu0 0.0
        %1151 = vmatprep.subr.mxu0 0.0
        %1152 = vmatpush1.msra.mxu0 0.0
        %1153 = vmatprep.subr.mxu0 0.0
        %1154 = vmatpush1.msra.mxu0 0.0
        %1155 = vmatprep.subr.mxu0 0.0
        %1156 = vmatpush1.msra.mxu0 0.0
        %1157 = vmatprep.subr.mxu0 0.0
        %1158 = vmatpush1.msra.mxu0 0.0
        %1159 = vmatprep.subr.mxu0 0.0
        %1160 = vmatpush1.msra.mxu0 0.0
        %1161 = vmatprep.subr.mxu0 0.0
        %1162 = vmatpush1.msra.mxu0 0.0
        %1163 = vmatprep.subr.mxu0 0.0
        %1164 = vmatpush1.msra.mxu0 0.0
        %1165 = vmatprep.subr.mxu0 0.0
        %1166 = vmatpush1.msra.mxu0 0.0
        %1167 = vmatprep.subr.mxu0 0.0
        %1168 = vmatpush1.msra.mxu0 0.0
        %1169 = vmatprep.subr.mxu0 0.0
        %1170 = vmatpush1.msra.mxu0 0.0
        %1171 = vmatprep.subr.mxu0 0.0
        %1172 = vmatpush1.msra.mxu0 0.0
        %1173 = vmatprep.subr.mxu0 0.0
        %1174 = vmatpush1.msra.mxu0 0.0
        %1175 = vmatprep.subr.mxu0 0.0
        %1176 = vmatpush1.msra.mxu0 0.0
        %1177 = vmatprep.subr.mxu0 0.0
        %1178 = vmatpush1.msra.mxu0 0.0
        %1179 = vmatprep.subr.mxu0 0.0
        %1180 = vmatpush1.msra.mxu0 0.0
        %1181 = vmatprep.subr.mxu0 0.0
        %1182 = vmatpush1.msra.mxu0 0.0
        %1183 = vmatprep.subr.mxu0 0.0
        %1184 = vmatpush1.msra.mxu0 0.0
        %1185 = vmatprep.subr.mxu0 0.0
        %1186 = vmatpush1.msra.mxu0 0.0
        %1187 = vmatprep.subr.mxu0 0.0
        %1188 = vmatpush1.msra.mxu0 0.0
        %1189 = vmatprep.subr.mxu0 0.0
        %1190 = vmatpush1.msra.mxu0 0.0
        %1191 = vmatprep.mubr.f32.mxu0 0.0
        %1192 = vmatmul.mubr.f32.gmra.mrb[0].mxu0 %v1119
        %v1193 = vpop.f32.mrb[0].mxu0
        %v1194 = vadd.f32 0.0, %v1193
        %v1195 = vpop.f32.mrb[0].mxu0
        %v1196 = vadd.f32 0.0, %v1195
        %1197 = vdwg.mxu0
        %v1198 = vadd.f32 %v1112, %v1194
        %v1199 = vadd.f32 %v1114, %v1196
        %s1200 = scalar_lea.vmem %s10, 12
        %v1201 = vld [vmem:[%s1200] sm:$0xf]
        %v1203 = vsel %vm654, %v1201, 0
        %v1206 = vsel %vm658, %v899, 0
        %v1209 = vsel %vm658, %v900, 0
        %1211 = vmatprep.subr.mxu0 %v1209
        %1212 = vmatpush1.msra.mxu0 %v1206
        %1213 = vmatprep.subr.mxu0 0.0
        %1214 = vmatpush1.msra.mxu0 0.0
        %1215 = vmatprep.subr.mxu0 0.0
        %1216 = vmatpush1.msra.mxu0 0.0
        %1217 = vmatprep.subr.mxu0 0.0
        %1218 = vmatpush1.msra.mxu0 0.0
        %1219 = vmatprep.subr.mxu0 0.0
        %1220 = vmatpush1.msra.mxu0 0.0
        %1221 = vmatprep.subr.mxu0 0.0
        %1222 = vmatpush1.msra.mxu0 0.0
        %1223 = vmatprep.subr.mxu0 0.0
        %1224 = vmatpush1.msra.mxu0 0.0
        %1225 = vmatprep.subr.mxu0 0.0
        %1226 = vmatpush1.msra.mxu0 0.0
        %1227 = vmatprep.subr.mxu0 0.0
        %1228 = vmatpush1.msra.mxu0 0.0
        %1229 = vmatprep.subr.mxu0 0.0
        %1230 = vmatpush1.msra.mxu0 0.0
        %1231 = vmatprep.subr.mxu0 0.0
        %1232 = vmatpush1.msra.mxu0 0.0
        %1233 = vmatprep.subr.mxu0 0.0
        %1234 = vmatpush1.msra.mxu0 0.0
        %1235 = vmatprep.subr.mxu0 0.0
        %1236 = vmatpush1.msra.mxu0 0.0
        %1237 = vmatprep.subr.mxu0 0.0
        %1238 = vmatpush1.msra.mxu0 0.0
        %1239 = vmatprep.subr.mxu0 0.0
        %1240 = vmatpush1.msra.mxu0 0.0
        %1241 = vmatprep.subr.mxu0 0.0
        %1242 = vmatpush1.msra.mxu0 0.0
        %1243 = vmatprep.subr.mxu0 0.0
        %1244 = vmatpush1.msra.mxu0 0.0
        %1245 = vmatprep.subr.mxu0 0.0
        %1246 = vmatpush1.msra.mxu0 0.0
        %1247 = vmatprep.subr.mxu0 0.0
        %1248 = vmatpush1.msra.mxu0 0.0
        %1249 = vmatprep.subr.mxu0 0.0
        %1250 = vmatpush1.msra.mxu0 0.0
        %1251 = vmatprep.subr.mxu0 0.0
        %1252 = vmatpush1.msra.mxu0 0.0
        %1253 = vmatprep.subr.mxu0 0.0
        %1254 = vmatpush1.msra.mxu0 0.0
        %1255 = vmatprep.subr.mxu0 0.0
        %1256 = vmatpush1.msra.mxu0 0.0
        %1257 = vmatprep.subr.mxu0 0.0
        %1258 = vmatpush1.msra.mxu0 0.0
        %1259 = vmatprep.subr.mxu0 0.0
        %1260 = vmatpush1.msra.mxu0 0.0
        %1261 = vmatprep.subr.mxu0 0.0
        %1262 = vmatpush1.msra.mxu0 0.0
        %1263 = vmatprep.subr.mxu0 0.0
        %1264 = vmatpush1.msra.mxu0 0.0
        %1265 = vmatprep.subr.mxu0 0.0
        %1266 = vmatpush1.msra.mxu0 0.0
        %1267 = vmatprep.subr.mxu0 0.0
        %1268 = vmatpush1.msra.mxu0 0.0
        %1269 = vmatprep.subr.mxu0 0.0
        %1270 = vmatpush1.msra.mxu0 0.0
        %1271 = vmatprep.subr.mxu0 0.0
        %1272 = vmatpush1.msra.mxu0 0.0
        %1273 = vmatprep.subr.mxu0 0.0
        %1274 = vmatpush1.msra.mxu0 0.0
        %1275 = vmatprep.mubr.f32.mxu0 0.0
        %1276 = vmatmul.mubr.f32.gmra.mrb[0].mxu0 %v1203
        %v1277 = vpop.f32.mrb[0].mxu0
        %v1278 = vadd.f32 0.0, %v1277
        %v1279 = vpop.f32.mrb[0].mxu0
        %v1280 = vadd.f32 0.0, %v1279
        %1281 = vdwg.mxu0
        %v1282 = vadd.f32 %v1198, %v1278
        %v1283 = vadd.f32 %v1199, %v1280
        %s1284 = scalar_lea.vmem %s10, 16
        %v1285 = vld [vmem:[%s1284] sm:$0xf]
        %v1287 = vsel %vm654, %v1285, 0
        %v1290 = vsel %vm658, %v847, 0
        %v1293 = vsel %vm658, %v848, 0
        %1295 = vmatprep.subr.mxu0 %v1293
        %1296 = vmatpush1.msra.mxu0 %v1290
        %1297 = vmatprep.subr.mxu0 0.0
        %1298 = vmatpush1.msra.mxu0 0.0
        %1299 = vmatprep.subr.mxu0 0.0
        %1300 = vmatpush1.msra.mxu0 0.0
        %1301 = vmatprep.subr.mxu0 0.0
        %1302 = vmatpush1.msra.mxu0 0.0
        %1303 = vmatprep.subr.mxu0 0.0
        %1304 = vmatpush1.msra.mxu0 0.0
        %1305 = vmatprep.subr.mxu0 0.0
        %1306 = vmatpush1.msra.mxu0 0.0
        %1307 = vmatprep.subr.mxu0 0.0
        %1308 = vmatpush1.msra.mxu0 0.0
        %1309 = vmatprep.subr.mxu0 0.0
        %1310 = vmatpush1.msra.mxu0 0.0
        %1311 = vmatprep.subr.mxu0 0.0
        %1312 = vmatpush1.msra.mxu0 0.0
        %1313 = vmatprep.subr.mxu0 0.0
        %1314 = vmatpush1.msra.mxu0 0.0
        %1315 = vmatprep.subr.mxu0 0.0
        %1316 = vmatpush1.msra.mxu0 0.0
        %1317 = vmatprep.subr.mxu0 0.0
        %1318 = vmatpush1.msra.mxu0 0.0
        %1319 = vmatprep.subr.mxu0 0.0
        %1320 = vmatpush1.msra.mxu0 0.0
        %1321 = vmatprep.subr.mxu0 0.0
        %1322 = vmatpush1.msra.mxu0 0.0
        %1323 = vmatprep.subr.mxu0 0.0
        %1324 = vmatpush1.msra.mxu0 0.0
        %1325 = vmatprep.subr.mxu0 0.0
        %1326 = vmatpush1.msra.mxu0 0.0
        %1327 = vmatprep.subr.mxu0 0.0
        %1328 = vmatpush1.msra.mxu0 0.0
        %1329 = vmatprep.subr.mxu0 0.0
        %1330 = vmatpush1.msra.mxu0 0.0
        %1331 = vmatprep.subr.mxu0 0.0
        %1332 = vmatpush1.msra.mxu0 0.0
        %1333 = vmatprep.subr.mxu0 0.0
        %1334 = vmatpush1.msra.mxu0 0.0
        %1335 = vmatprep.subr.mxu0 0.0
        %1336 = vmatpush1.msra.mxu0 0.0
        %1337 = vmatprep.subr.mxu0 0.0
        %1338 = vmatpush1.msra.mxu0 0.0
        %1339 = vmatprep.subr.mxu0 0.0
        %1340 = vmatpush1.msra.mxu0 0.0
        %1341 = vmatprep.subr.mxu0 0.0
        %1342 = vmatpush1.msra.mxu0 0.0
        %1343 = vmatprep.subr.mxu0 0.0
        %1344 = vmatpush1.msra.mxu0 0.0
        %1345 = vmatprep.subr.mxu0 0.0
        %1346 = vmatpush1.msra.mxu0 0.0
        %1347 = vmatprep.subr.mxu0 0.0
        %1348 = vmatpush1.msra.mxu0 0.0
        %1349 = vmatprep.subr.mxu0 0.0
        %1350 = vmatpush1.msra.mxu0 0.0
        %1351 = vmatprep.subr.mxu0 0.0
        %1352 = vmatpush1.msra.mxu0 0.0
        %1353 = vmatprep.subr.mxu0 0.0
        %1354 = vmatpush1.msra.mxu0 0.0
        %1355 = vmatprep.subr.mxu0 0.0
        %1356 = vmatpush1.msra.mxu0 0.0
        %1357 = vmatprep.subr.mxu0 0.0
        %1358 = vmatpush1.msra.mxu0 0.0
        %1359 = vmatprep.mubr.f32.mxu0 0.0
        %1360 = vmatmul.mubr.f32.gmra.mrb[0].mxu0 %v1287
        %v1361 = vpop.f32.mrb[0].mxu0
        %v1362 = vadd.f32 0.0, %v1361
        %v1363 = vpop.f32.mrb[0].mxu0
        %v1364 = vadd.f32 0.0, %v1363
        %1365 = vdwg.mxu0
        %v1366 = vadd.f32 %v1282, %v1362
        %v1367 = vadd.f32 %v1283, %v1364
        %s1368 = scalar_lea.vmem %s10, 20
        %v1369 = vld [vmem:[%s1368] sm:$0xf]
        %v1371 = vsel %vm654, %v1369, 0
        %v1374 = vsel %vm658, %v912, 0
        %v1377 = vsel %vm658, %v913, 0
        %1379 = vmatprep.subr.mxu0 %v1377
        %1380 = vmatpush1.msra.mxu0 %v1374
        %1381 = vmatprep.subr.mxu0 0.0
        %1382 = vmatpush1.msra.mxu0 0.0
        %1383 = vmatprep.subr.mxu0 0.0
        %1384 = vmatpush1.msra.mxu0 0.0
        %1385 = vmatprep.subr.mxu0 0.0
        %1386 = vmatpush1.msra.mxu0 0.0
        %1387 = vmatprep.subr.mxu0 0.0
        %1388 = vmatpush1.msra.mxu0 0.0
        %1389 = vmatprep.subr.mxu0 0.0
        %1390 = vmatpush1.msra.mxu0 0.0
        %1391 = vmatprep.subr.mxu0 0.0
        %1392 = vmatpush1.msra.mxu0 0.0
        %1393 = vmatprep.subr.mxu0 0.0
        %1394 = vmatpush1.msra.mxu0 0.0
        %1395 = vmatprep.subr.mxu0 0.0
        %1396 = vmatpush1.msra.mxu0 0.0
        %1397 = vmatprep.subr.mxu0 0.0
        %1398 = vmatpush1.msra.mxu0 0.0
        %1399 = vmatprep.subr.mxu0 0.0
        %1400 = vmatpush1.msra.mxu0 0.0
        %1401 = vmatprep.subr.mxu0 0.0
        %1402 = vmatpush1.msra.mxu0 0.0
        %1403 = vmatprep.subr.mxu0 0.0
        %1404 = vmatpush1.msra.mxu0 0.0
        %1405 = vmatprep.subr.mxu0 0.0
        %1406 = vmatpush1.msra.mxu0 0.0
        %1407 = vmatprep.subr.mxu0 0.0
        %1408 = vmatpush1.msra.mxu0 0.0
        %1409 = vmatprep.subr.mxu0 0.0
        %1410 = vmatpush1.msra.mxu0 0.0
        %1411 = vmatprep.subr.mxu0 0.0
        %1412 = vmatpush1.msra.mxu0 0.0
        %1413 = vmatprep.subr.mxu0 0.0
        %1414 = vmatpush1.msra.mxu0 0.0
        %1415 = vmatprep.subr.mxu0 0.0
        %1416 = vmatpush1.msra.mxu0 0.0
        %1417 = vmatprep.subr.mxu0 0.0
        %1418 = vmatpush1.msra.mxu0 0.0
        %1419 = vmatprep.subr.mxu0 0.0
        %1420 = vmatpush1.msra.mxu0 0.0
        %1421 = vmatprep.subr.mxu0 0.0
        %1422 = vmatpush1.msra.mxu0 0.0
        %1423 = vmatprep.subr.mxu0 0.0
        %1424 = vmatpush1.msra.mxu0 0.0
        %1425 = vmatprep.subr.mxu0 0.0
        %1426 = vmatpush1.msra.mxu0 0.0
        %1427 = vmatprep.subr.mxu0 0.0
        %1428 = vmatpush1.msra.mxu0 0.0
        %1429 = vmatprep.subr.mxu0 0.0
        %1430 = vmatpush1.msra.mxu0 0.0
        %1431 = vmatprep.subr.mxu0 0.0
        %1432 = vmatpush1.msra.mxu0 0.0
        %1433 = vmatprep.subr.mxu0 0.0
        %1434 = vmatpush1.msra.mxu0 0.0
        %1435 = vmatprep.subr.mxu0 0.0
        %1436 = vmatpush1.msra.mxu0 0.0
        %1437 = vmatprep.subr.mxu0 0.0
        %1438 = vmatpush1.msra.mxu0 0.0
        %1439 = vmatprep.subr.mxu0 0.0
        %1440 = vmatpush1.msra.mxu0 0.0
        %1441 = vmatprep.subr.mxu0 0.0
        %1442 = vmatpush1.msra.mxu0 0.0
        %1443 = vmatprep.mubr.f32.mxu0 0.0
        %1444 = vmatmul.mubr.f32.gmra.mrb[0].mxu0 %v1371
        %v1445 = vpop.f32.mrb[0].mxu0
        %v1446 = vadd.f32 0.0, %v1445
        %v1447 = vpop.f32.mrb[0].mxu0
        %v1448 = vadd.f32 0.0, %v1447
        %1449 = vdwg.mxu0
        %v1450 = vadd.f32 %v1366, %v1446
        %v1451 = vadd.f32 %v1367, %v1448
        %s1452 = scalar_lea.vmem %s10, 24
        %v1453 = vld [vmem:[%s1452] sm:$0xf]
        %v1455 = vsel %vm654, %v1453, 0
        %v1458 = vsel %vm658, %v925, 0
        %v1461 = vsel %vm658, %v926, 0
        %1463 = vmatprep.subr.mxu0 %v1461
        %1464 = vmatpush1.msra.mxu0 %v1458
        %1465 = vmatprep.subr.mxu0 0.0
        %1466 = vmatpush1.msra.mxu0 0.0
        %1467 = vmatprep.subr.mxu0 0.0
        %1468 = vmatpush1.msra.mxu0 0.0
        %1469 = vmatprep.subr.mxu0 0.0
        %1470 = vmatpush1.msra.mxu0 0.0
        %1471 = vmatprep.subr.mxu0 0.0
        %1472 = vmatpush1.msra.mxu0 0.0
        %1473 = vmatprep.subr.mxu0 0.0
        %1474 = vmatpush1.msra.mxu0 0.0
        %1475 = vmatprep.subr.mxu0 0.0
        %1476 = vmatpush1.msra.mxu0 0.0
        %1477 = vmatprep.subr.mxu0 0.0
        %1478 = vmatpush1.msra.mxu0 0.0
        %1479 = vmatprep.subr.mxu0 0.0
        %1480 = vmatpush1.msra.mxu0 0.0
        %1481 = vmatprep.subr.mxu0 0.0
        %1482 = vmatpush1.msra.mxu0 0.0
        %1483 = vmatprep.subr.mxu0 0.0
        %1484 = vmatpush1.msra.mxu0 0.0
        %1485 = vmatprep.subr.mxu0 0.0
        %1486 = vmatpush1.msra.mxu0 0.0
        %1487 = vmatprep.subr.mxu0 0.0
        %1488 = vmatpush1.msra.mxu0 0.0
        %1489 = vmatprep.subr.mxu0 0.0
        %1490 = vmatpush1.msra.mxu0 0.0
        %1491 = vmatprep.subr.mxu0 0.0
        %1492 = vmatpush1.msra.mxu0 0.0
        %1493 = vmatprep.subr.mxu0 0.0
        %1494 = vmatpush1.msra.mxu0 0.0
        %1495 = vmatprep.subr.mxu0 0.0
        %1496 = vmatpush1.msra.mxu0 0.0
        %1497 = vmatprep.subr.mxu0 0.0
        %1498 = vmatpush1.msra.mxu0 0.0
        %1499 = vmatprep.subr.mxu0 0.0
        %1500 = vmatpush1.msra.mxu0 0.0
        %1501 = vmatprep.subr.mxu0 0.0
        %1502 = vmatpush1.msra.mxu0 0.0
        %1503 = vmatprep.subr.mxu0 0.0
        %1504 = vmatpush1.msra.mxu0 0.0
        %1505 = vmatprep.subr.mxu0 0.0
        %1506 = vmatpush1.msra.mxu0 0.0
        %1507 = vmatprep.subr.mxu0 0.0
        %1508 = vmatpush1.msra.mxu0 0.0
        %1509 = vmatprep.subr.mxu0 0.0
        %1510 = vmatpush1.msra.mxu0 0.0
        %1511 = vmatprep.subr.mxu0 0.0
        %1512 = vmatpush1.msra.mxu0 0.0
        %1513 = vmatprep.subr.mxu0 0.0
        %1514 = vmatpush1.msra.mxu0 0.0
        %1515 = vmatprep.subr.mxu0 0.0
        %1516 = vmatpush1.msra.mxu0 0.0
        %1517 = vmatprep.subr.mxu0 0.0
        %1518 = vmatpush1.msra.mxu0 0.0
        %1519 = vmatprep.subr.mxu0 0.0
        %1520 = vmatpush1.msra.mxu0 0.0
        %1521 = vmatprep.subr.mxu0 0.0
        %1522 = vmatpush1.msra.mxu0 0.0
        %1523 = vmatprep.subr.mxu0 0.0
        %1524 = vmatpush1.msra.mxu0 0.0
        %1525 = vmatprep.subr.mxu0 0.0
        %1526 = vmatpush1.msra.mxu0 0.0
        %1527 = vmatprep.mubr.f32.mxu0 0.0
        %1528 = vmatmul.mubr.f32.gmra.mrb[0].mxu0 %v1455
        %v1529 = vpop.f32.mrb[0].mxu0
        %v1530 = vadd.f32 0.0, %v1529
        %v1531 = vpop.f32.mrb[0].mxu0
        %v1532 = vadd.f32 0.0, %v1531
        %1533 = vdwg.mxu0
        %v1534 = vadd.f32 %v1450, %v1530
        %v1535 = vadd.f32 %v1451, %v1532
        %s1536 = scalar_lea.vmem %s10, 28
        %v1537 = vld [vmem:[%s1536] sm:$0xf]
        %v1539 = vsel %vm654, %v1537, 0
        %v1542 = vsel %vm658, %v938, 0
        %v1545 = vsel %vm658, %v939, 0
        %1547 = vmatprep.subr.mxu0 %v1545
        %1548 = vmatpush1.msra.mxu0 %v1542
        %1549 = vmatprep.subr.mxu0 0.0
        %1550 = vmatpush1.msra.mxu0 0.0
        %1551 = vmatprep.subr.mxu0 0.0
        %1552 = vmatpush1.msra.mxu0 0.0
        %1553 = vmatprep.subr.mxu0 0.0
        %1554 = vmatpush1.msra.mxu0 0.0
        %1555 = vmatprep.subr.mxu0 0.0
        %1556 = vmatpush1.msra.mxu0 0.0
        %1557 = vmatprep.subr.mxu0 0.0
        %1558 = vmatpush1.msra.mxu0 0.0
        %1559 = vmatprep.subr.mxu0 0.0
        %1560 = vmatpush1.msra.mxu0 0.0
        %1561 = vmatprep.subr.mxu0 0.0
        %1562 = vmatpush1.msra.mxu0 0.0
        %1563 = vmatprep.subr.mxu0 0.0
        %1564 = vmatpush1.msra.mxu0 0.0
        %1565 = vmatprep.subr.mxu0 0.0
        %1566 = vmatpush1.msra.mxu0 0.0
        %1567 = vmatprep.subr.mxu0 0.0
        %1568 = vmatpush1.msra.mxu0 0.0
        %1569 = vmatprep.subr.mxu0 0.0
        %1570 = vmatpush1.msra.mxu0 0.0
        %1571 = vmatprep.subr.mxu0 0.0
        %1572 = vmatpush1.msra.mxu0 0.0
        %1573 = vmatprep.subr.mxu0 0.0
        %1574 = vmatpush1.msra.mxu0 0.0
        %1575 = vmatprep.subr.mxu0 0.0
        %1576 = vmatpush1.msra.mxu0 0.0
        %1577 = vmatprep.subr.mxu0 0.0
        %1578 = vmatpush1.msra.mxu0 0.0
        %1579 = vmatprep.subr.mxu0 0.0
        %1580 = vmatpush1.msra.mxu0 0.0
        %1581 = vmatprep.subr.mxu0 0.0
        %1582 = vmatpush1.msra.mxu0 0.0
        %1583 = vmatprep.subr.mxu0 0.0
        %1584 = vmatpush1.msra.mxu0 0.0
        %1585 = vmatprep.subr.mxu0 0.0
        %1586 = vmatpush1.msra.mxu0 0.0
        %1587 = vmatprep.subr.mxu0 0.0
        %1588 = vmatpush1.msra.mxu0 0.0
        %1589 = vmatprep.subr.mxu0 0.0
        %1590 = vmatpush1.msra.mxu0 0.0
        %1591 = vmatprep.subr.mxu0 0.0
        %1592 = vmatpush1.msra.mxu0 0.0
        %1593 = vmatprep.subr.mxu0 0.0
        %1594 = vmatpush1.msra.mxu0 0.0
        %1595 = vmatprep.subr.mxu0 0.0
        %1596 = vmatpush1.msra.mxu0 0.0
        %1597 = vmatprep.subr.mxu0 0.0
        %1598 = vmatpush1.msra.mxu0 0.0
        %1599 = vmatprep.subr.mxu0 0.0
        %1600 = vmatpush1.msra.mxu0 0.0
        %1601 = vmatprep.subr.mxu0 0.0
        %1602 = vmatpush1.msra.mxu0 0.0
        %1603 = vmatprep.subr.mxu0 0.0
        %1604 = vmatpush1.msra.mxu0 0.0
        %1605 = vmatprep.subr.mxu0 0.0
        %1606 = vmatpush1.msra.mxu0 0.0
        %1607 = vmatprep.subr.mxu0 0.0
        %1608 = vmatpush1.msra.mxu0 0.0
        %1609 = vmatprep.subr.mxu0 0.0
        %1610 = vmatpush1.msra.mxu0 0.0
        %1611 = vmatprep.mubr.f32.mxu0 0.0
        %1612 = vmatmul.mubr.f32.gmra.mrb[0].mxu0 %v1539
        %v1613 = vpop.f32.mrb[0].mxu0
        %v1614 = vadd.f32 0.0, %v1613
        %v1615 = vpop.f32.mrb[0].mxu0
        %v1616 = vadd.f32 0.0, %v1615
        %1617 = vdwg.mxu0
        %v1618 = vadd.f32 %v1534, %v1614
        %v1619 = vadd.f32 %v1535, %v1616
        %s1620 = scalar_lea.vmem %s10, 32
        %v1621 = vld [vmem:[%s1620] sm:$0xf]
        %v1623 = vsel %vm654, %v1621, 0
        %v1626 = vsel %vm658, %v951, 0
        %v1629 = vsel %vm658, %v952, 0
        %1631 = vmatprep.subr.mxu0 %v1629
        %1632 = vmatpush1.msra.mxu0 %v1626
        %1633 = vmatprep.subr.mxu0 0.0
        %1634 = vmatpush1.msra.mxu0 0.0
        %1635 = vmatprep.subr.mxu0 0.0
        %1636 = vmatpush1.msra.mxu0 0.0
        %1637 = vmatprep.subr.mxu0 0.0
        %1638 = vmatpush1.msra.mxu0 0.0
        %1639 = vmatprep.subr.mxu0 0.0
        %1640 = vmatpush1.msra.mxu0 0.0
        %1641 = vmatprep.subr.mxu0 0.0
        %1642 = vmatpush1.msra.mxu0 0.0
        %1643 = vmatprep.subr.mxu0 0.0
        %1644 = vmatpush1.msra.mxu0 0.0
        %1645 = vmatprep.subr.mxu0 0.0
        %1646 = vmatpush1.msra.mxu0 0.0
        %1647 = vmatprep.subr.mxu0 0.0
        %1648 = vmatpush1.msra.mxu0 0.0
        %1649 = vmatprep.subr.mxu0 0.0
        %1650 = vmatpush1.msra.mxu0 0.0
        %1651 = vmatprep.subr.mxu0 0.0
        %1652 = vmatpush1.msra.mxu0 0.0
        %1653 = vmatprep.subr.mxu0 0.0
        %1654 = vmatpush1.msra.mxu0 0.0
        %1655 = vmatprep.subr.mxu0 0.0
        %1656 = vmatpush1.msra.mxu0 0.0
        %1657 = vmatprep.subr.mxu0 0.0
        %1658 = vmatpush1.msra.mxu0 0.0
        %1659 = vmatprep.subr.mxu0 0.0
        %1660 = vmatpush1.msra.mxu0 0.0
        %1661 = vmatprep.subr.mxu0 0.0
        %1662 = vmatpush1.msra.mxu0 0.0
        %1663 = vmatprep.subr.mxu0 0.0
        %1664 = vmatpush1.msra.mxu0 0.0
        %1665 = vmatprep.subr.mxu0 0.0
        %1666 = vmatpush1.msra.mxu0 0.0
        %1667 = vmatprep.subr.mxu0 0.0
        %1668 = vmatpush1.msra.mxu0 0.0
        %1669 = vmatprep.subr.mxu0 0.0
        %1670 = vmatpush1.msra.mxu0 0.0
        %1671 = vmatprep.subr.mxu0 0.0
        %1672 = vmatpush1.msra.mxu0 0.0
        %1673 = vmatprep.subr.mxu0 0.0
        %1674 = vmatpush1.msra.mxu0 0.0
        %1675 = vmatprep.subr.mxu0 0.0
        %1676 = vmatpush1.msra.mxu0 0.0
        %1677 = vmatprep.subr.mxu0 0.0
        %1678 = vmatpush1.msra.mxu0 0.0
        %1679 = vmatprep.subr.mxu0 0.0
        %1680 = vmatpush1.msra.mxu0 0.0
        %1681 = vmatprep.subr.mxu0 0.0
        %1682 = vmatpush1.msra.mxu0 0.0
        %1683 = vmatprep.subr.mxu0 0.0
        %1684 = vmatpush1.msra.mxu0 0.0
        %1685 = vmatprep.subr.mxu0 0.0
        %1686 = vmatpush1.msra.mxu0 0.0
        %1687 = vmatprep.subr.mxu0 0.0
        %1688 = vmatpush1.msra.mxu0 0.0
        %1689 = vmatprep.subr.mxu0 0.0
        %1690 = vmatpush1.msra.mxu0 0.0
        %1691 = vmatprep.subr.mxu0 0.0
        %1692 = vmatpush1.msra.mxu0 0.0
        %1693 = vmatprep.subr.mxu0 0.0
        %1694 = vmatpush1.msra.mxu0 0.0
        %1695 = vmatprep.mubr.f32.mxu0 0.0
        %1696 = vmatmul.mubr.f32.gmra.mrb[0].mxu0 %v1623
        %v1697 = vpop.f32.mrb[0].mxu0
        %v1698 = vadd.f32 0.0, %v1697
        %v1699 = vpop.f32.mrb[0].mxu0
        %v1700 = vadd.f32 0.0, %v1699
        %1701 = vdwg.mxu0
        %v1702 = vadd.f32 %v1618, %v1698
        %v1703 = vadd.f32 %v1619, %v1700
        %v1704 = vld [vmem:[#allocation13] sm:$0xf]
        %1706 = vset.pattern.permute.xlu0 0
        %1707 = vperm.xlu0 %1706, %v1704
        %v1708 = vpop.permute.xlu0 %1707
        %v1710 = vadd.f32 %v1702, %v1708
        %v1711 = vadd.f32 %v1703, %v1708
        %v1712 = vxor.u32 %v1710, 2147483648
        %v1713 = vxor.u32 %v1711, 2147483648
        %v1714 = vmul.f32 %v1712, 1.442695
        %v1715 = vpow.pop %v1714
        %v1716 = vmul.f32 %v1713, 1.442695
        %v1717 = vpow.pop %v1716
        %v1718 = vadd.f32 %v1715, 1.0
        %v1719 = vadd.f32 %v1717, 1.0
        %v1720 = vrcp.pop %v1718
        %v1721 = vmul.f32 1.0, %v1720
        %v1722 = vrcp.pop %v1719
        %v1723 = vmul.f32 1.0, %v1722
        %v1724 = vmul.f32 %v1710, %v1721
        %v1725 = vmul.f32 %v1711, %v1723
        %v1726 = vadd.f32 %v1724, %v847
        %v1727 = vadd.f32 %v1725, %v848
        %1728 = vrot.lane.b32.xlu0 %v1726, 17
        %v1729 = vpop.permute.xlu0 %1728
        %1730 = vrot.lane.b32.xlu0 %v1727, 17
        %v1731 = vpop.permute.xlu0 %1730
        %v1732 = vsel %vm853, %v1729, %v1731
        %v1733 = vsel %vm853, %v1731, %v1729
        %v1734 = vsel %vm858, %v1733, 0.0
        %v1735 = vsel %vm859, %v1732, 0.0
        %1736 = vrot.lane.b32.xlu0 %v1726, 16
        %v1737 = vpop.permute.xlu0 %1736
        %1738 = vrot.lane.b32.xlu0 %v1727, 16
        %v1739 = vpop.permute.xlu0 %1738
        %v1740 = vsel %vm866, %v1737, %v1739
        %v1741 = vsel %vm866, %v1739, %v1737
        %v1742 = vsel %vm871, %v1741, 0.0
        %v1743 = vsel %vm872, %v1740, 0.0
        %1744 = vrot.lane.b32.xlu0 %v1726, 15
        %v1745 = vpop.permute.xlu0 %1744
        %1746 = vrot.lane.b32.xlu0 %v1727, 15
        %v1747 = vpop.permute.xlu0 %1746
        %v1748 = vsel %vm879, %v1745, %v1747
        %v1749 = vsel %vm879, %v1747, %v1745
        %v1750 = vsel %vm884, %v1749, 0.0
        %v1751 = vsel %vm885, %v1748, 0.0
        %1752 = vrot.lane.b32.xlu0 %v1726, 1
        %v1753 = vpop.permute.xlu0 %1752
        %1754 = vrot.lane.b32.xlu0 %v1727, 1
        %v1755 = vpop.permute.xlu0 %1754
        %v1756 = vsel %vm892, %v1753, %v1755
        %v1757 = vsel %vm892, %v1755, %v1753
        %v1758 = vsel %vm897, %v1757, 0.0
        %v1759 = vsel %vm898, %v1756, 0.0
        %1760 = vrot.lane.b32.xlu0 %v1726, 127
        %v1761 = vpop.permute.xlu0 %1760
        %1762 = vrot.lane.b32.xlu0 %v1727, 127
        %v1763 = vpop.permute.xlu0 %1762
        %v1764 = vsel %vm905, %v1761, %v1763
        %v1765 = vsel %vm905, %v1763, %v1761
        %v1766 = vsel %vm910, %v1764, 0.0
        %v1767 = vsel %vm911, %v1765, 0.0
        %1768 = vrot.lane.b32.xlu0 %v1726, 113
        %v1769 = vpop.permute.xlu0 %1768
        %1770 = vrot.lane.b32.xlu0 %v1727, 113
        %v1771 = vpop.permute.xlu0 %1770
        %v1772 = vsel %vm918, %v1769, %v1771
        %v1773 = vsel %vm918, %v1771, %v1769
        %v1774 = vsel %vm923, %v1772, 0.0
        %v1775 = vsel %vm924, %v1773, 0.0
        %1776 = vrot.lane.b32.xlu0 %v1726, 112
        %v1777 = vpop.permute.xlu0 %1776
        %1778 = vrot.lane.b32.xlu0 %v1727, 112
        %v1779 = vpop.permute.xlu0 %1778
        %v1780 = vsel %vm931, %v1777, %v1779
        %v1781 = vsel %vm931, %v1779, %v1777
        %v1782 = vsel %vm936, %v1780, 0.0
        %v1783 = vsel %vm937, %v1781, 0.0
        %1784 = vrot.lane.b32.xlu0 %v1726, 111
        %v1785 = vpop.permute.xlu0 %1784
        %1786 = vrot.lane.b32.xlu0 %v1727, 111
        %v1787 = vpop.permute.xlu0 %1786
        %v1788 = vsel %vm944, %v1785, %v1787
        %v1789 = vsel %vm944, %v1787, %v1785
        %v1790 = vsel %vm949, %v1788, 0.0
        %v1791 = vsel %vm950, %v1789, 0.0
        %v1793 = vsel %vm658, %v1742, 0
        %v1796 = vsel %vm658, %v1743, 0
        %1798 = vmatprep.subr.mxu0 %v1796
        %1799 = vmatpush1.msra.mxu0 %v1793
        %1800 = vmatprep.subr.mxu0 0.0
        %1801 = vmatpush1.msra.mxu0 0.0
        %1802 = vmatprep.subr.mxu0 0.0
        %1803 = vmatpush1.msra.mxu0 0.0
        %1804 = vmatprep.subr.mxu0 0.0
        %1805 = vmatpush1.msra.mxu0 0.0
        %1806 = vmatprep.subr.mxu0 0.0
        %1807 = vmatpush1.msra.mxu0 0.0
        %1808 = vmatprep.subr.mxu0 0.0
        %1809 = vmatpush1.msra.mxu0 0.0
        %1810 = vmatprep.subr.mxu0 0.0
        %1811 = vmatpush1.msra.mxu0 0.0
        %1812 = vmatprep.subr.mxu0 0.0
        %1813 = vmatpush1.msra.mxu0 0.0
        %1814 = vmatprep.subr.mxu0 0.0
        %1815 = vmatpush1.msra.mxu0 0.0
        %1816 = vmatprep.subr.mxu0 0.0
        %1817 = vmatpush1.msra.mxu0 0.0
        %1818 = vmatprep.subr.mxu0 0.0
        %1819 = vmatpush1.msra.mxu0 0.0
        %1820 = vmatprep.subr.mxu0 0.0
        %1821 = vmatpush1.msra.mxu0 0.0
        %1822 = vmatprep.subr.mxu0 0.0
        %1823 = vmatpush1.msra.mxu0 0.0
        %1824 = vmatprep.subr.mxu0 0.0
        %1825 = vmatpush1.msra.mxu0 0.0
        %1826 = vmatprep.subr.mxu0 0.0
        %1827 = vmatpush1.msra.mxu0 0.0
        %1828 = vmatprep.subr.mxu0 0.0
        %1829 = vmatpush1.msra.mxu0 0.0
        %1830 = vmatprep.subr.mxu0 0.0
        %1831 = vmatpush1.msra.mxu0 0.0
        %1832 = vmatprep.subr.mxu0 0.0
        %1833 = vmatpush1.msra.mxu0 0.0
        %1834 = vmatprep.subr.mxu0 0.0
        %1835 = vmatpush1.msra.mxu0 0.0
        %1836 = vmatprep.subr.mxu0 0.0
        %1837 = vmatpush1.msra.mxu0 0.0
        %1838 = vmatprep.subr.mxu0 0.0
        %1839 = vmatpush1.msra.mxu0 0.0
        %1840 = vmatprep.subr.mxu0 0.0
        %1841 = vmatpush1.msra.mxu0 0.0
        %1842 = vmatprep.subr.mxu0 0.0
        %1843 = vmatpush1.msra.mxu0 0.0
        %1844 = vmatprep.subr.mxu0 0.0
        %1845 = vmatpush1.msra.mxu0 0.0
        %1846 = vmatprep.subr.mxu0 0.0
        %1847 = vmatpush1.msra.mxu0 0.0
        %1848 = vmatprep.subr.mxu0 0.0
        %1849 = vmatpush1.msra.mxu0 0.0
        %1850 = vmatprep.subr.mxu0 0.0
        %1851 = vmatpush1.msra.mxu0 0.0
        %1852 = vmatprep.subr.mxu0 0.0
        %1853 = vmatpush1.msra.mxu0 0.0
        %1854 = vmatprep.subr.mxu0 0.0
        %1855 = vmatpush1.msra.mxu0 0.0
        %1856 = vmatprep.subr.mxu0 0.0
        %1857 = vmatpush1.msra.mxu0 0.0
        %1858 = vmatprep.subr.mxu0 0.0
        %1859 = vmatpush1.msra.mxu0 0.0
        %1860 = vmatprep.subr.mxu0 0.0
        %1861 = vmatpush1.msra.mxu0 0.0
        %1862 = vmatprep.mubr.f32.mxu0 0.0
        %1863 = vmatmul.mubr.f32.gmra.mrb[0].mxu0 %v957
        %v1864 = vpop.f32.mrb[0].mxu0
        %v1865 = vadd.f32 0.0, %v1864
        %v1866 = vpop.f32.mrb[0].mxu0
        %v1867 = vadd.f32 0.0, %v1866
        %1868 = vdwg.mxu0
        %v1870 = vsel %vm658, %v1734, 0
        %v1873 = vsel %vm658, %v1735, 0
        %1875 = vmatprep.subr.mxu0 %v1873
        %1876 = vmatpush1.msra.mxu0 %v1870
        %1877 = vmatprep.subr.mxu0 0.0
        %1878 = vmatpush1.msra.mxu0 0.0
        %1879 = vmatprep.subr.mxu0 0.0
        %1880 = vmatpush1.msra.mxu0 0.0
        %1881 = vmatprep.subr.mxu0 0.0
        %1882 = vmatpush1.msra.mxu0 0.0
        %1883 = vmatprep.subr.mxu0 0.0
        %1884 = vmatpush1.msra.mxu0 0.0
        %1885 = vmatprep.subr.mxu0 0.0
        %1886 = vmatpush1.msra.mxu0 0.0
        %1887 = vmatprep.subr.mxu0 0.0
        %1888 = vmatpush1.msra.mxu0 0.0
        %1889 = vmatprep.subr.mxu0 0.0
        %1890 = vmatpush1.msra.mxu0 0.0
        %1891 = vmatprep.subr.mxu0 0.0
        %1892 = vmatpush1.msra.mxu0 0.0
        %1893 = vmatprep.subr.mxu0 0.0
        %1894 = vmatpush1.msra.mxu0 0.0
        %1895 = vmatprep.subr.mxu0 0.0
        %1896 = vmatpush1.msra.mxu0 0.0
        %1897 = vmatprep.subr.mxu0 0.0
        %1898 = vmatpush1.msra.mxu0 0.0
        %1899 = vmatprep.subr.mxu0 0.0
        %1900 = vmatpush1.msra.mxu0 0.0
        %1901 = vmatprep.subr.mxu0 0.0
        %1902 = vmatpush1.msra.mxu0 0.0
        %1903 = vmatprep.subr.mxu0 0.0
        %1904 = vmatpush1.msra.mxu0 0.0
        %1905 = vmatprep.subr.mxu0 0.0
        %1906 = vmatpush1.msra.mxu0 0.0
        %1907 = vmatprep.subr.mxu0 0.0
        %1908 = vmatpush1.msra.mxu0 0.0
        %1909 = vmatprep.subr.mxu0 0.0
        %1910 = vmatpush1.msra.mxu0 0.0
        %1911 = vmatprep.subr.mxu0 0.0
        %1912 = vmatpush1.msra.mxu0 0.0
        %1913 = vmatprep.subr.mxu0 0.0
        %1914 = vmatpush1.msra.mxu0 0.0
        %1915 = vmatprep.subr.mxu0 0.0
        %1916 = vmatpush1.msra.mxu0 0.0
        %1917 = vmatprep.subr.mxu0 0.0
        %1918 = vmatpush1.msra.mxu0 0.0
        %1919 = vmatprep.subr.mxu0 0.0
        %1920 = vmatpush1.msra.mxu0 0.0
        %1921 = vmatprep.subr.mxu0 0.0
        %1922 = vmatpush1.msra.mxu0 0.0
        %1923 = vmatprep.subr.mxu0 0.0
        %1924 = vmatpush1.msra.mxu0 0.0
        %1925 = vmatprep.subr.mxu0 0.0
        %1926 = vmatpush1.msra.mxu0 0.0
        %1927 = vmatprep.subr.mxu0 0.0
        %1928 = vmatpush1.msra.mxu0 0.0
        %1929 = vmatprep.subr.mxu0 0.0
        %1930 = vmatpush1.msra.mxu0 0.0
        %1931 = vmatprep.subr.mxu0 0.0
        %1932 = vmatpush1.msra.mxu0 0.0
        %1933 = vmatprep.subr.mxu0 0.0
        %1934 = vmatpush1.msra.mxu0 0.0
        %1935 = vmatprep.subr.mxu0 0.0
        %1936 = vmatpush1.msra.mxu0 0.0
        %1937 = vmatprep.subr.mxu0 0.0
        %1938 = vmatpush1.msra.mxu0 0.0
        %1939 = vmatprep.mubr.f32.mxu0 0.0
        %1940 = vmatmul.mubr.f32.gmra.mrb[0].mxu0 %v1037
        %v1941 = vpop.f32.mrb[0].mxu0
        %v1942 = vadd.f32 %v1865, %v1941
        %v1943 = vpop.f32.mrb[0].mxu0
        %v1944 = vadd.f32 %v1867, %v1943
        %1945 = vdwg.mxu0
        %v1947 = vsel %vm658, %v1750, 0
        %v1950 = vsel %vm658, %v1751, 0
        %1952 = vmatprep.subr.mxu0 %v1950
        %1953 = vmatpush1.msra.mxu0 %v1947
        %1954 = vmatprep.subr.mxu0 0.0
        %1955 = vmatpush1.msra.mxu0 0.0
        %1956 = vmatprep.subr.mxu0 0.0
        %1957 = vmatpush1.msra.mxu0 0.0
        %1958 = vmatprep.subr.mxu0 0.0
        %1959 = vmatpush1.msra.mxu0 0.0
        %1960 = vmatprep.subr.mxu0 0.0
        %1961 = vmatpush1.msra.mxu0 0.0
        %1962 = vmatprep.subr.mxu0 0.0
        %1963 = vmatpush1.msra.mxu0 0.0
        %1964 = vmatprep.subr.mxu0 0.0
        %1965 = vmatpush1.msra.mxu0 0.0
        %1966 = vmatprep.subr.mxu0 0.0
        %1967 = vmatpush1.msra.mxu0 0.0
        %1968 = vmatprep.subr.mxu0 0.0
        %1969 = vmatpush1.msra.mxu0 0.0
        %1970 = vmatprep.subr.mxu0 0.0
        %1971 = vmatpush1.msra.mxu0 0.0
        %1972 = vmatprep.subr.mxu0 0.0
        %1973 = vmatpush1.msra.mxu0 0.0
        %1974 = vmatprep.subr.mxu0 0.0
        %1975 = vmatpush1.msra.mxu0 0.0
        %1976 = vmatprep.subr.mxu0 0.0
        %1977 = vmatpush1.msra.mxu0 0.0
        %1978 = vmatprep.subr.mxu0 0.0
        %1979 = vmatpush1.msra.mxu0 0.0
        %1980 = vmatprep.subr.mxu0 0.0
        %1981 = vmatpush1.msra.mxu0 0.0
        %1982 = vmatprep.subr.mxu0 0.0
        %1983 = vmatpush1.msra.mxu0 0.0
        %1984 = vmatprep.subr.mxu0 0.0
        %1985 = vmatpush1.msra.mxu0 0.0
        %1986 = vmatprep.subr.mxu0 0.0
        %1987 = vmatpush1.msra.mxu0 0.0
        %1988 = vmatprep.subr.mxu0 0.0
        %1989 = vmatpush1.msra.mxu0 0.0
        %1990 = vmatprep.subr.mxu0 0.0
        %1991 = vmatpush1.msra.mxu0 0.0
        %1992 = vmatprep.subr.mxu0 0.0
        %1993 = vmatpush1.msra.mxu0 0.0
        %1994 = vmatprep.subr.mxu0 0.0
        %1995 = vmatpush1.msra.mxu0 0.0
        %1996 = vmatprep.subr.mxu0 0.0
        %1997 = vmatpush1.msra.mxu0 0.0
        %1998 = vmatprep.subr.mxu0 0.0
        %1999 = vmatpush1.msra.mxu0 0.0
        %2000 = vmatprep.subr.mxu0 0.0
        %2001 = vmatpush1.msra.mxu0 0.0
        %2002 = vmatprep.subr.mxu0 0.0
        %2003 = vmatpush1.msra.mxu0 0.0
        %2004 = vmatprep.subr.mxu0 0.0
        %2005 = vmatpush1.msra.mxu0 0.0
        %2006 = vmatprep.subr.mxu0 0.0
        %2007 = vmatpush1.msra.mxu0 0.0
        %2008 = vmatprep.subr.mxu0 0.0
        %2009 = vmatpush1.msra.mxu0 0.0
        %2010 = vmatprep.subr.mxu0 0.0
        %2011 = vmatpush1.msra.mxu0 0.0
        %2012 = vmatprep.subr.mxu0 0.0
        %2013 = vmatpush1.msra.mxu0 0.0
        %2014 = vmatprep.subr.mxu0 0.0
        %2015 = vmatpush1.msra.mxu0 0.0
        %2016 = vmatprep.mubr.f32.mxu0 0.0
        %2017 = vmatmul.mubr.f32.gmra.mrb[0].mxu0 %v1119
        %v2018 = vpop.f32.mrb[0].mxu0
        %v2019 = vadd.f32 0.0, %v2018
        %v2020 = vpop.f32.mrb[0].mxu0
        %v2021 = vadd.f32 0.0, %v2020
        %2022 = vdwg.mxu0
        %v2023 = vadd.f32 %v1942, %v2019
        %v2024 = vadd.f32 %v1944, %v2021
        %v2026 = vsel %vm658, %v1758, 0
        %v2029 = vsel %vm658, %v1759, 0
        %2031 = vmatprep.subr.mxu0 %v2029
        %2032 = vmatpush1.msra.mxu0 %v2026
        %2033 = vmatprep.subr.mxu0 0.0
        %2034 = vmatpush1.msra.mxu0 0.0
        %2035 = vmatprep.subr.mxu0 0.0
        %2036 = vmatpush1.msra.mxu0 0.0
        %2037 = vmatprep.subr.mxu0 0.0
        %2038 = vmatpush1.msra.mxu0 0.0
        %2039 = vmatprep.subr.mxu0 0.0
        %2040 = vmatpush1.msra.mxu0 0.0
        %2041 = vmatprep.subr.mxu0 0.0
        %2042 = vmatpush1.msra.mxu0 0.0
        %2043 = vmatprep.subr.mxu0 0.0
        %2044 = vmatpush1.msra.mxu0 0.0
        %2045 = vmatprep.subr.mxu0 0.0
        %2046 = vmatpush1.msra.mxu0 0.0
        %2047 = vmatprep.subr.mxu0 0.0
        %2048 = vmatpush1.msra.mxu0 0.0
        %2049 = vmatprep.subr.mxu0 0.0
        %2050 = vmatpush1.msra.mxu0 0.0
        %2051 = vmatprep.subr.mxu0 0.0
        %2052 = vmatpush1.msra.mxu0 0.0
        %2053 = vmatprep.subr.mxu0 0.0
        %2054 = vmatpush1.msra.mxu0 0.0
        %2055 = vmatprep.subr.mxu0 0.0
        %2056 = vmatpush1.msra.mxu0 0.0
        %2057 = vmatprep.subr.mxu0 0.0
        %2058 = vmatpush1.msra.mxu0 0.0
        %2059 = vmatprep.subr.mxu0 0.0
        %2060 = vmatpush1.msra.mxu0 0.0
        %2061 = vmatprep.subr.mxu0 0.0
        %2062 = vmatpush1.msra.mxu0 0.0
        %2063 = vmatprep.subr.mxu0 0.0
        %2064 = vmatpush1.msra.mxu0 0.0
        %2065 = vmatprep.subr.mxu0 0.0
        %2066 = vmatpush1.msra.mxu0 0.0
        %2067 = vmatprep.subr.mxu0 0.0
        %2068 = vmatpush1.msra.mxu0 0.0
        %2069 = vmatprep.subr.mxu0 0.0
        %2070 = vmatpush1.msra.mxu0 0.0
        %2071 = vmatprep.subr.mxu0 0.0
        %2072 = vmatpush1.msra.mxu0 0.0
        %2073 = vmatprep.subr.mxu0 0.0
        %2074 = vmatpush1.msra.mxu0 0.0
        %2075 = vmatprep.subr.mxu0 0.0
        %2076 = vmatpush1.msra.mxu0 0.0
        %2077 = vmatprep.subr.mxu0 0.0
        %2078 = vmatpush1.msra.mxu0 0.0
        %2079 = vmatprep.subr.mxu0 0.0
        %2080 = vmatpush1.msra.mxu0 0.0
        %2081 = vmatprep.subr.mxu0 0.0
        %2082 = vmatpush1.msra.mxu0 0.0
        %2083 = vmatprep.subr.mxu0 0.0
        %2084 = vmatpush1.msra.mxu0 0.0
        %2085 = vmatprep.subr.mxu0 0.0
        %2086 = vmatpush1.msra.mxu0 0.0
        %2087 = vmatprep.subr.mxu0 0.0
        %2088 = vmatpush1.msra.mxu0 0.0
        %2089 = vmatprep.subr.mxu0 0.0
        %2090 = vmatpush1.msra.mxu0 0.0
        %2091 = vmatprep.subr.mxu0 0.0
        %2092 = vmatpush1.msra.mxu0 0.0
        %2093 = vmatprep.subr.mxu0 0.0
        %2094 = vmatpush1.msra.mxu0 0.0
        %2095 = vmatprep.mubr.f32.mxu0 0.0
        %2096 = vmatmul.mubr.f32.gmra.mrb[0].mxu0 %v1203
        %v2097 = vpop.f32.mrb[0].mxu0
        %v2098 = vadd.f32 0.0, %v2097
        %v2099 = vpop.f32.mrb[0].mxu0
        %v2100 = vadd.f32 0.0, %v2099
        %2101 = vdwg.mxu0
        %v2102 = vadd.f32 %v2023, %v2098
        %v2103 = vadd.f32 %v2024, %v2100
        %v2105 = vsel %vm658, %v1726, 0
        %v2108 = vsel %vm658, %v1727, 0
        %2110 = vmatprep.subr.mxu0 %v2108
        %2111 = vmatpush1.msra.mxu0 %v2105
        %2112 = vmatprep.subr.mxu0 0.0
        %2113 = vmatpush1.msra.mxu0 0.0
        %2114 = vmatprep.subr.mxu0 0.0
        %2115 = vmatpush1.msra.mxu0 0.0
        %2116 = vmatprep.subr.mxu0 0.0
        %2117 = vmatpush1.msra.mxu0 0.0
        %2118 = vmatprep.subr.mxu0 0.0
        %2119 = vmatpush1.msra.mxu0 0.0
        %2120 = vmatprep.subr.mxu0 0.0
        %2121 = vmatpush1.msra.mxu0 0.0
        %2122 = vmatprep.subr.mxu0 0.0
        %2123 = vmatpush1.msra.mxu0 0.0
        %2124 = vmatprep.subr.mxu0 0.0
        %2125 = vmatpush1.msra.mxu0 0.0
        %2126 = vmatprep.subr.mxu0 0.0
        %2127 = vmatpush1.msra.mxu0 0.0
        %2128 = vmatprep.subr.mxu0 0.0
        %2129 = vmatpush1.msra.mxu0 0.0
        %2130 = vmatprep.subr.mxu0 0.0
        %2131 = vmatpush1.msra.mxu0 0.0
        %2132 = vmatprep.subr.mxu0 0.0
        %2133 = vmatpush1.msra.mxu0 0.0
        %2134 = vmatprep.subr.mxu0 0.0
        %2135 = vmatpush1.msra.mxu0 0.0
        %2136 = vmatprep.subr.mxu0 0.0
        %2137 = vmatpush1.msra.mxu0 0.0
        %2138 = vmatprep.subr.mxu0 0.0
        %2139 = vmatpush1.msra.mxu0 0.0
        %2140 = vmatprep.subr.mxu0 0.0
        %2141 = vmatpush1.msra.mxu0 0.0
        %2142 = vmatprep.subr.mxu0 0.0
        %2143 = vmatpush1.msra.mxu0 0.0
        %2144 = vmatprep.subr.mxu0 0.0
        %2145 = vmatpush1.msra.mxu0 0.0
        %2146 = vmatprep.subr.mxu0 0.0
        %2147 = vmatpush1.msra.mxu0 0.0
        %2148 = vmatprep.subr.mxu0 0.0
        %2149 = vmatpush1.msra.mxu0 0.0
        %2150 = vmatprep.subr.mxu0 0.0
        %2151 = vmatpush1.msra.mxu0 0.0
        %2152 = vmatprep.subr.mxu0 0.0
        %2153 = vmatpush1.msra.mxu0 0.0
        %2154 = vmatprep.subr.mxu0 0.0
        %2155 = vmatpush1.msra.mxu0 0.0
        %2156 = vmatprep.subr.mxu0 0.0
        %2157 = vmatpush1.msra.mxu0 0.0
        %2158 = vmatprep.subr.mxu0 0.0
        %2159 = vmatpush1.msra.mxu0 0.0
        %2160 = vmatprep.subr.mxu0 0.0
        %2161 = vmatpush1.msra.mxu0 0.0
        %2162 = vmatprep.subr.mxu0 0.0
        %2163 = vmatpush1.msra.mxu0 0.0
        %2164 = vmatprep.subr.mxu0 0.0
        %2165 = vmatpush1.msra.mxu0 0.0
        %2166 = vmatprep.subr.mxu0 0.0
        %2167 = vmatpush1.msra.mxu0 0.0
        %2168 = vmatprep.subr.mxu0 0.0
        %2169 = vmatpush1.msra.mxu0 0.0
        %2170 = vmatprep.subr.mxu0 0.0
        %2171 = vmatpush1.msra.mxu0 0.0
        %2172 = vmatprep.subr.mxu0 0.0
        %2173 = vmatpush1.msra.mxu0 0.0
        %2174 = vmatprep.mubr.f32.mxu0 0.0
        %2175 = vmatmul.mubr.f32.gmra.mrb[0].mxu0 %v1287
        %v2176 = vpop.f32.mrb[0].mxu0
        %v2177 = vadd.f32 0.0, %v2176
        %v2178 = vpop.f32.mrb[0].mxu0
        %v2179 = vadd.f32 0.0, %v2178
        %2180 = vdwg.mxu0
        %v2181 = vadd.f32 %v2102, %v2177
        %v2182 = vadd.f32 %v2103, %v2179
        %v2184 = vsel %vm658, %v1766, 0
        %v2187 = vsel %vm658, %v1767, 0
        %2189 = vmatprep.subr.mxu0 %v2187
        %2190 = vmatpush1.msra.mxu0 %v2184
        %2191 = vmatprep.subr.mxu0 0.0
        %2192 = vmatpush1.msra.mxu0 0.0
        %2193 = vmatprep.subr.mxu0 0.0
        %2194 = vmatpush1.msra.mxu0 0.0
        %2195 = vmatprep.subr.mxu0 0.0
        %2196 = vmatpush1.msra.mxu0 0.0
        %2197 = vmatprep.subr.mxu0 0.0
        %2198 = vmatpush1.msra.mxu0 0.0
        %2199 = vmatprep.subr.mxu0 0.0
        %2200 = vmatpush1.msra.mxu0 0.0
        %2201 = vmatprep.subr.mxu0 0.0
        %2202 = vmatpush1.msra.mxu0 0.0
        %2203 = vmatprep.subr.mxu0 0.0
        %2204 = vmatpush1.msra.mxu0 0.0
        %2205 = vmatprep.subr.mxu0 0.0
        %2206 = vmatpush1.msra.mxu0 0.0
        %2207 = vmatprep.subr.mxu0 0.0
        %2208 = vmatpush1.msra.mxu0 0.0
        %2209 = vmatprep.subr.mxu0 0.0
        %2210 = vmatpush1.msra.mxu0 0.0
        %2211 = vmatprep.subr.mxu0 0.0
        %2212 = vmatpush1.msra.mxu0 0.0
        %2213 = vmatprep.subr.mxu0 0.0
        %2214 = vmatpush1.msra.mxu0 0.0
        %2215 = vmatprep.subr.mxu0 0.0
        %2216 = vmatpush1.msra.mxu0 0.0
        %2217 = vmatprep.subr.mxu0 0.0
        %2218 = vmatpush1.msra.mxu0 0.0
        %2219 = vmatprep.subr.mxu0 0.0
        %2220 = vmatpush1.msra.mxu0 0.0
        %2221 = vmatprep.subr.mxu0 0.0
        %2222 = vmatpush1.msra.mxu0 0.0
        %2223 = vmatprep.subr.mxu0 0.0
        %2224 = vmatpush1.msra.mxu0 0.0
        %2225 = vmatprep.subr.mxu0 0.0
        %2226 = vmatpush1.msra.mxu0 0.0
        %2227 = vmatprep.subr.mxu0 0.0
        %2228 = vmatpush1.msra.mxu0 0.0
        %2229 = vmatprep.subr.mxu0 0.0
        %2230 = vmatpush1.msra.mxu0 0.0
        %2231 = vmatprep.subr.mxu0 0.0
        %2232 = vmatpush1.msra.mxu0 0.0
        %2233 = vmatprep.subr.mxu0 0.0
        %2234 = vmatpush1.msra.mxu0 0.0
        %2235 = vmatprep.subr.mxu0 0.0
        %2236 = vmatpush1.msra.mxu0 0.0
        %2237 = vmatprep.subr.mxu0 0.0
        %2238 = vmatpush1.msra.mxu0 0.0
        %2239 = vmatprep.subr.mxu0 0.0
        %2240 = vmatpush1.msra.mxu0 0.0
        %2241 = vmatprep.subr.mxu0 0.0
        %2242 = vmatpush1.msra.mxu0 0.0
        %2243 = vmatprep.subr.mxu0 0.0
        %2244 = vmatpush1.msra.mxu0 0.0
        %2245 = vmatprep.subr.mxu0 0.0
        %2246 = vmatpush1.msra.mxu0 0.0
        %2247 = vmatprep.subr.mxu0 0.0
        %2248 = vmatpush1.msra.mxu0 0.0
        %2249 = vmatprep.subr.mxu0 0.0
        %2250 = vmatpush1.msra.mxu0 0.0
        %2251 = vmatprep.subr.mxu0 0.0
        %2252 = vmatpush1.msra.mxu0 0.0
        %2253 = vmatprep.mubr.f32.mxu0 0.0
        %2254 = vmatmul.mubr.f32.gmra.mrb[0].mxu0 %v1371
        %v2255 = vpop.f32.mrb[0].mxu0
        %v2256 = vadd.f32 0.0, %v2255
        %v2257 = vpop.f32.mrb[0].mxu0
        %v2258 = vadd.f32 0.0, %v2257
        %2259 = vdwg.mxu0
        %v2260 = vadd.f32 %v2181, %v2256
        %v2261 = vadd.f32 %v2182, %v2258
        %v2263 = vsel %vm658, %v1774, 0
        %v2266 = vsel %vm658, %v1775, 0
        %2268 = vmatprep.subr.mxu0 %v2266
        %2269 = vmatpush1.msra.mxu0 %v2263
        %2270 = vmatprep.subr.mxu0 0.0
        %2271 = vmatpush1.msra.mxu0 0.0
        %2272 = vmatprep.subr.mxu0 0.0
        %2273 = vmatpush1.msra.mxu0 0.0
        %2274 = vmatprep.subr.mxu0 0.0
        %2275 = vmatpush1.msra.mxu0 0.0
        %2276 = vmatprep.subr.mxu0 0.0
        %2277 = vmatpush1.msra.mxu0 0.0
        %2278 = vmatprep.subr.mxu0 0.0
        %2279 = vmatpush1.msra.mxu0 0.0
        %2280 = vmatprep.subr.mxu0 0.0
        %2281 = vmatpush1.msra.mxu0 0.0
        %2282 = vmatprep.subr.mxu0 0.0
        %2283 = vmatpush1.msra.mxu0 0.0
        %2284 = vmatprep.subr.mxu0 0.0
        %2285 = vmatpush1.msra.mxu0 0.0
        %2286 = vmatprep.subr.mxu0 0.0
        %2287 = vmatpush1.msra.mxu0 0.0
        %2288 = vmatprep.subr.mxu0 0.0
        %2289 = vmatpush1.msra.mxu0 0.0
        %2290 = vmatprep.subr.mxu0 0.0
        %2291 = vmatpush1.msra.mxu0 0.0
        %2292 = vmatprep.subr.mxu0 0.0
        %2293 = vmatpush1.msra.mxu0 0.0
        %2294 = vmatprep.subr.mxu0 0.0
        %2295 = vmatpush1.msra.mxu0 0.0
        %2296 = vmatprep.subr.mxu0 0.0
        %2297 = vmatpush1.msra.mxu0 0.0
        %2298 = vmatprep.subr.mxu0 0.0
        %2299 = vmatpush1.msra.mxu0 0.0
        %2300 = vmatprep.subr.mxu0 0.0
        %2301 = vmatpush1.msra.mxu0 0.0
        %2302 = vmatprep.subr.mxu0 0.0
        %2303 = vmatpush1.msra.mxu0 0.0
        %2304 = vmatprep.subr.mxu0 0.0
        %2305 = vmatpush1.msra.mxu0 0.0
        %2306 = vmatprep.subr.mxu0 0.0
        %2307 = vmatpush1.msra.mxu0 0.0
        %2308 = vmatprep.subr.mxu0 0.0
        %2309 = vmatpush1.msra.mxu0 0.0
        %2310 = vmatprep.subr.mxu0 0.0
        %2311 = vmatpush1.msra.mxu0 0.0
        %2312 = vmatprep.subr.mxu0 0.0
        %2313 = vmatpush1.msra.mxu0 0.0
        %2314 = vmatprep.subr.mxu0 0.0
        %2315 = vmatpush1.msra.mxu0 0.0
        %2316 = vmatprep.subr.mxu0 0.0
        %2317 = vmatpush1.msra.mxu0 0.0
        %2318 = vmatprep.subr.mxu0 0.0
        %2319 = vmatpush1.msra.mxu0 0.0
        %2320 = vmatprep.subr.mxu0 0.0
        %2321 = vmatpush1.msra.mxu0 0.0
        %2322 = vmatprep.subr.mxu0 0.0
        %2323 = vmatpush1.msra.mxu0 0.0
        %2324 = vmatprep.subr.mxu0 0.0
        %2325 = vmatpush1.msra.mxu0 0.0
        %2326 = vmatprep.subr.mxu0 0.0
        %2327 = vmatpush1.msra.mxu0 0.0
        %2328 = vmatprep.subr.mxu0 0.0
        %2329 = vmatpush1.msra.mxu0 0.0
        %2330 = vmatprep.subr.mxu0 0.0
        %2331 = vmatpush1.msra.mxu0 0.0
        %2332 = vmatprep.mubr.f32.mxu0 0.0
        %2333 = vmatmul.mubr.f32.gmra.mrb[0].mxu0 %v1455
        %v2334 = vpop.f32.mrb[0].mxu0
        %v2335 = vadd.f32 0.0, %v2334
        %v2336 = vpop.f32.mrb[0].mxu0
        %v2337 = vadd.f32 0.0, %v2336
        %2338 = vdwg.mxu0
        %v2339 = vadd.f32 %v2260, %v2335
        %v2340 = vadd.f32 %v2261, %v2337
        %v2342 = vsel %vm658, %v1782, 0
        %v2345 = vsel %vm658, %v1783, 0
        %2347 = vmatprep.subr.mxu0 %v2345
        %2348 = vmatpush1.msra.mxu0 %v2342
        %2349 = vmatprep.subr.mxu0 0.0
        %2350 = vmatpush1.msra.mxu0 0.0
        %2351 = vmatprep.subr.mxu0 0.0
        %2352 = vmatpush1.msra.mxu0 0.0
        %2353 = vmatprep.subr.mxu0 0.0
        %2354 = vmatpush1.msra.mxu0 0.0
        %2355 = vmatprep.subr.mxu0 0.0
        %2356 = vmatpush1.msra.mxu0 0.0
        %2357 = vmatprep.subr.mxu0 0.0
        %2358 = vmatpush1.msra.mxu0 0.0
        %2359 = vmatprep.subr.mxu0 0.0
        %2360 = vmatpush1.msra.mxu0 0.0
        %2361 = vmatprep.subr.mxu0 0.0
        %2362 = vmatpush1.msra.mxu0 0.0
        %2363 = vmatprep.subr.mxu0 0.0
        %2364 = vmatpush1.msra.mxu0 0.0
        %2365 = vmatprep.subr.mxu0 0.0
        %2366 = vmatpush1.msra.mxu0 0.0
        %2367 = vmatprep.subr.mxu0 0.0
        %2368 = vmatpush1.msra.mxu0 0.0
        %2369 = vmatprep.subr.mxu0 0.0
        %2370 = vmatpush1.msra.mxu0 0.0
        %2371 = vmatprep.subr.mxu0 0.0
        %2372 = vmatpush1.msra.mxu0 0.0
        %2373 = vmatprep.subr.mxu0 0.0
        %2374 = vmatpush1.msra.mxu0 0.0
        %2375 = vmatprep.subr.mxu0 0.0
        %2376 = vmatpush1.msra.mxu0 0.0
        %2377 = vmatprep.subr.mxu0 0.0
        %2378 = vmatpush1.msra.mxu0 0.0
        %2379 = vmatprep.subr.mxu0 0.0
        %2380 = vmatpush1.msra.mxu0 0.0
        %2381 = vmatprep.subr.mxu0 0.0
        %2382 = vmatpush1.msra.mxu0 0.0
        %2383 = vmatprep.subr.mxu0 0.0
        %2384 = vmatpush1.msra.mxu0 0.0
        %2385 = vmatprep.subr.mxu0 0.0
        %2386 = vmatpush1.msra.mxu0 0.0
        %2387 = vmatprep.subr.mxu0 0.0
        %2388 = vmatpush1.msra.mxu0 0.0
        %2389 = vmatprep.subr.mxu0 0.0
        %2390 = vmatpush1.msra.mxu0 0.0
        %2391 = vmatprep.subr.mxu0 0.0
        %2392 = vmatpush1.msra.mxu0 0.0
        %2393 = vmatprep.subr.mxu0 0.0
        %2394 = vmatpush1.msra.mxu0 0.0
        %2395 = vmatprep.subr.mxu0 0.0
        %2396 = vmatpush1.msra.mxu0 0.0
        %2397 = vmatprep.subr.mxu0 0.0
        %2398 = vmatpush1.msra.mxu0 0.0
        %2399 = vmatprep.subr.mxu0 0.0
        %2400 = vmatpush1.msra.mxu0 0.0
        %2401 = vmatprep.subr.mxu0 0.0
        %2402 = vmatpush1.msra.mxu0 0.0
        %2403 = vmatprep.subr.mxu0 0.0
        %2404 = vmatpush1.msra.mxu0 0.0
        %2405 = vmatprep.subr.mxu0 0.0
        %2406 = vmatpush1.msra.mxu0 0.0
        %2407 = vmatprep.subr.mxu0 0.0
        %2408 = vmatpush1.msra.mxu0 0.0
        %2409 = vmatprep.subr.mxu0 0.0
        %2410 = vmatpush1.msra.mxu0 0.0
        %2411 = vmatprep.mubr.f32.mxu0 0.0
        %2412 = vmatmul.mubr.f32.gmra.mrb[0].mxu0 %v1539
        %v2413 = vpop.f32.mrb[0].mxu0
        %v2414 = vadd.f32 0.0, %v2413
        %v2415 = vpop.f32.mrb[0].mxu0
        %v2416 = vadd.f32 0.0, %v2415
        %2417 = vdwg.mxu0
        %v2418 = vadd.f32 %v2339, %v2414
        %v2419 = vadd.f32 %v2340, %v2416
        %v2421 = vsel %vm658, %v1790, 0
        %v2424 = vsel %vm658, %v1791, 0
        %2426 = vmatprep.subr.mxu0 %v2424
        %2427 = vmatpush1.msra.mxu0 %v2421
        %2428 = vmatprep.subr.mxu0 0.0
        %2429 = vmatpush1.msra.mxu0 0.0
        %2430 = vmatprep.subr.mxu0 0.0
        %2431 = vmatpush1.msra.mxu0 0.0
        %2432 = vmatprep.subr.mxu0 0.0
        %2433 = vmatpush1.msra.mxu0 0.0
        %2434 = vmatprep.subr.mxu0 0.0
        %2435 = vmatpush1.msra.mxu0 0.0
        %2436 = vmatprep.subr.mxu0 0.0
        %2437 = vmatpush1.msra.mxu0 0.0
        %2438 = vmatprep.subr.mxu0 0.0
        %2439 = vmatpush1.msra.mxu0 0.0
        %2440 = vmatprep.subr.mxu0 0.0
        %2441 = vmatpush1.msra.mxu0 0.0
        %2442 = vmatprep.subr.mxu0 0.0
        %2443 = vmatpush1.msra.mxu0 0.0
        %2444 = vmatprep.subr.mxu0 0.0
        %2445 = vmatpush1.msra.mxu0 0.0
        %2446 = vmatprep.subr.mxu0 0.0
        %2447 = vmatpush1.msra.mxu0 0.0
        %2448 = vmatprep.subr.mxu0 0.0
        %2449 = vmatpush1.msra.mxu0 0.0
        %2450 = vmatprep.subr.mxu0 0.0
        %2451 = vmatpush1.msra.mxu0 0.0
        %2452 = vmatprep.subr.mxu0 0.0
        %2453 = vmatpush1.msra.mxu0 0.0
        %2454 = vmatprep.subr.mxu0 0.0
        %2455 = vmatpush1.msra.mxu0 0.0
        %2456 = vmatprep.subr.mxu0 0.0
        %2457 = vmatpush1.msra.mxu0 0.0
        %2458 = vmatprep.subr.mxu0 0.0
        %2459 = vmatpush1.msra.mxu0 0.0
        %2460 = vmatprep.subr.mxu0 0.0
        %2461 = vmatpush1.msra.mxu0 0.0
        %2462 = vmatprep.subr.mxu0 0.0
        %2463 = vmatpush1.msra.mxu0 0.0
        %2464 = vmatprep.subr.mxu0 0.0
        %2465 = vmatpush1.msra.mxu0 0.0
        %2466 = vmatprep.subr.mxu0 0.0
        %2467 = vmatpush1.msra.mxu0 0.0
        %2468 = vmatprep.subr.mxu0 0.0
        %2469 = vmatpush1.msra.mxu0 0.0
        %2470 = vmatprep.subr.mxu0 0.0
        %2471 = vmatpush1.msra.mxu0 0.0
        %2472 = vmatprep.subr.mxu0 0.0
        %2473 = vmatpush1.msra.mxu0 0.0
        %2474 = vmatprep.subr.mxu0 0.0
        %2475 = vmatpush1.msra.mxu0 0.0
        %2476 = vmatprep.subr.mxu0 0.0
        %2477 = vmatpush1.msra.mxu0 0.0
        %2478 = vmatprep.subr.mxu0 0.0
        %2479 = vmatpush1.msra.mxu0 0.0
        %2480 = vmatprep.subr.mxu0 0.0
        %2481 = vmatpush1.msra.mxu0 0.0
        %2482 = vmatprep.subr.mxu0 0.0
        %2483 = vmatpush1.msra.mxu0 0.0
        %2484 = vmatprep.subr.mxu0 0.0
        %2485 = vmatpush1.msra.mxu0 0.0
        %2486 = vmatprep.subr.mxu0 0.0
        %2487 = vmatpush1.msra.mxu0 0.0
        %2488 = vmatprep.subr.mxu0 0.0
        %2489 = vmatpush1.msra.mxu0 0.0
        %2490 = vmatprep.mubr.f32.mxu0 0.0
        %2491 = vmatmul.mubr.f32.gmra.mrb[0].mxu0 %v1623
        %v2492 = vpop.f32.mrb[0].mxu0
        %v2493 = vadd.f32 0.0, %v2492
        %v2494 = vpop.f32.mrb[0].mxu0
        %v2495 = vadd.f32 0.0, %v2494
        %2496 = vdwg.mxu0
        %v2497 = vadd.f32 %v2418, %v2493
        %v2498 = vadd.f32 %v2419, %v2495
        %v2499 = vadd.f32 %v2497, %v1708
        %v2500 = vadd.f32 %v2498, %v1708
        %v2501 = vxor.u32 %v2499, 2147483648
        %v2502 = vxor.u32 %v2500, 2147483648
        %v2503 = vmul.f32 %v2501, 1.442695
        %v2504 = vpow.pop %v2503
        %v2505 = vmul.f32 %v2502, 1.442695
        %v2506 = vpow.pop %v2505
        %v2507 = vadd.f32 %v2504, 1.0
        %v2508 = vadd.f32 %v2506, 1.0
        %v2509 = vrcp.pop %v2507
        %v2510 = vmul.f32 1.0, %v2509
        %v2511 = vrcp.pop %v2508
        %v2512 = vmul.f32 1.0, %v2511
        %v2513 = vmul.f32 %v2499, %v2510
        %v2514 = vmul.f32 %v2500, %v2512
        %v2515 = vadd.f32 %v2513, %v847
        %v2516 = vadd.f32 %v2514, %v848
        %2517 = vrot.lane.b32.xlu0 %v2515, 17
        %v2518 = vpop.permute.xlu0 %2517
        %2519 = vrot.lane.b32.xlu0 %v2516, 17
        %v2520 = vpop.permute.xlu0 %2519
        %v2521 = vsel %vm853, %v2518, %v2520
        %v2522 = vsel %vm853, %v2520, %v2518
        %v2523 = vsel %vm858, %v2522, 0.0
        %v2524 = vsel %vm859, %v2521, 0.0
        %2525 = vrot.lane.b32.xlu0 %v2515, 16
        %v2526 = vpop.permute.xlu0 %2525
        %2527 = vrot.lane.b32.xlu0 %v2516, 16
        %v2528 = vpop.permute.xlu0 %2527
        %v2529 = vsel %vm866, %v2526, %v2528
        %v2530 = vsel %vm866, %v2528, %v2526
        %v2531 = vsel %vm871, %v2530, 0.0
        %v2532 = vsel %vm872, %v2529, 0.0
        %2533 = vrot.lane.b32.xlu0 %v2515, 15
        %v2534 = vpop.permute.xlu0 %2533
        %2535 = vrot.lane.b32.xlu0 %v2516, 15
        %v2536 = vpop.permute.xlu0 %2535
        %v2537 = vsel %vm879, %v2534, %v2536
        %v2538 = vsel %vm879, %v2536, %v2534
        %v2539 = vsel %vm884, %v2538, 0.0
        %v2540 = vsel %vm885, %v2537, 0.0
        %2541 = vrot.lane.b32.xlu0 %v2515, 1
        %v2542 = vpop.permute.xlu0 %2541
        %2543 = vrot.lane.b32.xlu0 %v2516, 1
        %v2544 = vpop.permute.xlu0 %2543
        %v2545 = vsel %vm892, %v2542, %v2544
        %v2546 = vsel %vm892, %v2544, %v2542
        %v2547 = vsel %vm897, %v2546, 0.0
        %v2548 = vsel %vm898, %v2545, 0.0
        %2549 = vrot.lane.b32.xlu0 %v2515, 127
        %v2550 = vpop.permute.xlu0 %2549
        %2551 = vrot.lane.b32.xlu0 %v2516, 127
        %v2552 = vpop.permute.xlu0 %2551
        %v2553 = vsel %vm905, %v2550, %v2552
        %v2554 = vsel %vm905, %v2552, %v2550
        %v2555 = vsel %vm910, %v2553, 0.0
        %v2556 = vsel %vm911, %v2554, 0.0
        %2557 = vrot.lane.b32.xlu0 %v2515, 113
        %v2558 = vpop.permute.xlu0 %2557
        %2559 = vrot.lane.b32.xlu0 %v2516, 113
        %v2560 = vpop.permute.xlu0 %2559
        %v2561 = vsel %vm918, %v2558, %v2560
        %v2562 = vsel %vm918, %v2560, %v2558
        %v2563 = vsel %vm923, %v2561, 0.0
        %v2564 = vsel %vm924, %v2562, 0.0
        %2565 = vrot.lane.b32.xlu0 %v2515, 112
        %v2566 = vpop.permute.xlu0 %2565
        %2567 = vrot.lane.b32.xlu0 %v2516, 112
        %v2568 = vpop.permute.xlu0 %2567
        %v2569 = vsel %vm931, %v2566, %v2568
        %v2570 = vsel %vm931, %v2568, %v2566
        %v2571 = vsel %vm936, %v2569, 0.0
        %v2572 = vsel %vm937, %v2570, 0.0
        %2573 = vrot.lane.b32.xlu0 %v2515, 111
        %v2574 = vpop.permute.xlu0 %2573
        %2575 = vrot.lane.b32.xlu0 %v2516, 111
        %v2576 = vpop.permute.xlu0 %2575
        %v2577 = vsel %vm944, %v2574, %v2576
        %v2578 = vsel %vm944, %v2576, %v2574
        %v2579 = vsel %vm949, %v2577, 0.0
        %v2580 = vsel %vm950, %v2578, 0.0
        %v2582 = vsel %vm658, %v2531, 0
        %v2585 = vsel %vm658, %v2532, 0
        %2587 = vmatprep.subr.mxu0 %v2585
        %2588 = vmatpush1.msra.mxu0 %v2582
        %2589 = vmatprep.subr.mxu0 0.0
        %2590 = vmatpush1.msra.mxu0 0.0
        %2591 = vmatprep.subr.mxu0 0.0
        %2592 = vmatpush1.msra.mxu0 0.0
        %2593 = vmatprep.subr.mxu0 0.0
        %2594 = vmatpush1.msra.mxu0 0.0
        %2595 = vmatprep.subr.mxu0 0.0
        %2596 = vmatpush1.msra.mxu0 0.0
        %2597 = vmatprep.subr.mxu0 0.0
        %2598 = vmatpush1.msra.mxu0 0.0
        %2599 = vmatprep.subr.mxu0 0.0
        %2600 = vmatpush1.msra.mxu0 0.0
        %2601 = vmatprep.subr.mxu0 0.0
        %2602 = vmatpush1.msra.mxu0 0.0
        %2603 = vmatprep.subr.mxu0 0.0
        %2604 = vmatpush1.msra.mxu0 0.0
        %2605 = vmatprep.subr.mxu0 0.0
        %2606 = vmatpush1.msra.mxu0 0.0
        %2607 = vmatprep.subr.mxu0 0.0
        %2608 = vmatpush1.msra.mxu0 0.0
        %2609 = vmatprep.subr.mxu0 0.0
        %2610 = vmatpush1.msra.mxu0 0.0
        %2611 = vmatprep.subr.mxu0 0.0
        %2612 = vmatpush1.msra.mxu0 0.0
        %2613 = vmatprep.subr.mxu0 0.0
        %2614 = vmatpush1.msra.mxu0 0.0
        %2615 = vmatprep.subr.mxu0 0.0
        %2616 = vmatpush1.msra.mxu0 0.0
        %2617 = vmatprep.subr.mxu0 0.0
        %2618 = vmatpush1.msra.mxu0 0.0
        %2619 = vmatprep.subr.mxu0 0.0
        %2620 = vmatpush1.msra.mxu0 0.0
        %2621 = vmatprep.subr.mxu0 0.0
        %2622 = vmatpush1.msra.mxu0 0.0
        %2623 = vmatprep.subr.mxu0 0.0
        %2624 = vmatpush1.msra.mxu0 0.0
        %2625 = vmatprep.subr.mxu0 0.0
        %2626 = vmatpush1.msra.mxu0 0.0
        %2627 = vmatprep.subr.mxu0 0.0
        %2628 = vmatpush1.msra.mxu0 0.0
        %2629 = vmatprep.subr.mxu0 0.0
        %2630 = vmatpush1.msra.mxu0 0.0
        %2631 = vmatprep.subr.mxu0 0.0
        %2632 = vmatpush1.msra.mxu0 0.0
        %2633 = vmatprep.subr.mxu0 0.0
        %2634 = vmatpush1.msra.mxu0 0.0
        %2635 = vmatprep.subr.mxu0 0.0
        %2636 = vmatpush1.msra.mxu0 0.0
        %2637 = vmatprep.subr.mxu0 0.0
        %2638 = vmatpush1.msra.mxu0 0.0
        %2639 = vmatprep.subr.mxu0 0.0
        %2640 = vmatpush1.msra.mxu0 0.0
        %2641 = vmatprep.subr.mxu0 0.0
        %2642 = vmatpush1.msra.mxu0 0.0
        %2643 = vmatprep.subr.mxu0 0.0
        %2644 = vmatpush1.msra.mxu0 0.0
        %2645 = vmatprep.subr.mxu0 0.0
        %2646 = vmatpush1.msra.mxu0 0.0
        %2647 = vmatprep.subr.mxu0 0.0
        %2648 = vmatpush1.msra.mxu0 0.0
        %2649 = vmatprep.subr.mxu0 0.0
        %2650 = vmatpush1.msra.mxu0 0.0
        %2651 = vmatprep.mubr.f32.mxu0 0.0
        %2652 = vmatmul.mubr.f32.gmra.mrb[0].mxu0 %v957
        %v2653 = vpop.f32.mrb[0].mxu0
        %v2654 = vadd.f32 0.0, %v2653
        %v2655 = vpop.f32.mrb[0].mxu0
        %v2656 = vadd.f32 0.0, %v2655
        %2657 = vdwg.mxu0
        %v2659 = vsel %vm658, %v2523, 0
        %v2662 = vsel %vm658, %v2524, 0
        %2664 = vmatprep.subr.mxu0 %v2662
        %2665 = vmatpush1.msra.mxu0 %v2659
        %2666 = vmatprep.subr.mxu0 0.0
        %2667 = vmatpush1.msra.mxu0 0.0
        %2668 = vmatprep.subr.mxu0 0.0
        %2669 = vmatpush1.msra.mxu0 0.0
        %2670 = vmatprep.subr.mxu0 0.0
        %2671 = vmatpush1.msra.mxu0 0.0
        %2672 = vmatprep.subr.mxu0 0.0
        %2673 = vmatpush1.msra.mxu0 0.0
        %2674 = vmatprep.subr.mxu0 0.0
        %2675 = vmatpush1.msra.mxu0 0.0
        %2676 = vmatprep.subr.mxu0 0.0
        %2677 = vmatpush1.msra.mxu0 0.0
        %2678 = vmatprep.subr.mxu0 0.0
        %2679 = vmatpush1.msra.mxu0 0.0
        %2680 = vmatprep.subr.mxu0 0.0
        %2681 = vmatpush1.msra.mxu0 0.0
        %2682 = vmatprep.subr.mxu0 0.0
        %2683 = vmatpush1.msra.mxu0 0.0
        %2684 = vmatprep.subr.mxu0 0.0
        %2685 = vmatpush1.msra.mxu0 0.0
        %2686 = vmatprep.subr.mxu0 0.0
        %2687 = vmatpush1.msra.mxu0 0.0
        %2688 = vmatprep.subr.mxu0 0.0
        %2689 = vmatpush1.msra.mxu0 0.0
        %2690 = vmatprep.subr.mxu0 0.0
        %2691 = vmatpush1.msra.mxu0 0.0
        %2692 = vmatprep.subr.mxu0 0.0
        %2693 = vmatpush1.msra.mxu0 0.0
        %2694 = vmatprep.subr.mxu0 0.0
        %2695 = vmatpush1.msra.mxu0 0.0
        %2696 = vmatprep.subr.mxu0 0.0
        %2697 = vmatpush1.msra.mxu0 0.0
        %2698 = vmatprep.subr.mxu0 0.0
        %2699 = vmatpush1.msra.mxu0 0.0
        %2700 = vmatprep.subr.mxu0 0.0
        %2701 = vmatpush1.msra.mxu0 0.0
        %2702 = vmatprep.subr.mxu0 0.0
        %2703 = vmatpush1.msra.mxu0 0.0
        %2704 = vmatprep.subr.mxu0 0.0
        %2705 = vmatpush1.msra.mxu0 0.0
        %2706 = vmatprep.subr.mxu0 0.0
        %2707 = vmatpush1.msra.mxu0 0.0
        %2708 = vmatprep.subr.mxu0 0.0
        %2709 = vmatpush1.msra.mxu0 0.0
        %2710 = vmatprep.subr.mxu0 0.0
        %2711 = vmatpush1.msra.mxu0 0.0
        %2712 = vmatprep.subr.mxu0 0.0
        %2713 = vmatpush1.msra.mxu0 0.0
        %2714 = vmatprep.subr.mxu0 0.0
        %2715 = vmatpush1.msra.mxu0 0.0
        %2716 = vmatprep.subr.mxu0 0.0
        %2717 = vmatpush1.msra.mxu0 0.0
        %2718 = vmatprep.subr.mxu0 0.0
        %2719 = vmatpush1.msra.mxu0 0.0
        %2720 = vmatprep.subr.mxu0 0.0
        %2721 = vmatpush1.msra.mxu0 0.0
        %2722 = vmatprep.subr.mxu0 0.0
        %2723 = vmatpush1.msra.mxu0 0.0
        %2724 = vmatprep.subr.mxu0 0.0
        %2725 = vmatpush1.msra.mxu0 0.0
        %2726 = vmatprep.subr.mxu0 0.0
        %2727 = vmatpush1.msra.mxu0 0.0
        %2728 = vmatprep.mubr.f32.mxu0 0.0
        %2729 = vmatmul.mubr.f32.gmra.mrb[0].mxu0 %v1037
        %v2730 = vpop.f32.mrb[0].mxu0
        %v2731 = vadd.f32 %v2654, %v2730
        %v2732 = vpop.f32.mrb[0].mxu0
        %v2733 = vadd.f32 %v2656, %v2732
        %2734 = vdwg.mxu0
        %v2736 = vsel %vm658, %v2539, 0
        %v2739 = vsel %vm658, %v2540, 0
        %2741 = vmatprep.subr.mxu0 %v2739
        %2742 = vmatpush1.msra.mxu0 %v2736
        %2743 = vmatprep.subr.mxu0 0.0
        %2744 = vmatpush1.msra.mxu0 0.0
        %2745 = vmatprep.subr.mxu0 0.0
        %2746 = vmatpush1.msra.mxu0 0.0
        %2747 = vmatprep.subr.mxu0 0.0
        %2748 = vmatpush1.msra.mxu0 0.0
        %2749 = vmatprep.subr.mxu0 0.0
        %2750 = vmatpush1.msra.mxu0 0.0
        %2751 = vmatprep.subr.mxu0 0.0
        %2752 = vmatpush1.msra.mxu0 0.0
        %2753 = vmatprep.subr.mxu0 0.0
        %2754 = vmatpush1.msra.mxu0 0.0
        %2755 = vmatprep.subr.mxu0 0.0
        %2756 = vmatpush1.msra.mxu0 0.0
        %2757 = vmatprep.subr.mxu0 0.0
        %2758 = vmatpush1.msra.mxu0 0.0
        %2759 = vmatprep.subr.mxu0 0.0
        %2760 = vmatpush1.msra.mxu0 0.0
        %2761 = vmatprep.subr.mxu0 0.0
        %2762 = vmatpush1.msra.mxu0 0.0
        %2763 = vmatprep.subr.mxu0 0.0
        %2764 = vmatpush1.msra.mxu0 0.0
        %2765 = vmatprep.subr.mxu0 0.0
        %2766 = vmatpush1.msra.mxu0 0.0
        %2767 = vmatprep.subr.mxu0 0.0
        %2768 = vmatpush1.msra.mxu0 0.0
        %2769 = vmatprep.subr.mxu0 0.0
        %2770 = vmatpush1.msra.mxu0 0.0
        %2771 = vmatprep.subr.mxu0 0.0
        %2772 = vmatpush1.msra.mxu0 0.0
        %2773 = vmatprep.subr.mxu0 0.0
        %2774 = vmatpush1.msra.mxu0 0.0
        %2775 = vmatprep.subr.mxu0 0.0
        %2776 = vmatpush1.msra.mxu0 0.0
        %2777 = vmatprep.subr.mxu0 0.0
        %2778 = vmatpush1.msra.mxu0 0.0
        %2779 = vmatprep.subr.mxu0 0.0
        %2780 = vmatpush1.msra.mxu0 0.0
        %2781 = vmatprep.subr.mxu0 0.0
        %2782 = vmatpush1.msra.mxu0 0.0
        %2783 = vmatprep.subr.mxu0 0.0
        %2784 = vmatpush1.msra.mxu0 0.0
        %2785 = vmatprep.subr.mxu0 0.0
        %2786 = vmatpush1.msra.mxu0 0.0
        %2787 = vmatprep.subr.mxu0 0.0
        %2788 = vmatpush1.msra.mxu0 0.0
        %2789 = vmatprep.subr.mxu0 0.0
        %2790 = vmatpush1.msra.mxu0 0.0
        %2791 = vmatprep.subr.mxu0 0.0
        %2792 = vmatpush1.msra.mxu0 0.0
        %2793 = vmatprep.subr.mxu0 0.0
        %2794 = vmatpush1.msra.mxu0 0.0
        %2795 = vmatprep.subr.mxu0 0.0
        %2796 = vmatpush1.msra.mxu0 0.0
        %2797 = vmatprep.subr.mxu0 0.0
        %2798 = vmatpush1.msra.mxu0 0.0
        %2799 = vmatprep.subr.mxu0 0.0
        %2800 = vmatpush1.msra.mxu0 0.0
        %2801 = vmatprep.subr.mxu0 0.0
        %2802 = vmatpush1.msra.mxu0 0.0
        %2803 = vmatprep.subr.mxu0 0.0
        %2804 = vmatpush1.msra.mxu0 0.0
        %2805 = vmatprep.mubr.f32.mxu0 0.0
        %2806 = vmatmul.mubr.f32.gmra.mrb[0].mxu0 %v1119
        %v2807 = vpop.f32.mrb[0].mxu0
        %v2808 = vadd.f32 0.0, %v2807
        %v2809 = vpop.f32.mrb[0].mxu0
        %v2810 = vadd.f32 0.0, %v2809
        %2811 = vdwg.mxu0
        %v2812 = vadd.f32 %v2731, %v2808
        %v2813 = vadd.f32 %v2733, %v2810
        %v2815 = vsel %vm658, %v2547, 0
        %v2818 = vsel %vm658, %v2548, 0
        %2820 = vmatprep.subr.mxu0 %v2818
        %2821 = vmatpush1.msra.mxu0 %v2815
        %2822 = vmatprep.subr.mxu0 0.0
        %2823 = vmatpush1.msra.mxu0 0.0
        %2824 = vmatprep.subr.mxu0 0.0
        %2825 = vmatpush1.msra.mxu0 0.0
        %2826 = vmatprep.subr.mxu0 0.0
        %2827 = vmatpush1.msra.mxu0 0.0
        %2828 = vmatprep.subr.mxu0 0.0
        %2829 = vmatpush1.msra.mxu0 0.0
        %2830 = vmatprep.subr.mxu0 0.0
        %2831 = vmatpush1.msra.mxu0 0.0
        %2832 = vmatprep.subr.mxu0 0.0
        %2833 = vmatpush1.msra.mxu0 0.0
        %2834 = vmatprep.subr.mxu0 0.0
        %2835 = vmatpush1.msra.mxu0 0.0
        %2836 = vmatprep.subr.mxu0 0.0
        %2837 = vmatpush1.msra.mxu0 0.0
        %2838 = vmatprep.subr.mxu0 0.0
        %2839 = vmatpush1.msra.mxu0 0.0
        %2840 = vmatprep.subr.mxu0 0.0
        %2841 = vmatpush1.msra.mxu0 0.0
        %2842 = vmatprep.subr.mxu0 0.0
        %2843 = vmatpush1.msra.mxu0 0.0
        %2844 = vmatprep.subr.mxu0 0.0
        %2845 = vmatpush1.msra.mxu0 0.0
        %2846 = vmatprep.subr.mxu0 0.0
        %2847 = vmatpush1.msra.mxu0 0.0
        %2848 = vmatprep.subr.mxu0 0.0
        %2849 = vmatpush1.msra.mxu0 0.0
        %2850 = vmatprep.subr.mxu0 0.0
        %2851 = vmatpush1.msra.mxu0 0.0
        %2852 = vmatprep.subr.mxu0 0.0
        %2853 = vmatpush1.msra.mxu0 0.0
        %2854 = vmatprep.subr.mxu0 0.0
        %2855 = vmatpush1.msra.mxu0 0.0
        %2856 = vmatprep.subr.mxu0 0.0
        %2857 = vmatpush1.msra.mxu0 0.0
        %2858 = vmatprep.subr.mxu0 0.0
        %2859 = vmatpush1.msra.mxu0 0.0
        %2860 = vmatprep.subr.mxu0 0.0
        %2861 = vmatpush1.msra.mxu0 0.0
        %2862 = vmatprep.subr.mxu0 0.0
        %2863 = vmatpush1.msra.mxu0 0.0
        %2864 = vmatprep.subr.mxu0 0.0
        %2865 = vmatpush1.msra.mxu0 0.0
        %2866 = vmatprep.subr.mxu0 0.0
        %2867 = vmatpush1.msra.mxu0 0.0
        %2868 = vmatprep.subr.mxu0 0.0
        %2869 = vmatpush1.msra.mxu0 0.0
        %2870 = vmatprep.subr.mxu0 0.0
        %2871 = vmatpush1.msra.mxu0 0.0
        %2872 = vmatprep.subr.mxu0 0.0
        %2873 = vmatpush1.msra.mxu0 0.0
        %2874 = vmatprep.subr.mxu0 0.0
        %2875 = vmatpush1.msra.mxu0 0.0
        %2876 = vmatprep.subr.mxu0 0.0
        %2877 = vmatpush1.msra.mxu0 0.0
        %2878 = vmatprep.subr.mxu0 0.0
        %2879 = vmatpush1.msra.mxu0 0.0
        %2880 = vmatprep.subr.mxu0 0.0
        %2881 = vmatpush1.msra.mxu0 0.0
        %2882 = vmatprep.subr.mxu0 0.0
        %2883 = vmatpush1.msra.mxu0 0.0
        %2884 = vmatprep.mubr.f32.mxu0 0.0
        %2885 = vmatmul.mubr.f32.gmra.mrb[0].mxu0 %v1203
        %v2886 = vpop.f32.mrb[0].mxu0
        %v2887 = vadd.f32 0.0, %v2886
        %v2888 = vpop.f32.mrb[0].mxu0
        %v2889 = vadd.f32 0.0, %v2888
        %2890 = vdwg.mxu0
        %v2891 = vadd.f32 %v2812, %v2887
        %v2892 = vadd.f32 %v2813, %v2889
        %v2894 = vsel %vm658, %v2515, 0
        %v2897 = vsel %vm658, %v2516, 0
        %2899 = vmatprep.subr.mxu0 %v2897
        %2900 = vmatpush1.msra.mxu0 %v2894
        %2901 = vmatprep.subr.mxu0 0.0
        %2902 = vmatpush1.msra.mxu0 0.0
        %2903 = vmatprep.subr.mxu0 0.0
        %2904 = vmatpush1.msra.mxu0 0.0
        %2905 = vmatprep.subr.mxu0 0.0
        %2906 = vmatpush1.msra.mxu0 0.0
        %2907 = vmatprep.subr.mxu0 0.0
        %2908 = vmatpush1.msra.mxu0 0.0
        %2909 = vmatprep.subr.mxu0 0.0
        %2910 = vmatpush1.msra.mxu0 0.0
        %2911 = vmatprep.subr.mxu0 0.0
        %2912 = vmatpush1.msra.mxu0 0.0
        %2913 = vmatprep.subr.mxu0 0.0
        %2914 = vmatpush1.msra.mxu0 0.0
        %2915 = vmatprep.subr.mxu0 0.0
        %2916 = vmatpush1.msra.mxu0 0.0
        %2917 = vmatprep.subr.mxu0 0.0
        %2918 = vmatpush1.msra.mxu0 0.0
        %2919 = vmatprep.subr.mxu0 0.0
        %2920 = vmatpush1.msra.mxu0 0.0
        %2921 = vmatprep.subr.mxu0 0.0
        %2922 = vmatpush1.msra.mxu0 0.0
        %2923 = vmatprep.subr.mxu0 0.0
        %2924 = vmatpush1.msra.mxu0 0.0
        %2925 = vmatprep.subr.mxu0 0.0
        %2926 = vmatpush1.msra.mxu0 0.0
        %2927 = vmatprep.subr.mxu0 0.0
        %2928 = vmatpush1.msra.mxu0 0.0
        %2929 = vmatprep.subr.mxu0 0.0
        %2930 = vmatpush1.msra.mxu0 0.0
        %2931 = vmatprep.subr.mxu0 0.0
        %2932 = vmatpush1.msra.mxu0 0.0
        %2933 = vmatprep.subr.mxu0 0.0
        %2934 = vmatpush1.msra.mxu0 0.0
        %2935 = vmatprep.subr.mxu0 0.0
        %2936 = vmatpush1.msra.mxu0 0.0
        %2937 = vmatprep.subr.mxu0 0.0
        %2938 = vmatpush1.msra.mxu0 0.0
        %2939 = vmatprep.subr.mxu0 0.0
        %2940 = vmatpush1.msra.mxu0 0.0
        %2941 = vmatprep.subr.mxu0 0.0
        %2942 = vmatpush1.msra.mxu0 0.0
        %2943 = vmatprep.subr.mxu0 0.0
        %2944 = vmatpush1.msra.mxu0 0.0
        %2945 = vmatprep.subr.mxu0 0.0
        %2946 = vmatpush1.msra.mxu0 0.0
        %2947 = vmatprep.subr.mxu0 0.0
        %2948 = vmatpush1.msra.mxu0 0.0
        %2949 = vmatprep.subr.mxu0 0.0
        %2950 = vmatpush1.msra.mxu0 0.0
        %2951 = vmatprep.subr.mxu0 0.0
        %2952 = vmatpush1.msra.mxu0 0.0
        %2953 = vmatprep.subr.mxu0 0.0
        %2954 = vmatpush1.msra.mxu0 0.0
        %2955 = vmatprep.subr.mxu0 0.0
        %2956 = vmatpush1.msra.mxu0 0.0
        %2957 = vmatprep.subr.mxu0 0.0
        %2958 = vmatpush1.msra.mxu0 0.0
        %2959 = vmatprep.subr.mxu0 0.0
        %2960 = vmatpush1.msra.mxu0 0.0
        %2961 = vmatprep.subr.mxu0 0.0
        %2962 = vmatpush1.msra.mxu0 0.0
        %2963 = vmatprep.mubr.f32.mxu0 0.0
        %2964 = vmatmul.mubr.f32.gmra.mrb[0].mxu0 %v1287
        %v2965 = vpop.f32.mrb[0].mxu0
        %v2966 = vadd.f32 0.0, %v2965
        %v2967 = vpop.f32.mrb[0].mxu0
        %v2968 = vadd.f32 0.0, %v2967
        %2969 = vdwg.mxu0
        %v2970 = vadd.f32 %v2891, %v2966
        %v2971 = vadd.f32 %v2892, %v2968
        %v2973 = vsel %vm658, %v2555, 0
        %v2976 = vsel %vm658, %v2556, 0
        %2978 = vmatprep.subr.mxu0 %v2976
        %2979 = vmatpush1.msra.mxu0 %v2973
        %2980 = vmatprep.subr.mxu0 0.0
        %2981 = vmatpush1.msra.mxu0 0.0
        %2982 = vmatprep.subr.mxu0 0.0
        %2983 = vmatpush1.msra.mxu0 0.0
        %2984 = vmatprep.subr.mxu0 0.0
        %2985 = vmatpush1.msra.mxu0 0.0
        %2986 = vmatprep.subr.mxu0 0.0
        %2987 = vmatpush1.msra.mxu0 0.0
        %2988 = vmatprep.subr.mxu0 0.0
        %2989 = vmatpush1.msra.mxu0 0.0
        %2990 = vmatprep.subr.mxu0 0.0
        %2991 = vmatpush1.msra.mxu0 0.0
        %2992 = vmatprep.subr.mxu0 0.0
        %2993 = vmatpush1.msra.mxu0 0.0
        %2994 = vmatprep.subr.mxu0 0.0
        %2995 = vmatpush1.msra.mxu0 0.0
        %2996 = vmatprep.subr.mxu0 0.0
        %2997 = vmatpush1.msra.mxu0 0.0
        %2998 = vmatprep.subr.mxu0 0.0
        %2999 = vmatpush1.msra.mxu0 0.0
        %3000 = vmatprep.subr.mxu0 0.0
        %3001 = vmatpush1.msra.mxu0 0.0
        %3002 = vmatprep.subr.mxu0 0.0
        %3003 = vmatpush1.msra.mxu0 0.0
        %3004 = vmatprep.subr.mxu0 0.0
        %3005 = vmatpush1.msra.mxu0 0.0
        %3006 = vmatprep.subr.mxu0 0.0
        %3007 = vmatpush1.msra.mxu0 0.0
        %3008 = vmatprep.subr.mxu0 0.0
        %3009 = vmatpush1.msra.mxu0 0.0
        %3010 = vmatprep.subr.mxu0 0.0
        %3011 = vmatpush1.msra.mxu0 0.0
        %3012 = vmatprep.subr.mxu0 0.0
        %3013 = vmatpush1.msra.mxu0 0.0
        %3014 = vmatprep.subr.mxu0 0.0
        %3015 = vmatpush1.msra.mxu0 0.0
        %3016 = vmatprep.subr.mxu0 0.0
        %3017 = vmatpush1.msra.mxu0 0.0
        %3018 = vmatprep.subr.mxu0 0.0
        %3019 = vmatpush1.msra.mxu0 0.0
        %3020 = vmatprep.subr.mxu0 0.0
        %3021 = vmatpush1.msra.mxu0 0.0
        %3022 = vmatprep.subr.mxu0 0.0
        %3023 = vmatpush1.msra.mxu0 0.0
        %3024 = vmatprep.subr.mxu0 0.0
        %3025 = vmatpush1.msra.mxu0 0.0
        %3026 = vmatprep.subr.mxu0 0.0
        %3027 = vmatpush1.msra.mxu0 0.0
        %3028 = vmatprep.subr.mxu0 0.0
        %3029 = vmatpush1.msra.mxu0 0.0
        %3030 = vmatprep.subr.mxu0 0.0
        %3031 = vmatpush1.msra.mxu0 0.0
        %3032 = vmatprep.subr.mxu0 0.0
        %3033 = vmatpush1.msra.mxu0 0.0
        %3034 = vmatprep.subr.mxu0 0.0
        %3035 = vmatpush1.msra.mxu0 0.0
        %3036 = vmatprep.subr.mxu0 0.0
        %3037 = vmatpush1.msra.mxu0 0.0
        %3038 = vmatprep.subr.mxu0 0.0
        %3039 = vmatpush1.msra.mxu0 0.0
        %3040 = vmatprep.subr.mxu0 0.0
        %3041 = vmatpush1.msra.mxu0 0.0
        %3042 = vmatprep.mubr.f32.mxu0 0.0
        %3043 = vmatmul.mubr.f32.gmra.mrb[0].mxu0 %v1371
        %v3044 = vpop.f32.mrb[0].mxu0
        %v3045 = vadd.f32 0.0, %v3044
        %v3046 = vpop.f32.mrb[0].mxu0
        %v3047 = vadd.f32 0.0, %v3046
        %3048 = vdwg.mxu0
        %v3049 = vadd.f32 %v2970, %v3045
        %v3050 = vadd.f32 %v2971, %v3047
        %v3052 = vsel %vm658, %v2563, 0
        %v3055 = vsel %vm658, %v2564, 0
        %3057 = vmatprep.subr.mxu0 %v3055
        %3058 = vmatpush1.msra.mxu0 %v3052
        %3059 = vmatprep.subr.mxu0 0.0
        %3060 = vmatpush1.msra.mxu0 0.0
        %3061 = vmatprep.subr.mxu0 0.0
        %3062 = vmatpush1.msra.mxu0 0.0
        %3063 = vmatprep.subr.mxu0 0.0
        %3064 = vmatpush1.msra.mxu0 0.0
        %3065 = vmatprep.subr.mxu0 0.0
        %3066 = vmatpush1.msra.mxu0 0.0
        %3067 = vmatprep.subr.mxu0 0.0
        %3068 = vmatpush1.msra.mxu0 0.0
        %3069 = vmatprep.subr.mxu0 0.0
        %3070 = vmatpush1.msra.mxu0 0.0
        %3071 = vmatprep.subr.mxu0 0.0
        %3072 = vmatpush1.msra.mxu0 0.0
        %3073 = vmatprep.subr.mxu0 0.0
        %3074 = vmatpush1.msra.mxu0 0.0
        %3075 = vmatprep.subr.mxu0 0.0
        %3076 = vmatpush1.msra.mxu0 0.0
        %3077 = vmatprep.subr.mxu0 0.0
        %3078 = vmatpush1.msra.mxu0 0.0
        %3079 = vmatprep.subr.mxu0 0.0
        %3080 = vmatpush1.msra.mxu0 0.0
        %3081 = vmatprep.subr.mxu0 0.0
        %3082 = vmatpush1.msra.mxu0 0.0
        %3083 = vmatprep.subr.mxu0 0.0
        %3084 = vmatpush1.msra.mxu0 0.0
        %3085 = vmatprep.subr.mxu0 0.0
        %3086 = vmatpush1.msra.mxu0 0.0
        %3087 = vmatprep.subr.mxu0 0.0
        %3088 = vmatpush1.msra.mxu0 0.0
        %3089 = vmatprep.subr.mxu0 0.0
        %3090 = vmatpush1.msra.mxu0 0.0
        %3091 = vmatprep.subr.mxu0 0.0
        %3092 = vmatpush1.msra.mxu0 0.0
        %3093 = vmatprep.subr.mxu0 0.0
        %3094 = vmatpush1.msra.mxu0 0.0
        %3095 = vmatprep.subr.mxu0 0.0
        %3096 = vmatpush1.msra.mxu0 0.0
        %3097 = vmatprep.subr.mxu0 0.0
        %3098 = vmatpush1.msra.mxu0 0.0
        %3099 = vmatprep.subr.mxu0 0.0
        %3100 = vmatpush1.msra.mxu0 0.0
        %3101 = vmatprep.subr.mxu0 0.0
        %3102 = vmatpush1.msra.mxu0 0.0
        %3103 = vmatprep.subr.mxu0 0.0
        %3104 = vmatpush1.msra.mxu0 0.0
        %3105 = vmatprep.subr.mxu0 0.0
        %3106 = vmatpush1.msra.mxu0 0.0
        %3107 = vmatprep.subr.mxu0 0.0
        %3108 = vmatpush1.msra.mxu0 0.0
        %3109 = vmatprep.subr.mxu0 0.0
        %3110 = vmatpush1.msra.mxu0 0.0
        %3111 = vmatprep.subr.mxu0 0.0
        %3112 = vmatpush1.msra.mxu0 0.0
        %3113 = vmatprep.subr.mxu0 0.0
        %3114 = vmatpush1.msra.mxu0 0.0
        %3115 = vmatprep.subr.mxu0 0.0
        %3116 = vmatpush1.msra.mxu0 0.0
        %3117 = vmatprep.subr.mxu0 0.0
        %3118 = vmatpush1.msra.mxu0 0.0
        %3119 = vmatprep.subr.mxu0 0.0
        %3120 = vmatpush1.msra.mxu0 0.0
        %3121 = vmatprep.mubr.f32.mxu0 0.0
        %3122 = vmatmul.mubr.f32.gmra.mrb[0].mxu0 %v1455
        %v3123 = vpop.f32.mrb[0].mxu0
        %v3124 = vadd.f32 0.0, %v3123
        %v3125 = vpop.f32.mrb[0].mxu0
        %v3126 = vadd.f32 0.0, %v3125
        %3127 = vdwg.mxu0
        %v3128 = vadd.f32 %v3049, %v3124
        %v3129 = vadd.f32 %v3050, %v3126
        %v3131 = vsel %vm658, %v2571, 0
        %v3134 = vsel %vm658, %v2572, 0
        %3136 = vmatprep.subr.mxu0 %v3134
        %3137 = vmatpush1.msra.mxu0 %v3131
        %3138 = vmatprep.subr.mxu0 0.0
        %3139 = vmatpush1.msra.mxu0 0.0
        %3140 = vmatprep.subr.mxu0 0.0
        %3141 = vmatpush1.msra.mxu0 0.0
        %3142 = vmatprep.subr.mxu0 0.0
        %3143 = vmatpush1.msra.mxu0 0.0
        %3144 = vmatprep.subr.mxu0 0.0
        %3145 = vmatpush1.msra.mxu0 0.0
        %3146 = vmatprep.subr.mxu0 0.0
        %3147 = vmatpush1.msra.mxu0 0.0
        %3148 = vmatprep.subr.mxu0 0.0
        %3149 = vmatpush1.msra.mxu0 0.0
        %3150 = vmatprep.subr.mxu0 0.0
        %3151 = vmatpush1.msra.mxu0 0.0
        %3152 = vmatprep.subr.mxu0 0.0
        %3153 = vmatpush1.msra.mxu0 0.0
        %3154 = vmatprep.subr.mxu0 0.0
        %3155 = vmatpush1.msra.mxu0 0.0
        %3156 = vmatprep.subr.mxu0 0.0
        %3157 = vmatpush1.msra.mxu0 0.0
        %3158 = vmatprep.subr.mxu0 0.0
        %3159 = vmatpush1.msra.mxu0 0.0
        %3160 = vmatprep.subr.mxu0 0.0
        %3161 = vmatpush1.msra.mxu0 0.0
        %3162 = vmatprep.subr.mxu0 0.0
        %3163 = vmatpush1.msra.mxu0 0.0
        %3164 = vmatprep.subr.mxu0 0.0
        %3165 = vmatpush1.msra.mxu0 0.0
        %3166 = vmatprep.subr.mxu0 0.0
        %3167 = vmatpush1.msra.mxu0 0.0
        %3168 = vmatprep.subr.mxu0 0.0
        %3169 = vmatpush1.msra.mxu0 0.0
        %3170 = vmatprep.subr.mxu0 0.0
        %3171 = vmatpush1.msra.mxu0 0.0
        %3172 = vmatprep.subr.mxu0 0.0
        %3173 = vmatpush1.msra.mxu0 0.0
        %3174 = vmatprep.subr.mxu0 0.0
        %3175 = vmatpush1.msra.mxu0 0.0
        %3176 = vmatprep.subr.mxu0 0.0
        %3177 = vmatpush1.msra.mxu0 0.0
        %3178 = vmatprep.subr.mxu0 0.0
        %3179 = vmatpush1.msra.mxu0 0.0
        %3180 = vmatprep.subr.mxu0 0.0
        %3181 = vmatpush1.msra.mxu0 0.0
        %3182 = vmatprep.subr.mxu0 0.0
        %3183 = vmatpush1.msra.mxu0 0.0
        %3184 = vmatprep.subr.mxu0 0.0
        %3185 = vmatpush1.msra.mxu0 0.0
        %3186 = vmatprep.subr.mxu0 0.0
        %3187 = vmatpush1.msra.mxu0 0.0
        %3188 = vmatprep.subr.mxu0 0.0
        %3189 = vmatpush1.msra.mxu0 0.0
        %3190 = vmatprep.subr.mxu0 0.0
        %3191 = vmatpush1.msra.mxu0 0.0
        %3192 = vmatprep.subr.mxu0 0.0
        %3193 = vmatpush1.msra.mxu0 0.0
        %3194 = vmatprep.subr.mxu0 0.0
        %3195 = vmatpush1.msra.mxu0 0.0
        %3196 = vmatprep.subr.mxu0 0.0
        %3197 = vmatpush1.msra.mxu0 0.0
        %3198 = vmatprep.subr.mxu0 0.0
        %3199 = vmatpush1.msra.mxu0 0.0
        %3200 = vmatprep.mubr.f32.mxu0 0.0
        %3201 = vmatmul.mubr.f32.gmra.mrb[0].mxu0 %v1539
        %v3202 = vpop.f32.mrb[0].mxu0
        %v3203 = vadd.f32 0.0, %v3202
        %v3204 = vpop.f32.mrb[0].mxu0
        %v3205 = vadd.f32 0.0, %v3204
        %3206 = vdwg.mxu0
        %v3207 = vadd.f32 %v3128, %v3203
        %v3208 = vadd.f32 %v3129, %v3205
        %v3210 = vsel %vm658, %v2579, 0
        %v3213 = vsel %vm658, %v2580, 0
        %3215 = vmatprep.subr.mxu0 %v3213
        %3216 = vmatpush1.msra.mxu0 %v3210
        %3217 = vmatprep.subr.mxu0 0.0
        %3218 = vmatpush1.msra.mxu0 0.0
        %3219 = vmatprep.subr.mxu0 0.0
        %3220 = vmatpush1.msra.mxu0 0.0
        %3221 = vmatprep.subr.mxu0 0.0
        %3222 = vmatpush1.msra.mxu0 0.0
        %3223 = vmatprep.subr.mxu0 0.0
        %3224 = vmatpush1.msra.mxu0 0.0
        %3225 = vmatprep.subr.mxu0 0.0
        %3226 = vmatpush1.msra.mxu0 0.0
        %3227 = vmatprep.subr.mxu0 0.0
        %3228 = vmatpush1.msra.mxu0 0.0
        %3229 = vmatprep.subr.mxu0 0.0
        %3230 = vmatpush1.msra.mxu0 0.0
        %3231 = vmatprep.subr.mxu0 0.0
        %3232 = vmatpush1.msra.mxu0 0.0
        %3233 = vmatprep.subr.mxu0 0.0
        %3234 = vmatpush1.msra.mxu0 0.0
        %3235 = vmatprep.subr.mxu0 0.0
        %3236 = vmatpush1.msra.mxu0 0.0
        %3237 = vmatprep.subr.mxu0 0.0
        %3238 = vmatpush1.msra.mxu0 0.0
        %3239 = vmatprep.subr.mxu0 0.0
        %3240 = vmatpush1.msra.mxu0 0.0
        %3241 = vmatprep.subr.mxu0 0.0
        %3242 = vmatpush1.msra.mxu0 0.0
        %3243 = vmatprep.subr.mxu0 0.0
        %3244 = vmatpush1.msra.mxu0 0.0
        %3245 = vmatprep.subr.mxu0 0.0
        %3246 = vmatpush1.msra.mxu0 0.0
        %3247 = vmatprep.subr.mxu0 0.0
        %3248 = vmatpush1.msra.mxu0 0.0
        %3249 = vmatprep.subr.mxu0 0.0
        %3250 = vmatpush1.msra.mxu0 0.0
        %3251 = vmatprep.subr.mxu0 0.0
        %3252 = vmatpush1.msra.mxu0 0.0
        %3253 = vmatprep.subr.mxu0 0.0
        %3254 = vmatpush1.msra.mxu0 0.0
        %3255 = vmatprep.subr.mxu0 0.0
        %3256 = vmatpush1.msra.mxu0 0.0
        %3257 = vmatprep.subr.mxu0 0.0
        %3258 = vmatpush1.msra.mxu0 0.0
        %3259 = vmatprep.subr.mxu0 0.0
        %3260 = vmatpush1.msra.mxu0 0.0
        %3261 = vmatprep.subr.mxu0 0.0
        %3262 = vmatpush1.msra.mxu0 0.0
        %3263 = vmatprep.subr.mxu0 0.0
        %3264 = vmatpush1.msra.mxu0 0.0
        %3265 = vmatprep.subr.mxu0 0.0
        %3266 = vmatpush1.msra.mxu0 0.0
        %3267 = vmatprep.subr.mxu0 0.0
        %3268 = vmatpush1.msra.mxu0 0.0
        %3269 = vmatprep.subr.mxu0 0.0
        %3270 = vmatpush1.msra.mxu0 0.0
        %3271 = vmatprep.subr.mxu0 0.0
        %3272 = vmatpush1.msra.mxu0 0.0
        %3273 = vmatprep.subr.mxu0 0.0
        %3274 = vmatpush1.msra.mxu0 0.0
        %3275 = vmatprep.subr.mxu0 0.0
        %3276 = vmatpush1.msra.mxu0 0.0
        %3277 = vmatprep.subr.mxu0 0.0
        %3278 = vmatpush1.msra.mxu0 0.0
        %3279 = vmatprep.mubr.f32.mxu0 0.0
        %3280 = vmatmul.mubr.f32.gmra.mrb[0].mxu0 %v1623
        %v3281 = vpop.f32.mrb[0].mxu0
        %v3282 = vadd.f32 0.0, %v3281
        %v3283 = vpop.f32.mrb[0].mxu0
        %v3284 = vadd.f32 0.0, %v3283
        %3285 = vdwg.mxu0
        %v3286 = vadd.f32 %v3207, %v3282
        %v3287 = vadd.f32 %v3208, %v3284
        %v3288 = vadd.f32 %v3286, %v1708
        %v3289 = vadd.f32 %v3287, %v1708
        %v3290 = vxor.u32 %v3288, 2147483648
        %v3291 = vxor.u32 %v3289, 2147483648
        %v3292 = vmul.f32 %v3290, 1.442695
        %v3293 = vpow.pop %v3292
        %v3294 = vmul.f32 %v3291, 1.442695
        %v3295 = vpow.pop %v3294
        %v3296 = vadd.f32 %v3293, 1.0
        %v3297 = vadd.f32 %v3295, 1.0
        %v3298 = vrcp.pop %v3296
        %v3299 = vmul.f32 1.0, %v3298
        %v3300 = vrcp.pop %v3297
        %v3301 = vmul.f32 1.0, %v3300
        %v3302 = vmul.f32 %v3288, %v3299
        %v3303 = vmul.f32 %v3289, %v3301
        %v3304 = vadd.f32 %v3302, %v847
        %v3305 = vadd.f32 %v3303, %v848
        %3306 = vrot.lane.b32.xlu0 %v3304, 17
        %v3307 = vpop.permute.xlu0 %3306
        %3308 = vrot.lane.b32.xlu0 %v3305, 17
        %v3309 = vpop.permute.xlu0 %3308
        %v3310 = vsel %vm853, %v3307, %v3309
        %v3311 = vsel %vm853, %v3309, %v3307
        %v3312 = vsel %vm858, %v3311, 0.0
        %v3313 = vsel %vm859, %v3310, 0.0
        %3314 = vrot.lane.b32.xlu0 %v3304, 16
        %v3315 = vpop.permute.xlu0 %3314
        %3316 = vrot.lane.b32.xlu0 %v3305, 16
        %v3317 = vpop.permute.xlu0 %3316
        %v3318 = vsel %vm866, %v3315, %v3317
        %v3319 = vsel %vm866, %v3317, %v3315
        %v3320 = vsel %vm871, %v3319, 0.0
        %v3321 = vsel %vm872, %v3318, 0.0
        %3322 = vrot.lane.b32.xlu0 %v3304, 15
        %v3323 = vpop.permute.xlu0 %3322
        %3324 = vrot.lane.b32.xlu0 %v3305, 15
        %v3325 = vpop.permute.xlu0 %3324
        %v3326 = vsel %vm879, %v3323, %v3325
        %v3327 = vsel %vm879, %v3325, %v3323
        %v3328 = vsel %vm884, %v3327, 0.0
        %v3329 = vsel %vm885, %v3326, 0.0
        %3330 = vrot.lane.b32.xlu0 %v3304, 1
        %v3331 = vpop.permute.xlu0 %3330
        %3332 = vrot.lane.b32.xlu0 %v3305, 1
        %v3333 = vpop.permute.xlu0 %3332
        %v3334 = vsel %vm892, %v3331, %v3333
        %v3335 = vsel %vm892, %v3333, %v3331
        %v3336 = vsel %vm897, %v3335, 0.0
        %v3337 = vsel %vm898, %v3334, 0.0
        %3338 = vrot.lane.b32.xlu0 %v3304, 127
        %v3339 = vpop.permute.xlu0 %3338
        %3340 = vrot.lane.b32.xlu0 %v3305, 127
        %v3341 = vpop.permute.xlu0 %3340
        %v3342 = vsel %vm905, %v3339, %v3341
        %v3343 = vsel %vm905, %v3341, %v3339
        %v3344 = vsel %vm910, %v3342, 0.0
        %v3345 = vsel %vm911, %v3343, 0.0
        %3346 = vrot.lane.b32.xlu0 %v3304, 113
        %v3347 = vpop.permute.xlu0 %3346
        %3348 = vrot.lane.b32.xlu0 %v3305, 113
        %v3349 = vpop.permute.xlu0 %3348
        %v3350 = vsel %vm918, %v3347, %v3349
        %v3351 = vsel %vm918, %v3349, %v3347
        %v3352 = vsel %vm923, %v3350, 0.0
        %v3353 = vsel %vm924, %v3351, 0.0
        %3354 = vrot.lane.b32.xlu0 %v3304, 112
        %v3355 = vpop.permute.xlu0 %3354
        %3356 = vrot.lane.b32.xlu0 %v3305, 112
        %v3357 = vpop.permute.xlu0 %3356
        %v3358 = vsel %vm931, %v3355, %v3357
        %v3359 = vsel %vm931, %v3357, %v3355
        %v3360 = vsel %vm936, %v3358, 0.0
        %v3361 = vsel %vm937, %v3359, 0.0
        %3362 = vrot.lane.b32.xlu0 %v3304, 111
        %v3363 = vpop.permute.xlu0 %3362
        %3364 = vrot.lane.b32.xlu0 %v3305, 111
        %v3365 = vpop.permute.xlu0 %3364
        %v3366 = vsel %vm944, %v3363, %v3365
        %v3367 = vsel %vm944, %v3365, %v3363
        %v3368 = vsel %vm949, %v3366, 0.0
        %v3369 = vsel %vm950, %v3367, 0.0
        %v3371 = vsel %vm658, %v3320, 0
        %v3374 = vsel %vm658, %v3321, 0
        %3376 = vmatprep.subr.mxu0 %v3374
        %3377 = vmatpush1.msra.mxu0 %v3371
        %3378 = vmatprep.subr.mxu0 0.0
        %3379 = vmatpush1.msra.mxu0 0.0
        %3380 = vmatprep.subr.mxu0 0.0
        %3381 = vmatpush1.msra.mxu0 0.0
        %3382 = vmatprep.subr.mxu0 0.0
        %3383 = vmatpush1.msra.mxu0 0.0
        %3384 = vmatprep.subr.mxu0 0.0
        %3385 = vmatpush1.msra.mxu0 0.0
        %3386 = vmatprep.subr.mxu0 0.0
        %3387 = vmatpush1.msra.mxu0 0.0
        %3388 = vmatprep.subr.mxu0 0.0
        %3389 = vmatpush1.msra.mxu0 0.0
        %3390 = vmatprep.subr.mxu0 0.0
        %3391 = vmatpush1.msra.mxu0 0.0
        %3392 = vmatprep.subr.mxu0 0.0
        %3393 = vmatpush1.msra.mxu0 0.0
        %3394 = vmatprep.subr.mxu0 0.0
        %3395 = vmatpush1.msra.mxu0 0.0
        %3396 = vmatprep.subr.mxu0 0.0
        %3397 = vmatpush1.msra.mxu0 0.0
        %3398 = vmatprep.subr.mxu0 0.0
        %3399 = vmatpush1.msra.mxu0 0.0
        %3400 = vmatprep.subr.mxu0 0.0
        %3401 = vmatpush1.msra.mxu0 0.0
        %3402 = vmatprep.subr.mxu0 0.0
        %3403 = vmatpush1.msra.mxu0 0.0
        %3404 = vmatprep.subr.mxu0 0.0
        %3405 = vmatpush1.msra.mxu0 0.0
        %3406 = vmatprep.subr.mxu0 0.0
        %3407 = vmatpush1.msra.mxu0 0.0
        %3408 = vmatprep.subr.mxu0 0.0
        %3409 = vmatpush1.msra.mxu0 0.0
        %3410 = vmatprep.subr.mxu0 0.0
        %3411 = vmatpush1.msra.mxu0 0.0
        %3412 = vmatprep.subr.mxu0 0.0
        %3413 = vmatpush1.msra.mxu0 0.0
        %3414 = vmatprep.subr.mxu0 0.0
        %3415 = vmatpush1.msra.mxu0 0.0
        %3416 = vmatprep.subr.mxu0 0.0
        %3417 = vmatpush1.msra.mxu0 0.0
        %3418 = vmatprep.subr.mxu0 0.0
        %3419 = vmatpush1.msra.mxu0 0.0
        %3420 = vmatprep.subr.mxu0 0.0
        %3421 = vmatpush1.msra.mxu0 0.0
        %3422 = vmatprep.subr.mxu0 0.0
        %3423 = vmatpush1.msra.mxu0 0.0
        %3424 = vmatprep.subr.mxu0 0.0
        %3425 = vmatpush1.msra.mxu0 0.0
        %3426 = vmatprep.subr.mxu0 0.0
        %3427 = vmatpush1.msra.mxu0 0.0
        %3428 = vmatprep.subr.mxu0 0.0
        %3429 = vmatpush1.msra.mxu0 0.0
        %3430 = vmatprep.subr.mxu0 0.0
        %3431 = vmatpush1.msra.mxu0 0.0
        %3432 = vmatprep.subr.mxu0 0.0
        %3433 = vmatpush1.msra.mxu0 0.0
        %3434 = vmatprep.subr.mxu0 0.0
        %3435 = vmatpush1.msra.mxu0 0.0
        %3436 = vmatprep.subr.mxu0 0.0
        %3437 = vmatpush1.msra.mxu0 0.0
        %3438 = vmatprep.subr.mxu0 0.0
        %3439 = vmatpush1.msra.mxu0 0.0
        %3440 = vmatprep.mubr.f32.mxu0 0.0
        %3441 = vmatmul.mubr.f32.gmra.mrb[0].mxu0 %v957
        %v3442 = vpop.f32.mrb[0].mxu0
        %v3443 = vadd.f32 0.0, %v3442
        %v3444 = vpop.f32.mrb[0].mxu0
        %v3445 = vadd.f32 0.0, %v3444
        %3446 = vdwg.mxu0
        %v3448 = vsel %vm658, %v3312, 0
        %v3451 = vsel %vm658, %v3313, 0
        %3453 = vmatprep.subr.mxu0 %v3451
        %3454 = vmatpush1.msra.mxu0 %v3448
        %3455 = vmatprep.subr.mxu0 0.0
        %3456 = vmatpush1.msra.mxu0 0.0
        %3457 = vmatprep.subr.mxu0 0.0
        %3458 = vmatpush1.msra.mxu0 0.0
        %3459 = vmatprep.subr.mxu0 0.0
        %3460 = vmatpush1.msra.mxu0 0.0
        %3461 = vmatprep.subr.mxu0 0.0
        %3462 = vmatpush1.msra.mxu0 0.0
        %3463 = vmatprep.subr.mxu0 0.0
        %3464 = vmatpush1.msra.mxu0 0.0
        %3465 = vmatprep.subr.mxu0 0.0
        %3466 = vmatpush1.msra.mxu0 0.0
        %3467 = vmatprep.subr.mxu0 0.0
        %3468 = vmatpush1.msra.mxu0 0.0
        %3469 = vmatprep.subr.mxu0 0.0
        %3470 = vmatpush1.msra.mxu0 0.0
        %3471 = vmatprep.subr.mxu0 0.0
        %3472 = vmatpush1.msra.mxu0 0.0
        %3473 = vmatprep.subr.mxu0 0.0
        %3474 = vmatpush1.msra.mxu0 0.0
        %3475 = vmatprep.subr.mxu0 0.0
        %3476 = vmatpush1.msra.mxu0 0.0
        %3477 = vmatprep.subr.mxu0 0.0
        %3478 = vmatpush1.msra.mxu0 0.0
        %3479 = vmatprep.subr.mxu0 0.0
        %3480 = vmatpush1.msra.mxu0 0.0
        %3481 = vmatprep.subr.mxu0 0.0
        %3482 = vmatpush1.msra.mxu0 0.0
        %3483 = vmatprep.subr.mxu0 0.0
        %3484 = vmatpush1.msra.mxu0 0.0
        %3485 = vmatprep.subr.mxu0 0.0
        %3486 = vmatpush1.msra.mxu0 0.0
        %3487 = vmatprep.subr.mxu0 0.0
        %3488 = vmatpush1.msra.mxu0 0.0
        %3489 = vmatprep.subr.mxu0 0.0
        %3490 = vmatpush1.msra.mxu0 0.0
        %3491 = vmatprep.subr.mxu0 0.0
        %3492 = vmatpush1.msra.mxu0 0.0
        %3493 = vmatprep.subr.mxu0 0.0
        %3494 = vmatpush1.msra.mxu0 0.0
        %3495 = vmatprep.subr.mxu0 0.0
        %3496 = vmatpush1.msra.mxu0 0.0
        %3497 = vmatprep.subr.mxu0 0.0
        %3498 = vmatpush1.msra.mxu0 0.0
        %3499 = vmatprep.subr.mxu0 0.0
        %3500 = vmatpush1.msra.mxu0 0.0
        %3501 = vmatprep.subr.mxu0 0.0
        %3502 = vmatpush1.msra.mxu0 0.0
        %3503 = vmatprep.subr.mxu0 0.0
        %3504 = vmatpush1.msra.mxu0 0.0
        %3505 = vmatprep.subr.mxu0 0.0
        %3506 = vmatpush1.msra.mxu0 0.0
        %3507 = vmatprep.subr.mxu0 0.0
        %3508 = vmatpush1.msra.mxu0 0.0
        %3509 = vmatprep.subr.mxu0 0.0
        %3510 = vmatpush1.msra.mxu0 0.0
        %3511 = vmatprep.subr.mxu0 0.0
        %3512 = vmatpush1.msra.mxu0 0.0
        %3513 = vmatprep.subr.mxu0 0.0
        %3514 = vmatpush1.msra.mxu0 0.0
        %3515 = vmatprep.subr.mxu0 0.0
        %3516 = vmatpush1.msra.mxu0 0.0
        %3517 = vmatprep.mubr.f32.mxu0 0.0
        %3518 = vmatmul.mubr.f32.gmra.mrb[0].mxu0 %v1037
        %v3519 = vpop.f32.mrb[0].mxu0
        %v3520 = vadd.f32 %v3443, %v3519
        %v3521 = vpop.f32.mrb[0].mxu0
        %v3522 = vadd.f32 %v3445, %v3521
        %3523 = vdwg.mxu0
        %v3525 = vsel %vm658, %v3328, 0
        %v3528 = vsel %vm658, %v3329, 0
        %3530 = vmatprep.subr.mxu0 %v3528
        %3531 = vmatpush1.msra.mxu0 %v3525
        %3532 = vmatprep.subr.mxu0 0.0
        %3533 = vmatpush1.msra.mxu0 0.0
        %3534 = vmatprep.subr.mxu0 0.0
        %3535 = vmatpush1.msra.mxu0 0.0
        %3536 = vmatprep.subr.mxu0 0.0
        %3537 = vmatpush1.msra.mxu0 0.0
        %3538 = vmatprep.subr.mxu0 0.0
        %3539 = vmatpush1.msra.mxu0 0.0
        %3540 = vmatprep.subr.mxu0 0.0
        %3541 = vmatpush1.msra.mxu0 0.0
        %3542 = vmatprep.subr.mxu0 0.0
        %3543 = vmatpush1.msra.mxu0 0.0
        %3544 = vmatprep.subr.mxu0 0.0
        %3545 = vmatpush1.msra.mxu0 0.0
        %3546 = vmatprep.subr.mxu0 0.0
        %3547 = vmatpush1.msra.mxu0 0.0
        %3548 = vmatprep.subr.mxu0 0.0
        %3549 = vmatpush1.msra.mxu0 0.0
        %3550 = vmatprep.subr.mxu0 0.0
        %3551 = vmatpush1.msra.mxu0 0.0
        %3552 = vmatprep.subr.mxu0 0.0
        %3553 = vmatpush1.msra.mxu0 0.0
        %3554 = vmatprep.subr.mxu0 0.0
        %3555 = vmatpush1.msra.mxu0 0.0
        %3556 = vmatprep.subr.mxu0 0.0
        %3557 = vmatpush1.msra.mxu0 0.0
        %3558 = vmatprep.subr.mxu0 0.0
        %3559 = vmatpush1.msra.mxu0 0.0
        %3560 = vmatprep.subr.mxu0 0.0
        %3561 = vmatpush1.msra.mxu0 0.0
        %3562 = vmatprep.subr.mxu0 0.0
        %3563 = vmatpush1.msra.mxu0 0.0
        %3564 = vmatprep.subr.mxu0 0.0
        %3565 = vmatpush1.msra.mxu0 0.0
        %3566 = vmatprep.subr.mxu0 0.0
        %3567 = vmatpush1.msra.mxu0 0.0
        %3568 = vmatprep.subr.mxu0 0.0
        %3569 = vmatpush1.msra.mxu0 0.0
        %3570 = vmatprep.subr.mxu0 0.0
        %3571 = vmatpush1.msra.mxu0 0.0
        %3572 = vmatprep.subr.mxu0 0.0
        %3573 = vmatpush1.msra.mxu0 0.0
        %3574 = vmatprep.subr.mxu0 0.0
        %3575 = vmatpush1.msra.mxu0 0.0
        %3576 = vmatprep.subr.mxu0 0.0
        %3577 = vmatpush1.msra.mxu0 0.0
        %3578 = vmatprep.subr.mxu0 0.0
        %3579 = vmatpush1.msra.mxu0 0.0
        %3580 = vmatprep.subr.mxu0 0.0
        %3581 = vmatpush1.msra.mxu0 0.0
        %3582 = vmatprep.subr.mxu0 0.0
        %3583 = vmatpush1.msra.mxu0 0.0
        %3584 = vmatprep.subr.mxu0 0.0
        %3585 = vmatpush1.msra.mxu0 0.0
        %3586 = vmatprep.subr.mxu0 0.0
        %3587 = vmatpush1.msra.mxu0 0.0
        %3588 = vmatprep.subr.mxu0 0.0
        %3589 = vmatpush1.msra.mxu0 0.0
        %3590 = vmatprep.subr.mxu0 0.0
        %3591 = vmatpush1.msra.mxu0 0.0
        %3592 = vmatprep.subr.mxu0 0.0
        %3593 = vmatpush1.msra.mxu0 0.0
        %3594 = vmatprep.mubr.f32.mxu0 0.0
        %3595 = vmatmul.mubr.f32.gmra.mrb[0].mxu0 %v1119
        %v3596 = vpop.f32.mrb[0].mxu0
        %v3597 = vadd.f32 0.0, %v3596
        %v3598 = vpop.f32.mrb[0].mxu0
        %v3599 = vadd.f32 0.0, %v3598
        %3600 = vdwg.mxu0
        %v3601 = vadd.f32 %v3520, %v3597
        %v3602 = vadd.f32 %v3522, %v3599
        %v3604 = vsel %vm658, %v3336, 0
        %v3607 = vsel %vm658, %v3337, 0
        %3609 = vmatprep.subr.mxu0 %v3607
        %3610 = vmatpush1.msra.mxu0 %v3604
        %3611 = vmatprep.subr.mxu0 0.0
        %3612 = vmatpush1.msra.mxu0 0.0
        %3613 = vmatprep.subr.mxu0 0.0
        %3614 = vmatpush1.msra.mxu0 0.0
        %3615 = vmatprep.subr.mxu0 0.0
        %3616 = vmatpush1.msra.mxu0 0.0
        %3617 = vmatprep.subr.mxu0 0.0
        %3618 = vmatpush1.msra.mxu0 0.0
        %3619 = vmatprep.subr.mxu0 0.0
        %3620 = vmatpush1.msra.mxu0 0.0
        %3621 = vmatprep.subr.mxu0 0.0
        %3622 = vmatpush1.msra.mxu0 0.0
        %3623 = vmatprep.subr.mxu0 0.0
        %3624 = vmatpush1.msra.mxu0 0.0
        %3625 = vmatprep.subr.mxu0 0.0
        %3626 = vmatpush1.msra.mxu0 0.0
        %3627 = vmatprep.subr.mxu0 0.0
        %3628 = vmatpush1.msra.mxu0 0.0
        %3629 = vmatprep.subr.mxu0 0.0
        %3630 = vmatpush1.msra.mxu0 0.0
        %3631 = vmatprep.subr.mxu0 0.0
        %3632 = vmatpush1.msra.mxu0 0.0
        %3633 = vmatprep.subr.mxu0 0.0
        %3634 = vmatpush1.msra.mxu0 0.0
        %3635 = vmatprep.subr.mxu0 0.0
        %3636 = vmatpush1.msra.mxu0 0.0
        %3637 = vmatprep.subr.mxu0 0.0
        %3638 = vmatpush1.msra.mxu0 0.0
        %3639 = vmatprep.subr.mxu0 0.0
        %3640 = vmatpush1.msra.mxu0 0.0
        %3641 = vmatprep.subr.mxu0 0.0
        %3642 = vmatpush1.msra.mxu0 0.0
        %3643 = vmatprep.subr.mxu0 0.0
        %3644 = vmatpush1.msra.mxu0 0.0
        %3645 = vmatprep.subr.mxu0 0.0
        %3646 = vmatpush1.msra.mxu0 0.0
        %3647 = vmatprep.subr.mxu0 0.0
        %3648 = vmatpush1.msra.mxu0 0.0
        %3649 = vmatprep.subr.mxu0 0.0
        %3650 = vmatpush1.msra.mxu0 0.0
        %3651 = vmatprep.subr.mxu0 0.0
        %3652 = vmatpush1.msra.mxu0 0.0
        %3653 = vmatprep.subr.mxu0 0.0
        %3654 = vmatpush1.msra.mxu0 0.0
        %3655 = vmatprep.subr.mxu0 0.0
        %3656 = vmatpush1.msra.mxu0 0.0
        %3657 = vmatprep.subr.mxu0 0.0
        %3658 = vmatpush1.msra.mxu0 0.0
        %3659 = vmatprep.subr.mxu0 0.0
        %3660 = vmatpush1.msra.mxu0 0.0
        %3661 = vmatprep.subr.mxu0 0.0
        %3662 = vmatpush1.msra.mxu0 0.0
        %3663 = vmatprep.subr.mxu0 0.0
        %3664 = vmatpush1.msra.mxu0 0.0
        %3665 = vmatprep.subr.mxu0 0.0
        %3666 = vmatpush1.msra.mxu0 0.0
        %3667 = vmatprep.subr.mxu0 0.0
        %3668 = vmatpush1.msra.mxu0 0.0
        %3669 = vmatprep.subr.mxu0 0.0
        %3670 = vmatpush1.msra.mxu0 0.0
        %3671 = vmatprep.subr.mxu0 0.0
        %3672 = vmatpush1.msra.mxu0 0.0
        %3673 = vmatprep.mubr.f32.mxu0 0.0
        %3674 = vmatmul.mubr.f32.gmra.mrb[0].mxu0 %v1203
        %v3675 = vpop.f32.mrb[0].mxu0
        %v3676 = vadd.f32 0.0, %v3675
        %v3677 = vpop.f32.mrb[0].mxu0
        %v3678 = vadd.f32 0.0, %v3677
        %3679 = vdwg.mxu0
        %v3680 = vadd.f32 %v3601, %v3676
        %v3681 = vadd.f32 %v3602, %v3678
        %v3683 = vsel %vm658, %v3304, 0
        %v3686 = vsel %vm658, %v3305, 0
        %3688 = vmatprep.subr.mxu0 %v3686
        %3689 = vmatpush1.msra.mxu0 %v3683
        %3690 = vmatprep.subr.mxu0 0.0
        %3691 = vmatpush1.msra.mxu0 0.0
        %3692 = vmatprep.subr.mxu0 0.0
        %3693 = vmatpush1.msra.mxu0 0.0
        %3694 = vmatprep.subr.mxu0 0.0
        %3695 = vmatpush1.msra.mxu0 0.0
        %3696 = vmatprep.subr.mxu0 0.0
        %3697 = vmatpush1.msra.mxu0 0.0
        %3698 = vmatprep.subr.mxu0 0.0
        %3699 = vmatpush1.msra.mxu0 0.0
        %3700 = vmatprep.subr.mxu0 0.0
        %3701 = vmatpush1.msra.mxu0 0.0
        %3702 = vmatprep.subr.mxu0 0.0
        %3703 = vmatpush1.msra.mxu0 0.0
        %3704 = vmatprep.subr.mxu0 0.0
        %3705 = vmatpush1.msra.mxu0 0.0
        %3706 = vmatprep.subr.mxu0 0.0
        %3707 = vmatpush1.msra.mxu0 0.0
        %3708 = vmatprep.subr.mxu0 0.0
        %3709 = vmatpush1.msra.mxu0 0.0
        %3710 = vmatprep.subr.mxu0 0.0
        %3711 = vmatpush1.msra.mxu0 0.0
        %3712 = vmatprep.subr.mxu0 0.0
        %3713 = vmatpush1.msra.mxu0 0.0
        %3714 = vmatprep.subr.mxu0 0.0
        %3715 = vmatpush1.msra.mxu0 0.0
        %3716 = vmatprep.subr.mxu0 0.0
        %3717 = vmatpush1.msra.mxu0 0.0
        %3718 = vmatprep.subr.mxu0 0.0
        %3719 = vmatpush1.msra.mxu0 0.0
        %3720 = vmatprep.subr.mxu0 0.0
        %3721 = vmatpush1.msra.mxu0 0.0
        %3722 = vmatprep.subr.mxu0 0.0
        %3723 = vmatpush1.msra.mxu0 0.0
        %3724 = vmatprep.subr.mxu0 0.0
        %3725 = vmatpush1.msra.mxu0 0.0
        %3726 = vmatprep.subr.mxu0 0.0
        %3727 = vmatpush1.msra.mxu0 0.0
        %3728 = vmatprep.subr.mxu0 0.0
        %3729 = vmatpush1.msra.mxu0 0.0
        %3730 = vmatprep.subr.mxu0 0.0
        %3731 = vmatpush1.msra.mxu0 0.0
        %3732 = vmatprep.subr.mxu0 0.0
        %3733 = vmatpush1.msra.mxu0 0.0
        %3734 = vmatprep.subr.mxu0 0.0
        %3735 = vmatpush1.msra.mxu0 0.0
        %3736 = vmatprep.subr.mxu0 0.0
        %3737 = vmatpush1.msra.mxu0 0.0
        %3738 = vmatprep.subr.mxu0 0.0
        %3739 = vmatpush1.msra.mxu0 0.0
        %3740 = vmatprep.subr.mxu0 0.0
        %3741 = vmatpush1.msra.mxu0 0.0
        %3742 = vmatprep.subr.mxu0 0.0
        %3743 = vmatpush1.msra.mxu0 0.0
        %3744 = vmatprep.subr.mxu0 0.0
        %3745 = vmatpush1.msra.mxu0 0.0
        %3746 = vmatprep.subr.mxu0 0.0
        %3747 = vmatpush1.msra.mxu0 0.0
        %3748 = vmatprep.subr.mxu0 0.0
        %3749 = vmatpush1.msra.mxu0 0.0
        %3750 = vmatprep.subr.mxu0 0.0
        %3751 = vmatpush1.msra.mxu0 0.0
        %3752 = vmatprep.mubr.f32.mxu0 0.0
        %3753 = vmatmul.mubr.f32.gmra.mrb[0].mxu0 %v1287
        %v3754 = vpop.f32.mrb[0].mxu0
        %v3755 = vadd.f32 0.0, %v3754
        %v3756 = vpop.f32.mrb[0].mxu0
        %v3757 = vadd.f32 0.0, %v3756
        %3758 = vdwg.mxu0
        %v3759 = vadd.f32 %v3680, %v3755
        %v3760 = vadd.f32 %v3681, %v3757
        %v3762 = vsel %vm658, %v3344, 0
        %v3765 = vsel %vm658, %v3345, 0
        %3767 = vmatprep.subr.mxu0 %v3765
        %3768 = vmatpush1.msra.mxu0 %v3762
        %3769 = vmatprep.subr.mxu0 0.0
        %3770 = vmatpush1.msra.mxu0 0.0
        %3771 = vmatprep.subr.mxu0 0.0
        %3772 = vmatpush1.msra.mxu0 0.0
        %3773 = vmatprep.subr.mxu0 0.0
        %3774 = vmatpush1.msra.mxu0 0.0
        %3775 = vmatprep.subr.mxu0 0.0
        %3776 = vmatpush1.msra.mxu0 0.0
        %3777 = vmatprep.subr.mxu0 0.0
        %3778 = vmatpush1.msra.mxu0 0.0
        %3779 = vmatprep.subr.mxu0 0.0
        %3780 = vmatpush1.msra.mxu0 0.0
        %3781 = vmatprep.subr.mxu0 0.0
        %3782 = vmatpush1.msra.mxu0 0.0
        %3783 = vmatprep.subr.mxu0 0.0
        %3784 = vmatpush1.msra.mxu0 0.0
        %3785 = vmatprep.subr.mxu0 0.0
        %3786 = vmatpush1.msra.mxu0 0.0
        %3787 = vmatprep.subr.mxu0 0.0
        %3788 = vmatpush1.msra.mxu0 0.0
        %3789 = vmatprep.subr.mxu0 0.0
        %3790 = vmatpush1.msra.mxu0 0.0
        %3791 = vmatprep.subr.mxu0 0.0
        %3792 = vmatpush1.msra.mxu0 0.0
        %3793 = vmatprep.subr.mxu0 0.0
        %3794 = vmatpush1.msra.mxu0 0.0
        %3795 = vmatprep.subr.mxu0 0.0
        %3796 = vmatpush1.msra.mxu0 0.0
        %3797 = vmatprep.subr.mxu0 0.0
        %3798 = vmatpush1.msra.mxu0 0.0
        %3799 = vmatprep.subr.mxu0 0.0
        %3800 = vmatpush1.msra.mxu0 0.0
        %3801 = vmatprep.subr.mxu0 0.0
        %3802 = vmatpush1.msra.mxu0 0.0
        %3803 = vmatprep.subr.mxu0 0.0
        %3804 = vmatpush1.msra.mxu0 0.0
        %3805 = vmatprep.subr.mxu0 0.0
        %3806 = vmatpush1.msra.mxu0 0.0
        %3807 = vmatprep.subr.mxu0 0.0
        %3808 = vmatpush1.msra.mxu0 0.0
        %3809 = vmatprep.subr.mxu0 0.0
        %3810 = vmatpush1.msra.mxu0 0.0
        %3811 = vmatprep.subr.mxu0 0.0
        %3812 = vmatpush1.msra.mxu0 0.0
        %3813 = vmatprep.subr.mxu0 0.0
        %3814 = vmatpush1.msra.mxu0 0.0
        %3815 = vmatprep.subr.mxu0 0.0
        %3816 = vmatpush1.msra.mxu0 0.0
        %3817 = vmatprep.subr.mxu0 0.0
        %3818 = vmatpush1.msra.mxu0 0.0
        %3819 = vmatprep.subr.mxu0 0.0
        %3820 = vmatpush1.msra.mxu0 0.0
        %3821 = vmatprep.subr.mxu0 0.0
        %3822 = vmatpush1.msra.mxu0 0.0
        %3823 = vmatprep.subr.mxu0 0.0
        %3824 = vmatpush1.msra.mxu0 0.0
        %3825 = vmatprep.subr.mxu0 0.0
        %3826 = vmatpush1.msra.mxu0 0.0
        %3827 = vmatprep.subr.mxu0 0.0
        %3828 = vmatpush1.msra.mxu0 0.0
        %3829 = vmatprep.subr.mxu0 0.0
        %3830 = vmatpush1.msra.mxu0 0.0
        %3831 = vmatprep.mubr.f32.mxu0 0.0
        %3832 = vmatmul.mubr.f32.gmra.mrb[0].mxu0 %v1371
        %v3833 = vpop.f32.mrb[0].mxu0
        %v3834 = vadd.f32 0.0, %v3833
        %v3835 = vpop.f32.mrb[0].mxu0
        %v3836 = vadd.f32 0.0, %v3835
        %3837 = vdwg.mxu0
        %v3838 = vadd.f32 %v3759, %v3834
        %v3839 = vadd.f32 %v3760, %v3836
        %v3841 = vsel %vm658, %v3352, 0
        %v3844 = vsel %vm658, %v3353, 0
        %3846 = vmatprep.subr.mxu0 %v3844
        %3847 = vmatpush1.msra.mxu0 %v3841
        %3848 = vmatprep.subr.mxu0 0.0
        %3849 = vmatpush1.msra.mxu0 0.0
        %3850 = vmatprep.subr.mxu0 0.0
        %3851 = vmatpush1.msra.mxu0 0.0
        %3852 = vmatprep.subr.mxu0 0.0
        %3853 = vmatpush1.msra.mxu0 0.0
        %3854 = vmatprep.subr.mxu0 0.0
        %3855 = vmatpush1.msra.mxu0 0.0
        %3856 = vmatprep.subr.mxu0 0.0
        %3857 = vmatpush1.msra.mxu0 0.0
        %3858 = vmatprep.subr.mxu0 0.0
        %3859 = vmatpush1.msra.mxu0 0.0
        %3860 = vmatprep.subr.mxu0 0.0
        %3861 = vmatpush1.msra.mxu0 0.0
        %3862 = vmatprep.subr.mxu0 0.0
        %3863 = vmatpush1.msra.mxu0 0.0
        %3864 = vmatprep.subr.mxu0 0.0
        %3865 = vmatpush1.msra.mxu0 0.0
        %3866 = vmatprep.subr.mxu0 0.0
        %3867 = vmatpush1.msra.mxu0 0.0
        %3868 = vmatprep.subr.mxu0 0.0
        %3869 = vmatpush1.msra.mxu0 0.0
        %3870 = vmatprep.subr.mxu0 0.0
        %3871 = vmatpush1.msra.mxu0 0.0
        %3872 = vmatprep.subr.mxu0 0.0
        %3873 = vmatpush1.msra.mxu0 0.0
        %3874 = vmatprep.subr.mxu0 0.0
        %3875 = vmatpush1.msra.mxu0 0.0
        %3876 = vmatprep.subr.mxu0 0.0
        %3877 = vmatpush1.msra.mxu0 0.0
        %3878 = vmatprep.subr.mxu0 0.0
        %3879 = vmatpush1.msra.mxu0 0.0
        %3880 = vmatprep.subr.mxu0 0.0
        %3881 = vmatpush1.msra.mxu0 0.0
        %3882 = vmatprep.subr.mxu0 0.0
        %3883 = vmatpush1.msra.mxu0 0.0
        %3884 = vmatprep.subr.mxu0 0.0
        %3885 = vmatpush1.msra.mxu0 0.0
        %3886 = vmatprep.subr.mxu0 0.0
        %3887 = vmatpush1.msra.mxu0 0.0
        %3888 = vmatprep.subr.mxu0 0.0
        %3889 = vmatpush1.msra.mxu0 0.0
        %3890 = vmatprep.subr.mxu0 0.0
        %3891 = vmatpush1.msra.mxu0 0.0
        %3892 = vmatprep.subr.mxu0 0.0
        %3893 = vmatpush1.msra.mxu0 0.0
        %3894 = vmatprep.subr.mxu0 0.0
        %3895 = vmatpush1.msra.mxu0 0.0
        %3896 = vmatprep.subr.mxu0 0.0
        %3897 = vmatpush1.msra.mxu0 0.0
        %3898 = vmatprep.subr.mxu0 0.0
        %3899 = vmatpush1.msra.mxu0 0.0
        %3900 = vmatprep.subr.mxu0 0.0
        %3901 = vmatpush1.msra.mxu0 0.0
        %3902 = vmatprep.subr.mxu0 0.0
        %3903 = vmatpush1.msra.mxu0 0.0
        %3904 = vmatprep.subr.mxu0 0.0
        %3905 = vmatpush1.msra.mxu0 0.0
        %3906 = vmatprep.subr.mxu0 0.0
        %3907 = vmatpush1.msra.mxu0 0.0
        %3908 = vmatprep.subr.mxu0 0.0
        %3909 = vmatpush1.msra.mxu0 0.0
        %3910 = vmatprep.mubr.f32.mxu0 0.0
        %3911 = vmatmul.mubr.f32.gmra.mrb[0].mxu0 %v1455
        %v3912 = vpop.f32.mrb[0].mxu0
        %v3913 = vadd.f32 0.0, %v3912
        %v3914 = vpop.f32.mrb[0].mxu0
        %v3915 = vadd.f32 0.0, %v3914
        %3916 = vdwg.mxu0
        %v3917 = vadd.f32 %v3838, %v3913
        %v3918 = vadd.f32 %v3839, %v3915
        %v3920 = vsel %vm658, %v3360, 0
        %v3923 = vsel %vm658, %v3361, 0
        %3925 = vmatprep.subr.mxu0 %v3923
        %3926 = vmatpush1.msra.mxu0 %v3920
        %3927 = vmatprep.subr.mxu0 0.0
        %3928 = vmatpush1.msra.mxu0 0.0
        %3929 = vmatprep.subr.mxu0 0.0
        %3930 = vmatpush1.msra.mxu0 0.0
        %3931 = vmatprep.subr.mxu0 0.0
        %3932 = vmatpush1.msra.mxu0 0.0
        %3933 = vmatprep.subr.mxu0 0.0
        %3934 = vmatpush1.msra.mxu0 0.0
        %3935 = vmatprep.subr.mxu0 0.0
        %3936 = vmatpush1.msra.mxu0 0.0
        %3937 = vmatprep.subr.mxu0 0.0
        %3938 = vmatpush1.msra.mxu0 0.0
        %3939 = vmatprep.subr.mxu0 0.0
        %3940 = vmatpush1.msra.mxu0 0.0
        %3941 = vmatprep.subr.mxu0 0.0
        %3942 = vmatpush1.msra.mxu0 0.0
        %3943 = vmatprep.subr.mxu0 0.0
        %3944 = vmatpush1.msra.mxu0 0.0
        %3945 = vmatprep.subr.mxu0 0.0
        %3946 = vmatpush1.msra.mxu0 0.0
        %3947 = vmatprep.subr.mxu0 0.0
        %3948 = vmatpush1.msra.mxu0 0.0
        %3949 = vmatprep.subr.mxu0 0.0
        %3950 = vmatpush1.msra.mxu0 0.0
        %3951 = vmatprep.subr.mxu0 0.0
        %3952 = vmatpush1.msra.mxu0 0.0
        %3953 = vmatprep.subr.mxu0 0.0
        %3954 = vmatpush1.msra.mxu0 0.0
        %3955 = vmatprep.subr.mxu0 0.0
        %3956 = vmatpush1.msra.mxu0 0.0
        %3957 = vmatprep.subr.mxu0 0.0
        %3958 = vmatpush1.msra.mxu0 0.0
        %3959 = vmatprep.subr.mxu0 0.0
        %3960 = vmatpush1.msra.mxu0 0.0
        %3961 = vmatprep.subr.mxu0 0.0
        %3962 = vmatpush1.msra.mxu0 0.0
        %3963 = vmatprep.subr.mxu0 0.0
        %3964 = vmatpush1.msra.mxu0 0.0
        %3965 = vmatprep.subr.mxu0 0.0
        %3966 = vmatpush1.msra.mxu0 0.0
        %3967 = vmatprep.subr.mxu0 0.0
        %3968 = vmatpush1.msra.mxu0 0.0
        %3969 = vmatprep.subr.mxu0 0.0
        %3970 = vmatpush1.msra.mxu0 0.0
        %3971 = vmatprep.subr.mxu0 0.0
        %3972 = vmatpush1.msra.mxu0 0.0
        %3973 = vmatprep.subr.mxu0 0.0
        %3974 = vmatpush1.msra.mxu0 0.0
        %3975 = vmatprep.subr.mxu0 0.0
        %3976 = vmatpush1.msra.mxu0 0.0
        %3977 = vmatprep.subr.mxu0 0.0
        %3978 = vmatpush1.msra.mxu0 0.0
        %3979 = vmatprep.subr.mxu0 0.0
        %3980 = vmatpush1.msra.mxu0 0.0
        %3981 = vmatprep.subr.mxu0 0.0
        %3982 = vmatpush1.msra.mxu0 0.0
        %3983 = vmatprep.subr.mxu0 0.0
        %3984 = vmatpush1.msra.mxu0 0.0
        %3985 = vmatprep.subr.mxu0 0.0
        %3986 = vmatpush1.msra.mxu0 0.0
        %3987 = vmatprep.subr.mxu0 0.0
        %3988 = vmatpush1.msra.mxu0 0.0
        %3989 = vmatprep.mubr.f32.mxu0 0.0
        %3990 = vmatmul.mubr.f32.gmra.mrb[0].mxu0 %v1539
        %v3991 = vpop.f32.mrb[0].mxu0
        %v3992 = vadd.f32 0.0, %v3991
        %v3993 = vpop.f32.mrb[0].mxu0
        %v3994 = vadd.f32 0.0, %v3993
        %3995 = vdwg.mxu0
        %v3996 = vadd.f32 %v3917, %v3992
        %v3997 = vadd.f32 %v3918, %v3994
        %v3999 = vsel %vm658, %v3368, 0
        %v4002 = vsel %vm658, %v3369, 0
        %4004 = vmatprep.subr.mxu0 %v4002
        %4005 = vmatpush1.msra.mxu0 %v3999
        %4006 = vmatprep.subr.mxu0 0.0
        %4007 = vmatpush1.msra.mxu0 0.0
        %4008 = vmatprep.subr.mxu0 0.0
        %4009 = vmatpush1.msra.mxu0 0.0
        %4010 = vmatprep.subr.mxu0 0.0
        %4011 = vmatpush1.msra.mxu0 0.0
        %4012 = vmatprep.subr.mxu0 0.0
        %4013 = vmatpush1.msra.mxu0 0.0
        %4014 = vmatprep.subr.mxu0 0.0
        %4015 = vmatpush1.msra.mxu0 0.0
        %4016 = vmatprep.subr.mxu0 0.0
        %4017 = vmatpush1.msra.mxu0 0.0
        %4018 = vmatprep.subr.mxu0 0.0
        %4019 = vmatpush1.msra.mxu0 0.0
        %4020 = vmatprep.subr.mxu0 0.0
        %4021 = vmatpush1.msra.mxu0 0.0
        %4022 = vmatprep.subr.mxu0 0.0
        %4023 = vmatpush1.msra.mxu0 0.0
        %4024 = vmatprep.subr.mxu0 0.0
        %4025 = vmatpush1.msra.mxu0 0.0
        %4026 = vmatprep.subr.mxu0 0.0
        %4027 = vmatpush1.msra.mxu0 0.0
        %4028 = vmatprep.subr.mxu0 0.0
        %4029 = vmatpush1.msra.mxu0 0.0
        %4030 = vmatprep.subr.mxu0 0.0
        %4031 = vmatpush1.msra.mxu0 0.0
        %4032 = vmatprep.subr.mxu0 0.0
        %4033 = vmatpush1.msra.mxu0 0.0
        %4034 = vmatprep.subr.mxu0 0.0
        %4035 = vmatpush1.msra.mxu0 0.0
        %4036 = vmatprep.subr.mxu0 0.0
        %4037 = vmatpush1.msra.mxu0 0.0
        %4038 = vmatprep.subr.mxu0 0.0
        %4039 = vmatpush1.msra.mxu0 0.0
        %4040 = vmatprep.subr.mxu0 0.0
        %4041 = vmatpush1.msra.mxu0 0.0
        %4042 = vmatprep.subr.mxu0 0.0
        %4043 = vmatpush1.msra.mxu0 0.0
        %4044 = vmatprep.subr.mxu0 0.0
        %4045 = vmatpush1.msra.mxu0 0.0
        %4046 = vmatprep.subr.mxu0 0.0
        %4047 = vmatpush1.msra.mxu0 0.0
        %4048 = vmatprep.subr.mxu0 0.0
        %4049 = vmatpush1.msra.mxu0 0.0
        %4050 = vmatprep.subr.mxu0 0.0
        %4051 = vmatpush1.msra.mxu0 0.0
        %4052 = vmatprep.subr.mxu0 0.0
        %4053 = vmatpush1.msra.mxu0 0.0
        %4054 = vmatprep.subr.mxu0 0.0
        %4055 = vmatpush1.msra.mxu0 0.0
        %4056 = vmatprep.subr.mxu0 0.0
        %4057 = vmatpush1.msra.mxu0 0.0
        %4058 = vmatprep.subr.mxu0 0.0
        %4059 = vmatpush1.msra.mxu0 0.0
        %4060 = vmatprep.subr.mxu0 0.0
        %4061 = vmatpush1.msra.mxu0 0.0
        %4062 = vmatprep.subr.mxu0 0.0
        %4063 = vmatpush1.msra.mxu0 0.0
        %4064 = vmatprep.subr.mxu0 0.0
        %4065 = vmatpush1.msra.mxu0 0.0
        %4066 = vmatprep.subr.mxu0 0.0
        %4067 = vmatpush1.msra.mxu0 0.0
        %4068 = vmatprep.mubr.f32.mxu0 0.0
        %4069 = vmatmul.mubr.f32.gmra.mrb[0].mxu0 %v1623
        %v4070 = vpop.f32.mrb[0].mxu0
        %v4071 = vadd.f32 0.0, %v4070
        %v4072 = vpop.f32.mrb[0].mxu0
        %v4073 = vadd.f32 0.0, %v4072
        %4074 = vdwg.mxu0
        %v4075 = vadd.f32 %v3996, %v4071
        %v4076 = vadd.f32 %v3997, %v4073
        %v4077 = vadd.f32 %v4075, %v1708
        %v4078 = vadd.f32 %v4076, %v1708
        %v4079 = vxor.u32 %v4077, 2147483648
        %v4080 = vxor.u32 %v4078, 2147483648
        %v4081 = vmul.f32 %v4079, 1.442695
        %v4082 = vpow.pop %v4081
        %v4083 = vmul.f32 %v4080, 1.442695
        %v4084 = vpow.pop %v4083
        %v4085 = vadd.f32 %v4082, 1.0
        %v4086 = vadd.f32 %v4084, 1.0
        %v4087 = vrcp.pop %v4085
        %v4088 = vmul.f32 1.0, %v4087
        %v4089 = vrcp.pop %v4086
        %v4090 = vmul.f32 1.0, %v4089
        %v4091 = vmul.f32 %v4077, %v4088
        %v4092 = vmul.f32 %v4078, %v4090
        %v4093 = vadd.f32 %v3302, %v4091
        %v4094 = vadd.f32 %v3303, %v4092
        %4095 = vrot.lane.b32.xlu0 %v4093, 17
        %v4096 = vpop.permute.xlu0 %4095
        %4097 = vrot.lane.b32.xlu0 %v4094, 17
        %v4098 = vpop.permute.xlu0 %4097
        %v4099 = vsel %vm853, %v4096, %v4098
        %v4100 = vsel %vm853, %v4098, %v4096
        %v4101 = vsel %vm858, %v4100, 0.0
        %v4102 = vsel %vm859, %v4099, 0.0
        %4103 = vrot.lane.b32.xlu0 %v4093, 16
        %v4104 = vpop.permute.xlu0 %4103
        %4105 = vrot.lane.b32.xlu0 %v4094, 16
        %v4106 = vpop.permute.xlu0 %4105
        %v4107 = vsel %vm866, %v4104, %v4106
        %v4108 = vsel %vm866, %v4106, %v4104
        %v4109 = vsel %vm871, %v4108, 0.0
        %v4110 = vsel %vm872, %v4107, 0.0
        %4111 = vrot.lane.b32.xlu0 %v4093, 15
        %v4112 = vpop.permute.xlu0 %4111
        %4113 = vrot.lane.b32.xlu0 %v4094, 15
        %v4114 = vpop.permute.xlu0 %4113
        %v4115 = vsel %vm879, %v4112, %v4114
        %v4116 = vsel %vm879, %v4114, %v4112
        %v4117 = vsel %vm884, %v4116, 0.0
        %v4118 = vsel %vm885, %v4115, 0.0
        %4119 = vrot.lane.b32.xlu0 %v4093, 1
        %v4120 = vpop.permute.xlu0 %4119
        %4121 = vrot.lane.b32.xlu0 %v4094, 1
        %v4122 = vpop.permute.xlu0 %4121
        %v4123 = vsel %vm892, %v4120, %v4122
        %v4124 = vsel %vm892, %v4122, %v4120
        %v4125 = vsel %vm897, %v4124, 0.0
        %v4126 = vsel %vm898, %v4123, 0.0
        %4127 = vrot.lane.b32.xlu0 %v4093, 127
        %v4128 = vpop.permute.xlu0 %4127
        %4129 = vrot.lane.b32.xlu0 %v4094, 127
        %v4130 = vpop.permute.xlu0 %4129
        %v4131 = vsel %vm905, %v4128, %v4130
        %v4132 = vsel %vm905, %v4130, %v4128
        %v4133 = vsel %vm910, %v4131, 0.0
        %v4134 = vsel %vm911, %v4132, 0.0
        %4135 = vrot.lane.b32.xlu0 %v4093, 113
        %v4136 = vpop.permute.xlu0 %4135
        %4137 = vrot.lane.b32.xlu0 %v4094, 113
        %v4138 = vpop.permute.xlu0 %4137
        %v4139 = vsel %vm918, %v4136, %v4138
        %v4140 = vsel %vm918, %v4138, %v4136
        %v4141 = vsel %vm923, %v4139, 0.0
        %v4142 = vsel %vm924, %v4140, 0.0
        %4143 = vrot.lane.b32.xlu0 %v4093, 112
        %v4144 = vpop.permute.xlu0 %4143
        %4145 = vrot.lane.b32.xlu0 %v4094, 112
        %v4146 = vpop.permute.xlu0 %4145
        %v4147 = vsel %vm931, %v4144, %v4146
        %v4148 = vsel %vm931, %v4146, %v4144
        %v4149 = vsel %vm936, %v4147, 0.0
        %v4150 = vsel %vm937, %v4148, 0.0
        %4151 = vrot.lane.b32.xlu0 %v4093, 111
        %v4152 = vpop.permute.xlu0 %4151
        %4153 = vrot.lane.b32.xlu0 %v4094, 111
        %v4154 = vpop.permute.xlu0 %4153
        %v4155 = vsel %vm944, %v4152, %v4154
        %v4156 = vsel %vm944, %v4154, %v4152
        %v4157 = vsel %vm949, %v4155, 0.0
        %v4158 = vsel %vm950, %v4156, 0.0
        %v4160 = vsel %vm658, %v4109, 0
        %v4163 = vsel %vm658, %v4110, 0
        %4165 = vmatprep.subr.mxu0 %v4163
        %4166 = vmatpush1.msra.mxu0 %v4160
        %4167 = vmatprep.subr.mxu0 0.0
        %4168 = vmatpush1.msra.mxu0 0.0
        %4169 = vmatprep.subr.mxu0 0.0
        %4170 = vmatpush1.msra.mxu0 0.0
        %4171 = vmatprep.subr.mxu0 0.0
        %4172 = vmatpush1.msra.mxu0 0.0
        %4173 = vmatprep.subr.mxu0 0.0
        %4174 = vmatpush1.msra.mxu0 0.0
        %4175 = vmatprep.subr.mxu0 0.0
        %4176 = vmatpush1.msra.mxu0 0.0
        %4177 = vmatprep.subr.mxu0 0.0
        %4178 = vmatpush1.msra.mxu0 0.0
        %4179 = vmatprep.subr.mxu0 0.0
        %4180 = vmatpush1.msra.mxu0 0.0
        %4181 = vmatprep.subr.mxu0 0.0
        %4182 = vmatpush1.msra.mxu0 0.0
        %4183 = vmatprep.subr.mxu0 0.0
        %4184 = vmatpush1.msra.mxu0 0.0
        %4185 = vmatprep.subr.mxu0 0.0
        %4186 = vmatpush1.msra.mxu0 0.0
        %4187 = vmatprep.subr.mxu0 0.0
        %4188 = vmatpush1.msra.mxu0 0.0
        %4189 = vmatprep.subr.mxu0 0.0
        %4190 = vmatpush1.msra.mxu0 0.0
        %4191 = vmatprep.subr.mxu0 0.0
        %4192 = vmatpush1.msra.mxu0 0.0
        %4193 = vmatprep.subr.mxu0 0.0
        %4194 = vmatpush1.msra.mxu0 0.0
        %4195 = vmatprep.subr.mxu0 0.0
        %4196 = vmatpush1.msra.mxu0 0.0
        %4197 = vmatprep.subr.mxu0 0.0
        %4198 = vmatpush1.msra.mxu0 0.0
        %4199 = vmatprep.subr.mxu0 0.0
        %4200 = vmatpush1.msra.mxu0 0.0
        %4201 = vmatprep.subr.mxu0 0.0
        %4202 = vmatpush1.msra.mxu0 0.0
        %4203 = vmatprep.subr.mxu0 0.0
        %4204 = vmatpush1.msra.mxu0 0.0
        %4205 = vmatprep.subr.mxu0 0.0
        %4206 = vmatpush1.msra.mxu0 0.0
        %4207 = vmatprep.subr.mxu0 0.0
        %4208 = vmatpush1.msra.mxu0 0.0
        %4209 = vmatprep.subr.mxu0 0.0
        %4210 = vmatpush1.msra.mxu0 0.0
        %4211 = vmatprep.subr.mxu0 0.0
        %4212 = vmatpush1.msra.mxu0 0.0
        %4213 = vmatprep.subr.mxu0 0.0
        %4214 = vmatpush1.msra.mxu0 0.0
        %4215 = vmatprep.subr.mxu0 0.0
        %4216 = vmatpush1.msra.mxu0 0.0
        %4217 = vmatprep.subr.mxu0 0.0
        %4218 = vmatpush1.msra.mxu0 0.0
        %4219 = vmatprep.subr.mxu0 0.0
        %4220 = vmatpush1.msra.mxu0 0.0
        %4221 = vmatprep.subr.mxu0 0.0
        %4222 = vmatpush1.msra.mxu0 0.0
        %4223 = vmatprep.subr.mxu0 0.0
        %4224 = vmatpush1.msra.mxu0 0.0
        %4225 = vmatprep.subr.mxu0 0.0
        %4226 = vmatpush1.msra.mxu0 0.0
        %4227 = vmatprep.subr.mxu0 0.0
        %4228 = vmatpush1.msra.mxu0 0.0
        %4229 = vmatprep.mubr.f32.mxu0 0.0
        %4230 = vmatmul.mubr.f32.gmra.mrb[0].mxu0 %v957
        %v4231 = vpop.f32.mrb[0].mxu0
        %v4232 = vadd.f32 0.0, %v4231
        %v4233 = vpop.f32.mrb[0].mxu0
        %v4234 = vadd.f32 0.0, %v4233
        %4235 = vdwg.mxu0
        %v4237 = vsel %vm658, %v4101, 0
        %v4240 = vsel %vm658, %v4102, 0
        %4242 = vmatprep.subr.mxu0 %v4240
        %4243 = vmatpush1.msra.mxu0 %v4237
        %4244 = vmatprep.subr.mxu0 0.0
        %4245 = vmatpush1.msra.mxu0 0.0
        %4246 = vmatprep.subr.mxu0 0.0
        %4247 = vmatpush1.msra.mxu0 0.0
        %4248 = vmatprep.subr.mxu0 0.0
        %4249 = vmatpush1.msra.mxu0 0.0
        %4250 = vmatprep.subr.mxu0 0.0
        %4251 = vmatpush1.msra.mxu0 0.0
        %4252 = vmatprep.subr.mxu0 0.0
        %4253 = vmatpush1.msra.mxu0 0.0
        %4254 = vmatprep.subr.mxu0 0.0
        %4255 = vmatpush1.msra.mxu0 0.0
        %4256 = vmatprep.subr.mxu0 0.0
        %4257 = vmatpush1.msra.mxu0 0.0
        %4258 = vmatprep.subr.mxu0 0.0
        %4259 = vmatpush1.msra.mxu0 0.0
        %4260 = vmatprep.subr.mxu0 0.0
        %4261 = vmatpush1.msra.mxu0 0.0
        %4262 = vmatprep.subr.mxu0 0.0
        %4263 = vmatpush1.msra.mxu0 0.0
        %4264 = vmatprep.subr.mxu0 0.0
        %4265 = vmatpush1.msra.mxu0 0.0
        %4266 = vmatprep.subr.mxu0 0.0
        %4267 = vmatpush1.msra.mxu0 0.0
        %4268 = vmatprep.subr.mxu0 0.0
        %4269 = vmatpush1.msra.mxu0 0.0
        %4270 = vmatprep.subr.mxu0 0.0
        %4271 = vmatpush1.msra.mxu0 0.0
        %4272 = vmatprep.subr.mxu0 0.0
        %4273 = vmatpush1.msra.mxu0 0.0
        %4274 = vmatprep.subr.mxu0 0.0
        %4275 = vmatpush1.msra.mxu0 0.0
        %4276 = vmatprep.subr.mxu0 0.0
        %4277 = vmatpush1.msra.mxu0 0.0
        %4278 = vmatprep.subr.mxu0 0.0
        %4279 = vmatpush1.msra.mxu0 0.0
        %4280 = vmatprep.subr.mxu0 0.0
        %4281 = vmatpush1.msra.mxu0 0.0
        %4282 = vmatprep.subr.mxu0 0.0
        %4283 = vmatpush1.msra.mxu0 0.0
        %4284 = vmatprep.subr.mxu0 0.0
        %4285 = vmatpush1.msra.mxu0 0.0
        %4286 = vmatprep.subr.mxu0 0.0
        %4287 = vmatpush1.msra.mxu0 0.0
        %4288 = vmatprep.subr.mxu0 0.0
        %4289 = vmatpush1.msra.mxu0 0.0
        %4290 = vmatprep.subr.mxu0 0.0
        %4291 = vmatpush1.msra.mxu0 0.0
        %4292 = vmatprep.subr.mxu0 0.0
        %4293 = vmatpush1.msra.mxu0 0.0
        %4294 = vmatprep.subr.mxu0 0.0
        %4295 = vmatpush1.msra.mxu0 0.0
        %4296 = vmatprep.subr.mxu0 0.0
        %4297 = vmatpush1.msra.mxu0 0.0
        %4298 = vmatprep.subr.mxu0 0.0
        %4299 = vmatpush1.msra.mxu0 0.0
        %4300 = vmatprep.subr.mxu0 0.0
        %4301 = vmatpush1.msra.mxu0 0.0
        %4302 = vmatprep.subr.mxu0 0.0
        %4303 = vmatpush1.msra.mxu0 0.0
        %4304 = vmatprep.subr.mxu0 0.0
        %4305 = vmatpush1.msra.mxu0 0.0
        %4306 = vmatprep.mubr.f32.mxu0 0.0
        %4307 = vmatmul.mubr.f32.gmra.mrb[0].mxu0 %v1037
        %v4308 = vpop.f32.mrb[0].mxu0
        %v4309 = vadd.f32 %v4232, %v4308
        %v4310 = vpop.f32.mrb[0].mxu0
        %v4311 = vadd.f32 %v4234, %v4310
        %4312 = vdwg.mxu0
        %v4314 = vsel %vm658, %v4117, 0
        %v4317 = vsel %vm658, %v4118, 0
        %4319 = vmatprep.subr.mxu0 %v4317
        %4320 = vmatpush1.msra.mxu0 %v4314
        %4321 = vmatprep.subr.mxu0 0.0
        %4322 = vmatpush1.msra.mxu0 0.0
        %4323 = vmatprep.subr.mxu0 0.0
        %4324 = vmatpush1.msra.mxu0 0.0
        %4325 = vmatprep.subr.mxu0 0.0
        %4326 = vmatpush1.msra.mxu0 0.0
        %4327 = vmatprep.subr.mxu0 0.0
        %4328 = vmatpush1.msra.mxu0 0.0
        %4329 = vmatprep.subr.mxu0 0.0
        %4330 = vmatpush1.msra.mxu0 0.0
        %4331 = vmatprep.subr.mxu0 0.0
        %4332 = vmatpush1.msra.mxu0 0.0
        %4333 = vmatprep.subr.mxu0 0.0
        %4334 = vmatpush1.msra.mxu0 0.0
        %4335 = vmatprep.subr.mxu0 0.0
        %4336 = vmatpush1.msra.mxu0 0.0
        %4337 = vmatprep.subr.mxu0 0.0
        %4338 = vmatpush1.msra.mxu0 0.0
        %4339 = vmatprep.subr.mxu0 0.0
        %4340 = vmatpush1.msra.mxu0 0.0
        %4341 = vmatprep.subr.mxu0 0.0
        %4342 = vmatpush1.msra.mxu0 0.0
        %4343 = vmatprep.subr.mxu0 0.0
        %4344 = vmatpush1.msra.mxu0 0.0
        %4345 = vmatprep.subr.mxu0 0.0
        %4346 = vmatpush1.msra.mxu0 0.0
        %4347 = vmatprep.subr.mxu0 0.0
        %4348 = vmatpush1.msra.mxu0 0.0
        %4349 = vmatprep.subr.mxu0 0.0
        %4350 = vmatpush1.msra.mxu0 0.0
        %4351 = vmatprep.subr.mxu0 0.0
        %4352 = vmatpush1.msra.mxu0 0.0
        %4353 = vmatprep.subr.mxu0 0.0
        %4354 = vmatpush1.msra.mxu0 0.0
        %4355 = vmatprep.subr.mxu0 0.0
        %4356 = vmatpush1.msra.mxu0 0.0
        %4357 = vmatprep.subr.mxu0 0.0
        %4358 = vmatpush1.msra.mxu0 0.0
        %4359 = vmatprep.subr.mxu0 0.0
        %4360 = vmatpush1.msra.mxu0 0.0
        %4361 = vmatprep.subr.mxu0 0.0
        %4362 = vmatpush1.msra.mxu0 0.0
        %4363 = vmatprep.subr.mxu0 0.0
        %4364 = vmatpush1.msra.mxu0 0.0
        %4365 = vmatprep.subr.mxu0 0.0
        %4366 = vmatpush1.msra.mxu0 0.0
        %4367 = vmatprep.subr.mxu0 0.0
        %4368 = vmatpush1.msra.mxu0 0.0
        %4369 = vmatprep.subr.mxu0 0.0
        %4370 = vmatpush1.msra.mxu0 0.0
        %4371 = vmatprep.subr.mxu0 0.0
        %4372 = vmatpush1.msra.mxu0 0.0
        %4373 = vmatprep.subr.mxu0 0.0
        %4374 = vmatpush1.msra.mxu0 0.0
        %4375 = vmatprep.subr.mxu0 0.0
        %4376 = vmatpush1.msra.mxu0 0.0
        %4377 = vmatprep.subr.mxu0 0.0
        %4378 = vmatpush1.msra.mxu0 0.0
        %4379 = vmatprep.subr.mxu0 0.0
        %4380 = vmatpush1.msra.mxu0 0.0
        %4381 = vmatprep.subr.mxu0 0.0
        %4382 = vmatpush1.msra.mxu0 0.0
        %4383 = vmatprep.mubr.f32.mxu0 0.0
        %4384 = vmatmul.mubr.f32.gmra.mrb[0].mxu0 %v1119
        %v4385 = vpop.f32.mrb[0].mxu0
        %v4386 = vadd.f32 0.0, %v4385
        %v4387 = vpop.f32.mrb[0].mxu0
        %v4388 = vadd.f32 0.0, %v4387
        %4389 = vdwg.mxu0
        %v4390 = vadd.f32 %v4309, %v4386
        %v4391 = vadd.f32 %v4311, %v4388
        %v4393 = vsel %vm658, %v4125, 0
        %v4396 = vsel %vm658, %v4126, 0
        %4398 = vmatprep.subr.mxu0 %v4396
        %4399 = vmatpush1.msra.mxu0 %v4393
        %4400 = vmatprep.subr.mxu0 0.0
        %4401 = vmatpush1.msra.mxu0 0.0
        %4402 = vmatprep.subr.mxu0 0.0
        %4403 = vmatpush1.msra.mxu0 0.0
        %4404 = vmatprep.subr.mxu0 0.0
        %4405 = vmatpush1.msra.mxu0 0.0
        %4406 = vmatprep.subr.mxu0 0.0
        %4407 = vmatpush1.msra.mxu0 0.0
        %4408 = vmatprep.subr.mxu0 0.0
        %4409 = vmatpush1.msra.mxu0 0.0
        %4410 = vmatprep.subr.mxu0 0.0
        %4411 = vmatpush1.msra.mxu0 0.0
        %4412 = vmatprep.subr.mxu0 0.0
        %4413 = vmatpush1.msra.mxu0 0.0
        %4414 = vmatprep.subr.mxu0 0.0
        %4415 = vmatpush1.msra.mxu0 0.0
        %4416 = vmatprep.subr.mxu0 0.0
        %4417 = vmatpush1.msra.mxu0 0.0
        %4418 = vmatprep.subr.mxu0 0.0
        %4419 = vmatpush1.msra.mxu0 0.0
        %4420 = vmatprep.subr.mxu0 0.0
        %4421 = vmatpush1.msra.mxu0 0.0
        %4422 = vmatprep.subr.mxu0 0.0
        %4423 = vmatpush1.msra.mxu0 0.0
        %4424 = vmatprep.subr.mxu0 0.0
        %4425 = vmatpush1.msra.mxu0 0.0
        %4426 = vmatprep.subr.mxu0 0.0
        %4427 = vmatpush1.msra.mxu0 0.0
        %4428 = vmatprep.subr.mxu0 0.0
        %4429 = vmatpush1.msra.mxu0 0.0
        %4430 = vmatprep.subr.mxu0 0.0
        %4431 = vmatpush1.msra.mxu0 0.0
        %4432 = vmatprep.subr.mxu0 0.0
        %4433 = vmatpush1.msra.mxu0 0.0
        %4434 = vmatprep.subr.mxu0 0.0
        %4435 = vmatpush1.msra.mxu0 0.0
        %4436 = vmatprep.subr.mxu0 0.0
        %4437 = vmatpush1.msra.mxu0 0.0
        %4438 = vmatprep.subr.mxu0 0.0
        %4439 = vmatpush1.msra.mxu0 0.0
        %4440 = vmatprep.subr.mxu0 0.0
        %4441 = vmatpush1.msra.mxu0 0.0
        %4442 = vmatprep.subr.mxu0 0.0
        %4443 = vmatpush1.msra.mxu0 0.0
        %4444 = vmatprep.subr.mxu0 0.0
        %4445 = vmatpush1.msra.mxu0 0.0
        %4446 = vmatprep.subr.mxu0 0.0
        %4447 = vmatpush1.msra.mxu0 0.0
        %4448 = vmatprep.subr.mxu0 0.0
        %4449 = vmatpush1.msra.mxu0 0.0
        %4450 = vmatprep.subr.mxu0 0.0
        %4451 = vmatpush1.msra.mxu0 0.0
        %4452 = vmatprep.subr.mxu0 0.0
        %4453 = vmatpush1.msra.mxu0 0.0
        %4454 = vmatprep.subr.mxu0 0.0
        %4455 = vmatpush1.msra.mxu0 0.0
        %4456 = vmatprep.subr.mxu0 0.0
        %4457 = vmatpush1.msra.mxu0 0.0
        %4458 = vmatprep.subr.mxu0 0.0
        %4459 = vmatpush1.msra.mxu0 0.0
        %4460 = vmatprep.subr.mxu0 0.0
        %4461 = vmatpush1.msra.mxu0 0.0
        %4462 = vmatprep.mubr.f32.mxu0 0.0
        %4463 = vmatmul.mubr.f32.gmra.mrb[0].mxu0 %v1203
        %v4464 = vpop.f32.mrb[0].mxu0
        %v4465 = vadd.f32 0.0, %v4464
        %v4466 = vpop.f32.mrb[0].mxu0
        %v4467 = vadd.f32 0.0, %v4466
        %4468 = vdwg.mxu0
        %v4469 = vadd.f32 %v4390, %v4465
        %v4470 = vadd.f32 %v4391, %v4467
        %v4472 = vsel %vm658, %v4093, 0
        %v4475 = vsel %vm658, %v4094, 0
        %4477 = vmatprep.subr.mxu0 %v4475
        %4478 = vmatpush1.msra.mxu0 %v4472
        %4479 = vmatprep.subr.mxu0 0.0
        %4480 = vmatpush1.msra.mxu0 0.0
        %4481 = vmatprep.subr.mxu0 0.0
        %4482 = vmatpush1.msra.mxu0 0.0
        %4483 = vmatprep.subr.mxu0 0.0
        %4484 = vmatpush1.msra.mxu0 0.0
        %4485 = vmatprep.subr.mxu0 0.0
        %4486 = vmatpush1.msra.mxu0 0.0
        %4487 = vmatprep.subr.mxu0 0.0
        %4488 = vmatpush1.msra.mxu0 0.0
        %4489 = vmatprep.subr.mxu0 0.0
        %4490 = vmatpush1.msra.mxu0 0.0
        %4491 = vmatprep.subr.mxu0 0.0
        %4492 = vmatpush1.msra.mxu0 0.0
        %4493 = vmatprep.subr.mxu0 0.0
        %4494 = vmatpush1.msra.mxu0 0.0
        %4495 = vmatprep.subr.mxu0 0.0
        %4496 = vmatpush1.msra.mxu0 0.0
        %4497 = vmatprep.subr.mxu0 0.0
        %4498 = vmatpush1.msra.mxu0 0.0
        %4499 = vmatprep.subr.mxu0 0.0
        %4500 = vmatpush1.msra.mxu0 0.0
        %4501 = vmatprep.subr.mxu0 0.0
        %4502 = vmatpush1.msra.mxu0 0.0
        %4503 = vmatprep.subr.mxu0 0.0
        %4504 = vmatpush1.msra.mxu0 0.0
        %4505 = vmatprep.subr.mxu0 0.0
        %4506 = vmatpush1.msra.mxu0 0.0
        %4507 = vmatprep.subr.mxu0 0.0
        %4508 = vmatpush1.msra.mxu0 0.0
        %4509 = vmatprep.subr.mxu0 0.0
        %4510 = vmatpush1.msra.mxu0 0.0
        %4511 = vmatprep.subr.mxu0 0.0
        %4512 = vmatpush1.msra.mxu0 0.0
        %4513 = vmatprep.subr.mxu0 0.0
        %4514 = vmatpush1.msra.mxu0 0.0
        %4515 = vmatprep.subr.mxu0 0.0
        %4516 = vmatpush1.msra.mxu0 0.0
        %4517 = vmatprep.subr.mxu0 0.0
        %4518 = vmatpush1.msra.mxu0 0.0
        %4519 = vmatprep.subr.mxu0 0.0
        %4520 = vmatpush1.msra.mxu0 0.0
        %4521 = vmatprep.subr.mxu0 0.0
        %4522 = vmatpush1.msra.mxu0 0.0
        %4523 = vmatprep.subr.mxu0 0.0
        %4524 = vmatpush1.msra.mxu0 0.0
        %4525 = vmatprep.subr.mxu0 0.0
        %4526 = vmatpush1.msra.mxu0 0.0
        %4527 = vmatprep.subr.mxu0 0.0
        %4528 = vmatpush1.msra.mxu0 0.0
        %4529 = vmatprep.subr.mxu0 0.0
        %4530 = vmatpush1.msra.mxu0 0.0
        %4531 = vmatprep.subr.mxu0 0.0
        %4532 = vmatpush1.msra.mxu0 0.0
        %4533 = vmatprep.subr.mxu0 0.0
        %4534 = vmatpush1.msra.mxu0 0.0
        %4535 = vmatprep.subr.mxu0 0.0
        %4536 = vmatpush1.msra.mxu0 0.0
        %4537 = vmatprep.subr.mxu0 0.0
        %4538 = vmatpush1.msra.mxu0 0.0
        %4539 = vmatprep.subr.mxu0 0.0
        %4540 = vmatpush1.msra.mxu0 0.0
        %4541 = vmatprep.mubr.f32.mxu0 0.0
        %4542 = vmatmul.mubr.f32.gmra.mrb[0].mxu0 %v1287
        %v4543 = vpop.f32.mrb[0].mxu0
        %v4544 = vadd.f32 0.0, %v4543
        %v4545 = vpop.f32.mrb[0].mxu0
        %v4546 = vadd.f32 0.0, %v4545
        %4547 = vdwg.mxu0
        %v4548 = vadd.f32 %v4469, %v4544
        %v4549 = vadd.f32 %v4470, %v4546
        %v4551 = vsel %vm658, %v4133, 0
        %v4554 = vsel %vm658, %v4134, 0
        %4556 = vmatprep.subr.mxu0 %v4554
        %4557 = vmatpush1.msra.mxu0 %v4551
        %4558 = vmatprep.subr.mxu0 0.0
        %4559 = vmatpush1.msra.mxu0 0.0
        %4560 = vmatprep.subr.mxu0 0.0
        %4561 = vmatpush1.msra.mxu0 0.0
        %4562 = vmatprep.subr.mxu0 0.0
        %4563 = vmatpush1.msra.mxu0 0.0
        %4564 = vmatprep.subr.mxu0 0.0
        %4565 = vmatpush1.msra.mxu0 0.0
        %4566 = vmatprep.subr.mxu0 0.0
        %4567 = vmatpush1.msra.mxu0 0.0
        %4568 = vmatprep.subr.mxu0 0.0
        %4569 = vmatpush1.msra.mxu0 0.0
        %4570 = vmatprep.subr.mxu0 0.0
        %4571 = vmatpush1.msra.mxu0 0.0
        %4572 = vmatprep.subr.mxu0 0.0
        %4573 = vmatpush1.msra.mxu0 0.0
        %4574 = vmatprep.subr.mxu0 0.0
        %4575 = vmatpush1.msra.mxu0 0.0
        %4576 = vmatprep.subr.mxu0 0.0
        %4577 = vmatpush1.msra.mxu0 0.0
        %4578 = vmatprep.subr.mxu0 0.0
        %4579 = vmatpush1.msra.mxu0 0.0
        %4580 = vmatprep.subr.mxu0 0.0
        %4581 = vmatpush1.msra.mxu0 0.0
        %4582 = vmatprep.subr.mxu0 0.0
        %4583 = vmatpush1.msra.mxu0 0.0
        %4584 = vmatprep.subr.mxu0 0.0
        %4585 = vmatpush1.msra.mxu0 0.0
        %4586 = vmatprep.subr.mxu0 0.0
        %4587 = vmatpush1.msra.mxu0 0.0
        %4588 = vmatprep.subr.mxu0 0.0
        %4589 = vmatpush1.msra.mxu0 0.0
        %4590 = vmatprep.subr.mxu0 0.0
        %4591 = vmatpush1.msra.mxu0 0.0
        %4592 = vmatprep.subr.mxu0 0.0
        %4593 = vmatpush1.msra.mxu0 0.0
        %4594 = vmatprep.subr.mxu0 0.0
        %4595 = vmatpush1.msra.mxu0 0.0
        %4596 = vmatprep.subr.mxu0 0.0
        %4597 = vmatpush1.msra.mxu0 0.0
        %4598 = vmatprep.subr.mxu0 0.0
        %4599 = vmatpush1.msra.mxu0 0.0
        %4600 = vmatprep.subr.mxu0 0.0
        %4601 = vmatpush1.msra.mxu0 0.0
        %4602 = vmatprep.subr.mxu0 0.0
        %4603 = vmatpush1.msra.mxu0 0.0
        %4604 = vmatprep.subr.mxu0 0.0
        %4605 = vmatpush1.msra.mxu0 0.0
        %4606 = vmatprep.subr.mxu0 0.0
        %4607 = vmatpush1.msra.mxu0 0.0
        %4608 = vmatprep.subr.mxu0 0.0
        %4609 = vmatpush1.msra.mxu0 0.0
        %4610 = vmatprep.subr.mxu0 0.0
        %4611 = vmatpush1.msra.mxu0 0.0
        %4612 = vmatprep.subr.mxu0 0.0
        %4613 = vmatpush1.msra.mxu0 0.0
        %4614 = vmatprep.subr.mxu0 0.0
        %4615 = vmatpush1.msra.mxu0 0.0
        %4616 = vmatprep.subr.mxu0 0.0
        %4617 = vmatpush1.msra.mxu0 0.0
        %4618 = vmatprep.subr.mxu0 0.0
        %4619 = vmatpush1.msra.mxu0 0.0
        %4620 = vmatprep.mubr.f32.mxu0 0.0
        %4621 = vmatmul.mubr.f32.gmra.mrb[0].mxu0 %v1371
        %v4622 = vpop.f32.mrb[0].mxu0
        %v4623 = vadd.f32 0.0, %v4622
        %v4624 = vpop.f32.mrb[0].mxu0
        %v4625 = vadd.f32 0.0, %v4624
        %4626 = vdwg.mxu0
        %v4627 = vadd.f32 %v4548, %v4623
        %v4628 = vadd.f32 %v4549, %v4625
        %v4630 = vsel %vm658, %v4141, 0
        %v4633 = vsel %vm658, %v4142, 0
        %4635 = vmatprep.subr.mxu0 %v4633
        %4636 = vmatpush1.msra.mxu0 %v4630
        %4637 = vmatprep.subr.mxu0 0.0
        %4638 = vmatpush1.msra.mxu0 0.0
        %4639 = vmatprep.subr.mxu0 0.0
        %4640 = vmatpush1.msra.mxu0 0.0
        %4641 = vmatprep.subr.mxu0 0.0
        %4642 = vmatpush1.msra.mxu0 0.0
        %4643 = vmatprep.subr.mxu0 0.0
        %4644 = vmatpush1.msra.mxu0 0.0
        %4645 = vmatprep.subr.mxu0 0.0
        %4646 = vmatpush1.msra.mxu0 0.0
        %4647 = vmatprep.subr.mxu0 0.0
        %4648 = vmatpush1.msra.mxu0 0.0
        %4649 = vmatprep.subr.mxu0 0.0
        %4650 = vmatpush1.msra.mxu0 0.0
        %4651 = vmatprep.subr.mxu0 0.0
        %4652 = vmatpush1.msra.mxu0 0.0
        %4653 = vmatprep.subr.mxu0 0.0
        %4654 = vmatpush1.msra.mxu0 0.0
        %4655 = vmatprep.subr.mxu0 0.0
        %4656 = vmatpush1.msra.mxu0 0.0
        %4657 = vmatprep.subr.mxu0 0.0
        %4658 = vmatpush1.msra.mxu0 0.0
        %4659 = vmatprep.subr.mxu0 0.0
        %4660 = vmatpush1.msra.mxu0 0.0
        %4661 = vmatprep.subr.mxu0 0.0
        %4662 = vmatpush1.msra.mxu0 0.0
        %4663 = vmatprep.subr.mxu0 0.0
        %4664 = vmatpush1.msra.mxu0 0.0
        %4665 = vmatprep.subr.mxu0 0.0
        %4666 = vmatpush1.msra.mxu0 0.0
        %4667 = vmatprep.subr.mxu0 0.0
        %4668 = vmatpush1.msra.mxu0 0.0
        %4669 = vmatprep.subr.mxu0 0.0
        %4670 = vmatpush1.msra.mxu0 0.0
        %4671 = vmatprep.subr.mxu0 0.0
        %4672 = vmatpush1.msra.mxu0 0.0
        %4673 = vmatprep.subr.mxu0 0.0
        %4674 = vmatpush1.msra.mxu0 0.0
        %4675 = vmatprep.subr.mxu0 0.0
        %4676 = vmatpush1.msra.mxu0 0.0
        %4677 = vmatprep.subr.mxu0 0.0
        %4678 = vmatpush1.msra.mxu0 0.0
        %4679 = vmatprep.subr.mxu0 0.0
        %4680 = vmatpush1.msra.mxu0 0.0
        %4681 = vmatprep.subr.mxu0 0.0
        %4682 = vmatpush1.msra.mxu0 0.0
        %4683 = vmatprep.subr.mxu0 0.0
        %4684 = vmatpush1.msra.mxu0 0.0
        %4685 = vmatprep.subr.mxu0 0.0
        %4686 = vmatpush1.msra.mxu0 0.0
        %4687 = vmatprep.subr.mxu0 0.0
        %4688 = vmatpush1.msra.mxu0 0.0
        %4689 = vmatprep.subr.mxu0 0.0
        %4690 = vmatpush1.msra.mxu0 0.0
        %4691 = vmatprep.subr.mxu0 0.0
        %4692 = vmatpush1.msra.mxu0 0.0
        %4693 = vmatprep.subr.mxu0 0.0
        %4694 = vmatpush1.msra.mxu0 0.0
        %4695 = vmatprep.subr.mxu0 0.0
        %4696 = vmatpush1.msra.mxu0 0.0
        %4697 = vmatprep.subr.mxu0 0.0
        %4698 = vmatpush1.msra.mxu0 0.0
        %4699 = vmatprep.mubr.f32.mxu0 0.0
        %4700 = vmatmul.mubr.f32.gmra.mrb[0].mxu0 %v1455
        %v4701 = vpop.f32.mrb[0].mxu0
        %v4702 = vadd.f32 0.0, %v4701
        %v4703 = vpop.f32.mrb[0].mxu0
        %v4704 = vadd.f32 0.0, %v4703
        %4705 = vdwg.mxu0
        %v4706 = vadd.f32 %v4627, %v4702
        %v4707 = vadd.f32 %v4628, %v4704
        %v4709 = vsel %vm658, %v4149, 0
        %v4712 = vsel %vm658, %v4150, 0
        %4714 = vmatprep.subr.mxu0 %v4712
        %4715 = vmatpush1.msra.mxu0 %v4709
        %4716 = vmatprep.subr.mxu0 0.0
        %4717 = vmatpush1.msra.mxu0 0.0
        %4718 = vmatprep.subr.mxu0 0.0
        %4719 = vmatpush1.msra.mxu0 0.0
        %4720 = vmatprep.subr.mxu0 0.0
        %4721 = vmatpush1.msra.mxu0 0.0
        %4722 = vmatprep.subr.mxu0 0.0
        %4723 = vmatpush1.msra.mxu0 0.0
        %4724 = vmatprep.subr.mxu0 0.0
        %4725 = vmatpush1.msra.mxu0 0.0
        %4726 = vmatprep.subr.mxu0 0.0
        %4727 = vmatpush1.msra.mxu0 0.0
        %4728 = vmatprep.subr.mxu0 0.0
        %4729 = vmatpush1.msra.mxu0 0.0
        %4730 = vmatprep.subr.mxu0 0.0
        %4731 = vmatpush1.msra.mxu0 0.0
        %4732 = vmatprep.subr.mxu0 0.0
        %4733 = vmatpush1.msra.mxu0 0.0
        %4734 = vmatprep.subr.mxu0 0.0
        %4735 = vmatpush1.msra.mxu0 0.0
        %4736 = vmatprep.subr.mxu0 0.0
        %4737 = vmatpush1.msra.mxu0 0.0
        %4738 = vmatprep.subr.mxu0 0.0
        %4739 = vmatpush1.msra.mxu0 0.0
        %4740 = vmatprep.subr.mxu0 0.0
        %4741 = vmatpush1.msra.mxu0 0.0
        %4742 = vmatprep.subr.mxu0 0.0
        %4743 = vmatpush1.msra.mxu0 0.0
        %4744 = vmatprep.subr.mxu0 0.0
        %4745 = vmatpush1.msra.mxu0 0.0
        %4746 = vmatprep.subr.mxu0 0.0
        %4747 = vmatpush1.msra.mxu0 0.0
        %4748 = vmatprep.subr.mxu0 0.0
        %4749 = vmatpush1.msra.mxu0 0.0
        %4750 = vmatprep.subr.mxu0 0.0
        %4751 = vmatpush1.msra.mxu0 0.0
        %4752 = vmatprep.subr.mxu0 0.0
        %4753 = vmatpush1.msra.mxu0 0.0
        %4754 = vmatprep.subr.mxu0 0.0
        %4755 = vmatpush1.msra.mxu0 0.0
        %4756 = vmatprep.subr.mxu0 0.0
        %4757 = vmatpush1.msra.mxu0 0.0
        %4758 = vmatprep.subr.mxu0 0.0
        %4759 = vmatpush1.msra.mxu0 0.0
        %4760 = vmatprep.subr.mxu0 0.0
        %4761 = vmatpush1.msra.mxu0 0.0
        %4762 = vmatprep.subr.mxu0 0.0
        %4763 = vmatpush1.msra.mxu0 0.0
        %4764 = vmatprep.subr.mxu0 0.0
        %4765 = vmatpush1.msra.mxu0 0.0
        %4766 = vmatprep.subr.mxu0 0.0
        %4767 = vmatpush1.msra.mxu0 0.0
        %4768 = vmatprep.subr.mxu0 0.0
        %4769 = vmatpush1.msra.mxu0 0.0
        %4770 = vmatprep.subr.mxu0 0.0
        %4771 = vmatpush1.msra.mxu0 0.0
        %4772 = vmatprep.subr.mxu0 0.0
        %4773 = vmatpush1.msra.mxu0 0.0
        %4774 = vmatprep.subr.mxu0 0.0
        %4775 = vmatpush1.msra.mxu0 0.0
        %4776 = vmatprep.subr.mxu0 0.0
        %4777 = vmatpush1.msra.mxu0 0.0
        %4778 = vmatprep.mubr.f32.mxu0 0.0
        %4779 = vmatmul.mubr.f32.gmra.mrb[0].mxu0 %v1539
        %v4780 = vpop.f32.mrb[0].mxu0
        %v4781 = vadd.f32 0.0, %v4780
        %v4782 = vpop.f32.mrb[0].mxu0
        %v4783 = vadd.f32 0.0, %v4782
        %4784 = vdwg.mxu0
        %v4785 = vadd.f32 %v4706, %v4781
        %v4786 = vadd.f32 %v4707, %v4783
        %v4788 = vsel %vm658, %v4157, 0
        %v4791 = vsel %vm658, %v4158, 0
        %4793 = vmatprep.subr.mxu0 %v4791
        %4794 = vmatpush1.msra.mxu0 %v4788
        %4795 = vmatprep.subr.mxu0 0.0
        %4796 = vmatpush1.msra.mxu0 0.0
        %4797 = vmatprep.subr.mxu0 0.0
        %4798 = vmatpush1.msra.mxu0 0.0
        %4799 = vmatprep.subr.mxu0 0.0
        %4800 = vmatpush1.msra.mxu0 0.0
        %4801 = vmatprep.subr.mxu0 0.0
        %4802 = vmatpush1.msra.mxu0 0.0
        %4803 = vmatprep.subr.mxu0 0.0
        %4804 = vmatpush1.msra.mxu0 0.0
        %4805 = vmatprep.subr.mxu0 0.0
        %4806 = vmatpush1.msra.mxu0 0.0
        %4807 = vmatprep.subr.mxu0 0.0
        %4808 = vmatpush1.msra.mxu0 0.0
        %4809 = vmatprep.subr.mxu0 0.0
        %4810 = vmatpush1.msra.mxu0 0.0
        %4811 = vmatprep.subr.mxu0 0.0
        %4812 = vmatpush1.msra.mxu0 0.0
        %4813 = vmatprep.subr.mxu0 0.0
        %4814 = vmatpush1.msra.mxu0 0.0
        %4815 = vmatprep.subr.mxu0 0.0
        %4816 = vmatpush1.msra.mxu0 0.0
        %4817 = vmatprep.subr.mxu0 0.0
        %4818 = vmatpush1.msra.mxu0 0.0
        %4819 = vmatprep.subr.mxu0 0.0
        %4820 = vmatpush1.msra.mxu0 0.0
        %4821 = vmatprep.subr.mxu0 0.0
        %4822 = vmatpush1.msra.mxu0 0.0
        %4823 = vmatprep.subr.mxu0 0.0
        %4824 = vmatpush1.msra.mxu0 0.0
        %4825 = vmatprep.subr.mxu0 0.0
        %4826 = vmatpush1.msra.mxu0 0.0
        %4827 = vmatprep.subr.mxu0 0.0
        %4828 = vmatpush1.msra.mxu0 0.0
        %4829 = vmatprep.subr.mxu0 0.0
        %4830 = vmatpush1.msra.mxu0 0.0
        %4831 = vmatprep.subr.mxu0 0.0
        %4832 = vmatpush1.msra.mxu0 0.0
        %4833 = vmatprep.subr.mxu0 0.0
        %4834 = vmatpush1.msra.mxu0 0.0
        %4835 = vmatprep.subr.mxu0 0.0
        %4836 = vmatpush1.msra.mxu0 0.0
        %4837 = vmatprep.subr.mxu0 0.0
        %4838 = vmatpush1.msra.mxu0 0.0
        %4839 = vmatprep.subr.mxu0 0.0
        %4840 = vmatpush1.msra.mxu0 0.0
        %4841 = vmatprep.subr.mxu0 0.0
        %4842 = vmatpush1.msra.mxu0 0.0
        %4843 = vmatprep.subr.mxu0 0.0
        %4844 = vmatpush1.msra.mxu0 0.0
        %4845 = vmatprep.subr.mxu0 0.0
        %4846 = vmatpush1.msra.mxu0 0.0
        %4847 = vmatprep.subr.mxu0 0.0
        %4848 = vmatpush1.msra.mxu0 0.0
        %4849 = vmatprep.subr.mxu0 0.0
        %4850 = vmatpush1.msra.mxu0 0.0
        %4851 = vmatprep.subr.mxu0 0.0
        %4852 = vmatpush1.msra.mxu0 0.0
        %4853 = vmatprep.subr.mxu0 0.0
        %4854 = vmatpush1.msra.mxu0 0.0
        %4855 = vmatprep.subr.mxu0 0.0
        %4856 = vmatpush1.msra.mxu0 0.0
        %4857 = vmatprep.mubr.f32.mxu0 0.0
        %4858 = vmatmul.mubr.f32.gmra.mrb[0].mxu0 %v1623
        %v4859 = vpop.f32.mrb[0].mxu0
        %v4860 = vadd.f32 0.0, %v4859
        %v4861 = vpop.f32.mrb[0].mxu0
        %v4862 = vadd.f32 0.0, %v4861
        %4863 = vdwg.mxu0
        %v4864 = vadd.f32 %v4785, %v4860
        %v4865 = vadd.f32 %v4786, %v4862
        %v4866 = vadd.f32 %v4864, %v1708
        %v4867 = vadd.f32 %v4865, %v1708
        %v4868 = vxor.u32 %v4866, 2147483648
        %v4869 = vxor.u32 %v4867, 2147483648
        %v4870 = vmul.f32 %v4868, 1.442695
        %v4871 = vpow.pop %v4870
        %v4872 = vmul.f32 %v4869, 1.442695
        %v4873 = vpow.pop %v4872
        %v4874 = vadd.f32 %v4871, 1.0
        %v4875 = vadd.f32 %v4873, 1.0
        %v4876 = vrcp.pop %v4874
        %v4877 = vmul.f32 1.0, %v4876
        %v4878 = vrcp.pop %v4875
        %v4879 = vmul.f32 1.0, %v4878
        %v4880 = vmul.f32 %v4866, %v4877
        %v4881 = vmul.f32 %v4867, %v4879
        %4882 = vrot.lane.b32.xlu0 %v4880, 17
        %v4883 = vpop.permute.xlu0 %4882
        %4884 = vrot.lane.b32.xlu0 %v4881, 17
        %v4885 = vpop.permute.xlu0 %4884
        %v4886 = vsel %vm853, %v4883, %v4885
        %v4887 = vsel %vm853, %v4885, %v4883
        %v4888 = vsel %vm858, %v4887, 0.0
        %v4889 = vsel %vm859, %v4886, 0.0
        %4890 = vrot.lane.b32.xlu0 %v4880, 16
        %v4891 = vpop.permute.xlu0 %4890
        %4892 = vrot.lane.b32.xlu0 %v4881, 16
        %v4893 = vpop.permute.xlu0 %4892
        %v4894 = vsel %vm866, %v4891, %v4893
        %v4895 = vsel %vm866, %v4893, %v4891
        %v4896 = vsel %vm871, %v4895, 0.0
        %v4897 = vsel %vm872, %v4894, 0.0
        %4898 = vrot.lane.b32.xlu0 %v4880, 15
        %v4899 = vpop.permute.xlu0 %4898
        %4900 = vrot.lane.b32.xlu0 %v4881, 15
        %v4901 = vpop.permute.xlu0 %4900
        %v4902 = vsel %vm879, %v4899, %v4901
        %v4903 = vsel %vm879, %v4901, %v4899
        %v4904 = vsel %vm884, %v4903, 0.0
        %v4905 = vsel %vm885, %v4902, 0.0
        %4906 = vrot.lane.b32.xlu0 %v4880, 1
        %v4907 = vpop.permute.xlu0 %4906
        %4908 = vrot.lane.b32.xlu0 %v4881, 1
        %v4909 = vpop.permute.xlu0 %4908
        %v4910 = vsel %vm892, %v4907, %v4909
        %v4911 = vsel %vm892, %v4909, %v4907
        %v4912 = vsel %vm897, %v4911, 0.0
        %v4913 = vsel %vm898, %v4910, 0.0
        %4914 = vrot.lane.b32.xlu0 %v4880, 127
        %v4915 = vpop.permute.xlu0 %4914
        %4916 = vrot.lane.b32.xlu0 %v4881, 127
        %v4917 = vpop.permute.xlu0 %4916
        %v4918 = vsel %vm905, %v4915, %v4917
        %v4919 = vsel %vm905, %v4917, %v4915
        %v4920 = vsel %vm910, %v4918, 0.0
        %v4921 = vsel %vm911, %v4919, 0.0
        %4922 = vrot.lane.b32.xlu0 %v4880, 113
        %v4923 = vpop.permute.xlu0 %4922
        %4924 = vrot.lane.b32.xlu0 %v4881, 113
        %v4925 = vpop.permute.xlu0 %4924
        %v4926 = vsel %vm918, %v4923, %v4925
        %v4927 = vsel %vm918, %v4925, %v4923
        %v4928 = vsel %vm923, %v4926, 0.0
        %v4929 = vsel %vm924, %v4927, 0.0
        %4930 = vrot.lane.b32.xlu0 %v4880, 112
        %v4931 = vpop.permute.xlu0 %4930
        %4932 = vrot.lane.b32.xlu0 %v4881, 112
        %v4933 = vpop.permute.xlu0 %4932
        %v4934 = vsel %vm931, %v4931, %v4933
        %v4935 = vsel %vm931, %v4933, %v4931
        %v4936 = vsel %vm936, %v4934, 0.0
        %v4937 = vsel %vm937, %v4935, 0.0
        %4938 = vrot.lane.b32.xlu0 %v4880, 111
        %v4939 = vpop.permute.xlu0 %4938
        %4940 = vrot.lane.b32.xlu0 %v4881, 111
        %v4941 = vpop.permute.xlu0 %4940
        %v4942 = vsel %vm944, %v4939, %v4941
        %v4943 = vsel %vm944, %v4941, %v4939
        %v4944 = vsel %vm949, %v4942, 0.0
        %v4945 = vsel %vm950, %v4943, 0.0
        %v4947 = vsel %vm658, %v4896, 0
        %v4950 = vsel %vm658, %v4897, 0
        %4952 = vmatprep.subr.mxu0 %v4950
        %4953 = vmatpush1.msra.mxu0 %v4947
        %4954 = vmatprep.subr.mxu0 0.0
        %4955 = vmatpush1.msra.mxu0 0.0
        %4956 = vmatprep.subr.mxu0 0.0
        %4957 = vmatpush1.msra.mxu0 0.0
        %4958 = vmatprep.subr.mxu0 0.0
        %4959 = vmatpush1.msra.mxu0 0.0
        %4960 = vmatprep.subr.mxu0 0.0
        %4961 = vmatpush1.msra.mxu0 0.0
        %4962 = vmatprep.subr.mxu0 0.0
        %4963 = vmatpush1.msra.mxu0 0.0
        %4964 = vmatprep.subr.mxu0 0.0
        %4965 = vmatpush1.msra.mxu0 0.0
        %4966 = vmatprep.subr.mxu0 0.0
        %4967 = vmatpush1.msra.mxu0 0.0
        %4968 = vmatprep.subr.mxu0 0.0
        %4969 = vmatpush1.msra.mxu0 0.0
        %4970 = vmatprep.subr.mxu0 0.0
        %4971 = vmatpush1.msra.mxu0 0.0
        %4972 = vmatprep.subr.mxu0 0.0
        %4973 = vmatpush1.msra.mxu0 0.0
        %4974 = vmatprep.subr.mxu0 0.0
        %4975 = vmatpush1.msra.mxu0 0.0
        %4976 = vmatprep.subr.mxu0 0.0
        %4977 = vmatpush1.msra.mxu0 0.0
        %4978 = vmatprep.subr.mxu0 0.0
        %4979 = vmatpush1.msra.mxu0 0.0
        %4980 = vmatprep.subr.mxu0 0.0
        %4981 = vmatpush1.msra.mxu0 0.0
        %4982 = vmatprep.subr.mxu0 0.0
        %4983 = vmatpush1.msra.mxu0 0.0
        %4984 = vmatprep.subr.mxu0 0.0
        %4985 = vmatpush1.msra.mxu0 0.0
        %4986 = vmatprep.subr.mxu0 0.0
        %4987 = vmatpush1.msra.mxu0 0.0
        %4988 = vmatprep.subr.mxu0 0.0
        %4989 = vmatpush1.msra.mxu0 0.0
        %4990 = vmatprep.subr.mxu0 0.0
        %4991 = vmatpush1.msra.mxu0 0.0
        %4992 = vmatprep.subr.mxu0 0.0
        %4993 = vmatpush1.msra.mxu0 0.0
        %4994 = vmatprep.subr.mxu0 0.0
        %4995 = vmatpush1.msra.mxu0 0.0
        %4996 = vmatprep.subr.mxu0 0.0
        %4997 = vmatpush1.msra.mxu0 0.0
        %4998 = vmatprep.subr.mxu0 0.0
        %4999 = vmatpush1.msra.mxu0 0.0
        %5000 = vmatprep.subr.mxu0 0.0
        %5001 = vmatpush1.msra.mxu0 0.0
        %5002 = vmatprep.subr.mxu0 0.0
        %5003 = vmatpush1.msra.mxu0 0.0
        %5004 = vmatprep.subr.mxu0 0.0
        %5005 = vmatpush1.msra.mxu0 0.0
        %5006 = vmatprep.subr.mxu0 0.0
        %5007 = vmatpush1.msra.mxu0 0.0
        %5008 = vmatprep.subr.mxu0 0.0
        %5009 = vmatpush1.msra.mxu0 0.0
        %5010 = vmatprep.subr.mxu0 0.0
        %5011 = vmatpush1.msra.mxu0 0.0
        %5012 = vmatprep.subr.mxu0 0.0
        %5013 = vmatpush1.msra.mxu0 0.0
        %5014 = vmatprep.subr.mxu0 0.0
        %5015 = vmatpush1.msra.mxu0 0.0
        %5016 = vmatprep.mubr.f32.mxu0 0.0
        %5017 = vmatmul.mubr.f32.gmra.mrb[0].mxu0 %v957
        %v5018 = vpop.f32.mrb[0].mxu0
        %v5019 = vadd.f32 0.0, %v5018
        %v5020 = vpop.f32.mrb[0].mxu0
        %v5021 = vadd.f32 0.0, %v5020
        %5022 = vdwg.mxu0
        %v5024 = vsel %vm658, %v4888, 0
        %v5027 = vsel %vm658, %v4889, 0
        %5029 = vmatprep.subr.mxu0 %v5027
        %5030 = vmatpush1.msra.mxu0 %v5024
        %5031 = vmatprep.subr.mxu0 0.0
        %5032 = vmatpush1.msra.mxu0 0.0
        %5033 = vmatprep.subr.mxu0 0.0
        %5034 = vmatpush1.msra.mxu0 0.0
        %5035 = vmatprep.subr.mxu0 0.0
        %5036 = vmatpush1.msra.mxu0 0.0
        %5037 = vmatprep.subr.mxu0 0.0
        %5038 = vmatpush1.msra.mxu0 0.0
        %5039 = vmatprep.subr.mxu0 0.0
        %5040 = vmatpush1.msra.mxu0 0.0
        %5041 = vmatprep.subr.mxu0 0.0
        %5042 = vmatpush1.msra.mxu0 0.0
        %5043 = vmatprep.subr.mxu0 0.0
        %5044 = vmatpush1.msra.mxu0 0.0
        %5045 = vmatprep.subr.mxu0 0.0
        %5046 = vmatpush1.msra.mxu0 0.0
        %5047 = vmatprep.subr.mxu0 0.0
        %5048 = vmatpush1.msra.mxu0 0.0
        %5049 = vmatprep.subr.mxu0 0.0
        %5050 = vmatpush1.msra.mxu0 0.0
        %5051 = vmatprep.subr.mxu0 0.0
        %5052 = vmatpush1.msra.mxu0 0.0
        %5053 = vmatprep.subr.mxu0 0.0
        %5054 = vmatpush1.msra.mxu0 0.0
        %5055 = vmatprep.subr.mxu0 0.0
        %5056 = vmatpush1.msra.mxu0 0.0
        %5057 = vmatprep.subr.mxu0 0.0
        %5058 = vmatpush1.msra.mxu0 0.0
        %5059 = vmatprep.subr.mxu0 0.0
        %5060 = vmatpush1.msra.mxu0 0.0
        %5061 = vmatprep.subr.mxu0 0.0
        %5062 = vmatpush1.msra.mxu0 0.0
        %5063 = vmatprep.subr.mxu0 0.0
        %5064 = vmatpush1.msra.mxu0 0.0
        %5065 = vmatprep.subr.mxu0 0.0
        %5066 = vmatpush1.msra.mxu0 0.0
        %5067 = vmatprep.subr.mxu0 0.0
        %5068 = vmatpush1.msra.mxu0 0.0
        %5069 = vmatprep.subr.mxu0 0.0
        %5070 = vmatpush1.msra.mxu0 0.0
        %5071 = vmatprep.subr.mxu0 0.0
        %5072 = vmatpush1.msra.mxu0 0.0
        %5073 = vmatprep.subr.mxu0 0.0
        %5074 = vmatpush1.msra.mxu0 0.0
        %5075 = vmatprep.subr.mxu0 0.0
        %5076 = vmatpush1.msra.mxu0 0.0
        %5077 = vmatprep.subr.mxu0 0.0
        %5078 = vmatpush1.msra.mxu0 0.0
        %5079 = vmatprep.subr.mxu0 0.0
        %5080 = vmatpush1.msra.mxu0 0.0
        %5081 = vmatprep.subr.mxu0 0.0
        %5082 = vmatpush1.msra.mxu0 0.0
        %5083 = vmatprep.subr.mxu0 0.0
        %5084 = vmatpush1.msra.mxu0 0.0
        %5085 = vmatprep.subr.mxu0 0.0
        %5086 = vmatpush1.msra.mxu0 0.0
        %5087 = vmatprep.subr.mxu0 0.0
        %5088 = vmatpush1.msra.mxu0 0.0
        %5089 = vmatprep.subr.mxu0 0.0
        %5090 = vmatpush1.msra.mxu0 0.0
        %5091 = vmatprep.subr.mxu0 0.0
        %5092 = vmatpush1.msra.mxu0 0.0
        %5093 = vmatprep.mubr.f32.mxu0 0.0
        %5094 = vmatmul.mubr.f32.gmra.mrb[0].mxu0 %v1037
        %v5095 = vpop.f32.mrb[0].mxu0
        %v5096 = vadd.f32 %v5019, %v5095
        %v5097 = vpop.f32.mrb[0].mxu0
        %v5098 = vadd.f32 %v5021, %v5097
        %5099 = vdwg.mxu0
        %v5101 = vsel %vm658, %v4904, 0
        %v5104 = vsel %vm658, %v4905, 0
        %5106 = vmatprep.subr.mxu0 %v5104
        %5107 = vmatpush1.msra.mxu0 %v5101
        %5108 = vmatprep.subr.mxu0 0.0
        %5109 = vmatpush1.msra.mxu0 0.0
        %5110 = vmatprep.subr.mxu0 0.0
        %5111 = vmatpush1.msra.mxu0 0.0
        %5112 = vmatprep.subr.mxu0 0.0
        %5113 = vmatpush1.msra.mxu0 0.0
        %5114 = vmatprep.subr.mxu0 0.0
        %5115 = vmatpush1.msra.mxu0 0.0
        %5116 = vmatprep.subr.mxu0 0.0
        %5117 = vmatpush1.msra.mxu0 0.0
        %5118 = vmatprep.subr.mxu0 0.0
        %5119 = vmatpush1.msra.mxu0 0.0
        %5120 = vmatprep.subr.mxu0 0.0
        %5121 = vmatpush1.msra.mxu0 0.0
        %5122 = vmatprep.subr.mxu0 0.0
        %5123 = vmatpush1.msra.mxu0 0.0
        %5124 = vmatprep.subr.mxu0 0.0
        %5125 = vmatpush1.msra.mxu0 0.0
        %5126 = vmatprep.subr.mxu0 0.0
        %5127 = vmatpush1.msra.mxu0 0.0
        %5128 = vmatprep.subr.mxu0 0.0
        %5129 = vmatpush1.msra.mxu0 0.0
        %5130 = vmatprep.subr.mxu0 0.0
        %5131 = vmatpush1.msra.mxu0 0.0
        %5132 = vmatprep.subr.mxu0 0.0
        %5133 = vmatpush1.msra.mxu0 0.0
        %5134 = vmatprep.subr.mxu0 0.0
        %5135 = vmatpush1.msra.mxu0 0.0
        %5136 = vmatprep.subr.mxu0 0.0
        %5137 = vmatpush1.msra.mxu0 0.0
        %5138 = vmatprep.subr.mxu0 0.0
        %5139 = vmatpush1.msra.mxu0 0.0
        %5140 = vmatprep.subr.mxu0 0.0
        %5141 = vmatpush1.msra.mxu0 0.0
        %5142 = vmatprep.subr.mxu0 0.0
        %5143 = vmatpush1.msra.mxu0 0.0
        %5144 = vmatprep.subr.mxu0 0.0
        %5145 = vmatpush1.msra.mxu0 0.0
        %5146 = vmatprep.subr.mxu0 0.0
        %5147 = vmatpush1.msra.mxu0 0.0
        %5148 = vmatprep.subr.mxu0 0.0
        %5149 = vmatpush1.msra.mxu0 0.0
        %5150 = vmatprep.subr.mxu0 0.0
        %5151 = vmatpush1.msra.mxu0 0.0
        %5152 = vmatprep.subr.mxu0 0.0
        %5153 = vmatpush1.msra.mxu0 0.0
        %5154 = vmatprep.subr.mxu0 0.0
        %5155 = vmatpush1.msra.mxu0 0.0
        %5156 = vmatprep.subr.mxu0 0.0
        %5157 = vmatpush1.msra.mxu0 0.0
        %5158 = vmatprep.subr.mxu0 0.0
        %5159 = vmatpush1.msra.mxu0 0.0
        %5160 = vmatprep.subr.mxu0 0.0
        %5161 = vmatpush1.msra.mxu0 0.0
        %5162 = vmatprep.subr.mxu0 0.0
        %5163 = vmatpush1.msra.mxu0 0.0
        %5164 = vmatprep.subr.mxu0 0.0
        %5165 = vmatpush1.msra.mxu0 0.0
        %5166 = vmatprep.subr.mxu0 0.0
        %5167 = vmatpush1.msra.mxu0 0.0
        %5168 = vmatprep.subr.mxu0 0.0
        %5169 = vmatpush1.msra.mxu0 0.0
        %5170 = vmatprep.mubr.f32.mxu0 0.0
        %5171 = vmatmul.mubr.f32.gmra.mrb[0].mxu0 %v1119
        %v5172 = vpop.f32.mrb[0].mxu0
        %v5173 = vadd.f32 0.0, %v5172
        %v5174 = vpop.f32.mrb[0].mxu0
        %v5175 = vadd.f32 0.0, %v5174
        %5176 = vdwg.mxu0
        %v5177 = vadd.f32 %v5096, %v5173
        %v5178 = vadd.f32 %v5098, %v5175
        %v5180 = vsel %vm658, %v4912, 0
        %v5183 = vsel %vm658, %v4913, 0
        %5185 = vmatprep.subr.mxu0 %v5183
        %5186 = vmatpush1.msra.mxu0 %v5180
        %5187 = vmatprep.subr.mxu0 0.0
        %5188 = vmatpush1.msra.mxu0 0.0
        %5189 = vmatprep.subr.mxu0 0.0
        %5190 = vmatpush1.msra.mxu0 0.0
        %5191 = vmatprep.subr.mxu0 0.0
        %5192 = vmatpush1.msra.mxu0 0.0
        %5193 = vmatprep.subr.mxu0 0.0
        %5194 = vmatpush1.msra.mxu0 0.0
        %5195 = vmatprep.subr.mxu0 0.0
        %5196 = vmatpush1.msra.mxu0 0.0
        %5197 = vmatprep.subr.mxu0 0.0
        %5198 = vmatpush1.msra.mxu0 0.0
        %5199 = vmatprep.subr.mxu0 0.0
        %5200 = vmatpush1.msra.mxu0 0.0
        %5201 = vmatprep.subr.mxu0 0.0
        %5202 = vmatpush1.msra.mxu0 0.0
        %5203 = vmatprep.subr.mxu0 0.0
        %5204 = vmatpush1.msra.mxu0 0.0
        %5205 = vmatprep.subr.mxu0 0.0
        %5206 = vmatpush1.msra.mxu0 0.0
        %5207 = vmatprep.subr.mxu0 0.0
        %5208 = vmatpush1.msra.mxu0 0.0
        %5209 = vmatprep.subr.mxu0 0.0
        %5210 = vmatpush1.msra.mxu0 0.0
        %5211 = vmatprep.subr.mxu0 0.0
        %5212 = vmatpush1.msra.mxu0 0.0
        %5213 = vmatprep.subr.mxu0 0.0
        %5214 = vmatpush1.msra.mxu0 0.0
        %5215 = vmatprep.subr.mxu0 0.0
        %5216 = vmatpush1.msra.mxu0 0.0
        %5217 = vmatprep.subr.mxu0 0.0
        %5218 = vmatpush1.msra.mxu0 0.0
        %5219 = vmatprep.subr.mxu0 0.0
        %5220 = vmatpush1.msra.mxu0 0.0
        %5221 = vmatprep.subr.mxu0 0.0
        %5222 = vmatpush1.msra.mxu0 0.0
        %5223 = vmatprep.subr.mxu0 0.0
        %5224 = vmatpush1.msra.mxu0 0.0
        %5225 = vmatprep.subr.mxu0 0.0
        %5226 = vmatpush1.msra.mxu0 0.0
        %5227 = vmatprep.subr.mxu0 0.0
        %5228 = vmatpush1.msra.mxu0 0.0
        %5229 = vmatprep.subr.mxu0 0.0
        %5230 = vmatpush1.msra.mxu0 0.0
        %5231 = vmatprep.subr.mxu0 0.0
        %5232 = vmatpush1.msra.mxu0 0.0
        %5233 = vmatprep.subr.mxu0 0.0
        %5234 = vmatpush1.msra.mxu0 0.0
        %5235 = vmatprep.subr.mxu0 0.0
        %5236 = vmatpush1.msra.mxu0 0.0
        %5237 = vmatprep.subr.mxu0 0.0
        %5238 = vmatpush1.msra.mxu0 0.0
        %5239 = vmatprep.subr.mxu0 0.0
        %5240 = vmatpush1.msra.mxu0 0.0
        %5241 = vmatprep.subr.mxu0 0.0
        %5242 = vmatpush1.msra.mxu0 0.0
        %5243 = vmatprep.subr.mxu0 0.0
        %5244 = vmatpush1.msra.mxu0 0.0
        %5245 = vmatprep.subr.mxu0 0.0
        %5246 = vmatpush1.msra.mxu0 0.0
        %5247 = vmatprep.subr.mxu0 0.0
        %5248 = vmatpush1.msra.mxu0 0.0
        %5249 = vmatprep.mubr.f32.mxu0 0.0
        %5250 = vmatmul.mubr.f32.gmra.mrb[0].mxu0 %v1203
        %v5251 = vpop.f32.mrb[0].mxu0
        %v5252 = vadd.f32 0.0, %v5251
        %v5253 = vpop.f32.mrb[0].mxu0
        %v5254 = vadd.f32 0.0, %v5253
        %5255 = vdwg.mxu0
        %v5256 = vadd.f32 %v5177, %v5252
        %v5257 = vadd.f32 %v5178, %v5254
        %v5259 = vsel %vm658, %v4880, 0
        %v5262 = vsel %vm658, %v4881, 0
        %5264 = vmatprep.subr.mxu0 %v5262
        %5265 = vmatpush1.msra.mxu0 %v5259
        %5266 = vmatprep.subr.mxu0 0.0
        %5267 = vmatpush1.msra.mxu0 0.0
        %5268 = vmatprep.subr.mxu0 0.0
        %5269 = vmatpush1.msra.mxu0 0.0
        %5270 = vmatprep.subr.mxu0 0.0
        %5271 = vmatpush1.msra.mxu0 0.0
        %5272 = vmatprep.subr.mxu0 0.0
        %5273 = vmatpush1.msra.mxu0 0.0
        %5274 = vmatprep.subr.mxu0 0.0
        %5275 = vmatpush1.msra.mxu0 0.0
        %5276 = vmatprep.subr.mxu0 0.0
        %5277 = vmatpush1.msra.mxu0 0.0
        %5278 = vmatprep.subr.mxu0 0.0
        %5279 = vmatpush1.msra.mxu0 0.0
        %5280 = vmatprep.subr.mxu0 0.0
        %5281 = vmatpush1.msra.mxu0 0.0
        %5282 = vmatprep.subr.mxu0 0.0
        %5283 = vmatpush1.msra.mxu0 0.0
        %5284 = vmatprep.subr.mxu0 0.0
        %5285 = vmatpush1.msra.mxu0 0.0
        %5286 = vmatprep.subr.mxu0 0.0
        %5287 = vmatpush1.msra.mxu0 0.0
        %5288 = vmatprep.subr.mxu0 0.0
        %5289 = vmatpush1.msra.mxu0 0.0
        %5290 = vmatprep.subr.mxu0 0.0
        %5291 = vmatpush1.msra.mxu0 0.0
        %5292 = vmatprep.subr.mxu0 0.0
        %5293 = vmatpush1.msra.mxu0 0.0
        %5294 = vmatprep.subr.mxu0 0.0
        %5295 = vmatpush1.msra.mxu0 0.0
        %5296 = vmatprep.subr.mxu0 0.0
        %5297 = vmatpush1.msra.mxu0 0.0
        %5298 = vmatprep.subr.mxu0 0.0
        %5299 = vmatpush1.msra.mxu0 0.0
        %5300 = vmatprep.subr.mxu0 0.0
        %5301 = vmatpush1.msra.mxu0 0.0
        %5302 = vmatprep.subr.mxu0 0.0
        %5303 = vmatpush1.msra.mxu0 0.0
        %5304 = vmatprep.subr.mxu0 0.0
        %5305 = vmatpush1.msra.mxu0 0.0
        %5306 = vmatprep.subr.mxu0 0.0
        %5307 = vmatpush1.msra.mxu0 0.0
        %5308 = vmatprep.subr.mxu0 0.0
        %5309 = vmatpush1.msra.mxu0 0.0
        %5310 = vmatprep.subr.mxu0 0.0
        %5311 = vmatpush1.msra.mxu0 0.0
        %5312 = vmatprep.subr.mxu0 0.0
        %5313 = vmatpush1.msra.mxu0 0.0
        %5314 = vmatprep.subr.mxu0 0.0
        %5315 = vmatpush1.msra.mxu0 0.0
        %5316 = vmatprep.subr.mxu0 0.0
        %5317 = vmatpush1.msra.mxu0 0.0
        %5318 = vmatprep.subr.mxu0 0.0
        %5319 = vmatpush1.msra.mxu0 0.0
        %5320 = vmatprep.subr.mxu0 0.0
        %5321 = vmatpush1.msra.mxu0 0.0
        %5322 = vmatprep.subr.mxu0 0.0
        %5323 = vmatpush1.msra.mxu0 0.0
        %5324 = vmatprep.subr.mxu0 0.0
        %5325 = vmatpush1.msra.mxu0 0.0
        %5326 = vmatprep.subr.mxu0 0.0
        %5327 = vmatpush1.msra.mxu0 0.0
        %5328 = vmatprep.mubr.f32.mxu0 0.0
        %5329 = vmatmul.mubr.f32.gmra.mrb[0].mxu0 %v1287
        %v5330 = vpop.f32.mrb[0].mxu0
        %v5331 = vadd.f32 0.0, %v5330
        %v5332 = vpop.f32.mrb[0].mxu0
        %v5333 = vadd.f32 0.0, %v5332
        %5334 = vdwg.mxu0
        %v5335 = vadd.f32 %v5256, %v5331
        %v5336 = vadd.f32 %v5257, %v5333
        %v5338 = vsel %vm658, %v4920, 0
        %v5341 = vsel %vm658, %v4921, 0
        %5343 = vmatprep.subr.mxu0 %v5341
        %5344 = vmatpush1.msra.mxu0 %v5338
        %5345 = vmatprep.subr.mxu0 0.0
        %5346 = vmatpush1.msra.mxu0 0.0
        %5347 = vmatprep.subr.mxu0 0.0
        %5348 = vmatpush1.msra.mxu0 0.0
        %5349 = vmatprep.subr.mxu0 0.0
        %5350 = vmatpush1.msra.mxu0 0.0
        %5351 = vmatprep.subr.mxu0 0.0
        %5352 = vmatpush1.msra.mxu0 0.0
        %5353 = vmatprep.subr.mxu0 0.0
        %5354 = vmatpush1.msra.mxu0 0.0
        %5355 = vmatprep.subr.mxu0 0.0
        %5356 = vmatpush1.msra.mxu0 0.0
        %5357 = vmatprep.subr.mxu0 0.0
        %5358 = vmatpush1.msra.mxu0 0.0
        %5359 = vmatprep.subr.mxu0 0.0
        %5360 = vmatpush1.msra.mxu0 0.0
        %5361 = vmatprep.subr.mxu0 0.0
        %5362 = vmatpush1.msra.mxu0 0.0
        %5363 = vmatprep.subr.mxu0 0.0
        %5364 = vmatpush1.msra.mxu0 0.0
        %5365 = vmatprep.subr.mxu0 0.0
        %5366 = vmatpush1.msra.mxu0 0.0
        %5367 = vmatprep.subr.mxu0 0.0
        %5368 = vmatpush1.msra.mxu0 0.0
        %5369 = vmatprep.subr.mxu0 0.0
        %5370 = vmatpush1.msra.mxu0 0.0
        %5371 = vmatprep.subr.mxu0 0.0
        %5372 = vmatpush1.msra.mxu0 0.0
        %5373 = vmatprep.subr.mxu0 0.0
        %5374 = vmatpush1.msra.mxu0 0.0
        %5375 = vmatprep.subr.mxu0 0.0
        %5376 = vmatpush1.msra.mxu0 0.0
        %5377 = vmatprep.subr.mxu0 0.0
        %5378 = vmatpush1.msra.mxu0 0.0
        %5379 = vmatprep.subr.mxu0 0.0
        %5380 = vmatpush1.msra.mxu0 0.0
        %5381 = vmatprep.subr.mxu0 0.0
        %5382 = vmatpush1.msra.mxu0 0.0
        %5383 = vmatprep.subr.mxu0 0.0
        %5384 = vmatpush1.msra.mxu0 0.0
        %5385 = vmatprep.subr.mxu0 0.0
        %5386 = vmatpush1.msra.mxu0 0.0
        %5387 = vmatprep.subr.mxu0 0.0
        %5388 = vmatpush1.msra.mxu0 0.0
        %5389 = vmatprep.subr.mxu0 0.0
        %5390 = vmatpush1.msra.mxu0 0.0
        %5391 = vmatprep.subr.mxu0 0.0
        %5392 = vmatpush1.msra.mxu0 0.0
        %5393 = vmatprep.subr.mxu0 0.0
        %5394 = vmatpush1.msra.mxu0 0.0
        %5395 = vmatprep.subr.mxu0 0.0
        %5396 = vmatpush1.msra.mxu0 0.0
        %5397 = vmatprep.subr.mxu0 0.0
        %5398 = vmatpush1.msra.mxu0 0.0
        %5399 = vmatprep.subr.mxu0 0.0
        %5400 = vmatpush1.msra.mxu0 0.0
        %5401 = vmatprep.subr.mxu0 0.0
        %5402 = vmatpush1.msra.mxu0 0.0
        %5403 = vmatprep.subr.mxu0 0.0
        %5404 = vmatpush1.msra.mxu0 0.0
        %5405 = vmatprep.subr.mxu0 0.0
        %5406 = vmatpush1.msra.mxu0 0.0
        %5407 = vmatprep.mubr.f32.mxu0 0.0
        %5408 = vmatmul.mubr.f32.gmra.mrb[0].mxu0 %v1371
        %v5409 = vpop.f32.mrb[0].mxu0
        %v5410 = vadd.f32 0.0, %v5409
        %v5411 = vpop.f32.mrb[0].mxu0
        %v5412 = vadd.f32 0.0, %v5411
        %5413 = vdwg.mxu0
        %v5414 = vadd.f32 %v5335, %v5410
        %v5415 = vadd.f32 %v5336, %v5412
        %v5417 = vsel %vm658, %v4928, 0
        %v5420 = vsel %vm658, %v4929, 0
        %5422 = vmatprep.subr.mxu0 %v5420
        %5423 = vmatpush1.msra.mxu0 %v5417
        %5424 = vmatprep.subr.mxu0 0.0
        %5425 = vmatpush1.msra.mxu0 0.0
        %5426 = vmatprep.subr.mxu0 0.0
        %5427 = vmatpush1.msra.mxu0 0.0
        %5428 = vmatprep.subr.mxu0 0.0
        %5429 = vmatpush1.msra.mxu0 0.0
        %5430 = vmatprep.subr.mxu0 0.0
        %5431 = vmatpush1.msra.mxu0 0.0
        %5432 = vmatprep.subr.mxu0 0.0
        %5433 = vmatpush1.msra.mxu0 0.0
        %5434 = vmatprep.subr.mxu0 0.0
        %5435 = vmatpush1.msra.mxu0 0.0
        %5436 = vmatprep.subr.mxu0 0.0
        %5437 = vmatpush1.msra.mxu0 0.0
        %5438 = vmatprep.subr.mxu0 0.0
        %5439 = vmatpush1.msra.mxu0 0.0
        %5440 = vmatprep.subr.mxu0 0.0
        %5441 = vmatpush1.msra.mxu0 0.0
        %5442 = vmatprep.subr.mxu0 0.0
        %5443 = vmatpush1.msra.mxu0 0.0
        %5444 = vmatprep.subr.mxu0 0.0
        %5445 = vmatpush1.msra.mxu0 0.0
        %5446 = vmatprep.subr.mxu0 0.0
        %5447 = vmatpush1.msra.mxu0 0.0
        %5448 = vmatprep.subr.mxu0 0.0
        %5449 = vmatpush1.msra.mxu0 0.0
        %5450 = vmatprep.subr.mxu0 0.0
        %5451 = vmatpush1.msra.mxu0 0.0
        %5452 = vmatprep.subr.mxu0 0.0
        %5453 = vmatpush1.msra.mxu0 0.0
        %5454 = vmatprep.subr.mxu0 0.0
        %5455 = vmatpush1.msra.mxu0 0.0
        %5456 = vmatprep.subr.mxu0 0.0
        %5457 = vmatpush1.msra.mxu0 0.0
        %5458 = vmatprep.subr.mxu0 0.0
        %5459 = vmatpush1.msra.mxu0 0.0
        %5460 = vmatprep.subr.mxu0 0.0
        %5461 = vmatpush1.msra.mxu0 0.0
        %5462 = vmatprep.subr.mxu0 0.0
        %5463 = vmatpush1.msra.mxu0 0.0
        %5464 = vmatprep.subr.mxu0 0.0
        %5465 = vmatpush1.msra.mxu0 0.0
        %5466 = vmatprep.subr.mxu0 0.0
        %5467 = vmatpush1.msra.mxu0 0.0
        %5468 = vmatprep.subr.mxu0 0.0
        %5469 = vmatpush1.msra.mxu0 0.0
        %5470 = vmatprep.subr.mxu0 0.0
        %5471 = vmatpush1.msra.mxu0 0.0
        %5472 = vmatprep.subr.mxu0 0.0
        %5473 = vmatpush1.msra.mxu0 0.0
        %5474 = vmatprep.subr.mxu0 0.0
        %5475 = vmatpush1.msra.mxu0 0.0
        %5476 = vmatprep.subr.mxu0 0.0
        %5477 = vmatpush1.msra.mxu0 0.0
        %5478 = vmatprep.subr.mxu0 0.0
        %5479 = vmatpush1.msra.mxu0 0.0
        %5480 = vmatprep.subr.mxu0 0.0
        %5481 = vmatpush1.msra.mxu0 0.0
        %5482 = vmatprep.subr.mxu0 0.0
        %5483 = vmatpush1.msra.mxu0 0.0
        %5484 = vmatprep.subr.mxu0 0.0
        %5485 = vmatpush1.msra.mxu0 0.0
        %5486 = vmatprep.mubr.f32.mxu0 0.0
        %5487 = vmatmul.mubr.f32.gmra.mrb[0].mxu0 %v1455
        %v5488 = vpop.f32.mrb[0].mxu0
        %v5489 = vadd.f32 0.0, %v5488
        %v5490 = vpop.f32.mrb[0].mxu0
        %v5491 = vadd.f32 0.0, %v5490
        %5492 = vdwg.mxu0
        %v5493 = vadd.f32 %v5414, %v5489
        %v5494 = vadd.f32 %v5415, %v5491
        %v5496 = vsel %vm658, %v4936, 0
        %v5499 = vsel %vm658, %v4937, 0
        %5501 = vmatprep.subr.mxu0 %v5499
        %5502 = vmatpush1.msra.mxu0 %v5496
        %5503 = vmatprep.subr.mxu0 0.0
        %5504 = vmatpush1.msra.mxu0 0.0
        %5505 = vmatprep.subr.mxu0 0.0
        %5506 = vmatpush1.msra.mxu0 0.0
        %5507 = vmatprep.subr.mxu0 0.0
        %5508 = vmatpush1.msra.mxu0 0.0
        %5509 = vmatprep.subr.mxu0 0.0
        %5510 = vmatpush1.msra.mxu0 0.0
        %5511 = vmatprep.subr.mxu0 0.0
        %5512 = vmatpush1.msra.mxu0 0.0
        %5513 = vmatprep.subr.mxu0 0.0
        %5514 = vmatpush1.msra.mxu0 0.0
        %5515 = vmatprep.subr.mxu0 0.0
        %5516 = vmatpush1.msra.mxu0 0.0
        %5517 = vmatprep.subr.mxu0 0.0
        %5518 = vmatpush1.msra.mxu0 0.0
        %5519 = vmatprep.subr.mxu0 0.0
        %5520 = vmatpush1.msra.mxu0 0.0
        %5521 = vmatprep.subr.mxu0 0.0
        %5522 = vmatpush1.msra.mxu0 0.0
        %5523 = vmatprep.subr.mxu0 0.0
        %5524 = vmatpush1.msra.mxu0 0.0
        %5525 = vmatprep.subr.mxu0 0.0
        %5526 = vmatpush1.msra.mxu0 0.0
        %5527 = vmatprep.subr.mxu0 0.0
        %5528 = vmatpush1.msra.mxu0 0.0
        %5529 = vmatprep.subr.mxu0 0.0
        %5530 = vmatpush1.msra.mxu0 0.0
        %5531 = vmatprep.subr.mxu0 0.0
        %5532 = vmatpush1.msra.mxu0 0.0
        %5533 = vmatprep.subr.mxu0 0.0
        %5534 = vmatpush1.msra.mxu0 0.0
        %5535 = vmatprep.subr.mxu0 0.0
        %5536 = vmatpush1.msra.mxu0 0.0
        %5537 = vmatprep.subr.mxu0 0.0
        %5538 = vmatpush1.msra.mxu0 0.0
        %5539 = vmatprep.subr.mxu0 0.0
        %5540 = vmatpush1.msra.mxu0 0.0
        %5541 = vmatprep.subr.mxu0 0.0
        %5542 = vmatpush1.msra.mxu0 0.0
        %5543 = vmatprep.subr.mxu0 0.0
        %5544 = vmatpush1.msra.mxu0 0.0
        %5545 = vmatprep.subr.mxu0 0.0
        %5546 = vmatpush1.msra.mxu0 0.0
        %5547 = vmatprep.subr.mxu0 0.0
        %5548 = vmatpush1.msra.mxu0 0.0
        %5549 = vmatprep.subr.mxu0 0.0
        %5550 = vmatpush1.msra.mxu0 0.0
        %5551 = vmatprep.subr.mxu0 0.0
        %5552 = vmatpush1.msra.mxu0 0.0
        %5553 = vmatprep.subr.mxu0 0.0
        %5554 = vmatpush1.msra.mxu0 0.0
        %5555 = vmatprep.subr.mxu0 0.0
        %5556 = vmatpush1.msra.mxu0 0.0
        %5557 = vmatprep.subr.mxu0 0.0
        %5558 = vmatpush1.msra.mxu0 0.0
        %5559 = vmatprep.subr.mxu0 0.0
        %5560 = vmatpush1.msra.mxu0 0.0
        %5561 = vmatprep.subr.mxu0 0.0
        %5562 = vmatpush1.msra.mxu0 0.0
        %5563 = vmatprep.subr.mxu0 0.0
        %5564 = vmatpush1.msra.mxu0 0.0
        %5565 = vmatprep.mubr.f32.mxu0 0.0
        %5566 = vmatmul.mubr.f32.gmra.mrb[0].mxu0 %v1539
        %v5567 = vpop.f32.mrb[0].mxu0
        %v5568 = vadd.f32 0.0, %v5567
        %v5569 = vpop.f32.mrb[0].mxu0
        %v5570 = vadd.f32 0.0, %v5569
        %5571 = vdwg.mxu0
        %v5572 = vadd.f32 %v5493, %v5568
        %v5573 = vadd.f32 %v5494, %v5570
        %v5575 = vsel %vm658, %v4944, 0
        %v5578 = vsel %vm658, %v4945, 0
        %5580 = vmatprep.subr.mxu0 %v5578
        %5581 = vmatpush1.msra.mxu0 %v5575
        %5582 = vmatprep.subr.mxu0 0.0
        %5583 = vmatpush1.msra.mxu0 0.0
        %5584 = vmatprep.subr.mxu0 0.0
        %5585 = vmatpush1.msra.mxu0 0.0
        %5586 = vmatprep.subr.mxu0 0.0
        %5587 = vmatpush1.msra.mxu0 0.0
        %5588 = vmatprep.subr.mxu0 0.0
        %5589 = vmatpush1.msra.mxu0 0.0
        %5590 = vmatprep.subr.mxu0 0.0
        %5591 = vmatpush1.msra.mxu0 0.0
        %5592 = vmatprep.subr.mxu0 0.0
        %5593 = vmatpush1.msra.mxu0 0.0
        %5594 = vmatprep.subr.mxu0 0.0
        %5595 = vmatpush1.msra.mxu0 0.0
        %5596 = vmatprep.subr.mxu0 0.0
        %5597 = vmatpush1.msra.mxu0 0.0
        %5598 = vmatprep.subr.mxu0 0.0
        %5599 = vmatpush1.msra.mxu0 0.0
        %5600 = vmatprep.subr.mxu0 0.0
        %5601 = vmatpush1.msra.mxu0 0.0
        %5602 = vmatprep.subr.mxu0 0.0
        %5603 = vmatpush1.msra.mxu0 0.0
        %5604 = vmatprep.subr.mxu0 0.0
        %5605 = vmatpush1.msra.mxu0 0.0
        %5606 = vmatprep.subr.mxu0 0.0
        %5607 = vmatpush1.msra.mxu0 0.0
        %5608 = vmatprep.subr.mxu0 0.0
        %5609 = vmatpush1.msra.mxu0 0.0
        %5610 = vmatprep.subr.mxu0 0.0
        %5611 = vmatpush1.msra.mxu0 0.0
        %5612 = vmatprep.subr.mxu0 0.0
        %5613 = vmatpush1.msra.mxu0 0.0
        %5614 = vmatprep.subr.mxu0 0.0
        %5615 = vmatpush1.msra.mxu0 0.0
        %5616 = vmatprep.subr.mxu0 0.0
        %5617 = vmatpush1.msra.mxu0 0.0
        %5618 = vmatprep.subr.mxu0 0.0
        %5619 = vmatpush1.msra.mxu0 0.0
        %5620 = vmatprep.subr.mxu0 0.0
        %5621 = vmatpush1.msra.mxu0 0.0
        %5622 = vmatprep.subr.mxu0 0.0
        %5623 = vmatpush1.msra.mxu0 0.0
        %5624 = vmatprep.subr.mxu0 0.0
        %5625 = vmatpush1.msra.mxu0 0.0
        %5626 = vmatprep.subr.mxu0 0.0
        %5627 = vmatpush1.msra.mxu0 0.0
        %5628 = vmatprep.subr.mxu0 0.0
        %5629 = vmatpush1.msra.mxu0 0.0
        %5630 = vmatprep.subr.mxu0 0.0
        %5631 = vmatpush1.msra.mxu0 0.0
        %5632 = vmatprep.subr.mxu0 0.0
        %5633 = vmatpush1.msra.mxu0 0.0
        %5634 = vmatprep.subr.mxu0 0.0
        %5635 = vmatpush1.msra.mxu0 0.0
        %5636 = vmatprep.subr.mxu0 0.0
        %5637 = vmatpush1.msra.mxu0 0.0
        %5638 = vmatprep.subr.mxu0 0.0
        %5639 = vmatpush1.msra.mxu0 0.0
        %5640 = vmatprep.subr.mxu0 0.0
        %5641 = vmatpush1.msra.mxu0 0.0
        %5642 = vmatprep.subr.mxu0 0.0
        %5643 = vmatpush1.msra.mxu0 0.0
        %5644 = vmatprep.mubr.f32.mxu0 0.0
        %5645 = vmatmul.mubr.f32.gmra.mrb[0].mxu0 %v1623
        %v5646 = vpop.f32.mrb[0].mxu0
        %v5647 = vadd.f32 0.0, %v5646
        %v5648 = vpop.f32.mrb[0].mxu0
        %v5649 = vadd.f32 0.0, %v5648
        %5650 = vdwg.mxu0
        %v5651 = vadd.f32 %v5572, %v5647
        %v5652 = vadd.f32 %v5573, %v5649
        %v5653 = vadd.f32 %v5651, %v1708
        %v5654 = vadd.f32 %v5652, %v1708
        %v5655 = vxor.u32 %v5653, 2147483648
        %v5656 = vxor.u32 %v5654, 2147483648
        %v5657 = vmul.f32 %v5655, 1.442695
        %v5658 = vpow.pop %v5657
        %v5659 = vmul.f32 %v5656, 1.442695
        %v5660 = vpow.pop %v5659
        %v5661 = vadd.f32 %v5658, 1.0
        %v5662 = vadd.f32 %v5660, 1.0
        %v5663 = vrcp.pop %v5661
        %v5664 = vmul.f32 1.0, %v5663
        %v5665 = vrcp.pop %v5662
        %v5666 = vmul.f32 1.0, %v5665
        %v5667 = vmul.f32 %v5653, %v5664
        %v5668 = vmul.f32 %v5654, %v5666
        %5669 = vrot.lane.b32.xlu0 %v5667, 17
        %v5670 = vpop.permute.xlu0 %5669
        %5671 = vrot.lane.b32.xlu0 %v5668, 17
        %v5672 = vpop.permute.xlu0 %5671
        %v5673 = vsel %vm853, %v5670, %v5672
        %v5674 = vsel %vm853, %v5672, %v5670
        %v5675 = vsel %vm858, %v5674, 0.0
        %v5676 = vsel %vm859, %v5673, 0.0
        %5677 = vrot.lane.b32.xlu0 %v5667, 16
        %v5678 = vpop.permute.xlu0 %5677
        %5679 = vrot.lane.b32.xlu0 %v5668, 16
        %v5680 = vpop.permute.xlu0 %5679
        %v5681 = vsel %vm866, %v5678, %v5680
        %v5682 = vsel %vm866, %v5680, %v5678
        %v5683 = vsel %vm871, %v5682, 0.0
        %v5684 = vsel %vm872, %v5681, 0.0
        %5685 = vrot.lane.b32.xlu0 %v5667, 15
        %v5686 = vpop.permute.xlu0 %5685
        %5687 = vrot.lane.b32.xlu0 %v5668, 15
        %v5688 = vpop.permute.xlu0 %5687
        %v5689 = vsel %vm879, %v5686, %v5688
        %v5690 = vsel %vm879, %v5688, %v5686
        %v5691 = vsel %vm884, %v5690, 0.0
        %v5692 = vsel %vm885, %v5689, 0.0
        %5693 = vrot.lane.b32.xlu0 %v5667, 1
        %v5694 = vpop.permute.xlu0 %5693
        %5695 = vrot.lane.b32.xlu0 %v5668, 1
        %v5696 = vpop.permute.xlu0 %5695
        %v5697 = vsel %vm892, %v5694, %v5696
        %v5698 = vsel %vm892, %v5696, %v5694
        %v5699 = vsel %vm897, %v5698, 0.0
        %v5700 = vsel %vm898, %v5697, 0.0
        %5701 = vrot.lane.b32.xlu0 %v5667, 127
        %v5702 = vpop.permute.xlu0 %5701
        %5703 = vrot.lane.b32.xlu0 %v5668, 127
        %v5704 = vpop.permute.xlu0 %5703
        %v5705 = vsel %vm905, %v5702, %v5704
        %v5706 = vsel %vm905, %v5704, %v5702
        %v5707 = vsel %vm910, %v5705, 0.0
        %v5708 = vsel %vm911, %v5706, 0.0
        %5709 = vrot.lane.b32.xlu0 %v5667, 113
        %v5710 = vpop.permute.xlu0 %5709
        %5711 = vrot.lane.b32.xlu0 %v5668, 113
        %v5712 = vpop.permute.xlu0 %5711
        %v5713 = vsel %vm918, %v5710, %v5712
        %v5714 = vsel %vm918, %v5712, %v5710
        %v5715 = vsel %vm923, %v5713, 0.0
        %v5716 = vsel %vm924, %v5714, 0.0
        %5717 = vrot.lane.b32.xlu0 %v5667, 112
        %v5718 = vpop.permute.xlu0 %5717
        %5719 = vrot.lane.b32.xlu0 %v5668, 112
        %v5720 = vpop.permute.xlu0 %5719
        %v5721 = vsel %vm931, %v5718, %v5720
        %v5722 = vsel %vm931, %v5720, %v5718
        %v5723 = vsel %vm936, %v5721, 0.0
        %v5724 = vsel %vm937, %v5722, 0.0
        %5725 = vrot.lane.b32.xlu0 %v5667, 111
        %v5726 = vpop.permute.xlu0 %5725
        %5727 = vrot.lane.b32.xlu0 %v5668, 111
        %v5728 = vpop.permute.xlu0 %5727
        %v5729 = vsel %vm944, %v5726, %v5728
        %v5730 = vsel %vm944, %v5728, %v5726
        %v5731 = vsel %vm949, %v5729, 0.0
        %v5732 = vsel %vm950, %v5730, 0.0
        %5733 = vrot.lane.b32.xlu0 %v4091, 17
        %v5734 = vpop.permute.xlu0 %5733
        %5735 = vrot.lane.b32.xlu0 %v4092, 17
        %v5736 = vpop.permute.xlu0 %5735
        %v5737 = vsel %vm853, %v5734, %v5736
        %v5738 = vsel %vm853, %v5736, %v5734
        %v5739 = vsel %vm858, %v5738, 0.0
        %v5740 = vsel %vm859, %v5737, 0.0
        %5741 = vrot.lane.b32.xlu0 %v4091, 16
        %v5742 = vpop.permute.xlu0 %5741
        %5743 = vrot.lane.b32.xlu0 %v4092, 16
        %v5744 = vpop.permute.xlu0 %5743
        %v5745 = vsel %vm866, %v5742, %v5744
        %v5746 = vsel %vm866, %v5744, %v5742
        %v5747 = vsel %vm871, %v5746, 0.0
        %v5748 = vsel %vm872, %v5745, 0.0
        %5749 = vrot.lane.b32.xlu0 %v4091, 15
        %v5750 = vpop.permute.xlu0 %5749
        %5751 = vrot.lane.b32.xlu0 %v4092, 15
        %v5752 = vpop.permute.xlu0 %5751
        %v5753 = vsel %vm879, %v5750, %v5752
        %v5754 = vsel %vm879, %v5752, %v5750
        %v5755 = vsel %vm884, %v5754, 0.0
        %v5756 = vsel %vm885, %v5753, 0.0
        %5757 = vrot.lane.b32.xlu0 %v4091, 1
        %v5758 = vpop.permute.xlu0 %5757
        %5759 = vrot.lane.b32.xlu0 %v4092, 1
        %v5760 = vpop.permute.xlu0 %5759
        %v5761 = vsel %vm892, %v5758, %v5760
        %v5762 = vsel %vm892, %v5760, %v5758
        %v5763 = vsel %vm897, %v5762, 0.0
        %v5764 = vsel %vm898, %v5761, 0.0
        %5765 = vrot.lane.b32.xlu0 %v4091, 127
        %v5766 = vpop.permute.xlu0 %5765
        %5767 = vrot.lane.b32.xlu0 %v4092, 127
        %v5768 = vpop.permute.xlu0 %5767
        %v5769 = vsel %vm905, %v5766, %v5768
        %v5770 = vsel %vm905, %v5768, %v5766
        %v5771 = vsel %vm910, %v5769, 0.0
        %v5772 = vsel %vm911, %v5770, 0.0
        %5773 = vrot.lane.b32.xlu0 %v4091, 113
        %v5774 = vpop.permute.xlu0 %5773
        %5775 = vrot.lane.b32.xlu0 %v4092, 113
        %v5776 = vpop.permute.xlu0 %5775
        %v5777 = vsel %vm918, %v5774, %v5776
        %v5778 = vsel %vm918, %v5776, %v5774
        %v5779 = vsel %vm923, %v5777, 0.0
        %v5780 = vsel %vm924, %v5778, 0.0
        %5781 = vrot.lane.b32.xlu0 %v4091, 112
        %v5782 = vpop.permute.xlu0 %5781
        %5783 = vrot.lane.b32.xlu0 %v4092, 112
        %v5784 = vpop.permute.xlu0 %5783
        %v5785 = vsel %vm931, %v5782, %v5784
        %v5786 = vsel %vm931, %v5784, %v5782
        %v5787 = vsel %vm936, %v5785, 0.0
        %v5788 = vsel %vm937, %v5786, 0.0
        %5789 = vrot.lane.b32.xlu0 %v4091, 111
        %v5790 = vpop.permute.xlu0 %5789
        %5791 = vrot.lane.b32.xlu0 %v4092, 111
        %v5792 = vpop.permute.xlu0 %5791
        %v5793 = vsel %vm944, %v5790, %v5792
        %v5794 = vsel %vm944, %v5792, %v5790
        %v5795 = vsel %vm949, %v5793, 0.0
        %v5796 = vsel %vm950, %v5794, 0.0
        %v5797 = vld [vmem:[%s12] sm:$0xf]
        %s5798 = scalar_lea.vmem %s12, 4
        %v5799 = vld [vmem:[%s5798] sm:$0xf]
        %v5801 = vsel %vm654, %v5799, 0
        %v5804 = vsel %vm658, %v5683, 0
        %v5807 = vsel %vm658, %v5684, 0
        %5809 = vmatprep.subr.mxu0 %v5807
        %5810 = vmatpush1.msra.mxu0 %v5804
        %5811 = vmatprep.subr.mxu0 0.0
        %5812 = vmatpush1.msra.mxu0 0.0
        %5813 = vmatprep.subr.mxu0 0.0
        %5814 = vmatpush1.msra.mxu0 0.0
        %5815 = vmatprep.subr.mxu0 0.0
        %5816 = vmatpush1.msra.mxu0 0.0
        %5817 = vmatprep.subr.mxu0 0.0
        %5818 = vmatpush1.msra.mxu0 0.0
        %5819 = vmatprep.subr.mxu0 0.0
        %5820 = vmatpush1.msra.mxu0 0.0
        %5821 = vmatprep.subr.mxu0 0.0
        %5822 = vmatpush1.msra.mxu0 0.0
        %5823 = vmatprep.subr.mxu0 0.0
        %5824 = vmatpush1.msra.mxu0 0.0
        %5825 = vmatprep.subr.mxu0 0.0
        %5826 = vmatpush1.msra.mxu0 0.0
        %5827 = vmatprep.subr.mxu0 0.0
        %5828 = vmatpush1.msra.mxu0 0.0
        %5829 = vmatprep.subr.mxu0 0.0
        %5830 = vmatpush1.msra.mxu0 0.0
        %5831 = vmatprep.subr.mxu0 0.0
        %5832 = vmatpush1.msra.mxu0 0.0
        %5833 = vmatprep.subr.mxu0 0.0
        %5834 = vmatpush1.msra.mxu0 0.0
        %5835 = vmatprep.subr.mxu0 0.0
        %5836 = vmatpush1.msra.mxu0 0.0
        %5837 = vmatprep.subr.mxu0 0.0
        %5838 = vmatpush1.msra.mxu0 0.0
        %5839 = vmatprep.subr.mxu0 0.0
        %5840 = vmatpush1.msra.mxu0 0.0
        %5841 = vmatprep.subr.mxu0 0.0
        %5842 = vmatpush1.msra.mxu0 0.0
        %5843 = vmatprep.subr.mxu0 0.0
        %5844 = vmatpush1.msra.mxu0 0.0
        %5845 = vmatprep.subr.mxu0 0.0
        %5846 = vmatpush1.msra.mxu0 0.0
        %5847 = vmatprep.subr.mxu0 0.0
        %5848 = vmatpush1.msra.mxu0 0.0
        %5849 = vmatprep.subr.mxu0 0.0
        %5850 = vmatpush1.msra.mxu0 0.0
        %5851 = vmatprep.subr.mxu0 0.0
        %5852 = vmatpush1.msra.mxu0 0.0
        %5853 = vmatprep.subr.mxu0 0.0
        %5854 = vmatpush1.msra.mxu0 0.0
        %5855 = vmatprep.subr.mxu0 0.0
        %5856 = vmatpush1.msra.mxu0 0.0
        %5857 = vmatprep.subr.mxu0 0.0
        %5858 = vmatpush1.msra.mxu0 0.0
        %5859 = vmatprep.subr.mxu0 0.0
        %5860 = vmatpush1.msra.mxu0 0.0
        %5861 = vmatprep.subr.mxu0 0.0
        %5862 = vmatpush1.msra.mxu0 0.0
        %5863 = vmatprep.subr.mxu0 0.0
        %5864 = vmatpush1.msra.mxu0 0.0
        %5865 = vmatprep.subr.mxu0 0.0
        %5866 = vmatpush1.msra.mxu0 0.0
        %5867 = vmatprep.subr.mxu0 0.0
        %5868 = vmatpush1.msra.mxu0 0.0
        %5869 = vmatprep.subr.mxu0 0.0
        %5870 = vmatpush1.msra.mxu0 0.0
        %5871 = vmatprep.subr.mxu0 0.0
        %5872 = vmatpush1.msra.mxu0 0.0
        %5873 = vmatprep.mubr.f32.mxu0 0.0
        %5874 = vmatmul.mubr.f32.gmra.mrb[0].mxu0 %v5801
        %v5875 = vpop.f32.mrb[0].mxu0
        %v5876 = vadd.f32 0.0, %v5875
        %v5877 = vpop.f32.mrb[0].mxu0
        %v5878 = vadd.f32 0.0, %v5877
        %5879 = vdwg.mxu0
        %v5881 = vsel %vm654, %v5797, 0
        %v5884 = vsel %vm658, %v5675, 0
        %v5887 = vsel %vm658, %v5676, 0
        %5889 = vmatprep.subr.mxu0 %v5887
        %5890 = vmatpush1.msra.mxu0 %v5884
        %5891 = vmatprep.subr.mxu0 0.0
        %5892 = vmatpush1.msra.mxu0 0.0
        %5893 = vmatprep.subr.mxu0 0.0
        %5894 = vmatpush1.msra.mxu0 0.0
        %5895 = vmatprep.subr.mxu0 0.0
        %5896 = vmatpush1.msra.mxu0 0.0
        %5897 = vmatprep.subr.mxu0 0.0
        %5898 = vmatpush1.msra.mxu0 0.0
        %5899 = vmatprep.subr.mxu0 0.0
        %5900 = vmatpush1.msra.mxu0 0.0
        %5901 = vmatprep.subr.mxu0 0.0
        %5902 = vmatpush1.msra.mxu0 0.0
        %5903 = vmatprep.subr.mxu0 0.0
        %5904 = vmatpush1.msra.mxu0 0.0
        %5905 = vmatprep.subr.mxu0 0.0
        %5906 = vmatpush1.msra.mxu0 0.0
        %5907 = vmatprep.subr.mxu0 0.0
        %5908 = vmatpush1.msra.mxu0 0.0
        %5909 = vmatprep.subr.mxu0 0.0
        %5910 = vmatpush1.msra.mxu0 0.0
        %5911 = vmatprep.subr.mxu0 0.0
        %5912 = vmatpush1.msra.mxu0 0.0
        %5913 = vmatprep.subr.mxu0 0.0
        %5914 = vmatpush1.msra.mxu0 0.0
        %5915 = vmatprep.subr.mxu0 0.0
        %5916 = vmatpush1.msra.mxu0 0.0
        %5917 = vmatprep.subr.mxu0 0.0
        %5918 = vmatpush1.msra.mxu0 0.0
        %5919 = vmatprep.subr.mxu0 0.0
        %5920 = vmatpush1.msra.mxu0 0.0
        %5921 = vmatprep.subr.mxu0 0.0
        %5922 = vmatpush1.msra.mxu0 0.0
        %5923 = vmatprep.subr.mxu0 0.0
        %5924 = vmatpush1.msra.mxu0 0.0
        %5925 = vmatprep.subr.mxu0 0.0
        %5926 = vmatpush1.msra.mxu0 0.0
        %5927 = vmatprep.subr.mxu0 0.0
        %5928 = vmatpush1.msra.mxu0 0.0
        %5929 = vmatprep.subr.mxu0 0.0
        %5930 = vmatpush1.msra.mxu0 0.0
        %5931 = vmatprep.subr.mxu0 0.0
        %5932 = vmatpush1.msra.mxu0 0.0
        %5933 = vmatprep.subr.mxu0 0.0
        %5934 = vmatpush1.msra.mxu0 0.0
        %5935 = vmatprep.subr.mxu0 0.0
        %5936 = vmatpush1.msra.mxu0 0.0
        %5937 = vmatprep.subr.mxu0 0.0
        %5938 = vmatpush1.msra.mxu0 0.0
        %5939 = vmatprep.subr.mxu0 0.0
        %5940 = vmatpush1.msra.mxu0 0.0
        %5941 = vmatprep.subr.mxu0 0.0
        %5942 = vmatpush1.msra.mxu0 0.0
        %5943 = vmatprep.subr.mxu0 0.0
        %5944 = vmatpush1.msra.mxu0 0.0
        %5945 = vmatprep.subr.mxu0 0.0
        %5946 = vmatpush1.msra.mxu0 0.0
        %5947 = vmatprep.subr.mxu0 0.0
        %5948 = vmatpush1.msra.mxu0 0.0
        %5949 = vmatprep.subr.mxu0 0.0
        %5950 = vmatpush1.msra.mxu0 0.0
        %5951 = vmatprep.subr.mxu0 0.0
        %5952 = vmatpush1.msra.mxu0 0.0
        %5953 = vmatprep.mubr.f32.mxu0 0.0
        %5954 = vmatmul.mubr.f32.gmra.mrb[0].mxu0 %v5881
        %v5955 = vpop.f32.mrb[0].mxu0
        %v5956 = vadd.f32 %v5876, %v5955
        %v5957 = vpop.f32.mrb[0].mxu0
        %v5958 = vadd.f32 %v5878, %v5957
        %5959 = vdwg.mxu0
        %s5960 = scalar_lea.vmem %s12, 8
        %v5961 = vld [vmem:[%s5960] sm:$0xf]
        %v5963 = vsel %vm654, %v5961, 0
        %v5966 = vsel %vm658, %v5691, 0
        %v5969 = vsel %vm658, %v5692, 0
        %5971 = vmatprep.subr.mxu0 %v5969
        %5972 = vmatpush1.msra.mxu0 %v5966
        %5973 = vmatprep.subr.mxu0 0.0
        %5974 = vmatpush1.msra.mxu0 0.0
        %5975 = vmatprep.subr.mxu0 0.0
        %5976 = vmatpush1.msra.mxu0 0.0
        %5977 = vmatprep.subr.mxu0 0.0
        %5978 = vmatpush1.msra.mxu0 0.0
        %5979 = vmatprep.subr.mxu0 0.0
        %5980 = vmatpush1.msra.mxu0 0.0
        %5981 = vmatprep.subr.mxu0 0.0
        %5982 = vmatpush1.msra.mxu0 0.0
        %5983 = vmatprep.subr.mxu0 0.0
        %5984 = vmatpush1.msra.mxu0 0.0
        %5985 = vmatprep.subr.mxu0 0.0
        %5986 = vmatpush1.msra.mxu0 0.0
        %5987 = vmatprep.subr.mxu0 0.0
        %5988 = vmatpush1.msra.mxu0 0.0
        %5989 = vmatprep.subr.mxu0 0.0
        %5990 = vmatpush1.msra.mxu0 0.0
        %5991 = vmatprep.subr.mxu0 0.0
        %5992 = vmatpush1.msra.mxu0 0.0
        %5993 = vmatprep.subr.mxu0 0.0
        %5994 = vmatpush1.msra.mxu0 0.0
        %5995 = vmatprep.subr.mxu0 0.0
        %5996 = vmatpush1.msra.mxu0 0.0
        %5997 = vmatprep.subr.mxu0 0.0
        %5998 = vmatpush1.msra.mxu0 0.0
        %5999 = vmatprep.subr.mxu0 0.0
        %6000 = vmatpush1.msra.mxu0 0.0
        %6001 = vmatprep.subr.mxu0 0.0
        %6002 = vmatpush1.msra.mxu0 0.0
        %6003 = vmatprep.subr.mxu0 0.0
        %6004 = vmatpush1.msra.mxu0 0.0
        %6005 = vmatprep.subr.mxu0 0.0
        %6006 = vmatpush1.msra.mxu0 0.0
        %6007 = vmatprep.subr.mxu0 0.0
        %6008 = vmatpush1.msra.mxu0 0.0
        %6009 = vmatprep.subr.mxu0 0.0
        %6010 = vmatpush1.msra.mxu0 0.0
        %6011 = vmatprep.subr.mxu0 0.0
        %6012 = vmatpush1.msra.mxu0 0.0
        %6013 = vmatprep.subr.mxu0 0.0
        %6014 = vmatpush1.msra.mxu0 0.0
        %6015 = vmatprep.subr.mxu0 0.0
        %6016 = vmatpush1.msra.mxu0 0.0
        %6017 = vmatprep.subr.mxu0 0.0
        %6018 = vmatpush1.msra.mxu0 0.0
        %6019 = vmatprep.subr.mxu0 0.0
        %6020 = vmatpush1.msra.mxu0 0.0
        %6021 = vmatprep.subr.mxu0 0.0
        %6022 = vmatpush1.msra.mxu0 0.0
        %6023 = vmatprep.subr.mxu0 0.0
        %6024 = vmatpush1.msra.mxu0 0.0
        %6025 = vmatprep.subr.mxu0 0.0
        %6026 = vmatpush1.msra.mxu0 0.0
        %6027 = vmatprep.subr.mxu0 0.0
        %6028 = vmatpush1.msra.mxu0 0.0
        %6029 = vmatprep.subr.mxu0 0.0
        %6030 = vmatpush1.msra.mxu0 0.0
        %6031 = vmatprep.subr.mxu0 0.0
        %6032 = vmatpush1.msra.mxu0 0.0
        %6033 = vmatprep.subr.mxu0 0.0
        %6034 = vmatpush1.msra.mxu0 0.0
        %6035 = vmatprep.mubr.f32.mxu0 0.0
        %6036 = vmatmul.mubr.f32.gmra.mrb[0].mxu0 %v5963
        %v6037 = vpop.f32.mrb[0].mxu0
        %v6038 = vadd.f32 0.0, %v6037
        %v6039 = vpop.f32.mrb[0].mxu0
        %v6040 = vadd.f32 0.0, %v6039
        %6041 = vdwg.mxu0
        %v6042 = vadd.f32 %v5956, %v6038
        %v6043 = vadd.f32 %v5958, %v6040
        %s6044 = scalar_lea.vmem %s12, 12
        %v6045 = vld [vmem:[%s6044] sm:$0xf]
        %v6047 = vsel %vm654, %v6045, 0
        %v6050 = vsel %vm658, %v5699, 0
        %v6053 = vsel %vm658, %v5700, 0
        %6055 = vmatprep.subr.mxu0 %v6053
        %6056 = vmatpush1.msra.mxu0 %v6050
        %6057 = vmatprep.subr.mxu0 0.0
        %6058 = vmatpush1.msra.mxu0 0.0
        %6059 = vmatprep.subr.mxu0 0.0
        %6060 = vmatpush1.msra.mxu0 0.0
        %6061 = vmatprep.subr.mxu0 0.0
        %6062 = vmatpush1.msra.mxu0 0.0
        %6063 = vmatprep.subr.mxu0 0.0
        %6064 = vmatpush1.msra.mxu0 0.0
        %6065 = vmatprep.subr.mxu0 0.0
        %6066 = vmatpush1.msra.mxu0 0.0
        %6067 = vmatprep.subr.mxu0 0.0
        %6068 = vmatpush1.msra.mxu0 0.0
        %6069 = vmatprep.subr.mxu0 0.0
        %6070 = vmatpush1.msra.mxu0 0.0
        %6071 = vmatprep.subr.mxu0 0.0
        %6072 = vmatpush1.msra.mxu0 0.0
        %6073 = vmatprep.subr.mxu0 0.0
        %6074 = vmatpush1.msra.mxu0 0.0
        %6075 = vmatprep.subr.mxu0 0.0
        %6076 = vmatpush1.msra.mxu0 0.0
        %6077 = vmatprep.subr.mxu0 0.0
        %6078 = vmatpush1.msra.mxu0 0.0
        %6079 = vmatprep.subr.mxu0 0.0
        %6080 = vmatpush1.msra.mxu0 0.0
        %6081 = vmatprep.subr.mxu0 0.0
        %6082 = vmatpush1.msra.mxu0 0.0
        %6083 = vmatprep.subr.mxu0 0.0
        %6084 = vmatpush1.msra.mxu0 0.0
        %6085 = vmatprep.subr.mxu0 0.0
        %6086 = vmatpush1.msra.mxu0 0.0
        %6087 = vmatprep.subr.mxu0 0.0
        %6088 = vmatpush1.msra.mxu0 0.0
        %6089 = vmatprep.subr.mxu0 0.0
        %6090 = vmatpush1.msra.mxu0 0.0
        %6091 = vmatprep.subr.mxu0 0.0
        %6092 = vmatpush1.msra.mxu0 0.0
        %6093 = vmatprep.subr.mxu0 0.0
        %6094 = vmatpush1.msra.mxu0 0.0
        %6095 = vmatprep.subr.mxu0 0.0
        %6096 = vmatpush1.msra.mxu0 0.0
        %6097 = vmatprep.subr.mxu0 0.0
        %6098 = vmatpush1.msra.mxu0 0.0
        %6099 = vmatprep.subr.mxu0 0.0
        %6100 = vmatpush1.msra.mxu0 0.0
        %6101 = vmatprep.subr.mxu0 0.0
        %6102 = vmatpush1.msra.mxu0 0.0
        %6103 = vmatprep.subr.mxu0 0.0
        %6104 = vmatpush1.msra.mxu0 0.0
        %6105 = vmatprep.subr.mxu0 0.0
        %6106 = vmatpush1.msra.mxu0 0.0
        %6107 = vmatprep.subr.mxu0 0.0
        %6108 = vmatpush1.msra.mxu0 0.0
        %6109 = vmatprep.subr.mxu0 0.0
        %6110 = vmatpush1.msra.mxu0 0.0
        %6111 = vmatprep.subr.mxu0 0.0
        %6112 = vmatpush1.msra.mxu0 0.0
        %6113 = vmatprep.subr.mxu0 0.0
        %6114 = vmatpush1.msra.mxu0 0.0
        %6115 = vmatprep.subr.mxu0 0.0
        %6116 = vmatpush1.msra.mxu0 0.0
        %6117 = vmatprep.subr.mxu0 0.0
        %6118 = vmatpush1.msra.mxu0 0.0
        %6119 = vmatprep.mubr.f32.mxu0 0.0
        %6120 = vmatmul.mubr.f32.gmra.mrb[0].mxu0 %v6047
        %v6121 = vpop.f32.mrb[0].mxu0
        %v6122 = vadd.f32 0.0, %v6121
        %v6123 = vpop.f32.mrb[0].mxu0
        %v6124 = vadd.f32 0.0, %v6123
        %6125 = vdwg.mxu0
        %v6126 = vadd.f32 %v6042, %v6122
        %v6127 = vadd.f32 %v6043, %v6124
        %s6128 = scalar_lea.vmem %s12, 16
        %v6129 = vld [vmem:[%s6128] sm:$0xf]
        %v6131 = vsel %vm654, %v6129, 0
        %v6134 = vsel %vm658, %v5667, 0
        %v6137 = vsel %vm658, %v5668, 0
        %6139 = vmatprep.subr.mxu0 %v6137
        %6140 = vmatpush1.msra.mxu0 %v6134
        %6141 = vmatprep.subr.mxu0 0.0
        %6142 = vmatpush1.msra.mxu0 0.0
        %6143 = vmatprep.subr.mxu0 0.0
        %6144 = vmatpush1.msra.mxu0 0.0
        %6145 = vmatprep.subr.mxu0 0.0
        %6146 = vmatpush1.msra.mxu0 0.0
        %6147 = vmatprep.subr.mxu0 0.0
        %6148 = vmatpush1.msra.mxu0 0.0
        %6149 = vmatprep.subr.mxu0 0.0
        %6150 = vmatpush1.msra.mxu0 0.0
        %6151 = vmatprep.subr.mxu0 0.0
        %6152 = vmatpush1.msra.mxu0 0.0
        %6153 = vmatprep.subr.mxu0 0.0
        %6154 = vmatpush1.msra.mxu0 0.0
        %6155 = vmatprep.subr.mxu0 0.0
        %6156 = vmatpush1.msra.mxu0 0.0
        %6157 = vmatprep.subr.mxu0 0.0
        %6158 = vmatpush1.msra.mxu0 0.0
        %6159 = vmatprep.subr.mxu0 0.0
        %6160 = vmatpush1.msra.mxu0 0.0
        %6161 = vmatprep.subr.mxu0 0.0
        %6162 = vmatpush1.msra.mxu0 0.0
        %6163 = vmatprep.subr.mxu0 0.0
        %6164 = vmatpush1.msra.mxu0 0.0
        %6165 = vmatprep.subr.mxu0 0.0
        %6166 = vmatpush1.msra.mxu0 0.0
        %6167 = vmatprep.subr.mxu0 0.0
        %6168 = vmatpush1.msra.mxu0 0.0
        %6169 = vmatprep.subr.mxu0 0.0
        %6170 = vmatpush1.msra.mxu0 0.0
        %6171 = vmatprep.subr.mxu0 0.0
        %6172 = vmatpush1.msra.mxu0 0.0
        %6173 = vmatprep.subr.mxu0 0.0
        %6174 = vmatpush1.msra.mxu0 0.0
        %6175 = vmatprep.subr.mxu0 0.0
        %6176 = vmatpush1.msra.mxu0 0.0
        %6177 = vmatprep.subr.mxu0 0.0
        %6178 = vmatpush1.msra.mxu0 0.0
        %6179 = vmatprep.subr.mxu0 0.0
        %6180 = vmatpush1.msra.mxu0 0.0
        %6181 = vmatprep.subr.mxu0 0.0
        %6182 = vmatpush1.msra.mxu0 0.0
        %6183 = vmatprep.subr.mxu0 0.0
        %6184 = vmatpush1.msra.mxu0 0.0
        %6185 = vmatprep.subr.mxu0 0.0
        %6186 = vmatpush1.msra.mxu0 0.0
        %6187 = vmatprep.subr.mxu0 0.0
        %6188 = vmatpush1.msra.mxu0 0.0
        %6189 = vmatprep.subr.mxu0 0.0
        %6190 = vmatpush1.msra.mxu0 0.0
        %6191 = vmatprep.subr.mxu0 0.0
        %6192 = vmatpush1.msra.mxu0 0.0
        %6193 = vmatprep.subr.mxu0 0.0
        %6194 = vmatpush1.msra.mxu0 0.0
        %6195 = vmatprep.subr.mxu0 0.0
        %6196 = vmatpush1.msra.mxu0 0.0
        %6197 = vmatprep.subr.mxu0 0.0
        %6198 = vmatpush1.msra.mxu0 0.0
        %6199 = vmatprep.subr.mxu0 0.0
        %6200 = vmatpush1.msra.mxu0 0.0
        %6201 = vmatprep.subr.mxu0 0.0
        %6202 = vmatpush1.msra.mxu0 0.0
        %6203 = vmatprep.mubr.f32.mxu0 0.0
        %6204 = vmatmul.mubr.f32.gmra.mrb[0].mxu0 %v6131
        %v6205 = vpop.f32.mrb[0].mxu0
        %v6206 = vadd.f32 0.0, %v6205
        %v6207 = vpop.f32.mrb[0].mxu0
        %v6208 = vadd.f32 0.0, %v6207
        %6209 = vdwg.mxu0
        %v6210 = vadd.f32 %v6126, %v6206
        %v6211 = vadd.f32 %v6127, %v6208
        %s6212 = scalar_lea.vmem %s12, 20
        %v6213 = vld [vmem:[%s6212] sm:$0xf]
        %v6215 = vsel %vm654, %v6213, 0
        %v6218 = vsel %vm658, %v5707, 0
        %v6221 = vsel %vm658, %v5708, 0
        %6223 = vmatprep.subr.mxu0 %v6221
        %6224 = vmatpush1.msra.mxu0 %v6218
        %6225 = vmatprep.subr.mxu0 0.0
        %6226 = vmatpush1.msra.mxu0 0.0
        %6227 = vmatprep.subr.mxu0 0.0
        %6228 = vmatpush1.msra.mxu0 0.0
        %6229 = vmatprep.subr.mxu0 0.0
        %6230 = vmatpush1.msra.mxu0 0.0
        %6231 = vmatprep.subr.mxu0 0.0
        %6232 = vmatpush1.msra.mxu0 0.0
        %6233 = vmatprep.subr.mxu0 0.0
        %6234 = vmatpush1.msra.mxu0 0.0
        %6235 = vmatprep.subr.mxu0 0.0
        %6236 = vmatpush1.msra.mxu0 0.0
        %6237 = vmatprep.subr.mxu0 0.0
        %6238 = vmatpush1.msra.mxu0 0.0
        %6239 = vmatprep.subr.mxu0 0.0
        %6240 = vmatpush1.msra.mxu0 0.0
        %6241 = vmatprep.subr.mxu0 0.0
        %6242 = vmatpush1.msra.mxu0 0.0
        %6243 = vmatprep.subr.mxu0 0.0
        %6244 = vmatpush1.msra.mxu0 0.0
        %6245 = vmatprep.subr.mxu0 0.0
        %6246 = vmatpush1.msra.mxu0 0.0
        %6247 = vmatprep.subr.mxu0 0.0
        %6248 = vmatpush1.msra.mxu0 0.0
        %6249 = vmatprep.subr.mxu0 0.0
        %6250 = vmatpush1.msra.mxu0 0.0
        %6251 = vmatprep.subr.mxu0 0.0
        %6252 = vmatpush1.msra.mxu0 0.0
        %6253 = vmatprep.subr.mxu0 0.0
        %6254 = vmatpush1.msra.mxu0 0.0
        %6255 = vmatprep.subr.mxu0 0.0
        %6256 = vmatpush1.msra.mxu0 0.0
        %6257 = vmatprep.subr.mxu0 0.0
        %6258 = vmatpush1.msra.mxu0 0.0
        %6259 = vmatprep.subr.mxu0 0.0
        %6260 = vmatpush1.msra.mxu0 0.0
        %6261 = vmatprep.subr.mxu0 0.0
        %6262 = vmatpush1.msra.mxu0 0.0
        %6263 = vmatprep.subr.mxu0 0.0
        %6264 = vmatpush1.msra.mxu0 0.0
        %6265 = vmatprep.subr.mxu0 0.0
        %6266 = vmatpush1.msra.mxu0 0.0
        %6267 = vmatprep.subr.mxu0 0.0
        %6268 = vmatpush1.msra.mxu0 0.0
        %6269 = vmatprep.subr.mxu0 0.0
        %6270 = vmatpush1.msra.mxu0 0.0
        %6271 = vmatprep.subr.mxu0 0.0
        %6272 = vmatpush1.msra.mxu0 0.0
        %6273 = vmatprep.subr.mxu0 0.0
        %6274 = vmatpush1.msra.mxu0 0.0
        %6275 = vmatprep.subr.mxu0 0.0
        %6276 = vmatpush1.msra.mxu0 0.0
        %6277 = vmatprep.subr.mxu0 0.0
        %6278 = vmatpush1.msra.mxu0 0.0
        %6279 = vmatprep.subr.mxu0 0.0
        %6280 = vmatpush1.msra.mxu0 0.0
        %6281 = vmatprep.subr.mxu0 0.0
        %6282 = vmatpush1.msra.mxu0 0.0
        %6283 = vmatprep.subr.mxu0 0.0
        %6284 = vmatpush1.msra.mxu0 0.0
        %6285 = vmatprep.subr.mxu0 0.0
        %6286 = vmatpush1.msra.mxu0 0.0
        %6287 = vmatprep.mubr.f32.mxu0 0.0
        %6288 = vmatmul.mubr.f32.gmra.mrb[0].mxu0 %v6215
        %v6289 = vpop.f32.mrb[0].mxu0
        %v6290 = vadd.f32 0.0, %v6289
        %v6291 = vpop.f32.mrb[0].mxu0
        %v6292 = vadd.f32 0.0, %v6291
        %6293 = vdwg.mxu0
        %v6294 = vadd.f32 %v6210, %v6290
        %v6295 = vadd.f32 %v6211, %v6292
        %s6296 = scalar_lea.vmem %s12, 24
        %v6297 = vld [vmem:[%s6296] sm:$0xf]
        %v6299 = vsel %vm654, %v6297, 0
        %v6302 = vsel %vm658, %v5715, 0
        %v6305 = vsel %vm658, %v5716, 0
        %6307 = vmatprep.subr.mxu0 %v6305
        %6308 = vmatpush1.msra.mxu0 %v6302
        %6309 = vmatprep.subr.mxu0 0.0
        %6310 = vmatpush1.msra.mxu0 0.0
        %6311 = vmatprep.subr.mxu0 0.0
        %6312 = vmatpush1.msra.mxu0 0.0
        %6313 = vmatprep.subr.mxu0 0.0
        %6314 = vmatpush1.msra.mxu0 0.0
        %6315 = vmatprep.subr.mxu0 0.0
        %6316 = vmatpush1.msra.mxu0 0.0
        %6317 = vmatprep.subr.mxu0 0.0
        %6318 = vmatpush1.msra.mxu0 0.0
        %6319 = vmatprep.subr.mxu0 0.0
        %6320 = vmatpush1.msra.mxu0 0.0
        %6321 = vmatprep.subr.mxu0 0.0
        %6322 = vmatpush1.msra.mxu0 0.0
        %6323 = vmatprep.subr.mxu0 0.0
        %6324 = vmatpush1.msra.mxu0 0.0
        %6325 = vmatprep.subr.mxu0 0.0
        %6326 = vmatpush1.msra.mxu0 0.0
        %6327 = vmatprep.subr.mxu0 0.0
        %6328 = vmatpush1.msra.mxu0 0.0
        %6329 = vmatprep.subr.mxu0 0.0
        %6330 = vmatpush1.msra.mxu0 0.0
        %6331 = vmatprep.subr.mxu0 0.0
        %6332 = vmatpush1.msra.mxu0 0.0
        %6333 = vmatprep.subr.mxu0 0.0
        %6334 = vmatpush1.msra.mxu0 0.0
        %6335 = vmatprep.subr.mxu0 0.0
        %6336 = vmatpush1.msra.mxu0 0.0
        %6337 = vmatprep.subr.mxu0 0.0
        %6338 = vmatpush1.msra.mxu0 0.0
        %6339 = vmatprep.subr.mxu0 0.0
        %6340 = vmatpush1.msra.mxu0 0.0
        %6341 = vmatprep.subr.mxu0 0.0
        %6342 = vmatpush1.msra.mxu0 0.0
        %6343 = vmatprep.subr.mxu0 0.0
        %6344 = vmatpush1.msra.mxu0 0.0
        %6345 = vmatprep.subr.mxu0 0.0
        %6346 = vmatpush1.msra.mxu0 0.0
        %6347 = vmatprep.subr.mxu0 0.0
        %6348 = vmatpush1.msra.mxu0 0.0
        %6349 = vmatprep.subr.mxu0 0.0
        %6350 = vmatpush1.msra.mxu0 0.0
        %6351 = vmatprep.subr.mxu0 0.0
        %6352 = vmatpush1.msra.mxu0 0.0
        %6353 = vmatprep.subr.mxu0 0.0
        %6354 = vmatpush1.msra.mxu0 0.0
        %6355 = vmatprep.subr.mxu0 0.0
        %6356 = vmatpush1.msra.mxu0 0.0
        %6357 = vmatprep.subr.mxu0 0.0
        %6358 = vmatpush1.msra.mxu0 0.0
        %6359 = vmatprep.subr.mxu0 0.0
        %6360 = vmatpush1.msra.mxu0 0.0
        %6361 = vmatprep.subr.mxu0 0.0
        %6362 = vmatpush1.msra.mxu0 0.0
        %6363 = vmatprep.subr.mxu0 0.0
        %6364 = vmatpush1.msra.mxu0 0.0
        %6365 = vmatprep.subr.mxu0 0.0
        %6366 = vmatpush1.msra.mxu0 0.0
        %6367 = vmatprep.subr.mxu0 0.0
        %6368 = vmatpush1.msra.mxu0 0.0
        %6369 = vmatprep.subr.mxu0 0.0
        %6370 = vmatpush1.msra.mxu0 0.0
        %6371 = vmatprep.mubr.f32.mxu0 0.0
        %6372 = vmatmul.mubr.f32.gmra.mrb[0].mxu0 %v6299
        %v6373 = vpop.f32.mrb[0].mxu0
        %v6374 = vadd.f32 0.0, %v6373
        %v6375 = vpop.f32.mrb[0].mxu0
        %v6376 = vadd.f32 0.0, %v6375
        %6377 = vdwg.mxu0
        %v6378 = vadd.f32 %v6294, %v6374
        %v6379 = vadd.f32 %v6295, %v6376
        %s6380 = scalar_lea.vmem %s12, 28
        %v6381 = vld [vmem:[%s6380] sm:$0xf]
        %v6383 = vsel %vm654, %v6381, 0
        %v6386 = vsel %vm658, %v5723, 0
        %v6389 = vsel %vm658, %v5724, 0
        %6391 = vmatprep.subr.mxu0 %v6389
        %6392 = vmatpush1.msra.mxu0 %v6386
        %6393 = vmatprep.subr.mxu0 0.0
        %6394 = vmatpush1.msra.mxu0 0.0
        %6395 = vmatprep.subr.mxu0 0.0
        %6396 = vmatpush1.msra.mxu0 0.0
        %6397 = vmatprep.subr.mxu0 0.0
        %6398 = vmatpush1.msra.mxu0 0.0
        %6399 = vmatprep.subr.mxu0 0.0
        %6400 = vmatpush1.msra.mxu0 0.0
        %6401 = vmatprep.subr.mxu0 0.0
        %6402 = vmatpush1.msra.mxu0 0.0
        %6403 = vmatprep.subr.mxu0 0.0
        %6404 = vmatpush1.msra.mxu0 0.0
        %6405 = vmatprep.subr.mxu0 0.0
        %6406 = vmatpush1.msra.mxu0 0.0
        %6407 = vmatprep.subr.mxu0 0.0
        %6408 = vmatpush1.msra.mxu0 0.0
        %6409 = vmatprep.subr.mxu0 0.0
        %6410 = vmatpush1.msra.mxu0 0.0
        %6411 = vmatprep.subr.mxu0 0.0
        %6412 = vmatpush1.msra.mxu0 0.0
        %6413 = vmatprep.subr.mxu0 0.0
        %6414 = vmatpush1.msra.mxu0 0.0
        %6415 = vmatprep.subr.mxu0 0.0
        %6416 = vmatpush1.msra.mxu0 0.0
        %6417 = vmatprep.subr.mxu0 0.0
        %6418 = vmatpush1.msra.mxu0 0.0
        %6419 = vmatprep.subr.mxu0 0.0
        %6420 = vmatpush1.msra.mxu0 0.0
        %6421 = vmatprep.subr.mxu0 0.0
        %6422 = vmatpush1.msra.mxu0 0.0
        %6423 = vmatprep.subr.mxu0 0.0
        %6424 = vmatpush1.msra.mxu0 0.0
        %6425 = vmatprep.subr.mxu0 0.0
        %6426 = vmatpush1.msra.mxu0 0.0
        %6427 = vmatprep.subr.mxu0 0.0
        %6428 = vmatpush1.msra.mxu0 0.0
        %6429 = vmatprep.subr.mxu0 0.0
        %6430 = vmatpush1.msra.mxu0 0.0
        %6431 = vmatprep.subr.mxu0 0.0
        %6432 = vmatpush1.msra.mxu0 0.0
        %6433 = vmatprep.subr.mxu0 0.0
        %6434 = vmatpush1.msra.mxu0 0.0
        %6435 = vmatprep.subr.mxu0 0.0
        %6436 = vmatpush1.msra.mxu0 0.0
        %6437 = vmatprep.subr.mxu0 0.0
        %6438 = vmatpush1.msra.mxu0 0.0
        %6439 = vmatprep.subr.mxu0 0.0
        %6440 = vmatpush1.msra.mxu0 0.0
        %6441 = vmatprep.subr.mxu0 0.0
        %6442 = vmatpush1.msra.mxu0 0.0
        %6443 = vmatprep.subr.mxu0 0.0
        %6444 = vmatpush1.msra.mxu0 0.0
        %6445 = vmatprep.subr.mxu0 0.0
        %6446 = vmatpush1.msra.mxu0 0.0
        %6447 = vmatprep.subr.mxu0 0.0
        %6448 = vmatpush1.msra.mxu0 0.0
        %6449 = vmatprep.subr.mxu0 0.0
        %6450 = vmatpush1.msra.mxu0 0.0
        %6451 = vmatprep.subr.mxu0 0.0
        %6452 = vmatpush1.msra.mxu0 0.0
        %6453 = vmatprep.subr.mxu0 0.0
        %6454 = vmatpush1.msra.mxu0 0.0
        %6455 = vmatprep.mubr.f32.mxu0 0.0
        %6456 = vmatmul.mubr.f32.gmra.mrb[0].mxu0 %v6383
        %v6457 = vpop.f32.mrb[0].mxu0
        %v6458 = vadd.f32 0.0, %v6457
        %v6459 = vpop.f32.mrb[0].mxu0
        %v6460 = vadd.f32 0.0, %v6459
        %6461 = vdwg.mxu0
        %v6462 = vadd.f32 %v6378, %v6458
        %v6463 = vadd.f32 %v6379, %v6460
        %s6464 = scalar_lea.vmem %s12, 32
        %v6465 = vld [vmem:[%s6464] sm:$0xf]
        %v6467 = vsel %vm654, %v6465, 0
        %v6470 = vsel %vm658, %v5731, 0
        %v6473 = vsel %vm658, %v5732, 0
        %6475 = vmatprep.subr.mxu0 %v6473
        %6476 = vmatpush1.msra.mxu0 %v6470
        %6477 = vmatprep.subr.mxu0 0.0
        %6478 = vmatpush1.msra.mxu0 0.0
        %6479 = vmatprep.subr.mxu0 0.0
        %6480 = vmatpush1.msra.mxu0 0.0
        %6481 = vmatprep.subr.mxu0 0.0
        %6482 = vmatpush1.msra.mxu0 0.0
        %6483 = vmatprep.subr.mxu0 0.0
        %6484 = vmatpush1.msra.mxu0 0.0
        %6485 = vmatprep.subr.mxu0 0.0
        %6486 = vmatpush1.msra.mxu0 0.0
        %6487 = vmatprep.subr.mxu0 0.0
        %6488 = vmatpush1.msra.mxu0 0.0
        %6489 = vmatprep.subr.mxu0 0.0
        %6490 = vmatpush1.msra.mxu0 0.0
        %6491 = vmatprep.subr.mxu0 0.0
        %6492 = vmatpush1.msra.mxu0 0.0
        %6493 = vmatprep.subr.mxu0 0.0
        %6494 = vmatpush1.msra.mxu0 0.0
        %6495 = vmatprep.subr.mxu0 0.0
        %6496 = vmatpush1.msra.mxu0 0.0
        %6497 = vmatprep.subr.mxu0 0.0
        %6498 = vmatpush1.msra.mxu0 0.0
        %6499 = vmatprep.subr.mxu0 0.0
        %6500 = vmatpush1.msra.mxu0 0.0
        %6501 = vmatprep.subr.mxu0 0.0
        %6502 = vmatpush1.msra.mxu0 0.0
        %6503 = vmatprep.subr.mxu0 0.0
        %6504 = vmatpush1.msra.mxu0 0.0
        %6505 = vmatprep.subr.mxu0 0.0
        %6506 = vmatpush1.msra.mxu0 0.0
        %6507 = vmatprep.subr.mxu0 0.0
        %6508 = vmatpush1.msra.mxu0 0.0
        %6509 = vmatprep.subr.mxu0 0.0
        %6510 = vmatpush1.msra.mxu0 0.0
        %6511 = vmatprep.subr.mxu0 0.0
        %6512 = vmatpush1.msra.mxu0 0.0
        %6513 = vmatprep.subr.mxu0 0.0
        %6514 = vmatpush1.msra.mxu0 0.0
        %6515 = vmatprep.subr.mxu0 0.0
        %6516 = vmatpush1.msra.mxu0 0.0
        %6517 = vmatprep.subr.mxu0 0.0
        %6518 = vmatpush1.msra.mxu0 0.0
        %6519 = vmatprep.subr.mxu0 0.0
        %6520 = vmatpush1.msra.mxu0 0.0
        %6521 = vmatprep.subr.mxu0 0.0
        %6522 = vmatpush1.msra.mxu0 0.0
        %6523 = vmatprep.subr.mxu0 0.0
        %6524 = vmatpush1.msra.mxu0 0.0
        %6525 = vmatprep.subr.mxu0 0.0
        %6526 = vmatpush1.msra.mxu0 0.0
        %6527 = vmatprep.subr.mxu0 0.0
        %6528 = vmatpush1.msra.mxu0 0.0
        %6529 = vmatprep.subr.mxu0 0.0
        %6530 = vmatpush1.msra.mxu0 0.0
        %6531 = vmatprep.subr.mxu0 0.0
        %6532 = vmatpush1.msra.mxu0 0.0
        %6533 = vmatprep.subr.mxu0 0.0
        %6534 = vmatpush1.msra.mxu0 0.0
        %6535 = vmatprep.subr.mxu0 0.0
        %6536 = vmatpush1.msra.mxu0 0.0
        %6537 = vmatprep.subr.mxu0 0.0
        %6538 = vmatpush1.msra.mxu0 0.0
        %6539 = vmatprep.mubr.f32.mxu0 0.0
        %6540 = vmatmul.mubr.f32.gmra.mrb[0].mxu0 %v6467
        %v6541 = vpop.f32.mrb[0].mxu0
        %v6542 = vadd.f32 0.0, %v6541
        %v6543 = vpop.f32.mrb[0].mxu0
        %v6544 = vadd.f32 0.0, %v6543
        %6545 = vdwg.mxu0
        %v6546 = vadd.f32 %v6462, %v6542
        %v6547 = vadd.f32 %v6463, %v6544
        %s6548 = scalar_lea.vmem %s12, 36
        %v6549 = vld [vmem:[%s6548] sm:$0xf]
        %v6551 = vsel %vm654, %v6549, 0
        %6553 = vmatprep.subr.mxu0 %v5887
        %6554 = vmatpush1.msra.mxu0 %v5884
        %6555 = vmatprep.subr.mxu0 0.0
        %6556 = vmatpush1.msra.mxu0 0.0
        %6557 = vmatprep.subr.mxu0 0.0
        %6558 = vmatpush1.msra.mxu0 0.0
        %6559 = vmatprep.subr.mxu0 0.0
        %6560 = vmatpush1.msra.mxu0 0.0
        %6561 = vmatprep.subr.mxu0 0.0
        %6562 = vmatpush1.msra.mxu0 0.0
        %6563 = vmatprep.subr.mxu0 0.0
        %6564 = vmatpush1.msra.mxu0 0.0
        %6565 = vmatprep.subr.mxu0 0.0
        %6566 = vmatpush1.msra.mxu0 0.0
        %6567 = vmatprep.subr.mxu0 0.0
        %6568 = vmatpush1.msra.mxu0 0.0
        %6569 = vmatprep.subr.mxu0 0.0
        %6570 = vmatpush1.msra.mxu0 0.0
        %6571 = vmatprep.subr.mxu0 0.0
        %6572 = vmatpush1.msra.mxu0 0.0
        %6573 = vmatprep.subr.mxu0 0.0
        %6574 = vmatpush1.msra.mxu0 0.0
        %6575 = vmatprep.subr.mxu0 0.0
        %6576 = vmatpush1.msra.mxu0 0.0
        %6577 = vmatprep.subr.mxu0 0.0
        %6578 = vmatpush1.msra.mxu0 0.0
        %6579 = vmatprep.subr.mxu0 0.0
        %6580 = vmatpush1.msra.mxu0 0.0
        %6581 = vmatprep.subr.mxu0 0.0
        %6582 = vmatpush1.msra.mxu0 0.0
        %6583 = vmatprep.subr.mxu0 0.0
        %6584 = vmatpush1.msra.mxu0 0.0
        %6585 = vmatprep.subr.mxu0 0.0
        %6586 = vmatpush1.msra.mxu0 0.0
        %6587 = vmatprep.subr.mxu0 0.0
        %6588 = vmatpush1.msra.mxu0 0.0
        %6589 = vmatprep.subr.mxu0 0.0
        %6590 = vmatpush1.msra.mxu0 0.0
        %6591 = vmatprep.subr.mxu0 0.0
        %6592 = vmatpush1.msra.mxu0 0.0
        %6593 = vmatprep.subr.mxu0 0.0
        %6594 = vmatpush1.msra.mxu0 0.0
        %6595 = vmatprep.subr.mxu0 0.0
        %6596 = vmatpush1.msra.mxu0 0.0
        %6597 = vmatprep.subr.mxu0 0.0
        %6598 = vmatpush1.msra.mxu0 0.0
        %6599 = vmatprep.subr.mxu0 0.0
        %6600 = vmatpush1.msra.mxu0 0.0
        %6601 = vmatprep.subr.mxu0 0.0
        %6602 = vmatpush1.msra.mxu0 0.0
        %6603 = vmatprep.subr.mxu0 0.0
        %6604 = vmatpush1.msra.mxu0 0.0
        %6605 = vmatprep.subr.mxu0 0.0
        %6606 = vmatpush1.msra.mxu0 0.0
        %6607 = vmatprep.subr.mxu0 0.0
        %6608 = vmatpush1.msra.mxu0 0.0
        %6609 = vmatprep.subr.mxu0 0.0
        %6610 = vmatpush1.msra.mxu0 0.0
        %6611 = vmatprep.subr.mxu0 0.0
        %6612 = vmatpush1.msra.mxu0 0.0
        %6613 = vmatprep.subr.mxu0 0.0
        %6614 = vmatpush1.msra.mxu0 0.0
        %6615 = vmatprep.subr.mxu0 0.0
        %6616 = vmatpush1.msra.mxu0 0.0
        %6617 = vmatprep.mubr.f32.mxu0 0.0
        %6618 = vmatmul.mubr.f32.gmra.mrb[0].mxu0 %v6551
        %v6619 = vpop.f32.mrb[0].mxu0
        %v6620 = vadd.f32 0.0, %v6619
        %v6621 = vpop.f32.mrb[0].mxu0
        %v6622 = vadd.f32 0.0, %v6621
        %6623 = vdwg.mxu0
        %v6624 = vadd.f32 %v6546, %v6620
        %v6625 = vadd.f32 %v6547, %v6622
        %s6626 = scalar_lea.vmem %s12, 40
        %v6627 = vld [vmem:[%s6626] sm:$0xf]
        %v6629 = vsel %vm654, %v6627, 0
        %6631 = vmatprep.subr.mxu0 %v5807
        %6632 = vmatpush1.msra.mxu0 %v5804
        %6633 = vmatprep.subr.mxu0 0.0
        %6634 = vmatpush1.msra.mxu0 0.0
        %6635 = vmatprep.subr.mxu0 0.0
        %6636 = vmatpush1.msra.mxu0 0.0
        %6637 = vmatprep.subr.mxu0 0.0
        %6638 = vmatpush1.msra.mxu0 0.0
        %6639 = vmatprep.subr.mxu0 0.0
        %6640 = vmatpush1.msra.mxu0 0.0
        %6641 = vmatprep.subr.mxu0 0.0
        %6642 = vmatpush1.msra.mxu0 0.0
        %6643 = vmatprep.subr.mxu0 0.0
        %6644 = vmatpush1.msra.mxu0 0.0
        %6645 = vmatprep.subr.mxu0 0.0
        %6646 = vmatpush1.msra.mxu0 0.0
        %6647 = vmatprep.subr.mxu0 0.0
        %6648 = vmatpush1.msra.mxu0 0.0
        %6649 = vmatprep.subr.mxu0 0.0
        %6650 = vmatpush1.msra.mxu0 0.0
        %6651 = vmatprep.subr.mxu0 0.0
        %6652 = vmatpush1.msra.mxu0 0.0
        %6653 = vmatprep.subr.mxu0 0.0
        %6654 = vmatpush1.msra.mxu0 0.0
        %6655 = vmatprep.subr.mxu0 0.0
        %6656 = vmatpush1.msra.mxu0 0.0
        %6657 = vmatprep.subr.mxu0 0.0
        %6658 = vmatpush1.msra.mxu0 0.0
        %6659 = vmatprep.subr.mxu0 0.0
        %6660 = vmatpush1.msra.mxu0 0.0
        %6661 = vmatprep.subr.mxu0 0.0
        %6662 = vmatpush1.msra.mxu0 0.0
        %6663 = vmatprep.subr.mxu0 0.0
        %6664 = vmatpush1.msra.mxu0 0.0
        %6665 = vmatprep.subr.mxu0 0.0
        %6666 = vmatpush1.msra.mxu0 0.0
        %6667 = vmatprep.subr.mxu0 0.0
        %6668 = vmatpush1.msra.mxu0 0.0
        %6669 = vmatprep.subr.mxu0 0.0
        %6670 = vmatpush1.msra.mxu0 0.0
        %6671 = vmatprep.subr.mxu0 0.0
        %6672 = vmatpush1.msra.mxu0 0.0
        %6673 = vmatprep.subr.mxu0 0.0
        %6674 = vmatpush1.msra.mxu0 0.0
        %6675 = vmatprep.subr.mxu0 0.0
        %6676 = vmatpush1.msra.mxu0 0.0
        %6677 = vmatprep.subr.mxu0 0.0
        %6678 = vmatpush1.msra.mxu0 0.0
        %6679 = vmatprep.subr.mxu0 0.0
        %6680 = vmatpush1.msra.mxu0 0.0
        %6681 = vmatprep.subr.mxu0 0.0
        %6682 = vmatpush1.msra.mxu0 0.0
        %6683 = vmatprep.subr.mxu0 0.0
        %6684 = vmatpush1.msra.mxu0 0.0
        %6685 = vmatprep.subr.mxu0 0.0
        %6686 = vmatpush1.msra.mxu0 0.0
        %6687 = vmatprep.subr.mxu0 0.0
        %6688 = vmatpush1.msra.mxu0 0.0
        %6689 = vmatprep.subr.mxu0 0.0
        %6690 = vmatpush1.msra.mxu0 0.0
        %6691 = vmatprep.subr.mxu0 0.0
        %6692 = vmatpush1.msra.mxu0 0.0
        %6693 = vmatprep.subr.mxu0 0.0
        %6694 = vmatpush1.msra.mxu0 0.0
        %6695 = vmatprep.mubr.f32.mxu0 0.0
        %6696 = vmatmul.mubr.f32.gmra.mrb[0].mxu0 %v6629
        %v6697 = vpop.f32.mrb[0].mxu0
        %v6698 = vadd.f32 0.0, %v6697
        %v6699 = vpop.f32.mrb[0].mxu0
        %v6700 = vadd.f32 0.0, %v6699
        %6701 = vdwg.mxu0
        %v6702 = vadd.f32 %v6624, %v6698
        %v6703 = vadd.f32 %v6625, %v6700
        %s6704 = scalar_lea.vmem %s12, 44
        %v6705 = vld [vmem:[%s6704] sm:$0xf]
        %v6707 = vsel %vm654, %v6705, 0
        %6709 = vmatprep.subr.mxu0 %v5969
        %6710 = vmatpush1.msra.mxu0 %v5966
        %6711 = vmatprep.subr.mxu0 0.0
        %6712 = vmatpush1.msra.mxu0 0.0
        %6713 = vmatprep.subr.mxu0 0.0
        %6714 = vmatpush1.msra.mxu0 0.0
        %6715 = vmatprep.subr.mxu0 0.0
        %6716 = vmatpush1.msra.mxu0 0.0
        %6717 = vmatprep.subr.mxu0 0.0
        %6718 = vmatpush1.msra.mxu0 0.0
        %6719 = vmatprep.subr.mxu0 0.0
        %6720 = vmatpush1.msra.mxu0 0.0
        %6721 = vmatprep.subr.mxu0 0.0
        %6722 = vmatpush1.msra.mxu0 0.0
        %6723 = vmatprep.subr.mxu0 0.0
        %6724 = vmatpush1.msra.mxu0 0.0
        %6725 = vmatprep.subr.mxu0 0.0
        %6726 = vmatpush1.msra.mxu0 0.0
        %6727 = vmatprep.subr.mxu0 0.0
        %6728 = vmatpush1.msra.mxu0 0.0
        %6729 = vmatprep.subr.mxu0 0.0
        %6730 = vmatpush1.msra.mxu0 0.0
        %6731 = vmatprep.subr.mxu0 0.0
        %6732 = vmatpush1.msra.mxu0 0.0
        %6733 = vmatprep.subr.mxu0 0.0
        %6734 = vmatpush1.msra.mxu0 0.0
        %6735 = vmatprep.subr.mxu0 0.0
        %6736 = vmatpush1.msra.mxu0 0.0
        %6737 = vmatprep.subr.mxu0 0.0
        %6738 = vmatpush1.msra.mxu0 0.0
        %6739 = vmatprep.subr.mxu0 0.0
        %6740 = vmatpush1.msra.mxu0 0.0
        %6741 = vmatprep.subr.mxu0 0.0
        %6742 = vmatpush1.msra.mxu0 0.0
        %6743 = vmatprep.subr.mxu0 0.0
        %6744 = vmatpush1.msra.mxu0 0.0
        %6745 = vmatprep.subr.mxu0 0.0
        %6746 = vmatpush1.msra.mxu0 0.0
        %6747 = vmatprep.subr.mxu0 0.0
        %6748 = vmatpush1.msra.mxu0 0.0
        %6749 = vmatprep.subr.mxu0 0.0
        %6750 = vmatpush1.msra.mxu0 0.0
        %6751 = vmatprep.subr.mxu0 0.0
        %6752 = vmatpush1.msra.mxu0 0.0
        %6753 = vmatprep.subr.mxu0 0.0
        %6754 = vmatpush1.msra.mxu0 0.0
        %6755 = vmatprep.subr.mxu0 0.0
        %6756 = vmatpush1.msra.mxu0 0.0
        %6757 = vmatprep.subr.mxu0 0.0
        %6758 = vmatpush1.msra.mxu0 0.0
        %6759 = vmatprep.subr.mxu0 0.0
        %6760 = vmatpush1.msra.mxu0 0.0
        %6761 = vmatprep.subr.mxu0 0.0
        %6762 = vmatpush1.msra.mxu0 0.0
        %6763 = vmatprep.subr.mxu0 0.0
        %6764 = vmatpush1.msra.mxu0 0.0
        %6765 = vmatprep.subr.mxu0 0.0
        %6766 = vmatpush1.msra.mxu0 0.0
        %6767 = vmatprep.subr.mxu0 0.0
        %6768 = vmatpush1.msra.mxu0 0.0
        %6769 = vmatprep.subr.mxu0 0.0
        %6770 = vmatpush1.msra.mxu0 0.0
        %6771 = vmatprep.subr.mxu0 0.0
        %6772 = vmatpush1.msra.mxu0 0.0
        %6773 = vmatprep.mubr.f32.mxu0 0.0
        %6774 = vmatmul.mubr.f32.gmra.mrb[0].mxu0 %v6707
        %v6775 = vpop.f32.mrb[0].mxu0
        %v6776 = vadd.f32 0.0, %v6775
        %v6777 = vpop.f32.mrb[0].mxu0
        %v6778 = vadd.f32 0.0, %v6777
        %6779 = vdwg.mxu0
        %v6780 = vadd.f32 %v6702, %v6776
        %v6781 = vadd.f32 %v6703, %v6778
        %s6782 = scalar_lea.vmem %s12, 48
        %v6783 = vld [vmem:[%s6782] sm:$0xf]
        %v6785 = vsel %vm654, %v6783, 0
        %6787 = vmatprep.subr.mxu0 %v6053
        %6788 = vmatpush1.msra.mxu0 %v6050
        %6789 = vmatprep.subr.mxu0 0.0
        %6790 = vmatpush1.msra.mxu0 0.0
        %6791 = vmatprep.subr.mxu0 0.0
        %6792 = vmatpush1.msra.mxu0 0.0
        %6793 = vmatprep.subr.mxu0 0.0
        %6794 = vmatpush1.msra.mxu0 0.0
        %6795 = vmatprep.subr.mxu0 0.0
        %6796 = vmatpush1.msra.mxu0 0.0
        %6797 = vmatprep.subr.mxu0 0.0
        %6798 = vmatpush1.msra.mxu0 0.0
        %6799 = vmatprep.subr.mxu0 0.0
        %6800 = vmatpush1.msra.mxu0 0.0
        %6801 = vmatprep.subr.mxu0 0.0
        %6802 = vmatpush1.msra.mxu0 0.0
        %6803 = vmatprep.subr.mxu0 0.0
        %6804 = vmatpush1.msra.mxu0 0.0
        %6805 = vmatprep.subr.mxu0 0.0
        %6806 = vmatpush1.msra.mxu0 0.0
        %6807 = vmatprep.subr.mxu0 0.0
        %6808 = vmatpush1.msra.mxu0 0.0
        %6809 = vmatprep.subr.mxu0 0.0
        %6810 = vmatpush1.msra.mxu0 0.0
        %6811 = vmatprep.subr.mxu0 0.0
        %6812 = vmatpush1.msra.mxu0 0.0
        %6813 = vmatprep.subr.mxu0 0.0
        %6814 = vmatpush1.msra.mxu0 0.0
        %6815 = vmatprep.subr.mxu0 0.0
        %6816 = vmatpush1.msra.mxu0 0.0
        %6817 = vmatprep.subr.mxu0 0.0
        %6818 = vmatpush1.msra.mxu0 0.0
        %6819 = vmatprep.subr.mxu0 0.0
        %6820 = vmatpush1.msra.mxu0 0.0
        %6821 = vmatprep.subr.mxu0 0.0
        %6822 = vmatpush1.msra.mxu0 0.0
        %6823 = vmatprep.subr.mxu0 0.0
        %6824 = vmatpush1.msra.mxu0 0.0
        %6825 = vmatprep.subr.mxu0 0.0
        %6826 = vmatpush1.msra.mxu0 0.0
        %6827 = vmatprep.subr.mxu0 0.0
        %6828 = vmatpush1.msra.mxu0 0.0
        %6829 = vmatprep.subr.mxu0 0.0
        %6830 = vmatpush1.msra.mxu0 0.0
        %6831 = vmatprep.subr.mxu0 0.0
        %6832 = vmatpush1.msra.mxu0 0.0
        %6833 = vmatprep.subr.mxu0 0.0
        %6834 = vmatpush1.msra.mxu0 0.0
        %6835 = vmatprep.subr.mxu0 0.0
        %6836 = vmatpush1.msra.mxu0 0.0
        %6837 = vmatprep.subr.mxu0 0.0
        %6838 = vmatpush1.msra.mxu0 0.0
        %6839 = vmatprep.subr.mxu0 0.0
        %6840 = vmatpush1.msra.mxu0 0.0
        %6841 = vmatprep.subr.mxu0 0.0
        %6842 = vmatpush1.msra.mxu0 0.0
        %6843 = vmatprep.subr.mxu0 0.0
        %6844 = vmatpush1.msra.mxu0 0.0
        %6845 = vmatprep.subr.mxu0 0.0
        %6846 = vmatpush1.msra.mxu0 0.0
        %6847 = vmatprep.subr.mxu0 0.0
        %6848 = vmatpush1.msra.mxu0 0.0
        %6849 = vmatprep.subr.mxu0 0.0
        %6850 = vmatpush1.msra.mxu0 0.0
        %6851 = vmatprep.mubr.f32.mxu0 0.0
        %6852 = vmatmul.mubr.f32.gmra.mrb[0].mxu0 %v6785
        %v6853 = vpop.f32.mrb[0].mxu0
        %v6854 = vadd.f32 0.0, %v6853
        %v6855 = vpop.f32.mrb[0].mxu0
        %v6856 = vadd.f32 0.0, %v6855
        %6857 = vdwg.mxu0
        %v6858 = vadd.f32 %v6780, %v6854
        %v6859 = vadd.f32 %v6781, %v6856
        %s6860 = scalar_lea.vmem %s12, 52
        %v6861 = vld [vmem:[%s6860] sm:$0xf]
        %v6863 = vsel %vm654, %v6861, 0
        %6865 = vmatprep.subr.mxu0 %v6137
        %6866 = vmatpush1.msra.mxu0 %v6134
        %6867 = vmatprep.subr.mxu0 0.0
        %6868 = vmatpush1.msra.mxu0 0.0
        %6869 = vmatprep.subr.mxu0 0.0
        %6870 = vmatpush1.msra.mxu0 0.0
        %6871 = vmatprep.subr.mxu0 0.0
        %6872 = vmatpush1.msra.mxu0 0.0
        %6873 = vmatprep.subr.mxu0 0.0
        %6874 = vmatpush1.msra.mxu0 0.0
        %6875 = vmatprep.subr.mxu0 0.0
        %6876 = vmatpush1.msra.mxu0 0.0
        %6877 = vmatprep.subr.mxu0 0.0
        %6878 = vmatpush1.msra.mxu0 0.0
        %6879 = vmatprep.subr.mxu0 0.0
        %6880 = vmatpush1.msra.mxu0 0.0
        %6881 = vmatprep.subr.mxu0 0.0
        %6882 = vmatpush1.msra.mxu0 0.0
        %6883 = vmatprep.subr.mxu0 0.0
        %6884 = vmatpush1.msra.mxu0 0.0
        %6885 = vmatprep.subr.mxu0 0.0
        %6886 = vmatpush1.msra.mxu0 0.0
        %6887 = vmatprep.subr.mxu0 0.0
        %6888 = vmatpush1.msra.mxu0 0.0
        %6889 = vmatprep.subr.mxu0 0.0
        %6890 = vmatpush1.msra.mxu0 0.0
        %6891 = vmatprep.subr.mxu0 0.0
        %6892 = vmatpush1.msra.mxu0 0.0
        %6893 = vmatprep.subr.mxu0 0.0
        %6894 = vmatpush1.msra.mxu0 0.0
        %6895 = vmatprep.subr.mxu0 0.0
        %6896 = vmatpush1.msra.mxu0 0.0
        %6897 = vmatprep.subr.mxu0 0.0
        %6898 = vmatpush1.msra.mxu0 0.0
        %6899 = vmatprep.subr.mxu0 0.0
        %6900 = vmatpush1.msra.mxu0 0.0
        %6901 = vmatprep.subr.mxu0 0.0
        %6902 = vmatpush1.msra.mxu0 0.0
        %6903 = vmatprep.subr.mxu0 0.0
        %6904 = vmatpush1.msra.mxu0 0.0
        %6905 = vmatprep.subr.mxu0 0.0
        %6906 = vmatpush1.msra.mxu0 0.0
        %6907 = vmatprep.subr.mxu0 0.0
        %6908 = vmatpush1.msra.mxu0 0.0
        %6909 = vmatprep.subr.mxu0 0.0
        %6910 = vmatpush1.msra.mxu0 0.0
        %6911 = vmatprep.subr.mxu0 0.0
        %6912 = vmatpush1.msra.mxu0 0.0
        %6913 = vmatprep.subr.mxu0 0.0
        %6914 = vmatpush1.msra.mxu0 0.0
        %6915 = vmatprep.subr.mxu0 0.0
        %6916 = vmatpush1.msra.mxu0 0.0
        %6917 = vmatprep.subr.mxu0 0.0
        %6918 = vmatpush1.msra.mxu0 0.0
        %6919 = vmatprep.subr.mxu0 0.0
        %6920 = vmatpush1.msra.mxu0 0.0
        %6921 = vmatprep.subr.mxu0 0.0
        %6922 = vmatpush1.msra.mxu0 0.0
        %6923 = vmatprep.subr.mxu0 0.0
        %6924 = vmatpush1.msra.mxu0 0.0
        %6925 = vmatprep.subr.mxu0 0.0
        %6926 = vmatpush1.msra.mxu0 0.0
        %6927 = vmatprep.subr.mxu0 0.0
        %6928 = vmatpush1.msra.mxu0 0.0
        %6929 = vmatprep.mubr.f32.mxu0 0.0
        %6930 = vmatmul.mubr.f32.gmra.mrb[0].mxu0 %v6863
        %v6931 = vpop.f32.mrb[0].mxu0
        %v6932 = vadd.f32 0.0, %v6931
        %v6933 = vpop.f32.mrb[0].mxu0
        %v6934 = vadd.f32 0.0, %v6933
        %6935 = vdwg.mxu0
        %v6936 = vadd.f32 %v6858, %v6932
        %v6937 = vadd.f32 %v6859, %v6934
        %s6938 = scalar_lea.vmem %s12, 56
        %v6939 = vld [vmem:[%s6938] sm:$0xf]
        %v6941 = vsel %vm654, %v6939, 0
        %6943 = vmatprep.subr.mxu0 %v6221
        %6944 = vmatpush1.msra.mxu0 %v6218
        %6945 = vmatprep.subr.mxu0 0.0
        %6946 = vmatpush1.msra.mxu0 0.0
        %6947 = vmatprep.subr.mxu0 0.0
        %6948 = vmatpush1.msra.mxu0 0.0
        %6949 = vmatprep.subr.mxu0 0.0
        %6950 = vmatpush1.msra.mxu0 0.0
        %6951 = vmatprep.subr.mxu0 0.0
        %6952 = vmatpush1.msra.mxu0 0.0
        %6953 = vmatprep.subr.mxu0 0.0
        %6954 = vmatpush1.msra.mxu0 0.0
        %6955 = vmatprep.subr.mxu0 0.0
        %6956 = vmatpush1.msra.mxu0 0.0
        %6957 = vmatprep.subr.mxu0 0.0
        %6958 = vmatpush1.msra.mxu0 0.0
        %6959 = vmatprep.subr.mxu0 0.0
        %6960 = vmatpush1.msra.mxu0 0.0
        %6961 = vmatprep.subr.mxu0 0.0
        %6962 = vmatpush1.msra.mxu0 0.0
        %6963 = vmatprep.subr.mxu0 0.0
        %6964 = vmatpush1.msra.mxu0 0.0
        %6965 = vmatprep.subr.mxu0 0.0
        %6966 = vmatpush1.msra.mxu0 0.0
        %6967 = vmatprep.subr.mxu0 0.0
        %6968 = vmatpush1.msra.mxu0 0.0
        %6969 = vmatprep.subr.mxu0 0.0
        %6970 = vmatpush1.msra.mxu0 0.0
        %6971 = vmatprep.subr.mxu0 0.0
        %6972 = vmatpush1.msra.mxu0 0.0
        %6973 = vmatprep.subr.mxu0 0.0
        %6974 = vmatpush1.msra.mxu0 0.0
        %6975 = vmatprep.subr.mxu0 0.0
        %6976 = vmatpush1.msra.mxu0 0.0
        %6977 = vmatprep.subr.mxu0 0.0
        %6978 = vmatpush1.msra.mxu0 0.0
        %6979 = vmatprep.subr.mxu0 0.0
        %6980 = vmatpush1.msra.mxu0 0.0
        %6981 = vmatprep.subr.mxu0 0.0
        %6982 = vmatpush1.msra.mxu0 0.0
        %6983 = vmatprep.subr.mxu0 0.0
        %6984 = vmatpush1.msra.mxu0 0.0
        %6985 = vmatprep.subr.mxu0 0.0
        %6986 = vmatpush1.msra.mxu0 0.0
        %6987 = vmatprep.subr.mxu0 0.0
        %6988 = vmatpush1.msra.mxu0 0.0
        %6989 = vmatprep.subr.mxu0 0.0
        %6990 = vmatpush1.msra.mxu0 0.0
        %6991 = vmatprep.subr.mxu0 0.0
        %6992 = vmatpush1.msra.mxu0 0.0
        %6993 = vmatprep.subr.mxu0 0.0
        %6994 = vmatpush1.msra.mxu0 0.0
        %6995 = vmatprep.subr.mxu0 0.0
        %6996 = vmatpush1.msra.mxu0 0.0
        %6997 = vmatprep.subr.mxu0 0.0
        %6998 = vmatpush1.msra.mxu0 0.0
        %6999 = vmatprep.subr.mxu0 0.0
        %7000 = vmatpush1.msra.mxu0 0.0
        %7001 = vmatprep.subr.mxu0 0.0
        %7002 = vmatpush1.msra.mxu0 0.0
        %7003 = vmatprep.subr.mxu0 0.0
        %7004 = vmatpush1.msra.mxu0 0.0
        %7005 = vmatprep.subr.mxu0 0.0
        %7006 = vmatpush1.msra.mxu0 0.0
        %7007 = vmatprep.mubr.f32.mxu0 0.0
        %7008 = vmatmul.mubr.f32.gmra.mrb[0].mxu0 %v6941
        %v7009 = vpop.f32.mrb[0].mxu0
        %v7010 = vadd.f32 0.0, %v7009
        %v7011 = vpop.f32.mrb[0].mxu0
        %v7012 = vadd.f32 0.0, %v7011
        %7013 = vdwg.mxu0
        %v7014 = vadd.f32 %v6936, %v7010
        %v7015 = vadd.f32 %v6937, %v7012
        %s7016 = scalar_lea.vmem %s12, 60
        %v7017 = vld [vmem:[%s7016] sm:$0xf]
        %v7019 = vsel %vm654, %v7017, 0
        %7021 = vmatprep.subr.mxu0 %v6305
        %7022 = vmatpush1.msra.mxu0 %v6302
        %7023 = vmatprep.subr.mxu0 0.0
        %7024 = vmatpush1.msra.mxu0 0.0
        %7025 = vmatprep.subr.mxu0 0.0
        %7026 = vmatpush1.msra.mxu0 0.0
        %7027 = vmatprep.subr.mxu0 0.0
        %7028 = vmatpush1.msra.mxu0 0.0
        %7029 = vmatprep.subr.mxu0 0.0
        %7030 = vmatpush1.msra.mxu0 0.0
        %7031 = vmatprep.subr.mxu0 0.0
        %7032 = vmatpush1.msra.mxu0 0.0
        %7033 = vmatprep.subr.mxu0 0.0
        %7034 = vmatpush1.msra.mxu0 0.0
        %7035 = vmatprep.subr.mxu0 0.0
        %7036 = vmatpush1.msra.mxu0 0.0
        %7037 = vmatprep.subr.mxu0 0.0
        %7038 = vmatpush1.msra.mxu0 0.0
        %7039 = vmatprep.subr.mxu0 0.0
        %7040 = vmatpush1.msra.mxu0 0.0
        %7041 = vmatprep.subr.mxu0 0.0
        %7042 = vmatpush1.msra.mxu0 0.0
        %7043 = vmatprep.subr.mxu0 0.0
        %7044 = vmatpush1.msra.mxu0 0.0
        %7045 = vmatprep.subr.mxu0 0.0
        %7046 = vmatpush1.msra.mxu0 0.0
        %7047 = vmatprep.subr.mxu0 0.0
        %7048 = vmatpush1.msra.mxu0 0.0
        %7049 = vmatprep.subr.mxu0 0.0
        %7050 = vmatpush1.msra.mxu0 0.0
        %7051 = vmatprep.subr.mxu0 0.0
        %7052 = vmatpush1.msra.mxu0 0.0
        %7053 = vmatprep.subr.mxu0 0.0
        %7054 = vmatpush1.msra.mxu0 0.0
        %7055 = vmatprep.subr.mxu0 0.0
        %7056 = vmatpush1.msra.mxu0 0.0
        %7057 = vmatprep.subr.mxu0 0.0
        %7058 = vmatpush1.msra.mxu0 0.0
        %7059 = vmatprep.subr.mxu0 0.0
        %7060 = vmatpush1.msra.mxu0 0.0
        %7061 = vmatprep.subr.mxu0 0.0
        %7062 = vmatpush1.msra.mxu0 0.0
        %7063 = vmatprep.subr.mxu0 0.0
        %7064 = vmatpush1.msra.mxu0 0.0
        %7065 = vmatprep.subr.mxu0 0.0
        %7066 = vmatpush1.msra.mxu0 0.0
        %7067 = vmatprep.subr.mxu0 0.0
        %7068 = vmatpush1.msra.mxu0 0.0
        %7069 = vmatprep.subr.mxu0 0.0
        %7070 = vmatpush1.msra.mxu0 0.0
        %7071 = vmatprep.subr.mxu0 0.0
        %7072 = vmatpush1.msra.mxu0 0.0
        %7073 = vmatprep.subr.mxu0 0.0
        %7074 = vmatpush1.msra.mxu0 0.0
        %7075 = vmatprep.subr.mxu0 0.0
        %7076 = vmatpush1.msra.mxu0 0.0
        %7077 = vmatprep.subr.mxu0 0.0
        %7078 = vmatpush1.msra.mxu0 0.0
        %7079 = vmatprep.subr.mxu0 0.0
        %7080 = vmatpush1.msra.mxu0 0.0
        %7081 = vmatprep.subr.mxu0 0.0
        %7082 = vmatpush1.msra.mxu0 0.0
        %7083 = vmatprep.subr.mxu0 0.0
        %7084 = vmatpush1.msra.mxu0 0.0
        %7085 = vmatprep.mubr.f32.mxu0 0.0
        %7086 = vmatmul.mubr.f32.gmra.mrb[0].mxu0 %v7019
        %v7087 = vpop.f32.mrb[0].mxu0
        %v7088 = vadd.f32 0.0, %v7087
        %v7089 = vpop.f32.mrb[0].mxu0
        %v7090 = vadd.f32 0.0, %v7089
        %7091 = vdwg.mxu0
        %v7092 = vadd.f32 %v7014, %v7088
        %v7093 = vadd.f32 %v7015, %v7090
        %s7094 = scalar_lea.vmem %s12, 64
        %v7095 = vld [vmem:[%s7094] sm:$0xf]
        %v7097 = vsel %vm654, %v7095, 0
        %7099 = vmatprep.subr.mxu0 %v6389
        %7100 = vmatpush1.msra.mxu0 %v6386
        %7101 = vmatprep.subr.mxu0 0.0
        %7102 = vmatpush1.msra.mxu0 0.0
        %7103 = vmatprep.subr.mxu0 0.0
        %7104 = vmatpush1.msra.mxu0 0.0
        %7105 = vmatprep.subr.mxu0 0.0
        %7106 = vmatpush1.msra.mxu0 0.0
        %7107 = vmatprep.subr.mxu0 0.0
        %7108 = vmatpush1.msra.mxu0 0.0
        %7109 = vmatprep.subr.mxu0 0.0
        %7110 = vmatpush1.msra.mxu0 0.0
        %7111 = vmatprep.subr.mxu0 0.0
        %7112 = vmatpush1.msra.mxu0 0.0
        %7113 = vmatprep.subr.mxu0 0.0
        %7114 = vmatpush1.msra.mxu0 0.0
        %7115 = vmatprep.subr.mxu0 0.0
        %7116 = vmatpush1.msra.mxu0 0.0
        %7117 = vmatprep.subr.mxu0 0.0
        %7118 = vmatpush1.msra.mxu0 0.0
        %7119 = vmatprep.subr.mxu0 0.0
        %7120 = vmatpush1.msra.mxu0 0.0
        %7121 = vmatprep.subr.mxu0 0.0
        %7122 = vmatpush1.msra.mxu0 0.0
        %7123 = vmatprep.subr.mxu0 0.0
        %7124 = vmatpush1.msra.mxu0 0.0
        %7125 = vmatprep.subr.mxu0 0.0
        %7126 = vmatpush1.msra.mxu0 0.0
        %7127 = vmatprep.subr.mxu0 0.0
        %7128 = vmatpush1.msra.mxu0 0.0
        %7129 = vmatprep.subr.mxu0 0.0
        %7130 = vmatpush1.msra.mxu0 0.0
        %7131 = vmatprep.subr.mxu0 0.0
        %7132 = vmatpush1.msra.mxu0 0.0
        %7133 = vmatprep.subr.mxu0 0.0
        %7134 = vmatpush1.msra.mxu0 0.0
        %7135 = vmatprep.subr.mxu0 0.0
        %7136 = vmatpush1.msra.mxu0 0.0
        %7137 = vmatprep.subr.mxu0 0.0
        %7138 = vmatpush1.msra.mxu0 0.0
        %7139 = vmatprep.subr.mxu0 0.0
        %7140 = vmatpush1.msra.mxu0 0.0
        %7141 = vmatprep.subr.mxu0 0.0
        %7142 = vmatpush1.msra.mxu0 0.0
        %7143 = vmatprep.subr.mxu0 0.0
        %7144 = vmatpush1.msra.mxu0 0.0
        %7145 = vmatprep.subr.mxu0 0.0
        %7146 = vmatpush1.msra.mxu0 0.0
        %7147 = vmatprep.subr.mxu0 0.0
        %7148 = vmatpush1.msra.mxu0 0.0
        %7149 = vmatprep.subr.mxu0 0.0
        %7150 = vmatpush1.msra.mxu0 0.0
        %7151 = vmatprep.subr.mxu0 0.0
        %7152 = vmatpush1.msra.mxu0 0.0
        %7153 = vmatprep.subr.mxu0 0.0
        %7154 = vmatpush1.msra.mxu0 0.0
        %7155 = vmatprep.subr.mxu0 0.0
        %7156 = vmatpush1.msra.mxu0 0.0
        %7157 = vmatprep.subr.mxu0 0.0
        %7158 = vmatpush1.msra.mxu0 0.0
        %7159 = vmatprep.subr.mxu0 0.0
        %7160 = vmatpush1.msra.mxu0 0.0
        %7161 = vmatprep.subr.mxu0 0.0
        %7162 = vmatpush1.msra.mxu0 0.0
        %7163 = vmatprep.mubr.f32.mxu0 0.0
        %7164 = vmatmul.mubr.f32.gmra.mrb[0].mxu0 %v7097
        %v7165 = vpop.f32.mrb[0].mxu0
        %v7166 = vadd.f32 0.0, %v7165
        %v7167 = vpop.f32.mrb[0].mxu0
        %v7168 = vadd.f32 0.0, %v7167
        %7169 = vdwg.mxu0
        %v7170 = vadd.f32 %v7092, %v7166
        %v7171 = vadd.f32 %v7093, %v7168
        %s7172 = scalar_lea.vmem %s12, 68
        %v7173 = vld [vmem:[%s7172] sm:$0xf]
        %v7175 = vsel %vm654, %v7173, 0
        %7177 = vmatprep.subr.mxu0 %v6473
        %7178 = vmatpush1.msra.mxu0 %v6470
        %7179 = vmatprep.subr.mxu0 0.0
        %7180 = vmatpush1.msra.mxu0 0.0
        %7181 = vmatprep.subr.mxu0 0.0
        %7182 = vmatpush1.msra.mxu0 0.0
        %7183 = vmatprep.subr.mxu0 0.0
        %7184 = vmatpush1.msra.mxu0 0.0
        %7185 = vmatprep.subr.mxu0 0.0
        %7186 = vmatpush1.msra.mxu0 0.0
        %7187 = vmatprep.subr.mxu0 0.0
        %7188 = vmatpush1.msra.mxu0 0.0
        %7189 = vmatprep.subr.mxu0 0.0
        %7190 = vmatpush1.msra.mxu0 0.0
        %7191 = vmatprep.subr.mxu0 0.0
        %7192 = vmatpush1.msra.mxu0 0.0
        %7193 = vmatprep.subr.mxu0 0.0
        %7194 = vmatpush1.msra.mxu0 0.0
        %7195 = vmatprep.subr.mxu0 0.0
        %7196 = vmatpush1.msra.mxu0 0.0
        %7197 = vmatprep.subr.mxu0 0.0
        %7198 = vmatpush1.msra.mxu0 0.0
        %7199 = vmatprep.subr.mxu0 0.0
        %7200 = vmatpush1.msra.mxu0 0.0
        %7201 = vmatprep.subr.mxu0 0.0
        %7202 = vmatpush1.msra.mxu0 0.0
        %7203 = vmatprep.subr.mxu0 0.0
        %7204 = vmatpush1.msra.mxu0 0.0
        %7205 = vmatprep.subr.mxu0 0.0
        %7206 = vmatpush1.msra.mxu0 0.0
        %7207 = vmatprep.subr.mxu0 0.0
        %7208 = vmatpush1.msra.mxu0 0.0
        %7209 = vmatprep.subr.mxu0 0.0
        %7210 = vmatpush1.msra.mxu0 0.0
        %7211 = vmatprep.subr.mxu0 0.0
        %7212 = vmatpush1.msra.mxu0 0.0
        %7213 = vmatprep.subr.mxu0 0.0
        %7214 = vmatpush1.msra.mxu0 0.0
        %7215 = vmatprep.subr.mxu0 0.0
        %7216 = vmatpush1.msra.mxu0 0.0
        %7217 = vmatprep.subr.mxu0 0.0
        %7218 = vmatpush1.msra.mxu0 0.0
        %7219 = vmatprep.subr.mxu0 0.0
        %7220 = vmatpush1.msra.mxu0 0.0
        %7221 = vmatprep.subr.mxu0 0.0
        %7222 = vmatpush1.msra.mxu0 0.0
        %7223 = vmatprep.subr.mxu0 0.0
        %7224 = vmatpush1.msra.mxu0 0.0
        %7225 = vmatprep.subr.mxu0 0.0
        %7226 = vmatpush1.msra.mxu0 0.0
        %7227 = vmatprep.subr.mxu0 0.0
        %7228 = vmatpush1.msra.mxu0 0.0
        %7229 = vmatprep.subr.mxu0 0.0
        %7230 = vmatpush1.msra.mxu0 0.0
        %7231 = vmatprep.subr.mxu0 0.0
        %7232 = vmatpush1.msra.mxu0 0.0
        %7233 = vmatprep.subr.mxu0 0.0
        %7234 = vmatpush1.msra.mxu0 0.0
        %7235 = vmatprep.subr.mxu0 0.0
        %7236 = vmatpush1.msra.mxu0 0.0
        %7237 = vmatprep.subr.mxu0 0.0
        %7238 = vmatpush1.msra.mxu0 0.0
        %7239 = vmatprep.subr.mxu0 0.0
        %7240 = vmatpush1.msra.mxu0 0.0
        %7241 = vmatprep.mubr.f32.mxu0 0.0
        %7242 = vmatmul.mubr.f32.gmra.mrb[0].mxu0 %v7175
        %v7243 = vpop.f32.mrb[0].mxu0
        %v7244 = vadd.f32 0.0, %v7243
        %v7245 = vpop.f32.mrb[0].mxu0
        %v7246 = vadd.f32 0.0, %v7245
        %7247 = vdwg.mxu0
        %v7248 = vadd.f32 %v7170, %v7244
        %v7249 = vadd.f32 %v7171, %v7246
        %s7250 = scalar_lea.vmem %s12, 72
        %v7251 = vld [vmem:[%s7250] sm:$0xf]
        %v7253 = vsel %vm654, %v7251, 0
        %7255 = vmatprep.subr.mxu0 %v5027
        %7256 = vmatpush1.msra.mxu0 %v5024
        %7257 = vmatprep.subr.mxu0 0.0
        %7258 = vmatpush1.msra.mxu0 0.0
        %7259 = vmatprep.subr.mxu0 0.0
        %7260 = vmatpush1.msra.mxu0 0.0
        %7261 = vmatprep.subr.mxu0 0.0
        %7262 = vmatpush1.msra.mxu0 0.0
        %7263 = vmatprep.subr.mxu0 0.0
        %7264 = vmatpush1.msra.mxu0 0.0
        %7265 = vmatprep.subr.mxu0 0.0
        %7266 = vmatpush1.msra.mxu0 0.0
        %7267 = vmatprep.subr.mxu0 0.0
        %7268 = vmatpush1.msra.mxu0 0.0
        %7269 = vmatprep.subr.mxu0 0.0
        %7270 = vmatpush1.msra.mxu0 0.0
        %7271 = vmatprep.subr.mxu0 0.0
        %7272 = vmatpush1.msra.mxu0 0.0
        %7273 = vmatprep.subr.mxu0 0.0
        %7274 = vmatpush1.msra.mxu0 0.0
        %7275 = vmatprep.subr.mxu0 0.0
        %7276 = vmatpush1.msra.mxu0 0.0
        %7277 = vmatprep.subr.mxu0 0.0
        %7278 = vmatpush1.msra.mxu0 0.0
        %7279 = vmatprep.subr.mxu0 0.0
        %7280 = vmatpush1.msra.mxu0 0.0
        %7281 = vmatprep.subr.mxu0 0.0
        %7282 = vmatpush1.msra.mxu0 0.0
        %7283 = vmatprep.subr.mxu0 0.0
        %7284 = vmatpush1.msra.mxu0 0.0
        %7285 = vmatprep.subr.mxu0 0.0
        %7286 = vmatpush1.msra.mxu0 0.0
        %7287 = vmatprep.subr.mxu0 0.0
        %7288 = vmatpush1.msra.mxu0 0.0
        %7289 = vmatprep.subr.mxu0 0.0
        %7290 = vmatpush1.msra.mxu0 0.0
        %7291 = vmatprep.subr.mxu0 0.0
        %7292 = vmatpush1.msra.mxu0 0.0
        %7293 = vmatprep.subr.mxu0 0.0
        %7294 = vmatpush1.msra.mxu0 0.0
        %7295 = vmatprep.subr.mxu0 0.0
        %7296 = vmatpush1.msra.mxu0 0.0
        %7297 = vmatprep.subr.mxu0 0.0
        %7298 = vmatpush1.msra.mxu0 0.0
        %7299 = vmatprep.subr.mxu0 0.0
        %7300 = vmatpush1.msra.mxu0 0.0
        %7301 = vmatprep.subr.mxu0 0.0
        %7302 = vmatpush1.msra.mxu0 0.0
        %7303 = vmatprep.subr.mxu0 0.0
        %7304 = vmatpush1.msra.mxu0 0.0
        %7305 = vmatprep.subr.mxu0 0.0
        %7306 = vmatpush1.msra.mxu0 0.0
        %7307 = vmatprep.subr.mxu0 0.0
        %7308 = vmatpush1.msra.mxu0 0.0
        %7309 = vmatprep.subr.mxu0 0.0
        %7310 = vmatpush1.msra.mxu0 0.0
        %7311 = vmatprep.subr.mxu0 0.0
        %7312 = vmatpush1.msra.mxu0 0.0
        %7313 = vmatprep.subr.mxu0 0.0
        %7314 = vmatpush1.msra.mxu0 0.0
        %7315 = vmatprep.subr.mxu0 0.0
        %7316 = vmatpush1.msra.mxu0 0.0
        %7317 = vmatprep.subr.mxu0 0.0
        %7318 = vmatpush1.msra.mxu0 0.0
        %7319 = vmatprep.mubr.f32.mxu0 0.0
        %7320 = vmatmul.mubr.f32.gmra.mrb[0].mxu0 %v7253
        %v7321 = vpop.f32.mrb[0].mxu0
        %v7322 = vadd.f32 0.0, %v7321
        %v7323 = vpop.f32.mrb[0].mxu0
        %v7324 = vadd.f32 0.0, %v7323
        %7325 = vdwg.mxu0
        %v7326 = vadd.f32 %v7248, %v7322
        %v7327 = vadd.f32 %v7249, %v7324
        %s7328 = scalar_lea.vmem %s12, 76
        %v7329 = vld [vmem:[%s7328] sm:$0xf]
        %v7331 = vsel %vm654, %v7329, 0
        %7333 = vmatprep.subr.mxu0 %v4950
        %7334 = vmatpush1.msra.mxu0 %v4947
        %7335 = vmatprep.subr.mxu0 0.0
        %7336 = vmatpush1.msra.mxu0 0.0
        %7337 = vmatprep.subr.mxu0 0.0
        %7338 = vmatpush1.msra.mxu0 0.0
        %7339 = vmatprep.subr.mxu0 0.0
        %7340 = vmatpush1.msra.mxu0 0.0
        %7341 = vmatprep.subr.mxu0 0.0
        %7342 = vmatpush1.msra.mxu0 0.0
        %7343 = vmatprep.subr.mxu0 0.0
        %7344 = vmatpush1.msra.mxu0 0.0
        %7345 = vmatprep.subr.mxu0 0.0
        %7346 = vmatpush1.msra.mxu0 0.0
        %7347 = vmatprep.subr.mxu0 0.0
        %7348 = vmatpush1.msra.mxu0 0.0
        %7349 = vmatprep.subr.mxu0 0.0
        %7350 = vmatpush1.msra.mxu0 0.0
        %7351 = vmatprep.subr.mxu0 0.0
        %7352 = vmatpush1.msra.mxu0 0.0
        %7353 = vmatprep.subr.mxu0 0.0
        %7354 = vmatpush1.msra.mxu0 0.0
        %7355 = vmatprep.subr.mxu0 0.0
        %7356 = vmatpush1.msra.mxu0 0.0
        %7357 = vmatprep.subr.mxu0 0.0
        %7358 = vmatpush1.msra.mxu0 0.0
        %7359 = vmatprep.subr.mxu0 0.0
        %7360 = vmatpush1.msra.mxu0 0.0
        %7361 = vmatprep.subr.mxu0 0.0
        %7362 = vmatpush1.msra.mxu0 0.0
        %7363 = vmatprep.subr.mxu0 0.0
        %7364 = vmatpush1.msra.mxu0 0.0
        %7365 = vmatprep.subr.mxu0 0.0
        %7366 = vmatpush1.msra.mxu0 0.0
        %7367 = vmatprep.subr.mxu0 0.0
        %7368 = vmatpush1.msra.mxu0 0.0
        %7369 = vmatprep.subr.mxu0 0.0
        %7370 = vmatpush1.msra.mxu0 0.0
        %7371 = vmatprep.subr.mxu0 0.0
        %7372 = vmatpush1.msra.mxu0 0.0
        %7373 = vmatprep.subr.mxu0 0.0
        %7374 = vmatpush1.msra.mxu0 0.0
        %7375 = vmatprep.subr.mxu0 0.0
        %7376 = vmatpush1.msra.mxu0 0.0
        %7377 = vmatprep.subr.mxu0 0.0
        %7378 = vmatpush1.msra.mxu0 0.0
        %7379 = vmatprep.subr.mxu0 0.0
        %7380 = vmatpush1.msra.mxu0 0.0
        %7381 = vmatprep.subr.mxu0 0.0
        %7382 = vmatpush1.msra.mxu0 0.0
        %7383 = vmatprep.subr.mxu0 0.0
        %7384 = vmatpush1.msra.mxu0 0.0
        %7385 = vmatprep.subr.mxu0 0.0
        %7386 = vmatpush1.msra.mxu0 0.0
        %7387 = vmatprep.subr.mxu0 0.0
        %7388 = vmatpush1.msra.mxu0 0.0
        %7389 = vmatprep.subr.mxu0 0.0
        %7390 = vmatpush1.msra.mxu0 0.0
        %7391 = vmatprep.subr.mxu0 0.0
        %7392 = vmatpush1.msra.mxu0 0.0
        %7393 = vmatprep.subr.mxu0 0.0
        %7394 = vmatpush1.msra.mxu0 0.0
        %7395 = vmatprep.subr.mxu0 0.0
        %7396 = vmatpush1.msra.mxu0 0.0
        %7397 = vmatprep.mubr.f32.mxu0 0.0
        %7398 = vmatmul.mubr.f32.gmra.mrb[0].mxu0 %v7331
        %v7399 = vpop.f32.mrb[0].mxu0
        %v7400 = vadd.f32 0.0, %v7399
        %v7401 = vpop.f32.mrb[0].mxu0
        %v7402 = vadd.f32 0.0, %v7401
        %7403 = vdwg.mxu0
        %v7404 = vadd.f32 %v7326, %v7400
        %v7405 = vadd.f32 %v7327, %v7402
        %s7406 = scalar_lea.vmem %s12, 80
        %v7407 = vld [vmem:[%s7406] sm:$0xf]
        %v7409 = vsel %vm654, %v7407, 0
        %7411 = vmatprep.subr.mxu0 %v5104
        %7412 = vmatpush1.msra.mxu0 %v5101
        %7413 = vmatprep.subr.mxu0 0.0
        %7414 = vmatpush1.msra.mxu0 0.0
        %7415 = vmatprep.subr.mxu0 0.0
        %7416 = vmatpush1.msra.mxu0 0.0
        %7417 = vmatprep.subr.mxu0 0.0
        %7418 = vmatpush1.msra.mxu0 0.0
        %7419 = vmatprep.subr.mxu0 0.0
        %7420 = vmatpush1.msra.mxu0 0.0
        %7421 = vmatprep.subr.mxu0 0.0
        %7422 = vmatpush1.msra.mxu0 0.0
        %7423 = vmatprep.subr.mxu0 0.0
        %7424 = vmatpush1.msra.mxu0 0.0
        %7425 = vmatprep.subr.mxu0 0.0
        %7426 = vmatpush1.msra.mxu0 0.0
        %7427 = vmatprep.subr.mxu0 0.0
        %7428 = vmatpush1.msra.mxu0 0.0
        %7429 = vmatprep.subr.mxu0 0.0
        %7430 = vmatpush1.msra.mxu0 0.0
        %7431 = vmatprep.subr.mxu0 0.0
        %7432 = vmatpush1.msra.mxu0 0.0
        %7433 = vmatprep.subr.mxu0 0.0
        %7434 = vmatpush1.msra.mxu0 0.0
        %7435 = vmatprep.subr.mxu0 0.0
        %7436 = vmatpush1.msra.mxu0 0.0
        %7437 = vmatprep.subr.mxu0 0.0
        %7438 = vmatpush1.msra.mxu0 0.0
        %7439 = vmatprep.subr.mxu0 0.0
        %7440 = vmatpush1.msra.mxu0 0.0
        %7441 = vmatprep.subr.mxu0 0.0
        %7442 = vmatpush1.msra.mxu0 0.0
        %7443 = vmatprep.subr.mxu0 0.0
        %7444 = vmatpush1.msra.mxu0 0.0
        %7445 = vmatprep.subr.mxu0 0.0
        %7446 = vmatpush1.msra.mxu0 0.0
        %7447 = vmatprep.subr.mxu0 0.0
        %7448 = vmatpush1.msra.mxu0 0.0
        %7449 = vmatprep.subr.mxu0 0.0
        %7450 = vmatpush1.msra.mxu0 0.0
        %7451 = vmatprep.subr.mxu0 0.0
        %7452 = vmatpush1.msra.mxu0 0.0
        %7453 = vmatprep.subr.mxu0 0.0
        %7454 = vmatpush1.msra.mxu0 0.0
        %7455 = vmatprep.subr.mxu0 0.0
        %7456 = vmatpush1.msra.mxu0 0.0
        %7457 = vmatprep.subr.mxu0 0.0
        %7458 = vmatpush1.msra.mxu0 0.0
        %7459 = vmatprep.subr.mxu0 0.0
        %7460 = vmatpush1.msra.mxu0 0.0
        %7461 = vmatprep.subr.mxu0 0.0
        %7462 = vmatpush1.msra.mxu0 0.0
        %7463 = vmatprep.subr.mxu0 0.0
        %7464 = vmatpush1.msra.mxu0 0.0
        %7465 = vmatprep.subr.mxu0 0.0
        %7466 = vmatpush1.msra.mxu0 0.0
        %7467 = vmatprep.subr.mxu0 0.0
        %7468 = vmatpush1.msra.mxu0 0.0
        %7469 = vmatprep.subr.mxu0 0.0
        %7470 = vmatpush1.msra.mxu0 0.0
        %7471 = vmatprep.subr.mxu0 0.0
        %7472 = vmatpush1.msra.mxu0 0.0
        %7473 = vmatprep.subr.mxu0 0.0
        %7474 = vmatpush1.msra.mxu0 0.0
        %7475 = vmatprep.mubr.f32.mxu0 0.0
        %7476 = vmatmul.mubr.f32.gmra.mrb[0].mxu0 %v7409
        %v7477 = vpop.f32.mrb[0].mxu0
        %v7478 = vadd.f32 0.0, %v7477
        %v7479 = vpop.f32.mrb[0].mxu0
        %v7480 = vadd.f32 0.0, %v7479
        %7481 = vdwg.mxu0
        %v7482 = vadd.f32 %v7404, %v7478
        %v7483 = vadd.f32 %v7405, %v7480
        %s7484 = scalar_lea.vmem %s12, 84
        %v7485 = vld [vmem:[%s7484] sm:$0xf]
        %v7487 = vsel %vm654, %v7485, 0
        %7489 = vmatprep.subr.mxu0 %v5183
        %7490 = vmatpush1.msra.mxu0 %v5180
        %7491 = vmatprep.subr.mxu0 0.0
        %7492 = vmatpush1.msra.mxu0 0.0
        %7493 = vmatprep.subr.mxu0 0.0
        %7494 = vmatpush1.msra.mxu0 0.0
        %7495 = vmatprep.subr.mxu0 0.0
        %7496 = vmatpush1.msra.mxu0 0.0
        %7497 = vmatprep.subr.mxu0 0.0
        %7498 = vmatpush1.msra.mxu0 0.0
        %7499 = vmatprep.subr.mxu0 0.0
        %7500 = vmatpush1.msra.mxu0 0.0
        %7501 = vmatprep.subr.mxu0 0.0
        %7502 = vmatpush1.msra.mxu0 0.0
        %7503 = vmatprep.subr.mxu0 0.0
        %7504 = vmatpush1.msra.mxu0 0.0
        %7505 = vmatprep.subr.mxu0 0.0
        %7506 = vmatpush1.msra.mxu0 0.0
        %7507 = vmatprep.subr.mxu0 0.0
        %7508 = vmatpush1.msra.mxu0 0.0
        %7509 = vmatprep.subr.mxu0 0.0
        %7510 = vmatpush1.msra.mxu0 0.0
        %7511 = vmatprep.subr.mxu0 0.0
        %7512 = vmatpush1.msra.mxu0 0.0
        %7513 = vmatprep.subr.mxu0 0.0
        %7514 = vmatpush1.msra.mxu0 0.0
        %7515 = vmatprep.subr.mxu0 0.0
        %7516 = vmatpush1.msra.mxu0 0.0
        %7517 = vmatprep.subr.mxu0 0.0
        %7518 = vmatpush1.msra.mxu0 0.0
        %7519 = vmatprep.subr.mxu0 0.0
        %7520 = vmatpush1.msra.mxu0 0.0
        %7521 = vmatprep.subr.mxu0 0.0
        %7522 = vmatpush1.msra.mxu0 0.0
        %7523 = vmatprep.subr.mxu0 0.0
        %7524 = vmatpush1.msra.mxu0 0.0
        %7525 = vmatprep.subr.mxu0 0.0
        %7526 = vmatpush1.msra.mxu0 0.0
        %7527 = vmatprep.subr.mxu0 0.0
        %7528 = vmatpush1.msra.mxu0 0.0
        %7529 = vmatprep.subr.mxu0 0.0
        %7530 = vmatpush1.msra.mxu0 0.0
        %7531 = vmatprep.subr.mxu0 0.0
        %7532 = vmatpush1.msra.mxu0 0.0
        %7533 = vmatprep.subr.mxu0 0.0
        %7534 = vmatpush1.msra.mxu0 0.0
        %7535 = vmatprep.subr.mxu0 0.0
        %7536 = vmatpush1.msra.mxu0 0.0
        %7537 = vmatprep.subr.mxu0 0.0
        %7538 = vmatpush1.msra.mxu0 0.0
        %7539 = vmatprep.subr.mxu0 0.0
        %7540 = vmatpush1.msra.mxu0 0.0
        %7541 = vmatprep.subr.mxu0 0.0
        %7542 = vmatpush1.msra.mxu0 0.0
        %7543 = vmatprep.subr.mxu0 0.0
        %7544 = vmatpush1.msra.mxu0 0.0
        %7545 = vmatprep.subr.mxu0 0.0
        %7546 = vmatpush1.msra.mxu0 0.0
        %7547 = vmatprep.subr.mxu0 0.0
        %7548 = vmatpush1.msra.mxu0 0.0
        %7549 = vmatprep.subr.mxu0 0.0
        %7550 = vmatpush1.msra.mxu0 0.0
        %7551 = vmatprep.subr.mxu0 0.0
        %7552 = vmatpush1.msra.mxu0 0.0
        %7553 = vmatprep.mubr.f32.mxu0 0.0
        %7554 = vmatmul.mubr.f32.gmra.mrb[0].mxu0 %v7487
        %v7555 = vpop.f32.mrb[0].mxu0
        %v7556 = vadd.f32 0.0, %v7555
        %v7557 = vpop.f32.mrb[0].mxu0
        %v7558 = vadd.f32 0.0, %v7557
        %7559 = vdwg.mxu0
        %v7560 = vadd.f32 %v7482, %v7556
        %v7561 = vadd.f32 %v7483, %v7558
        %s7562 = scalar_lea.vmem %s12, 88
        %v7563 = vld [vmem:[%s7562] sm:$0xf]
        %v7565 = vsel %vm654, %v7563, 0
        %7567 = vmatprep.subr.mxu0 %v5262
        %7568 = vmatpush1.msra.mxu0 %v5259
        %7569 = vmatprep.subr.mxu0 0.0
        %7570 = vmatpush1.msra.mxu0 0.0
        %7571 = vmatprep.subr.mxu0 0.0
        %7572 = vmatpush1.msra.mxu0 0.0
        %7573 = vmatprep.subr.mxu0 0.0
        %7574 = vmatpush1.msra.mxu0 0.0
        %7575 = vmatprep.subr.mxu0 0.0
        %7576 = vmatpush1.msra.mxu0 0.0
        %7577 = vmatprep.subr.mxu0 0.0
        %7578 = vmatpush1.msra.mxu0 0.0
        %7579 = vmatprep.subr.mxu0 0.0
        %7580 = vmatpush1.msra.mxu0 0.0
        %7581 = vmatprep.subr.mxu0 0.0
        %7582 = vmatpush1.msra.mxu0 0.0
        %7583 = vmatprep.subr.mxu0 0.0
        %7584 = vmatpush1.msra.mxu0 0.0
        %7585 = vmatprep.subr.mxu0 0.0
        %7586 = vmatpush1.msra.mxu0 0.0
        %7587 = vmatprep.subr.mxu0 0.0
        %7588 = vmatpush1.msra.mxu0 0.0
        %7589 = vmatprep.subr.mxu0 0.0
        %7590 = vmatpush1.msra.mxu0 0.0
        %7591 = vmatprep.subr.mxu0 0.0
        %7592 = vmatpush1.msra.mxu0 0.0
        %7593 = vmatprep.subr.mxu0 0.0
        %7594 = vmatpush1.msra.mxu0 0.0
        %7595 = vmatprep.subr.mxu0 0.0
        %7596 = vmatpush1.msra.mxu0 0.0
        %7597 = vmatprep.subr.mxu0 0.0
        %7598 = vmatpush1.msra.mxu0 0.0
        %7599 = vmatprep.subr.mxu0 0.0
        %7600 = vmatpush1.msra.mxu0 0.0
        %7601 = vmatprep.subr.mxu0 0.0
        %7602 = vmatpush1.msra.mxu0 0.0
        %7603 = vmatprep.subr.mxu0 0.0
        %7604 = vmatpush1.msra.mxu0 0.0
        %7605 = vmatprep.subr.mxu0 0.0
        %7606 = vmatpush1.msra.mxu0 0.0
        %7607 = vmatprep.subr.mxu0 0.0
        %7608 = vmatpush1.msra.mxu0 0.0
        %7609 = vmatprep.subr.mxu0 0.0
        %7610 = vmatpush1.msra.mxu0 0.0
        %7611 = vmatprep.subr.mxu0 0.0
        %7612 = vmatpush1.msra.mxu0 0.0
        %7613 = vmatprep.subr.mxu0 0.0
        %7614 = vmatpush1.msra.mxu0 0.0
        %7615 = vmatprep.subr.mxu0 0.0
        %7616 = vmatpush1.msra.mxu0 0.0
        %7617 = vmatprep.subr.mxu0 0.0
        %7618 = vmatpush1.msra.mxu0 0.0
        %7619 = vmatprep.subr.mxu0 0.0
        %7620 = vmatpush1.msra.mxu0 0.0
        %7621 = vmatprep.subr.mxu0 0.0
        %7622 = vmatpush1.msra.mxu0 0.0
        %7623 = vmatprep.subr.mxu0 0.0
        %7624 = vmatpush1.msra.mxu0 0.0
        %7625 = vmatprep.subr.mxu0 0.0
        %7626 = vmatpush1.msra.mxu0 0.0
        %7627 = vmatprep.subr.mxu0 0.0
        %7628 = vmatpush1.msra.mxu0 0.0
        %7629 = vmatprep.subr.mxu0 0.0
        %7630 = vmatpush1.msra.mxu0 0.0
        %7631 = vmatprep.mubr.f32.mxu0 0.0
        %7632 = vmatmul.mubr.f32.gmra.mrb[0].mxu0 %v7565
        %v7633 = vpop.f32.mrb[0].mxu0
        %v7634 = vadd.f32 0.0, %v7633
        %v7635 = vpop.f32.mrb[0].mxu0
        %v7636 = vadd.f32 0.0, %v7635
        %7637 = vdwg.mxu0
        %v7638 = vadd.f32 %v7560, %v7634
        %v7639 = vadd.f32 %v7561, %v7636
        %s7640 = scalar_lea.vmem %s12, 92
        %v7641 = vld [vmem:[%s7640] sm:$0xf]
        %v7643 = vsel %vm654, %v7641, 0
        %7645 = vmatprep.subr.mxu0 %v5341
        %7646 = vmatpush1.msra.mxu0 %v5338
        %7647 = vmatprep.subr.mxu0 0.0
        %7648 = vmatpush1.msra.mxu0 0.0
        %7649 = vmatprep.subr.mxu0 0.0
        %7650 = vmatpush1.msra.mxu0 0.0
        %7651 = vmatprep.subr.mxu0 0.0
        %7652 = vmatpush1.msra.mxu0 0.0
        %7653 = vmatprep.subr.mxu0 0.0
        %7654 = vmatpush1.msra.mxu0 0.0
        %7655 = vmatprep.subr.mxu0 0.0
        %7656 = vmatpush1.msra.mxu0 0.0
        %7657 = vmatprep.subr.mxu0 0.0
        %7658 = vmatpush1.msra.mxu0 0.0
        %7659 = vmatprep.subr.mxu0 0.0
        %7660 = vmatpush1.msra.mxu0 0.0
        %7661 = vmatprep.subr.mxu0 0.0
        %7662 = vmatpush1.msra.mxu0 0.0
        %7663 = vmatprep.subr.mxu0 0.0
        %7664 = vmatpush1.msra.mxu0 0.0
        %7665 = vmatprep.subr.mxu0 0.0
        %7666 = vmatpush1.msra.mxu0 0.0
        %7667 = vmatprep.subr.mxu0 0.0
        %7668 = vmatpush1.msra.mxu0 0.0
        %7669 = vmatprep.subr.mxu0 0.0
        %7670 = vmatpush1.msra.mxu0 0.0
        %7671 = vmatprep.subr.mxu0 0.0
        %7672 = vmatpush1.msra.mxu0 0.0
        %7673 = vmatprep.subr.mxu0 0.0
        %7674 = vmatpush1.msra.mxu0 0.0
        %7675 = vmatprep.subr.mxu0 0.0
        %7676 = vmatpush1.msra.mxu0 0.0
        %7677 = vmatprep.subr.mxu0 0.0
        %7678 = vmatpush1.msra.mxu0 0.0
        %7679 = vmatprep.subr.mxu0 0.0
        %7680 = vmatpush1.msra.mxu0 0.0
        %7681 = vmatprep.subr.mxu0 0.0
        %7682 = vmatpush1.msra.mxu0 0.0
        %7683 = vmatprep.subr.mxu0 0.0
        %7684 = vmatpush1.msra.mxu0 0.0
        %7685 = vmatprep.subr.mxu0 0.0
        %7686 = vmatpush1.msra.mxu0 0.0
        %7687 = vmatprep.subr.mxu0 0.0
        %7688 = vmatpush1.msra.mxu0 0.0
        %7689 = vmatprep.subr.mxu0 0.0
        %7690 = vmatpush1.msra.mxu0 0.0
        %7691 = vmatprep.subr.mxu0 0.0
        %7692 = vmatpush1.msra.mxu0 0.0
        %7693 = vmatprep.subr.mxu0 0.0
        %7694 = vmatpush1.msra.mxu0 0.0
        %7695 = vmatprep.subr.mxu0 0.0
        %7696 = vmatpush1.msra.mxu0 0.0
        %7697 = vmatprep.subr.mxu0 0.0
        %7698 = vmatpush1.msra.mxu0 0.0
        %7699 = vmatprep.subr.mxu0 0.0
        %7700 = vmatpush1.msra.mxu0 0.0
        %7701 = vmatprep.subr.mxu0 0.0
        %7702 = vmatpush1.msra.mxu0 0.0
        %7703 = vmatprep.subr.mxu0 0.0
        %7704 = vmatpush1.msra.mxu0 0.0
        %7705 = vmatprep.subr.mxu0 0.0
        %7706 = vmatpush1.msra.mxu0 0.0
        %7707 = vmatprep.subr.mxu0 0.0
        %7708 = vmatpush1.msra.mxu0 0.0
        %7709 = vmatprep.mubr.f32.mxu0 0.0
        %7710 = vmatmul.mubr.f32.gmra.mrb[0].mxu0 %v7643
        %v7711 = vpop.f32.mrb[0].mxu0
        %v7712 = vadd.f32 0.0, %v7711
        %v7713 = vpop.f32.mrb[0].mxu0
        %v7714 = vadd.f32 0.0, %v7713
        %7715 = vdwg.mxu0
        %v7716 = vadd.f32 %v7638, %v7712
        %v7717 = vadd.f32 %v7639, %v7714
        %s7718 = scalar_lea.vmem %s12, 96
        %v7719 = vld [vmem:[%s7718] sm:$0xf]
        %v7721 = vsel %vm654, %v7719, 0
        %7723 = vmatprep.subr.mxu0 %v5420
        %7724 = vmatpush1.msra.mxu0 %v5417
        %7725 = vmatprep.subr.mxu0 0.0
        %7726 = vmatpush1.msra.mxu0 0.0
        %7727 = vmatprep.subr.mxu0 0.0
        %7728 = vmatpush1.msra.mxu0 0.0
        %7729 = vmatprep.subr.mxu0 0.0
        %7730 = vmatpush1.msra.mxu0 0.0
        %7731 = vmatprep.subr.mxu0 0.0
        %7732 = vmatpush1.msra.mxu0 0.0
        %7733 = vmatprep.subr.mxu0 0.0
        %7734 = vmatpush1.msra.mxu0 0.0
        %7735 = vmatprep.subr.mxu0 0.0
        %7736 = vmatpush1.msra.mxu0 0.0
        %7737 = vmatprep.subr.mxu0 0.0
        %7738 = vmatpush1.msra.mxu0 0.0
        %7739 = vmatprep.subr.mxu0 0.0
        %7740 = vmatpush1.msra.mxu0 0.0
        %7741 = vmatprep.subr.mxu0 0.0
        %7742 = vmatpush1.msra.mxu0 0.0
        %7743 = vmatprep.subr.mxu0 0.0
        %7744 = vmatpush1.msra.mxu0 0.0
        %7745 = vmatprep.subr.mxu0 0.0
        %7746 = vmatpush1.msra.mxu0 0.0
        %7747 = vmatprep.subr.mxu0 0.0
        %7748 = vmatpush1.msra.mxu0 0.0
        %7749 = vmatprep.subr.mxu0 0.0
        %7750 = vmatpush1.msra.mxu0 0.0
        %7751 = vmatprep.subr.mxu0 0.0
        %7752 = vmatpush1.msra.mxu0 0.0
        %7753 = vmatprep.subr.mxu0 0.0
        %7754 = vmatpush1.msra.mxu0 0.0
        %7755 = vmatprep.subr.mxu0 0.0
        %7756 = vmatpush1.msra.mxu0 0.0
        %7757 = vmatprep.subr.mxu0 0.0
        %7758 = vmatpush1.msra.mxu0 0.0
        %7759 = vmatprep.subr.mxu0 0.0
        %7760 = vmatpush1.msra.mxu0 0.0
        %7761 = vmatprep.subr.mxu0 0.0
        %7762 = vmatpush1.msra.mxu0 0.0
        %7763 = vmatprep.subr.mxu0 0.0
        %7764 = vmatpush1.msra.mxu0 0.0
        %7765 = vmatprep.subr.mxu0 0.0
        %7766 = vmatpush1.msra.mxu0 0.0
        %7767 = vmatprep.subr.mxu0 0.0
        %7768 = vmatpush1.msra.mxu0 0.0
        %7769 = vmatprep.subr.mxu0 0.0
        %7770 = vmatpush1.msra.mxu0 0.0
        %7771 = vmatprep.subr.mxu0 0.0
        %7772 = vmatpush1.msra.mxu0 0.0
        %7773 = vmatprep.subr.mxu0 0.0
        %7774 = vmatpush1.msra.mxu0 0.0
        %7775 = vmatprep.subr.mxu0 0.0
        %7776 = vmatpush1.msra.mxu0 0.0
        %7777 = vmatprep.subr.mxu0 0.0
        %7778 = vmatpush1.msra.mxu0 0.0
        %7779 = vmatprep.subr.mxu0 0.0
        %7780 = vmatpush1.msra.mxu0 0.0
        %7781 = vmatprep.subr.mxu0 0.0
        %7782 = vmatpush1.msra.mxu0 0.0
        %7783 = vmatprep.subr.mxu0 0.0
        %7784 = vmatpush1.msra.mxu0 0.0
        %7785 = vmatprep.subr.mxu0 0.0
        %7786 = vmatpush1.msra.mxu0 0.0
        %7787 = vmatprep.mubr.f32.mxu0 0.0
        %7788 = vmatmul.mubr.f32.gmra.mrb[0].mxu0 %v7721
        %v7789 = vpop.f32.mrb[0].mxu0
        %v7790 = vadd.f32 0.0, %v7789
        %v7791 = vpop.f32.mrb[0].mxu0
        %v7792 = vadd.f32 0.0, %v7791
        %7793 = vdwg.mxu0
        %v7794 = vadd.f32 %v7716, %v7790
        %v7795 = vadd.f32 %v7717, %v7792
        %s7796 = scalar_lea.vmem %s12, 100
        %v7797 = vld [vmem:[%s7796] sm:$0xf]
        %v7799 = vsel %vm654, %v7797, 0
        %7801 = vmatprep.subr.mxu0 %v5499
        %7802 = vmatpush1.msra.mxu0 %v5496
        %7803 = vmatprep.subr.mxu0 0.0
        %7804 = vmatpush1.msra.mxu0 0.0
        %7805 = vmatprep.subr.mxu0 0.0
        %7806 = vmatpush1.msra.mxu0 0.0
        %7807 = vmatprep.subr.mxu0 0.0
        %7808 = vmatpush1.msra.mxu0 0.0
        %7809 = vmatprep.subr.mxu0 0.0
        %7810 = vmatpush1.msra.mxu0 0.0
        %7811 = vmatprep.subr.mxu0 0.0
        %7812 = vmatpush1.msra.mxu0 0.0
        %7813 = vmatprep.subr.mxu0 0.0
        %7814 = vmatpush1.msra.mxu0 0.0
        %7815 = vmatprep.subr.mxu0 0.0
        %7816 = vmatpush1.msra.mxu0 0.0
        %7817 = vmatprep.subr.mxu0 0.0
        %7818 = vmatpush1.msra.mxu0 0.0
        %7819 = vmatprep.subr.mxu0 0.0
        %7820 = vmatpush1.msra.mxu0 0.0
        %7821 = vmatprep.subr.mxu0 0.0
        %7822 = vmatpush1.msra.mxu0 0.0
        %7823 = vmatprep.subr.mxu0 0.0
        %7824 = vmatpush1.msra.mxu0 0.0
        %7825 = vmatprep.subr.mxu0 0.0
        %7826 = vmatpush1.msra.mxu0 0.0
        %7827 = vmatprep.subr.mxu0 0.0
        %7828 = vmatpush1.msra.mxu0 0.0
        %7829 = vmatprep.subr.mxu0 0.0
        %7830 = vmatpush1.msra.mxu0 0.0
        %7831 = vmatprep.subr.mxu0 0.0
        %7832 = vmatpush1.msra.mxu0 0.0
        %7833 = vmatprep.subr.mxu0 0.0
        %7834 = vmatpush1.msra.mxu0 0.0
        %7835 = vmatprep.subr.mxu0 0.0
        %7836 = vmatpush1.msra.mxu0 0.0
        %7837 = vmatprep.subr.mxu0 0.0
        %7838 = vmatpush1.msra.mxu0 0.0
        %7839 = vmatprep.subr.mxu0 0.0
        %7840 = vmatpush1.msra.mxu0 0.0
        %7841 = vmatprep.subr.mxu0 0.0
        %7842 = vmatpush1.msra.mxu0 0.0
        %7843 = vmatprep.subr.mxu0 0.0
        %7844 = vmatpush1.msra.mxu0 0.0
        %7845 = vmatprep.subr.mxu0 0.0
        %7846 = vmatpush1.msra.mxu0 0.0
        %7847 = vmatprep.subr.mxu0 0.0
        %7848 = vmatpush1.msra.mxu0 0.0
        %7849 = vmatprep.subr.mxu0 0.0
        %7850 = vmatpush1.msra.mxu0 0.0
        %7851 = vmatprep.subr.mxu0 0.0
        %7852 = vmatpush1.msra.mxu0 0.0
        %7853 = vmatprep.subr.mxu0 0.0
        %7854 = vmatpush1.msra.mxu0 0.0
        %7855 = vmatprep.subr.mxu0 0.0
        %7856 = vmatpush1.msra.mxu0 0.0
        %7857 = vmatprep.subr.mxu0 0.0
        %7858 = vmatpush1.msra.mxu0 0.0
        %7859 = vmatprep.subr.mxu0 0.0
        %7860 = vmatpush1.msra.mxu0 0.0
        %7861 = vmatprep.subr.mxu0 0.0
        %7862 = vmatpush1.msra.mxu0 0.0
        %7863 = vmatprep.subr.mxu0 0.0
        %7864 = vmatpush1.msra.mxu0 0.0
        %7865 = vmatprep.mubr.f32.mxu0 0.0
        %7866 = vmatmul.mubr.f32.gmra.mrb[0].mxu0 %v7799
        %v7867 = vpop.f32.mrb[0].mxu0
        %v7868 = vadd.f32 0.0, %v7867
        %v7869 = vpop.f32.mrb[0].mxu0
        %v7870 = vadd.f32 0.0, %v7869
        %7871 = vdwg.mxu0
        %v7872 = vadd.f32 %v7794, %v7868
        %v7873 = vadd.f32 %v7795, %v7870
        %s7874 = scalar_lea.vmem %s12, 104
        %v7875 = vld [vmem:[%s7874] sm:$0xf]
        %v7877 = vsel %vm654, %v7875, 0
        %7879 = vmatprep.subr.mxu0 %v5578
        %7880 = vmatpush1.msra.mxu0 %v5575
        %7881 = vmatprep.subr.mxu0 0.0
        %7882 = vmatpush1.msra.mxu0 0.0
        %7883 = vmatprep.subr.mxu0 0.0
        %7884 = vmatpush1.msra.mxu0 0.0
        %7885 = vmatprep.subr.mxu0 0.0
        %7886 = vmatpush1.msra.mxu0 0.0
        %7887 = vmatprep.subr.mxu0 0.0
        %7888 = vmatpush1.msra.mxu0 0.0
        %7889 = vmatprep.subr.mxu0 0.0
        %7890 = vmatpush1.msra.mxu0 0.0
        %7891 = vmatprep.subr.mxu0 0.0
        %7892 = vmatpush1.msra.mxu0 0.0
        %7893 = vmatprep.subr.mxu0 0.0
        %7894 = vmatpush1.msra.mxu0 0.0
        %7895 = vmatprep.subr.mxu0 0.0
        %7896 = vmatpush1.msra.mxu0 0.0
        %7897 = vmatprep.subr.mxu0 0.0
        %7898 = vmatpush1.msra.mxu0 0.0
        %7899 = vmatprep.subr.mxu0 0.0
        %7900 = vmatpush1.msra.mxu0 0.0
        %7901 = vmatprep.subr.mxu0 0.0
        %7902 = vmatpush1.msra.mxu0 0.0
        %7903 = vmatprep.subr.mxu0 0.0
        %7904 = vmatpush1.msra.mxu0 0.0
        %7905 = vmatprep.subr.mxu0 0.0
        %7906 = vmatpush1.msra.mxu0 0.0
        %7907 = vmatprep.subr.mxu0 0.0
        %7908 = vmatpush1.msra.mxu0 0.0
        %7909 = vmatprep.subr.mxu0 0.0
        %7910 = vmatpush1.msra.mxu0 0.0
        %7911 = vmatprep.subr.mxu0 0.0
        %7912 = vmatpush1.msra.mxu0 0.0
        %7913 = vmatprep.subr.mxu0 0.0
        %7914 = vmatpush1.msra.mxu0 0.0
        %7915 = vmatprep.subr.mxu0 0.0
        %7916 = vmatpush1.msra.mxu0 0.0
        %7917 = vmatprep.subr.mxu0 0.0
        %7918 = vmatpush1.msra.mxu0 0.0
        %7919 = vmatprep.subr.mxu0 0.0
        %7920 = vmatpush1.msra.mxu0 0.0
        %7921 = vmatprep.subr.mxu0 0.0
        %7922 = vmatpush1.msra.mxu0 0.0
        %7923 = vmatprep.subr.mxu0 0.0
        %7924 = vmatpush1.msra.mxu0 0.0
        %7925 = vmatprep.subr.mxu0 0.0
        %7926 = vmatpush1.msra.mxu0 0.0
        %7927 = vmatprep.subr.mxu0 0.0
        %7928 = vmatpush1.msra.mxu0 0.0
        %7929 = vmatprep.subr.mxu0 0.0
        %7930 = vmatpush1.msra.mxu0 0.0
        %7931 = vmatprep.subr.mxu0 0.0
        %7932 = vmatpush1.msra.mxu0 0.0
        %7933 = vmatprep.subr.mxu0 0.0
        %7934 = vmatpush1.msra.mxu0 0.0
        %7935 = vmatprep.subr.mxu0 0.0
        %7936 = vmatpush1.msra.mxu0 0.0
        %7937 = vmatprep.subr.mxu0 0.0
        %7938 = vmatpush1.msra.mxu0 0.0
        %7939 = vmatprep.subr.mxu0 0.0
        %7940 = vmatpush1.msra.mxu0 0.0
        %7941 = vmatprep.subr.mxu0 0.0
        %7942 = vmatpush1.msra.mxu0 0.0
        %7943 = vmatprep.mubr.f32.mxu0 0.0
        %7944 = vmatmul.mubr.f32.gmra.mrb[0].mxu0 %v7877
        %v7945 = vpop.f32.mrb[0].mxu0
        %v7946 = vadd.f32 0.0, %v7945
        %v7947 = vpop.f32.mrb[0].mxu0
        %v7948 = vadd.f32 0.0, %v7947
        %7949 = vdwg.mxu0
        %v7950 = vadd.f32 %v7872, %v7946
        %v7951 = vadd.f32 %v7873, %v7948
        %s7952 = scalar_lea.vmem %s12, 108
        %v7953 = vld [vmem:[%s7952] sm:$0xf]
        %v7955 = vsel %vm654, %v7953, 0
        %v7958 = vsel %vm658, %v5739, 0
        %v7961 = vsel %vm658, %v5740, 0
        %7963 = vmatprep.subr.mxu0 %v7961
        %7964 = vmatpush1.msra.mxu0 %v7958
        %7965 = vmatprep.subr.mxu0 0.0
        %7966 = vmatpush1.msra.mxu0 0.0
        %7967 = vmatprep.subr.mxu0 0.0
        %7968 = vmatpush1.msra.mxu0 0.0
        %7969 = vmatprep.subr.mxu0 0.0
        %7970 = vmatpush1.msra.mxu0 0.0
        %7971 = vmatprep.subr.mxu0 0.0
        %7972 = vmatpush1.msra.mxu0 0.0
        %7973 = vmatprep.subr.mxu0 0.0
        %7974 = vmatpush1.msra.mxu0 0.0
        %7975 = vmatprep.subr.mxu0 0.0
        %7976 = vmatpush1.msra.mxu0 0.0
        %7977 = vmatprep.subr.mxu0 0.0
        %7978 = vmatpush1.msra.mxu0 0.0
        %7979 = vmatprep.subr.mxu0 0.0
        %7980 = vmatpush1.msra.mxu0 0.0
        %7981 = vmatprep.subr.mxu0 0.0
        %7982 = vmatpush1.msra.mxu0 0.0
        %7983 = vmatprep.subr.mxu0 0.0
        %7984 = vmatpush1.msra.mxu0 0.0
        %7985 = vmatprep.subr.mxu0 0.0
        %7986 = vmatpush1.msra.mxu0 0.0
        %7987 = vmatprep.subr.mxu0 0.0
        %7988 = vmatpush1.msra.mxu0 0.0
        %7989 = vmatprep.subr.mxu0 0.0
        %7990 = vmatpush1.msra.mxu0 0.0
        %7991 = vmatprep.subr.mxu0 0.0
        %7992 = vmatpush1.msra.mxu0 0.0
        %7993 = vmatprep.subr.mxu0 0.0
        %7994 = vmatpush1.msra.mxu0 0.0
        %7995 = vmatprep.subr.mxu0 0.0
        %7996 = vmatpush1.msra.mxu0 0.0
        %7997 = vmatprep.subr.mxu0 0.0
        %7998 = vmatpush1.msra.mxu0 0.0
        %7999 = vmatprep.subr.mxu0 0.0
        %8000 = vmatpush1.msra.mxu0 0.0
        %8001 = vmatprep.subr.mxu0 0.0
        %8002 = vmatpush1.msra.mxu0 0.0
        %8003 = vmatprep.subr.mxu0 0.0
        %8004 = vmatpush1.msra.mxu0 0.0
        %8005 = vmatprep.subr.mxu0 0.0
        %8006 = vmatpush1.msra.mxu0 0.0
        %8007 = vmatprep.subr.mxu0 0.0
        %8008 = vmatpush1.msra.mxu0 0.0
        %8009 = vmatprep.subr.mxu0 0.0
        %8010 = vmatpush1.msra.mxu0 0.0
        %8011 = vmatprep.subr.mxu0 0.0
        %8012 = vmatpush1.msra.mxu0 0.0
        %8013 = vmatprep.subr.mxu0 0.0
        %8014 = vmatpush1.msra.mxu0 0.0
        %8015 = vmatprep.subr.mxu0 0.0
        %8016 = vmatpush1.msra.mxu0 0.0
        %8017 = vmatprep.subr.mxu0 0.0
        %8018 = vmatpush1.msra.mxu0 0.0
        %8019 = vmatprep.subr.mxu0 0.0
        %8020 = vmatpush1.msra.mxu0 0.0
        %8021 = vmatprep.subr.mxu0 0.0
        %8022 = vmatpush1.msra.mxu0 0.0
        %8023 = vmatprep.subr.mxu0 0.0
        %8024 = vmatpush1.msra.mxu0 0.0
        %8025 = vmatprep.subr.mxu0 0.0
        %8026 = vmatpush1.msra.mxu0 0.0
        %8027 = vmatprep.mubr.f32.mxu0 0.0
        %8028 = vmatmul.mubr.f32.gmra.mrb[0].mxu0 %v7955
        %v8029 = vpop.f32.mrb[0].mxu0
        %v8030 = vadd.f32 0.0, %v8029
        %v8031 = vpop.f32.mrb[0].mxu0
        %v8032 = vadd.f32 0.0, %v8031
        %8033 = vdwg.mxu0
        %v8034 = vadd.f32 %v7950, %v8030
        %v8035 = vadd.f32 %v7951, %v8032
        %s8036 = scalar_lea.vmem %s12, 112
        %v8037 = vld [vmem:[%s8036] sm:$0xf]
        %v8039 = vsel %vm654, %v8037, 0
        %v8042 = vsel %vm658, %v5747, 0
        %v8045 = vsel %vm658, %v5748, 0
        %8047 = vmatprep.subr.mxu0 %v8045
        %8048 = vmatpush1.msra.mxu0 %v8042
        %8049 = vmatprep.subr.mxu0 0.0
        %8050 = vmatpush1.msra.mxu0 0.0
        %8051 = vmatprep.subr.mxu0 0.0
        %8052 = vmatpush1.msra.mxu0 0.0
        %8053 = vmatprep.subr.mxu0 0.0
        %8054 = vmatpush1.msra.mxu0 0.0
        %8055 = vmatprep.subr.mxu0 0.0
        %8056 = vmatpush1.msra.mxu0 0.0
        %8057 = vmatprep.subr.mxu0 0.0
        %8058 = vmatpush1.msra.mxu0 0.0
        %8059 = vmatprep.subr.mxu0 0.0
        %8060 = vmatpush1.msra.mxu0 0.0
        %8061 = vmatprep.subr.mxu0 0.0
        %8062 = vmatpush1.msra.mxu0 0.0
        %8063 = vmatprep.subr.mxu0 0.0
        %8064 = vmatpush1.msra.mxu0 0.0
        %8065 = vmatprep.subr.mxu0 0.0
        %8066 = vmatpush1.msra.mxu0 0.0
        %8067 = vmatprep.subr.mxu0 0.0
        %8068 = vmatpush1.msra.mxu0 0.0
        %8069 = vmatprep.subr.mxu0 0.0
        %8070 = vmatpush1.msra.mxu0 0.0
        %8071 = vmatprep.subr.mxu0 0.0
        %8072 = vmatpush1.msra.mxu0 0.0
        %8073 = vmatprep.subr.mxu0 0.0
        %8074 = vmatpush1.msra.mxu0 0.0
        %8075 = vmatprep.subr.mxu0 0.0
        %8076 = vmatpush1.msra.mxu0 0.0
        %8077 = vmatprep.subr.mxu0 0.0
        %8078 = vmatpush1.msra.mxu0 0.0
        %8079 = vmatprep.subr.mxu0 0.0
        %8080 = vmatpush1.msra.mxu0 0.0
        %8081 = vmatprep.subr.mxu0 0.0
        %8082 = vmatpush1.msra.mxu0 0.0
        %8083 = vmatprep.subr.mxu0 0.0
        %8084 = vmatpush1.msra.mxu0 0.0
        %8085 = vmatprep.subr.mxu0 0.0
        %8086 = vmatpush1.msra.mxu0 0.0
        %8087 = vmatprep.subr.mxu0 0.0
        %8088 = vmatpush1.msra.mxu0 0.0
        %8089 = vmatprep.subr.mxu0 0.0
        %8090 = vmatpush1.msra.mxu0 0.0
        %8091 = vmatprep.subr.mxu0 0.0
        %8092 = vmatpush1.msra.mxu0 0.0
        %8093 = vmatprep.subr.mxu0 0.0
        %8094 = vmatpush1.msra.mxu0 0.0
        %8095 = vmatprep.subr.mxu0 0.0
        %8096 = vmatpush1.msra.mxu0 0.0
        %8097 = vmatprep.subr.mxu0 0.0
        %8098 = vmatpush1.msra.mxu0 0.0
        %8099 = vmatprep.subr.mxu0 0.0
        %8100 = vmatpush1.msra.mxu0 0.0
        %8101 = vmatprep.subr.mxu0 0.0
        %8102 = vmatpush1.msra.mxu0 0.0
        %8103 = vmatprep.subr.mxu0 0.0
        %8104 = vmatpush1.msra.mxu0 0.0
        %8105 = vmatprep.subr.mxu0 0.0
        %8106 = vmatpush1.msra.mxu0 0.0
        %8107 = vmatprep.subr.mxu0 0.0
        %8108 = vmatpush1.msra.mxu0 0.0
        %8109 = vmatprep.subr.mxu0 0.0
        %8110 = vmatpush1.msra.mxu0 0.0
        %8111 = vmatprep.mubr.f32.mxu0 0.0
        %8112 = vmatmul.mubr.f32.gmra.mrb[0].mxu0 %v8039
        %v8113 = vpop.f32.mrb[0].mxu0
        %v8114 = vadd.f32 0.0, %v8113
        %v8115 = vpop.f32.mrb[0].mxu0
        %v8116 = vadd.f32 0.0, %v8115
        %8117 = vdwg.mxu0
        %v8118 = vadd.f32 %v8034, %v8114
        %v8119 = vadd.f32 %v8035, %v8116
        %s8120 = scalar_lea.vmem %s12, 116
        %v8121 = vld [vmem:[%s8120] sm:$0xf]
        %v8123 = vsel %vm654, %v8121, 0
        %v8126 = vsel %vm658, %v5755, 0
        %v8129 = vsel %vm658, %v5756, 0
        %8131 = vmatprep.subr.mxu0 %v8129
        %8132 = vmatpush1.msra.mxu0 %v8126
        %8133 = vmatprep.subr.mxu0 0.0
        %8134 = vmatpush1.msra.mxu0 0.0
        %8135 = vmatprep.subr.mxu0 0.0
        %8136 = vmatpush1.msra.mxu0 0.0
        %8137 = vmatprep.subr.mxu0 0.0
        %8138 = vmatpush1.msra.mxu0 0.0
        %8139 = vmatprep.subr.mxu0 0.0
        %8140 = vmatpush1.msra.mxu0 0.0
        %8141 = vmatprep.subr.mxu0 0.0
        %8142 = vmatpush1.msra.mxu0 0.0
        %8143 = vmatprep.subr.mxu0 0.0
        %8144 = vmatpush1.msra.mxu0 0.0
        %8145 = vmatprep.subr.mxu0 0.0
        %8146 = vmatpush1.msra.mxu0 0.0
        %8147 = vmatprep.subr.mxu0 0.0
        %8148 = vmatpush1.msra.mxu0 0.0
        %8149 = vmatprep.subr.mxu0 0.0
        %8150 = vmatpush1.msra.mxu0 0.0
        %8151 = vmatprep.subr.mxu0 0.0
        %8152 = vmatpush1.msra.mxu0 0.0
        %8153 = vmatprep.subr.mxu0 0.0
        %8154 = vmatpush1.msra.mxu0 0.0
        %8155 = vmatprep.subr.mxu0 0.0
        %8156 = vmatpush1.msra.mxu0 0.0
        %8157 = vmatprep.subr.mxu0 0.0
        %8158 = vmatpush1.msra.mxu0 0.0
        %8159 = vmatprep.subr.mxu0 0.0
        %8160 = vmatpush1.msra.mxu0 0.0
        %8161 = vmatprep.subr.mxu0 0.0
        %8162 = vmatpush1.msra.mxu0 0.0
        %8163 = vmatprep.subr.mxu0 0.0
        %8164 = vmatpush1.msra.mxu0 0.0
        %8165 = vmatprep.subr.mxu0 0.0
        %8166 = vmatpush1.msra.mxu0 0.0
        %8167 = vmatprep.subr.mxu0 0.0
        %8168 = vmatpush1.msra.mxu0 0.0
        %8169 = vmatprep.subr.mxu0 0.0
        %8170 = vmatpush1.msra.mxu0 0.0
        %8171 = vmatprep.subr.mxu0 0.0
        %8172 = vmatpush1.msra.mxu0 0.0
        %8173 = vmatprep.subr.mxu0 0.0
        %8174 = vmatpush1.msra.mxu0 0.0
        %8175 = vmatprep.subr.mxu0 0.0
        %8176 = vmatpush1.msra.mxu0 0.0
        %8177 = vmatprep.subr.mxu0 0.0
        %8178 = vmatpush1.msra.mxu0 0.0
        %8179 = vmatprep.subr.mxu0 0.0
        %8180 = vmatpush1.msra.mxu0 0.0
        %8181 = vmatprep.subr.mxu0 0.0
        %8182 = vmatpush1.msra.mxu0 0.0
        %8183 = vmatprep.subr.mxu0 0.0
        %8184 = vmatpush1.msra.mxu0 0.0
        %8185 = vmatprep.subr.mxu0 0.0
        %8186 = vmatpush1.msra.mxu0 0.0
        %8187 = vmatprep.subr.mxu0 0.0
        %8188 = vmatpush1.msra.mxu0 0.0
        %8189 = vmatprep.subr.mxu0 0.0
        %8190 = vmatpush1.msra.mxu0 0.0
        %8191 = vmatprep.subr.mxu0 0.0
        %8192 = vmatpush1.msra.mxu0 0.0
        %8193 = vmatprep.subr.mxu0 0.0
        %8194 = vmatpush1.msra.mxu0 0.0
        %8195 = vmatprep.mubr.f32.mxu0 0.0
        %8196 = vmatmul.mubr.f32.gmra.mrb[0].mxu0 %v8123
        %v8197 = vpop.f32.mrb[0].mxu0
        %v8198 = vadd.f32 0.0, %v8197
        %v8199 = vpop.f32.mrb[0].mxu0
        %v8200 = vadd.f32 0.0, %v8199
        %8201 = vdwg.mxu0
        %v8202 = vadd.f32 %v8118, %v8198
        %v8203 = vadd.f32 %v8119, %v8200
        %s8204 = scalar_lea.vmem %s12, 120
        %v8205 = vld [vmem:[%s8204] sm:$0xf]
        %v8207 = vsel %vm654, %v8205, 0
        %v8210 = vsel %vm658, %v5763, 0
        %v8213 = vsel %vm658, %v5764, 0
        %8215 = vmatprep.subr.mxu0 %v8213
        %8216 = vmatpush1.msra.mxu0 %v8210
        %8217 = vmatprep.subr.mxu0 0.0
        %8218 = vmatpush1.msra.mxu0 0.0
        %8219 = vmatprep.subr.mxu0 0.0
        %8220 = vmatpush1.msra.mxu0 0.0
        %8221 = vmatprep.subr.mxu0 0.0
        %8222 = vmatpush1.msra.mxu0 0.0
        %8223 = vmatprep.subr.mxu0 0.0
        %8224 = vmatpush1.msra.mxu0 0.0
        %8225 = vmatprep.subr.mxu0 0.0
        %8226 = vmatpush1.msra.mxu0 0.0
        %8227 = vmatprep.subr.mxu0 0.0
        %8228 = vmatpush1.msra.mxu0 0.0
        %8229 = vmatprep.subr.mxu0 0.0
        %8230 = vmatpush1.msra.mxu0 0.0
        %8231 = vmatprep.subr.mxu0 0.0
        %8232 = vmatpush1.msra.mxu0 0.0
        %8233 = vmatprep.subr.mxu0 0.0
        %8234 = vmatpush1.msra.mxu0 0.0
        %8235 = vmatprep.subr.mxu0 0.0
        %8236 = vmatpush1.msra.mxu0 0.0
        %8237 = vmatprep.subr.mxu0 0.0
        %8238 = vmatpush1.msra.mxu0 0.0
        %8239 = vmatprep.subr.mxu0 0.0
        %8240 = vmatpush1.msra.mxu0 0.0
        %8241 = vmatprep.subr.mxu0 0.0
        %8242 = vmatpush1.msra.mxu0 0.0
        %8243 = vmatprep.subr.mxu0 0.0
        %8244 = vmatpush1.msra.mxu0 0.0
        %8245 = vmatprep.subr.mxu0 0.0
        %8246 = vmatpush1.msra.mxu0 0.0
        %8247 = vmatprep.subr.mxu0 0.0
        %8248 = vmatpush1.msra.mxu0 0.0
        %8249 = vmatprep.subr.mxu0 0.0
        %8250 = vmatpush1.msra.mxu0 0.0
        %8251 = vmatprep.subr.mxu0 0.0
        %8252 = vmatpush1.msra.mxu0 0.0
        %8253 = vmatprep.subr.mxu0 0.0
        %8254 = vmatpush1.msra.mxu0 0.0
        %8255 = vmatprep.subr.mxu0 0.0
        %8256 = vmatpush1.msra.mxu0 0.0
        %8257 = vmatprep.subr.mxu0 0.0
        %8258 = vmatpush1.msra.mxu0 0.0
        %8259 = vmatprep.subr.mxu0 0.0
        %8260 = vmatpush1.msra.mxu0 0.0
        %8261 = vmatprep.subr.mxu0 0.0
        %8262 = vmatpush1.msra.mxu0 0.0
        %8263 = vmatprep.subr.mxu0 0.0
        %8264 = vmatpush1.msra.mxu0 0.0
        %8265 = vmatprep.subr.mxu0 0.0
        %8266 = vmatpush1.msra.mxu0 0.0
        %8267 = vmatprep.subr.mxu0 0.0
        %8268 = vmatpush1.msra.mxu0 0.0
        %8269 = vmatprep.subr.mxu0 0.0
        %8270 = vmatpush1.msra.mxu0 0.0
        %8271 = vmatprep.subr.mxu0 0.0
        %8272 = vmatpush1.msra.mxu0 0.0
        %8273 = vmatprep.subr.mxu0 0.0
        %8274 = vmatpush1.msra.mxu0 0.0
        %8275 = vmatprep.subr.mxu0 0.0
        %8276 = vmatpush1.msra.mxu0 0.0
        %8277 = vmatprep.subr.mxu0 0.0
        %8278 = vmatpush1.msra.mxu0 0.0
        %8279 = vmatprep.mubr.f32.mxu0 0.0
        %8280 = vmatmul.mubr.f32.gmra.mrb[0].mxu0 %v8207
        %v8281 = vpop.f32.mrb[0].mxu0
        %v8282 = vadd.f32 0.0, %v8281
        %v8283 = vpop.f32.mrb[0].mxu0
        %v8284 = vadd.f32 0.0, %v8283
        %8285 = vdwg.mxu0
        %v8286 = vadd.f32 %v8202, %v8282
        %v8287 = vadd.f32 %v8203, %v8284
        %s8288 = scalar_lea.vmem %s12, 124
        %v8289 = vld [vmem:[%s8288] sm:$0xf]
        %v8291 = vsel %vm654, %v8289, 0
        %v8294 = vsel %vm658, %v4091, 0
        %v8297 = vsel %vm658, %v4092, 0
        %8299 = vmatprep.subr.mxu0 %v8297
        %8300 = vmatpush1.msra.mxu0 %v8294
        %8301 = vmatprep.subr.mxu0 0.0
        %8302 = vmatpush1.msra.mxu0 0.0
        %8303 = vmatprep.subr.mxu0 0.0
        %8304 = vmatpush1.msra.mxu0 0.0
        %8305 = vmatprep.subr.mxu0 0.0
        %8306 = vmatpush1.msra.mxu0 0.0
        %8307 = vmatprep.subr.mxu0 0.0
        %8308 = vmatpush1.msra.mxu0 0.0
        %8309 = vmatprep.subr.mxu0 0.0
        %8310 = vmatpush1.msra.mxu0 0.0
        %8311 = vmatprep.subr.mxu0 0.0
        %8312 = vmatpush1.msra.mxu0 0.0
        %8313 = vmatprep.subr.mxu0 0.0
        %8314 = vmatpush1.msra.mxu0 0.0
        %8315 = vmatprep.subr.mxu0 0.0
        %8316 = vmatpush1.msra.mxu0 0.0
        %8317 = vmatprep.subr.mxu0 0.0
        %8318 = vmatpush1.msra.mxu0 0.0
        %8319 = vmatprep.subr.mxu0 0.0
        %8320 = vmatpush1.msra.mxu0 0.0
        %8321 = vmatprep.subr.mxu0 0.0
        %8322 = vmatpush1.msra.mxu0 0.0
        %8323 = vmatprep.subr.mxu0 0.0
        %8324 = vmatpush1.msra.mxu0 0.0
        %8325 = vmatprep.subr.mxu0 0.0
        %8326 = vmatpush1.msra.mxu0 0.0
        %8327 = vmatprep.subr.mxu0 0.0
        %8328 = vmatpush1.msra.mxu0 0.0
        %8329 = vmatprep.subr.mxu0 0.0
        %8330 = vmatpush1.msra.mxu0 0.0
        %8331 = vmatprep.subr.mxu0 0.0
        %8332 = vmatpush1.msra.mxu0 0.0
        %8333 = vmatprep.subr.mxu0 0.0
        %8334 = vmatpush1.msra.mxu0 0.0
        %8335 = vmatprep.subr.mxu0 0.0
        %8336 = vmatpush1.msra.mxu0 0.0
        %8337 = vmatprep.subr.mxu0 0.0
        %8338 = vmatpush1.msra.mxu0 0.0
        %8339 = vmatprep.subr.mxu0 0.0
        %8340 = vmatpush1.msra.mxu0 0.0
        %8341 = vmatprep.subr.mxu0 0.0
        %8342 = vmatpush1.msra.mxu0 0.0
        %8343 = vmatprep.subr.mxu0 0.0
        %8344 = vmatpush1.msra.mxu0 0.0
        %8345 = vmatprep.subr.mxu0 0.0
        %8346 = vmatpush1.msra.mxu0 0.0
        %8347 = vmatprep.subr.mxu0 0.0
        %8348 = vmatpush1.msra.mxu0 0.0
        %8349 = vmatprep.subr.mxu0 0.0
        %8350 = vmatpush1.msra.mxu0 0.0
        %8351 = vmatprep.subr.mxu0 0.0
        %8352 = vmatpush1.msra.mxu0 0.0
        %8353 = vmatprep.subr.mxu0 0.0
        %8354 = vmatpush1.msra.mxu0 0.0
        %8355 = vmatprep.subr.mxu0 0.0
        %8356 = vmatpush1.msra.mxu0 0.0
        %8357 = vmatprep.subr.mxu0 0.0
        %8358 = vmatpush1.msra.mxu0 0.0
        %8359 = vmatprep.subr.mxu0 0.0
        %8360 = vmatpush1.msra.mxu0 0.0
        %8361 = vmatprep.subr.mxu0 0.0
        %8362 = vmatpush1.msra.mxu0 0.0
        %8363 = vmatprep.mubr.f32.mxu0 0.0
        %8364 = vmatmul.mubr.f32.gmra.mrb[0].mxu0 %v8291
        %v8365 = vpop.f32.mrb[0].mxu0
        %v8366 = vadd.f32 0.0, %v8365
        %v8367 = vpop.f32.mrb[0].mxu0
        %v8368 = vadd.f32 0.0, %v8367
        %8369 = vdwg.mxu0
        %v8370 = vadd.f32 %v8286, %v8366
        %v8371 = vadd.f32 %v8287, %v8368
        %s8372 = scalar_lea.vmem %s12, 128
        %v8373 = vld [vmem:[%s8372] sm:$0xf]
        %v8375 = vsel %vm654, %v8373, 0
        %v8378 = vsel %vm658, %v5771, 0
        %v8381 = vsel %vm658, %v5772, 0
        %8383 = vmatprep.subr.mxu0 %v8381
        %8384 = vmatpush1.msra.mxu0 %v8378
        %8385 = vmatprep.subr.mxu0 0.0
        %8386 = vmatpush1.msra.mxu0 0.0
        %8387 = vmatprep.subr.mxu0 0.0
        %8388 = vmatpush1.msra.mxu0 0.0
        %8389 = vmatprep.subr.mxu0 0.0
        %8390 = vmatpush1.msra.mxu0 0.0
        %8391 = vmatprep.subr.mxu0 0.0
        %8392 = vmatpush1.msra.mxu0 0.0
        %8393 = vmatprep.subr.mxu0 0.0
        %8394 = vmatpush1.msra.mxu0 0.0
        %8395 = vmatprep.subr.mxu0 0.0
        %8396 = vmatpush1.msra.mxu0 0.0
        %8397 = vmatprep.subr.mxu0 0.0
        %8398 = vmatpush1.msra.mxu0 0.0
        %8399 = vmatprep.subr.mxu0 0.0
        %8400 = vmatpush1.msra.mxu0 0.0
        %8401 = vmatprep.subr.mxu0 0.0
        %8402 = vmatpush1.msra.mxu0 0.0
        %8403 = vmatprep.subr.mxu0 0.0
        %8404 = vmatpush1.msra.mxu0 0.0
        %8405 = vmatprep.subr.mxu0 0.0
        %8406 = vmatpush1.msra.mxu0 0.0
        %8407 = vmatprep.subr.mxu0 0.0
        %8408 = vmatpush1.msra.mxu0 0.0
        %8409 = vmatprep.subr.mxu0 0.0
        %8410 = vmatpush1.msra.mxu0 0.0
        %8411 = vmatprep.subr.mxu0 0.0
        %8412 = vmatpush1.msra.mxu0 0.0
        %8413 = vmatprep.subr.mxu0 0.0
        %8414 = vmatpush1.msra.mxu0 0.0
        %8415 = vmatprep.subr.mxu0 0.0
        %8416 = vmatpush1.msra.mxu0 0.0
        %8417 = vmatprep.subr.mxu0 0.0
        %8418 = vmatpush1.msra.mxu0 0.0
        %8419 = vmatprep.subr.mxu0 0.0
        %8420 = vmatpush1.msra.mxu0 0.0
        %8421 = vmatprep.subr.mxu0 0.0
        %8422 = vmatpush1.msra.mxu0 0.0
        %8423 = vmatprep.subr.mxu0 0.0
        %8424 = vmatpush1.msra.mxu0 0.0
        %8425 = vmatprep.subr.mxu0 0.0
        %8426 = vmatpush1.msra.mxu0 0.0
        %8427 = vmatprep.subr.mxu0 0.0
        %8428 = vmatpush1.msra.mxu0 0.0
        %8429 = vmatprep.subr.mxu0 0.0
        %8430 = vmatpush1.msra.mxu0 0.0
        %8431 = vmatprep.subr.mxu0 0.0
        %8432 = vmatpush1.msra.mxu0 0.0
        %8433 = vmatprep.subr.mxu0 0.0
        %8434 = vmatpush1.msra.mxu0 0.0
        %8435 = vmatprep.subr.mxu0 0.0
        %8436 = vmatpush1.msra.mxu0 0.0
        %8437 = vmatprep.subr.mxu0 0.0
        %8438 = vmatpush1.msra.mxu0 0.0
        %8439 = vmatprep.subr.mxu0 0.0
        %8440 = vmatpush1.msra.mxu0 0.0
        %8441 = vmatprep.subr.mxu0 0.0
        %8442 = vmatpush1.msra.mxu0 0.0
        %8443 = vmatprep.subr.mxu0 0.0
        %8444 = vmatpush1.msra.mxu0 0.0
        %8445 = vmatprep.subr.mxu0 0.0
        %8446 = vmatpush1.msra.mxu0 0.0
        %8447 = vmatprep.mubr.f32.mxu0 0.0
        %8448 = vmatmul.mubr.f32.gmra.mrb[0].mxu0 %v8375
        %v8449 = vpop.f32.mrb[0].mxu0
        %v8450 = vadd.f32 0.0, %v8449
        %v8451 = vpop.f32.mrb[0].mxu0
        %v8452 = vadd.f32 0.0, %v8451
        %8453 = vdwg.mxu0
        %v8454 = vadd.f32 %v8370, %v8450
        %v8455 = vadd.f32 %v8371, %v8452
        %s8456 = scalar_lea.vmem %s12, 132
        %v8457 = vld [vmem:[%s8456] sm:$0xf]
        %v8459 = vsel %vm654, %v8457, 0
        %v8462 = vsel %vm658, %v5779, 0
        %v8465 = vsel %vm658, %v5780, 0
        %8467 = vmatprep.subr.mxu0 %v8465
        %8468 = vmatpush1.msra.mxu0 %v8462
        %8469 = vmatprep.subr.mxu0 0.0
        %8470 = vmatpush1.msra.mxu0 0.0
        %8471 = vmatprep.subr.mxu0 0.0
        %8472 = vmatpush1.msra.mxu0 0.0
        %8473 = vmatprep.subr.mxu0 0.0
        %8474 = vmatpush1.msra.mxu0 0.0
        %8475 = vmatprep.subr.mxu0 0.0
        %8476 = vmatpush1.msra.mxu0 0.0
        %8477 = vmatprep.subr.mxu0 0.0
        %8478 = vmatpush1.msra.mxu0 0.0
        %8479 = vmatprep.subr.mxu0 0.0
        %8480 = vmatpush1.msra.mxu0 0.0
        %8481 = vmatprep.subr.mxu0 0.0
        %8482 = vmatpush1.msra.mxu0 0.0
        %8483 = vmatprep.subr.mxu0 0.0
        %8484 = vmatpush1.msra.mxu0 0.0
        %8485 = vmatprep.subr.mxu0 0.0
        %8486 = vmatpush1.msra.mxu0 0.0
        %8487 = vmatprep.subr.mxu0 0.0
        %8488 = vmatpush1.msra.mxu0 0.0
        %8489 = vmatprep.subr.mxu0 0.0
        %8490 = vmatpush1.msra.mxu0 0.0
        %8491 = vmatprep.subr.mxu0 0.0
        %8492 = vmatpush1.msra.mxu0 0.0
        %8493 = vmatprep.subr.mxu0 0.0
        %8494 = vmatpush1.msra.mxu0 0.0
        %8495 = vmatprep.subr.mxu0 0.0
        %8496 = vmatpush1.msra.mxu0 0.0
        %8497 = vmatprep.subr.mxu0 0.0
        %8498 = vmatpush1.msra.mxu0 0.0
        %8499 = vmatprep.subr.mxu0 0.0
        %8500 = vmatpush1.msra.mxu0 0.0
        %8501 = vmatprep.subr.mxu0 0.0
        %8502 = vmatpush1.msra.mxu0 0.0
        %8503 = vmatprep.subr.mxu0 0.0
        %8504 = vmatpush1.msra.mxu0 0.0
        %8505 = vmatprep.subr.mxu0 0.0
        %8506 = vmatpush1.msra.mxu0 0.0
        %8507 = vmatprep.subr.mxu0 0.0
        %8508 = vmatpush1.msra.mxu0 0.0
        %8509 = vmatprep.subr.mxu0 0.0
        %8510 = vmatpush1.msra.mxu0 0.0
        %8511 = vmatprep.subr.mxu0 0.0
        %8512 = vmatpush1.msra.mxu0 0.0
        %8513 = vmatprep.subr.mxu0 0.0
        %8514 = vmatpush1.msra.mxu0 0.0
        %8515 = vmatprep.subr.mxu0 0.0
        %8516 = vmatpush1.msra.mxu0 0.0
        %8517 = vmatprep.subr.mxu0 0.0
        %8518 = vmatpush1.msra.mxu0 0.0
        %8519 = vmatprep.subr.mxu0 0.0
        %8520 = vmatpush1.msra.mxu0 0.0
        %8521 = vmatprep.subr.mxu0 0.0
        %8522 = vmatpush1.msra.mxu0 0.0
        %8523 = vmatprep.subr.mxu0 0.0
        %8524 = vmatpush1.msra.mxu0 0.0
        %8525 = vmatprep.subr.mxu0 0.0
        %8526 = vmatpush1.msra.mxu0 0.0
        %8527 = vmatprep.subr.mxu0 0.0
        %8528 = vmatpush1.msra.mxu0 0.0
        %8529 = vmatprep.subr.mxu0 0.0
        %8530 = vmatpush1.msra.mxu0 0.0
        %8531 = vmatprep.mubr.f32.mxu0 0.0
        %8532 = vmatmul.mubr.f32.gmra.mrb[0].mxu0 %v8459
        %v8533 = vpop.f32.mrb[0].mxu0
        %v8534 = vadd.f32 0.0, %v8533
        %v8535 = vpop.f32.mrb[0].mxu0
        %v8536 = vadd.f32 0.0, %v8535
        %8537 = vdwg.mxu0
        %v8538 = vadd.f32 %v8454, %v8534
        %v8539 = vadd.f32 %v8455, %v8536
        %s8540 = scalar_lea.vmem %s12, 136
        %v8541 = vld [vmem:[%s8540] sm:$0xf]
        %v8543 = vsel %vm654, %v8541, 0
        %v8546 = vsel %vm658, %v5787, 0
        %v8549 = vsel %vm658, %v5788, 0
        %8551 = vmatprep.subr.mxu0 %v8549
        %8552 = vmatpush1.msra.mxu0 %v8546
        %8553 = vmatprep.subr.mxu0 0.0
        %8554 = vmatpush1.msra.mxu0 0.0
        %8555 = vmatprep.subr.mxu0 0.0
        %8556 = vmatpush1.msra.mxu0 0.0
        %8557 = vmatprep.subr.mxu0 0.0
        %8558 = vmatpush1.msra.mxu0 0.0
        %8559 = vmatprep.subr.mxu0 0.0
        %8560 = vmatpush1.msra.mxu0 0.0
        %8561 = vmatprep.subr.mxu0 0.0
        %8562 = vmatpush1.msra.mxu0 0.0
        %8563 = vmatprep.subr.mxu0 0.0
        %8564 = vmatpush1.msra.mxu0 0.0
        %8565 = vmatprep.subr.mxu0 0.0
        %8566 = vmatpush1.msra.mxu0 0.0
        %8567 = vmatprep.subr.mxu0 0.0
        %8568 = vmatpush1.msra.mxu0 0.0
        %8569 = vmatprep.subr.mxu0 0.0
        %8570 = vmatpush1.msra.mxu0 0.0
        %8571 = vmatprep.subr.mxu0 0.0
        %8572 = vmatpush1.msra.mxu0 0.0
        %8573 = vmatprep.subr.mxu0 0.0
        %8574 = vmatpush1.msra.mxu0 0.0
        %8575 = vmatprep.subr.mxu0 0.0
        %8576 = vmatpush1.msra.mxu0 0.0
        %8577 = vmatprep.subr.mxu0 0.0
        %8578 = vmatpush1.msra.mxu0 0.0
        %8579 = vmatprep.subr.mxu0 0.0
        %8580 = vmatpush1.msra.mxu0 0.0
        %8581 = vmatprep.subr.mxu0 0.0
        %8582 = vmatpush1.msra.mxu0 0.0
        %8583 = vmatprep.subr.mxu0 0.0
        %8584 = vmatpush1.msra.mxu0 0.0
        %8585 = vmatprep.subr.mxu0 0.0
        %8586 = vmatpush1.msra.mxu0 0.0
        %8587 = vmatprep.subr.mxu0 0.0
        %8588 = vmatpush1.msra.mxu0 0.0
        %8589 = vmatprep.subr.mxu0 0.0
        %8590 = vmatpush1.msra.mxu0 0.0
        %8591 = vmatprep.subr.mxu0 0.0
        %8592 = vmatpush1.msra.mxu0 0.0
        %8593 = vmatprep.subr.mxu0 0.0
        %8594 = vmatpush1.msra.mxu0 0.0
        %8595 = vmatprep.subr.mxu0 0.0
        %8596 = vmatpush1.msra.mxu0 0.0
        %8597 = vmatprep.subr.mxu0 0.0
        %8598 = vmatpush1.msra.mxu0 0.0
        %8599 = vmatprep.subr.mxu0 0.0
        %8600 = vmatpush1.msra.mxu0 0.0
        %8601 = vmatprep.subr.mxu0 0.0
        %8602 = vmatpush1.msra.mxu0 0.0
        %8603 = vmatprep.subr.mxu0 0.0
        %8604 = vmatpush1.msra.mxu0 0.0
        %8605 = vmatprep.subr.mxu0 0.0
        %8606 = vmatpush1.msra.mxu0 0.0
        %8607 = vmatprep.subr.mxu0 0.0
        %8608 = vmatpush1.msra.mxu0 0.0
        %8609 = vmatprep.subr.mxu0 0.0
        %8610 = vmatpush1.msra.mxu0 0.0
        %8611 = vmatprep.subr.mxu0 0.0
        %8612 = vmatpush1.msra.mxu0 0.0
        %8613 = vmatprep.subr.mxu0 0.0
        %8614 = vmatpush1.msra.mxu0 0.0
        %8615 = vmatprep.mubr.f32.mxu0 0.0
        %8616 = vmatmul.mubr.f32.gmra.mrb[0].mxu0 %v8543
        %v8617 = vpop.f32.mrb[0].mxu0
        %v8618 = vadd.f32 0.0, %v8617
        %v8619 = vpop.f32.mrb[0].mxu0
        %v8620 = vadd.f32 0.0, %v8619
        %8621 = vdwg.mxu0
        %v8622 = vadd.f32 %v8538, %v8618
        %v8623 = vadd.f32 %v8539, %v8620
        %s8624 = scalar_lea.vmem %s12, 140
        %v8625 = vld [vmem:[%s8624] sm:$0xf]
        %v8627 = vsel %vm654, %v8625, 0
        %v8630 = vsel %vm658, %v5795, 0
        %v8633 = vsel %vm658, %v5796, 0
        %8635 = vmatprep.subr.mxu0 %v8633
        %8636 = vmatpush1.msra.mxu0 %v8630
        %8637 = vmatprep.subr.mxu0 0.0
        %8638 = vmatpush1.msra.mxu0 0.0
        %8639 = vmatprep.subr.mxu0 0.0
        %8640 = vmatpush1.msra.mxu0 0.0
        %8641 = vmatprep.subr.mxu0 0.0
        %8642 = vmatpush1.msra.mxu0 0.0
        %8643 = vmatprep.subr.mxu0 0.0
        %8644 = vmatpush1.msra.mxu0 0.0
        %8645 = vmatprep.subr.mxu0 0.0
        %8646 = vmatpush1.msra.mxu0 0.0
        %8647 = vmatprep.subr.mxu0 0.0
        %8648 = vmatpush1.msra.mxu0 0.0
        %8649 = vmatprep.subr.mxu0 0.0
        %8650 = vmatpush1.msra.mxu0 0.0
        %8651 = vmatprep.subr.mxu0 0.0
        %8652 = vmatpush1.msra.mxu0 0.0
        %8653 = vmatprep.subr.mxu0 0.0
        %8654 = vmatpush1.msra.mxu0 0.0
        %8655 = vmatprep.subr.mxu0 0.0
        %8656 = vmatpush1.msra.mxu0 0.0
        %8657 = vmatprep.subr.mxu0 0.0
        %8658 = vmatpush1.msra.mxu0 0.0
        %8659 = vmatprep.subr.mxu0 0.0
        %8660 = vmatpush1.msra.mxu0 0.0
        %8661 = vmatprep.subr.mxu0 0.0
        %8662 = vmatpush1.msra.mxu0 0.0
        %8663 = vmatprep.subr.mxu0 0.0
        %8664 = vmatpush1.msra.mxu0 0.0
        %8665 = vmatprep.subr.mxu0 0.0
        %8666 = vmatpush1.msra.mxu0 0.0
        %8667 = vmatprep.subr.mxu0 0.0
        %8668 = vmatpush1.msra.mxu0 0.0
        %8669 = vmatprep.subr.mxu0 0.0
        %8670 = vmatpush1.msra.mxu0 0.0
        %8671 = vmatprep.subr.mxu0 0.0
        %8672 = vmatpush1.msra.mxu0 0.0
        %8673 = vmatprep.subr.mxu0 0.0
        %8674 = vmatpush1.msra.mxu0 0.0
        %8675 = vmatprep.subr.mxu0 0.0
        %8676 = vmatpush1.msra.mxu0 0.0
        %8677 = vmatprep.subr.mxu0 0.0
        %8678 = vmatpush1.msra.mxu0 0.0
        %8679 = vmatprep.subr.mxu0 0.0
        %8680 = vmatpush1.msra.mxu0 0.0
        %8681 = vmatprep.subr.mxu0 0.0
        %8682 = vmatpush1.msra.mxu0 0.0
        %8683 = vmatprep.subr.mxu0 0.0
        %8684 = vmatpush1.msra.mxu0 0.0
        %8685 = vmatprep.subr.mxu0 0.0
        %8686 = vmatpush1.msra.mxu0 0.0
        %8687 = vmatprep.subr.mxu0 0.0
        %8688 = vmatpush1.msra.mxu0 0.0
        %8689 = vmatprep.subr.mxu0 0.0
        %8690 = vmatpush1.msra.mxu0 0.0
        %8691 = vmatprep.subr.mxu0 0.0
        %8692 = vmatpush1.msra.mxu0 0.0
        %8693 = vmatprep.subr.mxu0 0.0
        %8694 = vmatpush1.msra.mxu0 0.0
        %8695 = vmatprep.subr.mxu0 0.0
        %8696 = vmatpush1.msra.mxu0 0.0
        %8697 = vmatprep.subr.mxu0 0.0
        %8698 = vmatpush1.msra.mxu0 0.0
        %8699 = vmatprep.mubr.f32.mxu0 0.0
        %8700 = vmatmul.mubr.f32.gmra.mrb[0].mxu0 %v8627
        %v8701 = vpop.f32.mrb[0].mxu0
        %v8702 = vadd.f32 0.0, %v8701
        %v8703 = vpop.f32.mrb[0].mxu0
        %v8704 = vadd.f32 0.0, %v8703
        %8705 = vdwg.mxu0
        %v8706 = vadd.f32 %v8622, %v8702
        %v8707 = vadd.f32 %v8623, %v8704
        %v8708 = vld [vmem:[#allocation15] sm:$0xf]
        %8710 = vset.pattern.permute.xlu0 0
        %8711 = vperm.xlu0 %8710, %v8708
        %v8712 = vpop.permute.xlu0 %8711
        %v8714 = vadd.f32 %v8706, %v8712
        %v8715 = vadd.f32 %v8707, %v8712
        %v8716 = vxor.u32 %v8714, 2147483648
        %v8717 = vxor.u32 %v8715, 2147483648
        %v8718 = vmul.f32 %v8716, 1.442695
        %v8719 = vpow.pop %v8718
        %v8720 = vmul.f32 %v8717, 1.442695
        %v8721 = vpow.pop %v8720
        %v8722 = vadd.f32 %v8719, 1.0
        %v8723 = vadd.f32 %v8721, 1.0
        %v8724 = vrcp.pop %v8722
        %v8725 = vmul.f32 1.0, %v8724
        %v8726 = vrcp.pop %v8723
        %v8727 = vmul.f32 1.0, %v8726
        %v8728 = vmul.f32 %v8714, %v8725
        %v8729 = vmul.f32 %v8715, %v8727
        %v8730 = vld [vmem:[%s14] sm:$0xf]
        %v8731 = vld [vmem:[#allocation16] sm:$0xf]
        %8733 = vset.pattern.permute.xlu0 0
        %8734 = vperm.xlu0 %8733, %v8731
        %v8735 = vpop.permute.xlu0 %8734
        %v8738 = vsel %vm654, %v8730, 0
        %8740 = vmatprep.subr.mxu0 %v762
        %8741 = vmatpush1.msra.mxu0 %v759
        %8742 = vmatprep.subr.mxu0 0.0
        %8743 = vmatpush1.msra.mxu0 0.0
        %8744 = vmatprep.subr.mxu0 0.0
        %8745 = vmatpush1.msra.mxu0 0.0
        %8746 = vmatprep.subr.mxu0 0.0
        %8747 = vmatpush1.msra.mxu0 0.0
        %8748 = vmatprep.subr.mxu0 0.0
        %8749 = vmatpush1.msra.mxu0 0.0
        %8750 = vmatprep.subr.mxu0 0.0
        %8751 = vmatpush1.msra.mxu0 0.0
        %8752 = vmatprep.subr.mxu0 0.0
        %8753 = vmatpush1.msra.mxu0 0.0
        %8754 = vmatprep.subr.mxu0 0.0
        %8755 = vmatpush1.msra.mxu0 0.0
        %8756 = vmatprep.subr.mxu0 0.0
        %8757 = vmatpush1.msra.mxu0 0.0
        %8758 = vmatprep.subr.mxu0 0.0
        %8759 = vmatpush1.msra.mxu0 0.0
        %8760 = vmatprep.subr.mxu0 0.0
        %8761 = vmatpush1.msra.mxu0 0.0
        %8762 = vmatprep.subr.mxu0 0.0
        %8763 = vmatpush1.msra.mxu0 0.0
        %8764 = vmatprep.subr.mxu0 0.0
        %8765 = vmatpush1.msra.mxu0 0.0
        %8766 = vmatprep.subr.mxu0 0.0
        %8767 = vmatpush1.msra.mxu0 0.0
        %8768 = vmatprep.subr.mxu0 0.0
        %8769 = vmatpush1.msra.mxu0 0.0
        %8770 = vmatprep.subr.mxu0 0.0
        %8771 = vmatpush1.msra.mxu0 0.0
        %8772 = vmatprep.subr.mxu0 0.0
        %8773 = vmatpush1.msra.mxu0 0.0
        %8774 = vmatprep.subr.mxu0 0.0
        %8775 = vmatpush1.msra.mxu0 0.0
        %8776 = vmatprep.subr.mxu0 0.0
        %8777 = vmatpush1.msra.mxu0 0.0
        %8778 = vmatprep.subr.mxu0 0.0
        %8779 = vmatpush1.msra.mxu0 0.0
        %8780 = vmatprep.subr.mxu0 0.0
        %8781 = vmatpush1.msra.mxu0 0.0
        %8782 = vmatprep.subr.mxu0 0.0
        %8783 = vmatpush1.msra.mxu0 0.0
        %8784 = vmatprep.subr.mxu0 0.0
        %8785 = vmatpush1.msra.mxu0 0.0
        %8786 = vmatprep.subr.mxu0 0.0
        %8787 = vmatpush1.msra.mxu0 0.0
        %8788 = vmatprep.subr.mxu0 0.0
        %8789 = vmatpush1.msra.mxu0 0.0
        %8790 = vmatprep.subr.mxu0 0.0
        %8791 = vmatpush1.msra.mxu0 0.0
        %8792 = vmatprep.subr.mxu0 0.0
        %8793 = vmatpush1.msra.mxu0 0.0
        %8794 = vmatprep.subr.mxu0 0.0
        %8795 = vmatpush1.msra.mxu0 0.0
        %8796 = vmatprep.subr.mxu0 0.0
        %8797 = vmatpush1.msra.mxu0 0.0
        %8798 = vmatprep.subr.mxu0 0.0
        %8799 = vmatpush1.msra.mxu0 0.0
        %8800 = vmatprep.subr.mxu0 0.0
        %8801 = vmatpush1.msra.mxu0 0.0
        %8802 = vmatprep.subr.mxu0 0.0
        %8803 = vmatpush1.msra.mxu0 0.0
        %8804 = vmatprep.mubr.f32.mxu0 0.0
        %8805 = vmatmul.mubr.f32.gmra.mrb[0].mxu0 %v8738
        %v8806 = vpop.f32.mrb[0].mxu0
        %v8807 = vadd.f32 %v8735, %v8806
        %v8808 = vpop.f32.mrb[0].mxu0
        %v8809 = vadd.f32 %v8735, %v8808
        %8810 = vdwg.mxu0
        %v8811 = vxor.u32 %v8807, 2147483648
        %v8812 = vxor.u32 %v8809, 2147483648
        %v8813 = vmul.f32 %v8811, 1.442695
        %v8814 = vpow.pop %v8813
        %v8815 = vmul.f32 %v8812, 1.442695
        %v8816 = vpow.pop %v8815
        %v8817 = vadd.f32 %v8814, 1.0
        %v8818 = vadd.f32 %v8816, 1.0
        %v8819 = vrcp.pop %v8817
        %v8820 = vmul.f32 1.0, %v8819
        %v8821 = vrcp.pop %v8818
        %v8822 = vmul.f32 1.0, %v8821
        %v8823 = vmul.f32 %v8807, %v8820
        %v8824 = vmul.f32 %v8809, %v8822
        %v8825 = vadd.f32 %v8823, %v8728
        %v8826 = vadd.f32 %v8824, %v8729
        %v8827 = vld [vmem:[#allocation7] sm:$0xf]
        %v8828 = vld [vmem:[#allocation6] sm:$0xf]
        %8830 = vset.pattern.permute.xlu0 0
        %8831 = vperm.xlu0 %8830, %v8828
        %v8832 = vpop.permute.xlu0 %8831
        %v8835 = vsel %vm654, %v8827, 0
        %8837 = vmatprep.subr.mxu0 %v661
        %8838 = vmatpush1.msra.mxu0 %v659
        %8839 = vmatprep.subr.mxu0 0.0
        %8840 = vmatpush1.msra.mxu0 0.0
        %8841 = vmatprep.subr.mxu0 0.0
        %8842 = vmatpush1.msra.mxu0 0.0
        %8843 = vmatprep.subr.mxu0 0.0
        %8844 = vmatpush1.msra.mxu0 0.0
        %8845 = vmatprep.subr.mxu0 0.0
        %8846 = vmatpush1.msra.mxu0 0.0
        %8847 = vmatprep.subr.mxu0 0.0
        %8848 = vmatpush1.msra.mxu0 0.0
        %8849 = vmatprep.subr.mxu0 0.0
        %8850 = vmatpush1.msra.mxu0 0.0
        %8851 = vmatprep.subr.mxu0 0.0
        %8852 = vmatpush1.msra.mxu0 0.0
        %8853 = vmatprep.subr.mxu0 0.0
        %8854 = vmatpush1.msra.mxu0 0.0
        %8855 = vmatprep.subr.mxu0 0.0
        %8856 = vmatpush1.msra.mxu0 0.0
        %8857 = vmatprep.subr.mxu0 0.0
        %8858 = vmatpush1.msra.mxu0 0.0
        %8859 = vmatprep.subr.mxu0 0.0
        %8860 = vmatpush1.msra.mxu0 0.0
        %8861 = vmatprep.subr.mxu0 0.0
        %8862 = vmatpush1.msra.mxu0 0.0
        %8863 = vmatprep.subr.mxu0 0.0
        %8864 = vmatpush1.msra.mxu0 0.0
        %8865 = vmatprep.subr.mxu0 0.0
        %8866 = vmatpush1.msra.mxu0 0.0
        %8867 = vmatprep.subr.mxu0 0.0
        %8868 = vmatpush1.msra.mxu0 0.0
        %8869 = vmatprep.subr.mxu0 0.0
        %8870 = vmatpush1.msra.mxu0 0.0
        %8871 = vmatprep.subr.mxu0 0.0
        %8872 = vmatpush1.msra.mxu0 0.0
        %8873 = vmatprep.subr.mxu0 0.0
        %8874 = vmatpush1.msra.mxu0 0.0
        %8875 = vmatprep.subr.mxu0 0.0
        %8876 = vmatpush1.msra.mxu0 0.0
        %8877 = vmatprep.subr.mxu0 0.0
        %8878 = vmatpush1.msra.mxu0 0.0
        %8879 = vmatprep.subr.mxu0 0.0
        %8880 = vmatpush1.msra.mxu0 0.0
        %8881 = vmatprep.subr.mxu0 0.0
        %8882 = vmatpush1.msra.mxu0 0.0
        %8883 = vmatprep.subr.mxu0 0.0
        %8884 = vmatpush1.msra.mxu0 0.0
        %8885 = vmatprep.subr.mxu0 0.0
        %8886 = vmatpush1.msra.mxu0 0.0
        %8887 = vmatprep.subr.mxu0 0.0
        %8888 = vmatpush1.msra.mxu0 0.0
        %8889 = vmatprep.subr.mxu0 0.0
        %8890 = vmatpush1.msra.mxu0 0.0
        %8891 = vmatprep.subr.mxu0 0.0
        %8892 = vmatpush1.msra.mxu0 0.0
        %8893 = vmatprep.subr.mxu0 0.0
        %8894 = vmatpush1.msra.mxu0 0.0
        %8895 = vmatprep.subr.mxu0 0.0
        %8896 = vmatpush1.msra.mxu0 0.0
        %8897 = vmatprep.subr.mxu0 0.0
        %8898 = vmatpush1.msra.mxu0 0.0
        %8899 = vmatprep.subr.mxu0 0.0
        %8900 = vmatpush1.msra.mxu0 0.0
        %8901 = vmatprep.mubr.f32.mxu0 0.0
        %8902 = vmatmul.mubr.f32.gmra.mrb[0].mxu0 %v8835
        %v8903 = vpop.f32.mrb[0].mxu0
        %v8904 = vadd.f32 %v8832, %v8903
        %v8905 = vpop.f32.mrb[0].mxu0
        %v8906 = vadd.f32 %v8832, %v8905
        %8907 = vdwg.mxu0
        %v8908 = vxor.u32 %v8904, 2147483648
        %v8909 = vxor.u32 %v8906, 2147483648
        %v8910 = vmul.f32 %v8908, 1.442695
        %v8911 = vpow.pop %v8910
        %v8912 = vmul.f32 %v8909, 1.442695
        %v8913 = vpow.pop %v8912
        %v8914 = vadd.f32 %v8911, 1.0
        %v8915 = vadd.f32 %v8913, 1.0
        %v8916 = vrcp.pop %v8914
        %v8917 = vmul.f32 1.0, %v8916
        %v8918 = vrcp.pop %v8915
        %v8919 = vmul.f32 1.0, %v8918
        %v8920 = vmul.f32 %v8904, %v8917
        %v8921 = vmul.f32 %v8906, %v8919
        %v8922 = vld [vmem:[#allocation9] sm:$0xff]
        %s8923 = scalar_lea.vmem [#allocation9], 8
        %v8924 = vld [vmem:[%s8923] sm:$0xff]
        %v8926 = vsel %vm654, %v8924, 0
        %v8929 = vsel %vm658, %v8920, 0
        %v8932 = vsel %vm658, %v8921, 0
        %8934 = vmatprep.subr.mxu0 %v8932
        %8935 = vmatpush1.msra.mxu0 %v8929
        %8936 = vmatprep.subr.mxu0 0.0
        %8937 = vmatpush1.msra.mxu0 0.0
        %8938 = vmatprep.subr.mxu0 0.0
        %8939 = vmatpush1.msra.mxu0 0.0
        %8940 = vmatprep.subr.mxu0 0.0
        %8941 = vmatpush1.msra.mxu0 0.0
        %8942 = vmatprep.subr.mxu0 0.0
        %8943 = vmatpush1.msra.mxu0 0.0
        %8944 = vmatprep.subr.mxu0 0.0
        %8945 = vmatpush1.msra.mxu0 0.0
        %8946 = vmatprep.subr.mxu0 0.0
        %8947 = vmatpush1.msra.mxu0 0.0
        %8948 = vmatprep.subr.mxu0 0.0
        %8949 = vmatpush1.msra.mxu0 0.0
        %8950 = vmatprep.subr.mxu0 0.0
        %8951 = vmatpush1.msra.mxu0 0.0
        %8952 = vmatprep.subr.mxu0 0.0
        %8953 = vmatpush1.msra.mxu0 0.0
        %8954 = vmatprep.subr.mxu0 0.0
        %8955 = vmatpush1.msra.mxu0 0.0
        %8956 = vmatprep.subr.mxu0 0.0
        %8957 = vmatpush1.msra.mxu0 0.0
        %8958 = vmatprep.subr.mxu0 0.0
        %8959 = vmatpush1.msra.mxu0 0.0
        %8960 = vmatprep.subr.mxu0 0.0
        %8961 = vmatpush1.msra.mxu0 0.0
        %8962 = vmatprep.subr.mxu0 0.0
        %8963 = vmatpush1.msra.mxu0 0.0
        %8964 = vmatprep.subr.mxu0 0.0
        %8965 = vmatpush1.msra.mxu0 0.0
        %8966 = vmatprep.subr.mxu0 0.0
        %8967 = vmatpush1.msra.mxu0 0.0
        %8968 = vmatprep.subr.mxu0 0.0
        %8969 = vmatpush1.msra.mxu0 0.0
        %8970 = vmatprep.subr.mxu0 0.0
        %8971 = vmatpush1.msra.mxu0 0.0
        %8972 = vmatprep.subr.mxu0 0.0
        %8973 = vmatpush1.msra.mxu0 0.0
        %8974 = vmatprep.subr.mxu0 0.0
        %8975 = vmatpush1.msra.mxu0 0.0
        %8976 = vmatprep.subr.mxu0 0.0
        %8977 = vmatpush1.msra.mxu0 0.0
        %8978 = vmatprep.subr.mxu0 0.0
        %8979 = vmatpush1.msra.mxu0 0.0
        %8980 = vmatprep.subr.mxu0 0.0
        %8981 = vmatpush1.msra.mxu0 0.0
        %8982 = vmatprep.subr.mxu0 0.0
        %8983 = vmatpush1.msra.mxu0 0.0
        %8984 = vmatprep.subr.mxu0 0.0
        %8985 = vmatpush1.msra.mxu0 0.0
        %8986 = vmatprep.subr.mxu0 0.0
        %8987 = vmatpush1.msra.mxu0 0.0
        %8988 = vmatprep.subr.mxu0 0.0
        %8989 = vmatpush1.msra.mxu0 0.0
        %8990 = vmatprep.subr.mxu0 0.0
        %8991 = vmatpush1.msra.mxu0 0.0
        %8992 = vmatprep.subr.mxu0 0.0
        %8993 = vmatpush1.msra.mxu0 0.0
        %8994 = vmatprep.subr.mxu0 0.0
        %8995 = vmatpush1.msra.mxu0 0.0
        %8996 = vmatprep.subr.mxu0 0.0
        %8997 = vmatpush1.msra.mxu0 0.0
        %8998 = vmatprep.mubr.f32.mxu0 0.0
        %8999 = vmatmul.mubr.f32.gmra.mrb[0].mxu0 %v8926
        %v9000 = vpop.f32.mrb[0].mxu0
        %v9001 = vadd.f32 0.0, %v9000
        %v9002 = vpop.f32.mrb[0].mxu0
        %v9003 = vadd.f32 0.0, %v9002
        %9004 = vdwg.mxu0
        %v9006 = vsel %vm654, %v8922, 0
        %v9009 = vsel %vm658, %v8825, 0
        %v9012 = vsel %vm658, %v8826, 0
        %9014 = vmatprep.subr.mxu0 %v9012
        %9015 = vmatpush1.msra.mxu0 %v9009
        %9016 = vmatprep.subr.mxu0 0.0
        %9017 = vmatpush1.msra.mxu0 0.0
        %9018 = vmatprep.subr.mxu0 0.0
        %9019 = vmatpush1.msra.mxu0 0.0
        %9020 = vmatprep.subr.mxu0 0.0
        %9021 = vmatpush1.msra.mxu0 0.0
        %9022 = vmatprep.subr.mxu0 0.0
        %9023 = vmatpush1.msra.mxu0 0.0
        %9024 = vmatprep.subr.mxu0 0.0
        %9025 = vmatpush1.msra.mxu0 0.0
        %9026 = vmatprep.subr.mxu0 0.0
        %9027 = vmatpush1.msra.mxu0 0.0
        %9028 = vmatprep.subr.mxu0 0.0
        %9029 = vmatpush1.msra.mxu0 0.0
        %9030 = vmatprep.subr.mxu0 0.0
        %9031 = vmatpush1.msra.mxu0 0.0
        %9032 = vmatprep.subr.mxu0 0.0
        %9033 = vmatpush1.msra.mxu0 0.0
        %9034 = vmatprep.subr.mxu0 0.0
        %9035 = vmatpush1.msra.mxu0 0.0
        %9036 = vmatprep.subr.mxu0 0.0
        %9037 = vmatpush1.msra.mxu0 0.0
        %9038 = vmatprep.subr.mxu0 0.0
        %9039 = vmatpush1.msra.mxu0 0.0
        %9040 = vmatprep.subr.mxu0 0.0
        %9041 = vmatpush1.msra.mxu0 0.0
        %9042 = vmatprep.subr.mxu0 0.0
        %9043 = vmatpush1.msra.mxu0 0.0
        %9044 = vmatprep.subr.mxu0 0.0
        %9045 = vmatpush1.msra.mxu0 0.0
        %9046 = vmatprep.subr.mxu0 0.0
        %9047 = vmatpush1.msra.mxu0 0.0
        %9048 = vmatprep.subr.mxu0 0.0
        %9049 = vmatpush1.msra.mxu0 0.0
        %9050 = vmatprep.subr.mxu0 0.0
        %9051 = vmatpush1.msra.mxu0 0.0
        %9052 = vmatprep.subr.mxu0 0.0
        %9053 = vmatpush1.msra.mxu0 0.0
        %9054 = vmatprep.subr.mxu0 0.0
        %9055 = vmatpush1.msra.mxu0 0.0
        %9056 = vmatprep.subr.mxu0 0.0
        %9057 = vmatpush1.msra.mxu0 0.0
        %9058 = vmatprep.subr.mxu0 0.0
        %9059 = vmatpush1.msra.mxu0 0.0
        %9060 = vmatprep.subr.mxu0 0.0
        %9061 = vmatpush1.msra.mxu0 0.0
        %9062 = vmatprep.subr.mxu0 0.0
        %9063 = vmatpush1.msra.mxu0 0.0
        %9064 = vmatprep.subr.mxu0 0.0
        %9065 = vmatpush1.msra.mxu0 0.0
        %9066 = vmatprep.subr.mxu0 0.0
        %9067 = vmatpush1.msra.mxu0 0.0
        %9068 = vmatprep.subr.mxu0 0.0
        %9069 = vmatpush1.msra.mxu0 0.0
        %9070 = vmatprep.subr.mxu0 0.0
        %9071 = vmatpush1.msra.mxu0 0.0
        %9072 = vmatprep.subr.mxu0 0.0
        %9073 = vmatpush1.msra.mxu0 0.0
        %9074 = vmatprep.subr.mxu0 0.0
        %9075 = vmatpush1.msra.mxu0 0.0
        %9076 = vmatprep.subr.mxu0 0.0
        %9077 = vmatpush1.msra.mxu0 0.0
        %9078 = vmatprep.mubr.f32.mxu0 0.0
        %9079 = vmatmul.mubr.f32.gmra.mrb[0].mxu0 %v9006
        %v9080 = vpop.f32.mrb[0].mxu0
        %v9081 = vadd.f32 %v9001, %v9080
        %v9082 = vpop.f32.mrb[0].mxu0
        %v9083 = vadd.f32 %v9003, %v9082
        %9084 = vdwg.mxu0
        %v9085 = vld [vmem:[%s5] sm:$0xff]
        %9087 = vset.pattern.permute.xlu0 0
        %9088 = vperm.xlu0 %9087, %v9085
        %v9089 = vpop.permute.xlu0 %9088
        %v9091 = vadd.f32 %v9081, %v9089
        %v9092 = vadd.f32 %v9083, %v9089
        %v9093 = vxor.u32 %v9091, 2147483648
        %v9094 = vxor.u32 %v9092, 2147483648
        %v9095 = vmul.f32 %v9093, 1.442695
        %v9096 = vpow.pop %v9095
        %v9097 = vmul.f32 %v9094, 1.442695
        %v9098 = vpow.pop %v9097
        %v9099 = vadd.f32 %v9096, 1.0
        %v9100 = vadd.f32 %v9098, 1.0
        %v9101 = vrcp.pop %v9099
        %v9102 = vmul.f32 1.0, %v9101
        %v9103 = vrcp.pop %v9100
        %v9104 = vmul.f32 1.0, %v9103
        %v9105 = vmul.f32 %v9091, %v9102
        %v9106 = vmul.f32 %v9092, %v9104
        %9107 = vst [vmem:[%s622] sm:$0xff] %v9105
        %9108 = vst [vmem:[%s622 + $0x8] sm:$0xff] %v9106
        %p9109 = scmp.lt.s32.totalorder %s32, 1
        %s9110 = scalar_select %p9109, %s32, 1
        %s9111 = smul.addr %s9110, 2
        %s9112 = smul.addr %s9111, 8
        %s9113 = scalar_lea.vmem %s15, %s9112
        // Predicated region
        $region121: #{_lambda_.1} parent=79 // pred_check
          %p9114 = pneg %p370
        $region122: #{_lambda_.1} parent=79 // pred_check_branch
          %9116 = sbr.rel (%p9114) target = $region124
        $region123: #{_lambda_.1} parent=79 // pred_region
          _
        $region124: #{_lambda_.1} parent=79 // pred_fallthru
          _
      $region80: #{_lambda_.1} parent=5 // pred_fallthru
        _
      %p9117 = scmp.le.s32.totalorder 2, %s27
      // Predicated region
      $region125: #{_lambda_.1} parent=5 // pred_check
        %p9118 = pneg %p9117
      $region126: #{_lambda_.1} parent=5 // pred_check_branch
        %9120 = sbr.rel (%p9118) target = $region128
      $region127: #{_lambda_.1} parent=5 // pred_region
        %s9121 = ssub.s32 %s27, 2
        // Predicated region
        $region129: #{_lambda_.1} parent=127 // pred_check
          %p9122 = pneg %p376
        $region130: #{_lambda_.1} parent=127 // pred_check_branch
          %9124 = sbr.rel (%p9122) target = $region132
        $region131: #{_lambda_.1} parent=127 // pred_region
          %p9125 = scmp.lt.s32.totalorder %s33, 1
          %s9126 = scalar_select %p9125, %s33, 1
          %s9127 = smul.addr %s9126, 2
          %s9128 = smul.addr %s9127, 8
          %s9129 = scalar_lea.vmem %s15, %s9128
        $region132: #{_lambda_.1} parent=127 // pred_fallthru
          _
      $region128: #{_lambda_.1} parent=5 // pred_fallthru
        _
    $region6: #{_lambda_.1} parent=1 // loop_footer
      %s31 = sadd.s32 1, %s27
    $region7: #{_lambda_.1} parent=1 // loop_footer_branch
      %26 = sbr.rel target = $region3
    $region8: #{_lambda_.1} parent=1 // loop_exit
      _
    %9130 = vsyncpa [#allocation3], 1
    %s9131 = scalar_lea.sflag [#allocation3], 1
    %9132 = vsyncpa %s9131, 1
    %9133 = vsyncpa [#allocation5], 1
    %9134 = vsyncpa [#allocation8], 1
    %9135 = vsyncpa [#allocation11], 1
    %9136 = vsyncpa [#allocation14], 1
    %9137 = vsyncpa [#allocation17], 1

</llo_original>
